<compile_context>
chip_gen: v5e
topology: v5e:2x2
jax: 0.10.0
libtpu: 0.0.40
codegen_flags: <defaults>
</compile_context>

<pallas_src>
import functools
import math

import jax
import jax.numpy as jnp
from jax import lax
from jax.experimental import pallas as pl
from jax.experimental.pallas import tpu as pltpu


def _round_up(x, m):
    return ((x + m - 1) // m) * m


def _detect_tpu_tuning():
    """Per-generation knobs: (vmem_limit_bytes, default tm, softmax exp dtype)."""
    try:
        kind = jax.devices()[0].device_kind.lower()
    except Exception:  # pragma: no cover - defensive
        kind = ""
    is_v5_or_v6 = ("v5" in kind) or ("v6" in kind)          # 128 MiB VMEM chips
    vmem = (100 * 1024 * 1024) if is_v5_or_v6 else (48 * 1024 * 1024)
    tm = 1024 if is_v5_or_v6 else 512
    # bf16 EUP exists on v6e / v7x only; keep f32 exp elsewhere / unknown.
    exp_dt = jnp.bfloat16 if (("v6" in kind) or ("v7" in kind) or ("7x" in kind)) else jnp.float32
    return vmem, tm, exp_dt


_VMEM_LIMIT, _DEFAULT_TM, _EXP_DTYPE = _detect_tpu_tuning()


# ----------------------------------------------------------------------------
# Pallas kernels
# ----------------------------------------------------------------------------
def _matmul_bias_kernel(x_ref, w_ref, b_ref, o_ref, *, negative_slope):
    # x: (TM, Kp) bf16, w: (Kp, TN) bf16, b: (1, TN) f32 -> o: (TM, TN)
    acc = jnp.dot(x_ref[...], w_ref[...], preferred_element_type=jnp.float32)
    acc = acc + b_ref[...]
    if negative_slope is not None:                 # fused LeakyReLU(0.2), f32 VPU
        acc = jnp.where(acc >= 0.0, acc, negative_slope * acc)
    o_ref[...] = acc.astype(o_ref.dtype)


def _attn_kernel(x_full_ref, x_q_ref, wq_ref, bq_ref, wkt_ref, bk_ref,
                 wv_ref, bv_ref, gamma_ref, o_ref, kt_s, v_s,
                 *, hw, hwp, exp_dtype):
    # x_full: (1, HWp, C) bf16 (per-batch, resident), x_q: (1, TQ, C) bf16,
    # wq: (C, C8), wkt: (C8, C), wv: (C, C) bf16; biases f32; gamma: (1,1) SMEM.
    # Scratch: kt_s (C8, HWp) bf16 (K^T, HW lane-dense), v_s (HWp, C) bf16.
    i = pl.program_id(1)

    @pl.when(i == 0)                               # build K^T / V once per batch
    def _():
        xf = x_full_ref[0]                                         # (HWp, C)
        # K^T[c8, j] = sum_c Wk[c8, c] * x[j, c]  -> lane-dense over HW.
        kt = lax.dot_general(wkt_ref[...], xf, (((1,), (1,)), ((), ())),
                             preferred_element_type=jnp.float32)   # (C8, HWp)
        kt_s[...] = (kt + bk_ref[...]).astype(kt_s.dtype)
        v = jnp.dot(xf, wv_ref[...], preferred_element_type=jnp.float32)
        v_s[...] = (v + bv_ref[...]).astype(v_s.dtype)             # (HWp, C)

    xq = x_q_ref[0]                                                # (TQ, C) bf16
    q = (jnp.dot(xq, wq_ref[...], preferred_element_type=jnp.float32)
         + bq_ref[...]).astype(jnp.bfloat16)                       # (TQ, C8)
    s = jnp.dot(q, kt_s[...], preferred_element_type=jnp.float32)  # (TQ, HWp)
    if hwp != hw:                                  # mask padded key columns
        col = lax.broadcasted_iota(jnp.int32, s.shape, 1)
        s = jnp.where(col < hw, s, jnp.float32(-1e30))
    m = jnp.max(s, axis=-1, keepdims=True)
    e = jnp.exp((s - m).astype(exp_dtype))         # bf16 exp on v6e/v7x EUP
    l = jnp.sum(e.astype(jnp.float32), axis=-1, keepdims=True)
    inv = pl.reciprocal(l, approx=True)
    p = (e * inv.astype(e.dtype)).astype(jnp.bfloat16)             # (TQ, HWp)
    out = jnp.dot(p, v_s[...], preferred_element_type=jnp.float32)  # (TQ, C)
    o_ref[0] = (gamma_ref[0, 0] * out + xq.astype(jnp.float32)).astype(o_ref.dtype)


def _head_kernel(xf_ref, cp_ref, wu_ref, bu_ref, o_ref, acc_ref):
    # Streamed pure-VPU reduction over F:
    #   out = sum_f xf * (cproj + wu) + bu    (uncond matmul folded elementwise)
    f = pl.program_id(0)

    @pl.when(f == 0)
    def _():
        acc_ref[...] = jnp.zeros_like(acc_ref)

    contrib = xf_ref[...] * (cp_ref[...] + wu_ref[...])            # (B, TF)
    acc_ref[...] += jnp.sum(contrib, axis=-1, keepdims=True)       # (B, 1)

    @pl.when(f == pl.num_programs(0) - 1)
    def _():
        o_ref[...] = (acc_ref[...] + bu_ref[...]).astype(o_ref.dtype)


# ----------------------------------------------------------------------------
# Glue: tiled matmul, im2col (bf16), conv, fused attention, head wrappers
# ----------------------------------------------------------------------------
def fused_matmul(x, w, b, negative_slope=None, out_dtype=jnp.float32,
                 tm=None, tn=256):
    """x:(M,K) @ w:(K,N) + b:(N,), optional LeakyReLU. bf16 MXU, f32 accumulate."""
    M, K = x.shape
    N = w.shape[1]
    tm = _DEFAULT_TM if tm is None else tm
    tm = tm if M > tm else _round_up(M, 16)
    tn = tn if N > tn else _round_up(N, 128)
    Mp, Kp, Np = _round_up(M, tm), _round_up(K, 128), _round_up(N, tn)

    # v7x has 2 TensorCores: a (1,1) grid idles one of them -> split a tile.
    if Mp // tm == 1 and Np // tn == 1:
        if Np >= 256 and (Np // 2) % 128 == 0:
            tn = Np // 2
        elif Mp >= 32 and (Mp // 2) % 16 == 0:
            tm = Mp // 2

    xp = x if (Mp == M and Kp == K) else jnp.pad(x, ((0, Mp - M), (0, Kp - K)))
    xp = xp.astype(jnp.bfloat16)
    wp = w if (Kp == K and Np == N) else jnp.pad(w, ((0, Kp - K), (0, Np - N)))
    wp = wp.astype(jnp.bfloat16)
    bp = (b if Np == N else jnp.pad(b, ((0, Np - N),))).reshape(1, Np).astype(jnp.float32)

    kern = functools.partial(_matmul_bias_kernel, negative_slope=negative_slope)
    out = pl.pallas_call(
        kern,
        out_shape=jax.ShapeDtypeStruct((Mp, Np), out_dtype),
        grid=(Mp // tm, Np // tn),
        in_specs=[
            pl.BlockSpec((tm, Kp), lambda i, j: (i, 0)),
            pl.BlockSpec((Kp, tn), lambda i, j: (0, j)),
            pl.BlockSpec((1, tn), lambda i, j: (0, j)),
        ],
        out_specs=pl.BlockSpec((tm, tn), lambda i, j: (i, j)),
        compiler_params=pltpu.CompilerParams(
            dimension_semantics=("parallel", "parallel"),
            vmem_limit_bytes=_VMEM_LIMIT),
    )(xp, wp, bp)
    if Mp != M or Np != N:
        out = out[:M, :N]
    return out


def im2col_nhwc(x, k, stride, pad):
    """x: (B,H,W,C) -> ((B*Ho*Wo, k*k*C), Ho, Wo); column order (kh, kw, C)."""
    B, H, W, C = x.shape
    xp = jnp.pad(x, ((0, 0), (pad, pad), (pad, pad), (0, 0)))
    Hp, Wp = H + 2 * pad, W + 2 * pad
    Ho = (Hp - k) // stride + 1
    Wo = (Wp - k) // stride + 1
    patches = []
    for di in range(k):
        for dj in range(k):
            patches.append(
                xp[:, di:di + stride * (Ho - 1) + 1:stride,
                      dj:dj + stride * (Wo - 1) + 1:stride, :])
    p = jnp.stack(patches, axis=3)                    # (B, Ho, Wo, k*k, C)
    return p.reshape(B * Ho * Wo, k * k * C), Ho, Wo


def conv2d_nhwc(x, w, b, stride, pad, negative_slope=None, out_dtype=jnp.bfloat16):
    """x: (B,H,W,Cin), w: (Cout,Cin,kh,kw) torch layout -> (B,Ho,Wo,Cout)."""
    # TODO(synk): fold im2col into the matmul kernel (tap reduction grid axis with
    # shifted activation slabs) to avoid the k*k HBM expansion of the patch stack.
    B = x.shape[0]
    Cout, Cin, kh, kw = w.shape
    # bf16 before im2col + pre-pad Cin so K = kh*kw*Cin_p is already 128-aligned.
    cin_step = max(1, 128 // math.gcd(kh * kw, 128))
    Cin_p = _round_up(Cin, cin_step)
    xb = x.astype(jnp.bfloat16)
    if Cin_p != Cin:
        xb = jnp.pad(xb, ((0, 0), (0, 0), (0, 0), (0, Cin_p - Cin)))
    cols, Ho, Wo = im2col_nhwc(xb, kh, stride, pad)
    wmat = w.transpose(2, 3, 1, 0)                    # (kh, kw, Cin, Cout)
    if Cin_p != Cin:
        wmat = jnp.pad(wmat, ((0, 0), (0, 0), (0, Cin_p - Cin), (0, 0)))
    wmat = wmat.reshape(kh * kw * Cin_p, Cout)
    out = fused_matmul(cols, wmat, b, negative_slope, out_dtype=out_dtype)
    return out.reshape(B, Ho, Wo, Cout)


def self_attention(x, p, out_dtype=jnp.bfloat16, tq_max=256):
    """Fused SelfAttention on NHWC x: q/k/v 1x1 convs + softmax + residual."""
    B, H, W, C = x.shape
    HW = H * W
    C8 = C // 8
    tq = min(tq_max, _round_up(HW, 8))
    HWp = _round_up(HW, tq)

    xr = x.reshape(B, HW, C).astype(jnp.bfloat16)
    if HWp != HW:
        xr = jnp.pad(xr, ((0, 0), (0, HWp - HW), (0, 0)))

    wq_t = p['wq'].reshape(C8, C).T.astype(jnp.bfloat16)     # (C, C8)
    wkt = p['wk'].reshape(C8, C).astype(jnp.bfloat16)        # (C8, C) -> K^T direct
    wv_t = p['wv'].reshape(C, C).T.astype(jnp.bfloat16)      # (C, C)
    bq = p['bq'].reshape(1, C8).astype(jnp.float32)
    bk = p['bk'].reshape(C8, 1).astype(jnp.float32)
    bv = p['bv'].reshape(1, C).astype(jnp.float32)
    gamma = p['gamma'].reshape(1, 1).astype(jnp.float32)

    kern = functools.partial(_attn_kernel, hw=HW, hwp=HWp, exp_dtype=_EXP_DTYPE)
    out = pl.pallas_call(
        kern,
        out_shape=jax.ShapeDtypeStruct((B, HWp, C), out_dtype),
        grid=(B, HWp // tq),
        in_specs=[
            pl.BlockSpec((1, HWp, C), lambda b, i: (b, 0, 0)),   # full x (K/V build)
            pl.BlockSpec((1, tq, C), lambda b, i: (b, i, 0)),    # query tile of x
            pl.BlockSpec((C, C8), lambda b, i: (0, 0)),
            pl.BlockSpec((1, C8), lambda b, i: (0, 0)),
            pl.BlockSpec((C8, C), lambda b, i: (0, 0)),
            pl.BlockSpec((C8, 1), lambda b, i: (0, 0)),
            pl.BlockSpec((C, C), lambda b, i: (0, 0)),
            pl.BlockSpec((1, C), lambda b, i: (0, 0)),
            pl.BlockSpec(memory_space=pltpu.MemorySpace.SMEM),
        ],
        out_specs=pl.BlockSpec((1, tq, C), lambda b, i: (b, i, 0)),
        scratch_shapes=[pltpu.VMEM((C8, HWp), jnp.bfloat16),     # K^T, lane=HW
                        pltpu.VMEM((HWp, C), jnp.bfloat16)],     # V
        compiler_params=pltpu.CompilerParams(
            dimension_semantics=("parallel", "arbitrary"),
            vmem_limit_bytes=_VMEM_LIMIT),
    )(xr, xr, wq_t, bq, wkt, bk, wv_t, bv, gamma)
    if HWp != HW:
        out = out[:, :HW, :]
    return out.reshape(B, H, W, C)


def head(x_flat, c, params):
    """uncond_fc(x_flat) + sum(x_flat * embed_proj(c)) ; F streamed, pure VPU."""
    B, F = x_flat.shape
    # cond projection once on the MXU (instead of per-F-tile inside the kernel).
    cproj = fused_matmul(c, params['embed_w'], params['embed_b'],
                         out_dtype=jnp.float32)                    # (B, F)

    tf = 512 if F > 512 else _round_up(F, 128)
    Fp = _round_up(F, tf)
    xfp = x_flat if Fp == F else jnp.pad(x_flat, ((0, 0), (0, Fp - F)))
    cpp = cproj if Fp == F else jnp.pad(cproj, ((0, 0), (0, Fp - F)))
    wu = params['uncond_w'].reshape(1, F)
    wu = wu if Fp == F else jnp.pad(wu, ((0, 0), (0, Fp - F)))
    bu = params['uncond_b'].reshape(1, 1)

    return pl.pallas_call(
        _head_kernel,
        out_shape=jax.ShapeDtypeStruct((B, 1), jnp.float32),
        grid=(Fp // tf,),
        in_specs=[
            pl.BlockSpec((B, tf), lambda f: (0, f)),     # x_flat tile
            pl.BlockSpec((B, tf), lambda f: (0, f)),     # cproj tile
            pl.BlockSpec((1, tf), lambda f: (0, f)),     # uncond_w tile
            pl.BlockSpec((1, 1), lambda f: (0, 0)),      # uncond_b
        ],
        out_specs=pl.BlockSpec((B, 1), lambda f: (0, 0)),
        scratch_shapes=[pltpu.VMEM((B, 1), jnp.float32)],
        compiler_params=pltpu.CompilerParams(
            dimension_semantics=("arbitrary",),
            vmem_limit_bytes=_VMEM_LIMIT),
    )(xfp, cpp, wu, bu)


def forward(params, x, c):
    """EnhancedDiscriminator.forward: returns (final_out (B,1), features NCHW, [])."""
    # Dropout2d(p=0.0) layers are identities and therefore omitted.
    h = x.transpose(0, 2, 3, 1)                         # NCHW -> NHWC once
    h = conv2d_nhwc(h, params['c1_w'], params['c1_b'], 1, 1, 0.2)
    h = conv2d_nhwc(h, params['c2_w'], params['c2_b'], 2, 1, 0.2)
    h = conv2d_nhwc(h, params['c3_w'], params['c3_b'], 2, 1, 0.2)
    h = self_attention(h, params['attn1'], out_dtype=jnp.bfloat16)
    h = conv2d_nhwc(h, params['c4_w'], params['c4_b'], 2, 1, 0.2)
    h = self_attention(h, params['attn2'], out_dtype=jnp.float32)  # final features f32
    B = x.shape[0]
    h_nchw = h.transpose(0, 3, 1, 2)                    # NCHW (torch flatten order)
    x_flat = h_nchw.reshape(B, -1)
    final_out = head(x_flat, c, params)
    return final_out, h_nchw, []


# ----------------------------------------------------------------------------
# Deterministic parameter initialization
# ----------------------------------------------------------------------------
def spectral_normalize(w, iters=30):
    """W / sigma_max(W.reshape(Cout,-1)); deterministic power iteration (glue)."""
    # TODO(synk): PyTorch spectral_norm does 1 iteration/forward with a persisted
    # random u; this converged approximation differs slightly.
    w2 = w.reshape(w.shape[0], -1)
    u = jnp.ones((w2.shape[0],), w.dtype) / jnp.sqrt(jnp.float32(w2.shape[0]))
    v = None
    for _ in range(iters):
        v = w2.T @ u
        v = v / (jnp.linalg.norm(v) + 1e-12)
        u = w2 @ v
        u = u / (jnp.linalg.norm(u) + 1e-12)
    sigma = u @ (w2 @ v)
    return w / sigma


def init_params(key, in_ch, H, W, cond_dim):
    def s1(h):  # Conv2d(k=4, stride=1, pad=1)
        return h - 1

    def s2(h):  # Conv2d(k=4, stride=2, pad=1)
        return (h + 2 - 4) // 2 + 1

    Hf = s2(s2(s2(s1(H))))
    Wf = s2(s2(s2(s1(W))))
    feature_dim = 256 * Hf * Wf

    keys = iter(jax.random.split(key, 32))

    def nrm(shape, scale=0.05):
        return scale * jax.random.normal(next(keys), shape, jnp.float32)

    def conv_p(co, ci, k, sn=True):
        w = nrm((co, ci, k, k))
        if sn:
            w = spectral_normalize(w)
        b = nrm((co,), 0.01)
        return w, b

    p = {}
    p['c1_w'], p['c1_b'] = conv_p(32, in_ch, 4)
    p['c2_w'], p['c2_b'] = conv_p(64, 32, 4)
    p['c3_w'], p['c3_b'] = conv_p(128, 64, 4)
    p['c4_w'], p['c4_b'] = conv_p(256, 128, 4)

    def attn_p(C):
        wq, bq = conv_p(C // 8, C, 1, sn=False)
        wk, bk = conv_p(C // 8, C, 1, sn=False)
        wv, bv = conv_p(C, C, 1, sn=False)
        return dict(wq=wq, bq=bq, wk=wk, bk=bk, wv=wv, bv=bv,
                    gamma=jnp.zeros((1, 1), jnp.float32))  # nn.Parameter(tensor(0.0))

    p['attn1'] = attn_p(128)
    p['attn2'] = attn_p(256)

    # Linear layers stored pre-transposed: y = x @ W + b
    p['uncond_w'] = nrm((feature_dim, 1))
    p['uncond_b'] = nrm((1,), 0.01)
    p['embed_w'] = nrm((cond_dim, feature_dim))
    p['embed_b'] = nrm((feature_dim,), 0.01)
    return p


# ----------------------------------------------------------------------------
if __name__ == "__main__":
    B, Cin, H, W = 2, 3, 16, 16
    cond_dim = 64  # small stand-in for the module's default cond_dim=512

    key = jax.random.PRNGKey(0)
    kx, kc, kp = jax.random.split(key, 3)
    x = jax.random.normal(kx, (B, Cin, H, W), jnp.float32)
    c = jax.random.normal(kc, (B, cond_dim), jnp.float32)

    params = init_params(kp, Cin, H, W, cond_dim)

    final_out, feats, _ = jax.jit(forward)(params, x, c)
    jax.block_until_ready((final_out, feats))

    assert final_out.shape == (B, 1), final_out.shape
    assert feats.shape == (B, 256, 1, 1), feats.shape
    assert jnp.all(jnp.isfinite(final_out)) and jnp.all(jnp.isfinite(feats))
    print("KERNEL_OK")
</pallas_src>

<mosaic_0001>
module attributes {stable_mosaic.version = 11 : i64} {
  func.func @_matmul_bias_kernel(%arg0: i32, %arg1: i32, %arg2: memref<464x128xbf16, #tpu.memory_space<vmem>>, %arg3: memref<128x128xbf16, #tpu.memory_space<vmem>>, %arg4: memref<1x128xf32, #tpu.memory_space<vmem>>, %arg5: memref<464x128xbf16, #tpu.memory_space<vmem>>) attributes {dimension_semantics = [#tpu.dimension_semantics<parallel>, #tpu.dimension_semantics<parallel>], iteration_bounds = array<i64: 1, 1>, scalar_prefetch = 0 : i64, scratch_operands = 0 : i64, tpu.core_type = #tpu.core_type<tc>, window_params = [{transform_indices = @transform_0, window_bounds = array<i64: 464, 128>}, {transform_indices = @transform_1, window_bounds = array<i64: 128, 128>}, {transform_indices = @transform_2, window_bounds = array<i64: 1, 128>}, {transform_indices = @transform_3, window_bounds = array<i64: 464, 128>}]} {
    %c0 = arith.constant 0 : index
    %c0_0 = arith.constant 0 : index
    %0 = vector.load %arg2[%c0, %c0_0] : memref<464x128xbf16, #tpu.memory_space<vmem>>, vector<464x128xbf16>
    %c0_1 = arith.constant 0 : index
    %c0_2 = arith.constant 0 : index
    %1 = vector.load %arg3[%c0_1, %c0_2] : memref<128x128xbf16, #tpu.memory_space<vmem>>, vector<128x128xbf16>
    %cst = arith.constant dense<0.000000e+00> : vector<464x128xf32>
    %2 = tpu.matmul %0, %1, %cst {dimension_numbers = #tpu.dot_dimension_numbers<[1], [0], [0], [1], [0, 0, 1, 1], [], []>} : vector<464x128xbf16>, vector<128x128xbf16>, vector<464x128xf32> -> vector<464x128xf32>
    %c0_3 = arith.constant 0 : index
    %c0_4 = arith.constant 0 : index
    %3 = vector.load %arg4[%c0_3, %c0_4] : memref<1x128xf32, #tpu.memory_space<vmem>>, vector<1x128xf32>
    %4 = vector.broadcast %3 : vector<1x128xf32> to vector<464x128xf32>
    %5 = arith.addf %2, %4 : vector<464x128xf32>
    %cst_5 = arith.constant 0.000000e+00 : f32
    %6 = vector.broadcast %cst_5 : f32 to vector<464x128xf32>
    %7 = arith.cmpf oge, %5, %6 : vector<464x128xf32>
    %cst_6 = arith.constant 2.000000e-01 : f32
    %8 = vector.broadcast %cst_6 : f32 to vector<464x128xf32>
    %9 = arith.mulf %8, %5 : vector<464x128xf32>
    %10 = arith.select %7, %5, %9 : vector<464x128xi1>, vector<464x128xf32>
    %11 = arith.truncf %10 : vector<464x128xf32> to vector<464x128xbf16>
    %c0_7 = arith.constant 0 : index
    %c0_8 = arith.constant 0 : index
    %12 = vector.load %arg5[%c0_7, %c0_8] : memref<464x128xbf16, #tpu.memory_space<vmem>>, vector<464x128xbf16>
    tpu.vector_store %arg5[%c0_7, %c0_8], %11 {strides = array<i32>} : memref<464x128xbf16, #tpu.memory_space<vmem>>, vector<464x128xbf16>,
    return
  }
  func.func @transform_0(%arg0: i32, %arg1: i32) -> (i32, i32) {
    %c0_i32 = arith.constant 0 : i32
    %c0_i32_0 = arith.constant 0 : i32
    return %arg0, %c0_i32 : i32, i32
  }
  func.func @transform_1(%arg0: i32, %arg1: i32) -> (i32, i32) {
    %c0_i32 = arith.constant 0 : i32
    %c0_i32_0 = arith.constant 0 : i32
    return %c0_i32, %arg1 : i32, i32
  }
  func.func @transform_2(%arg0: i32, %arg1: i32) -> (i32, i32) {
    %c0_i32 = arith.constant 0 : i32
    %c0_i32_0 = arith.constant 0 : i32
    return %c0_i32, %arg1 : i32, i32
  }
  func.func @transform_3(%arg0: i32, %arg1: i32) -> (i32, i32) {
    %c0_i32 = arith.constant 0 : i32
    return %arg0, %arg1 : i32, i32
  }
}

module attributes {stable_mosaic.version = 11 : i64} {
  func.func @_matmul_bias_kernel(%arg0: i32, %arg1: i32, %arg2: memref<112x512xbf16, #tpu.memory_space<vmem>>, %arg3: memref<512x128xbf16, #tpu.memory_space<vmem>>, %arg4: memref<1x128xf32, #tpu.memory_space<vmem>>, %arg5: memref<112x128xbf16, #tpu.memory_space<vmem>>) attributes {dimension_semantics = [#tpu.dimension_semantics<parallel>, #tpu.dimension_semantics<parallel>], iteration_bounds = array<i64: 1, 1>, scalar_prefetch = 0 : i64, scratch_operands = 0 : i64, tpu.core_type = #tpu.core_type<tc>, window_params = [{transform_indices = @transform_0, window_bounds = array<i64: 112, 512>}, {transform_indices = @transform_1, window_bounds = array<i64: 512, 128>}, {transform_indices = @transform_2, window_bounds = array<i64: 1, 128>}, {transform_indices = @transform_3, window_bounds = array<i64: 112, 128>}]} {
    %c0 = arith.constant 0 : index
    %c0_0 = arith.constant 0 : index
    %0 = vector.load %arg2[%c0, %c0_0] : memref<112x512xbf16, #tpu.memory_space<vmem>>, vector<112x512xbf16>
    %c0_1 = arith.constant 0 : index
    %c0_2 = arith.constant 0 : index
    %1 = vector.load %arg3[%c0_1, %c0_2] : memref<512x128xbf16, #tpu.memory_space<vmem>>, vector<512x128xbf16>
    %cst = arith.constant dense<0.000000e+00> : vector<112x128xf32>
    %2 = tpu.matmul %0, %1, %cst {dimension_numbers = #tpu.dot_dimension_numbers<[1], [0], [0], [1], [0, 0, 1, 1], [], []>} : vector<112x512xbf16>, vector<512x128xbf16>, vector<112x128xf32> -> vector<112x128xf32>
    %c0_3 = arith.constant 0 : index
    %c0_4 = arith.constant 0 : index
    %3 = vector.load %arg4[%c0_3, %c0_4] : memref<1x128xf32, #tpu.memory_space<vmem>>, vector<1x128xf32>
    %4 = vector.broadcast %3 : vector<1x128xf32> to vector<112x128xf32>
    %5 = arith.addf %2, %4 : vector<112x128xf32>
    %cst_5 = arith.constant 0.000000e+00 : f32
    %6 = vector.broadcast %cst_5 : f32 to vector<112x128xf32>
    %7 = arith.cmpf oge, %5, %6 : vector<112x128xf32>
    %cst_6 = arith.constant 2.000000e-01 : f32
    %8 = vector.broadcast %cst_6 : f32 to vector<112x128xf32>
    %9 = arith.mulf %8, %5 : vector<112x128xf32>
    %10 = arith.select %7, %5, %9 : vector<112x128xi1>, vector<112x128xf32>
    %11 = arith.truncf %10 : vector<112x128xf32> to vector<112x128xbf16>
    %c0_7 = arith.constant 0 : index
    %c0_8 = arith.constant 0 : index
    %12 = vector.load %arg5[%c0_7, %c0_8] : memref<112x128xbf16, #tpu.memory_space<vmem>>, vector<112x128xbf16>
    tpu.vector_store %arg5[%c0_7, %c0_8], %11 {strides = array<i32>} : memref<112x128xbf16, #tpu.memory_space<vmem>>, vector<112x128xbf16>,
    return
  }
  func.func @transform_0(%arg0: i32, %arg1: i32) -> (i32, i32) {
    %c0_i32 = arith.constant 0 : i32
    %c0_i32_0 = arith.constant 0 : i32
    return %arg0, %c0_i32 : i32, i32
  }
  func.func @transform_1(%arg0: i32, %arg1: i32) -> (i32, i32) {
    %c0_i32 = arith.constant 0 : i32
    %c0_i32_0 = arith.constant 0 : i32
    return %c0_i32, %arg1 : i32, i32
  }
  func.func @transform_2(%arg0: i32, %arg1: i32) -> (i32, i32) {
    %c0_i32 = arith.constant 0 : i32
    %c0_i32_0 = arith.constant 0 : i32
    return %c0_i32, %arg1 : i32, i32
  }
  func.func @transform_3(%arg0: i32, %arg1: i32) -> (i32, i32) {
    %c0_i32 = arith.constant 0 : i32
    return %arg0, %arg1 : i32, i32
  }
}

module attributes {stable_mosaic.version = 11 : i64} {
  func.func @_matmul_bias_kernel(%arg0: i32, %arg1: i32, %arg2: memref<16x1024xbf16, #tpu.memory_space<vmem>>, %arg3: memref<1024x128xbf16, #tpu.memory_space<vmem>>, %arg4: memref<1x128xf32, #tpu.memory_space<vmem>>, %arg5: memref<16x128xbf16, #tpu.memory_space<vmem>>) attributes {dimension_semantics = [#tpu.dimension_semantics<parallel>, #tpu.dimension_semantics<parallel>], iteration_bounds = array<i64: 2, 1>, scalar_prefetch = 0 : i64, scratch_operands = 0 : i64, tpu.core_type = #tpu.core_type<tc>, window_params = [{transform_indices = @transform_0, window_bounds = array<i64: 16, 1024>}, {transform_indices = @transform_1, window_bounds = array<i64: 1024, 128>}, {transform_indices = @transform_2, window_bounds = array<i64: 1, 128>}, {transform_indices = @transform_3, window_bounds = array<i64: 16, 128>}]} {
    %c0 = arith.constant 0 : index
    %c0_0 = arith.constant 0 : index
    %0 = vector.load %arg2[%c0, %c0_0] : memref<16x1024xbf16, #tpu.memory_space<vmem>>, vector<16x1024xbf16>
    %c0_1 = arith.constant 0 : index
    %c0_2 = arith.constant 0 : index
    %1 = vector.load %arg3[%c0_1, %c0_2] : memref<1024x128xbf16, #tpu.memory_space<vmem>>, vector<1024x128xbf16>
    %cst = arith.constant dense<0.000000e+00> : vector<16x128xf32>
    %2 = tpu.matmul %0, %1, %cst {dimension_numbers = #tpu.dot_dimension_numbers<[1], [0], [0], [1], [0, 0, 1, 1], [], []>} : vector<16x1024xbf16>, vector<1024x128xbf16>, vector<16x128xf32> -> vector<16x128xf32>
    %c0_3 = arith.constant 0 : index
    %c0_4 = arith.constant 0 : index
    %3 = vector.load %arg4[%c0_3, %c0_4] : memref<1x128xf32, #tpu.memory_space<vmem>>, vector<1x128xf32>
    %4 = vector.broadcast %3 : vector<1x128xf32> to vector<16x128xf32>
    %5 = arith.addf %2, %4 : vector<16x128xf32>
    %cst_5 = arith.constant 0.000000e+00 : f32
    %6 = vector.broadcast %cst_5 : f32 to vector<16x128xf32>
    %7 = arith.cmpf oge, %5, %6 : vector<16x128xf32>
    %cst_6 = arith.constant 2.000000e-01 : f32
    %8 = vector.broadcast %cst_6 : f32 to vector<16x128xf32>
    %9 = arith.mulf %8, %5 : vector<16x128xf32>
    %10 = arith.select %7, %5, %9 : vector<16x128xi1>, vector<16x128xf32>
    %11 = arith.truncf %10 : vector<16x128xf32> to vector<16x128xbf16>
    %c0_7 = arith.constant 0 : index
    %c0_8 = arith.constant 0 : index
    %12 = vector.load %arg5[%c0_7, %c0_8] : memref<16x128xbf16, #tpu.memory_space<vmem>>, vector<16x128xbf16>
    tpu.vector_store %arg5[%c0_7, %c0_8], %11 {strides = array<i32>} : memref<16x128xbf16, #tpu.memory_space<vmem>>, vector<16x128xbf16>,
    return
  }
  func.func @transform_0(%arg0: i32, %arg1: i32) -> (i32, i32) {
    %c0_i32 = arith.constant 0 : i32
    %c0_i32_0 = arith.constant 0 : i32
    return %arg0, %c0_i32 : i32, i32
  }
  func.func @transform_1(%arg0: i32, %arg1: i32) -> (i32, i32) {
    %c0_i32 = arith.constant 0 : i32
    %c0_i32_0 = arith.constant 0 : i32
    return %c0_i32, %arg1 : i32, i32
  }
  func.func @transform_2(%arg0: i32, %arg1: i32) -> (i32, i32) {
    %c0_i32 = arith.constant 0 : i32
    %c0_i32_0 = arith.constant 0 : i32
    return %c0_i32, %arg1 : i32, i32
  }
  func.func @transform_3(%arg0: i32, %arg1: i32) -> (i32, i32) {
    %c0_i32 = arith.constant 0 : i32
    return %arg0, %arg1 : i32, i32
  }
}

module attributes {stable_mosaic.version = 11 : i64} {
  func.func @_attn_kernel(%arg0: i32, %arg1: i32, %arg2: memref<1x16x128xbf16, #tpu.memory_space<vmem>>, %arg3: memref<1x16x128xbf16, #tpu.memory_space<vmem>>, %arg4: memref<128x16xbf16, #tpu.memory_space<vmem>>, %arg5: memref<1x16xf32, #tpu.memory_space<vmem>>, %arg6: memref<16x128xbf16, #tpu.memory_space<vmem>>, %arg7: memref<16x1xf32, #tpu.memory_space<vmem>>, %arg8: memref<128x128xbf16, #tpu.memory_space<vmem>>, %arg9: memref<1x128xf32, #tpu.memory_space<vmem>>, %arg10: memref<1x1xf32, #tpu.memory_space<smem>>, %arg11: memref<1x16x128xbf16, #tpu.memory_space<vmem>>, %arg12: memref<16x16xbf16, #tpu.memory_space<vmem>>, %arg13: memref<16x128xbf16, #tpu.memory_space<vmem>>) attributes {dimension_semantics = [#tpu.dimension_semantics<parallel>, #tpu.dimension_semantics<arbitrary>], iteration_bounds = array<i64: 2, 1>, scalar_prefetch = 0 : i64, scratch_operands = 2 : i64, tpu.core_type = #tpu.core_type<tc>, window_params = [{transform_indices = @transform_0, window_bounds = array<i64: 1, 16, 128>}, {transform_indices = @transform_1, window_bounds = array<i64: 1, 16, 128>}, {pipeline_mode = #tpu.pipeline_mode<synchronous>, transform_indices = @transform_2, window_bounds = array<i64: 128, 16>}, {pipeline_mode = #tpu.pipeline_mode<synchronous>, transform_indices = @transform_3, window_bounds = array<i64: 1, 16>}, {pipeline_mode = #tpu.pipeline_mode<synchronous>, transform_indices = @transform_4, window_bounds = array<i64: 16, 128>}, {pipeline_mode = #tpu.pipeline_mode<synchronous>, transform_indices = @transform_5, window_bounds = array<i64: 16, 1>}, {pipeline_mode = #tpu.pipeline_mode<synchronous>, transform_indices = @transform_6, window_bounds = array<i64: 128, 128>}, {pipeline_mode = #tpu.pipeline_mode<synchronous>, transform_indices = @transform_7, window_bounds = array<i64: 1, 128>}, {transform_indices = @transform_8, window_bounds = array<i64: 1, 1>}, {transform_indices = @transform_9, window_bounds = array<i64: 1, 16, 128>}]} {
    %c0_i32 = arith.constant 0 : i32
    %0 = arith.cmpi eq, %arg1, %c0_i32 : i32
    %1 = arith.extui %0 : i1 to i32
    %c0_i32_0 = arith.constant 0 : i32
    %2 = arith.cmpi ne, %1, %c0_i32_0 : i32
    scf.if %2 {
      %c0_21 = arith.constant 0 : index
      %c0_22 = arith.constant 0 : index
      %c0_23 = arith.constant 0 : index
      %40 = vector.load %arg2[%c0_21, %c0_22, %c0_23] : memref<1x16x128xbf16, #tpu.memory_space<vmem>>, vector<1x16x128xbf16>
      %41 = vector.shape_cast %40 : vector<1x16x128xbf16> to vector<16x128xbf16>
      %c0_24 = arith.constant 0 : index
      %c0_25 = arith.constant 0 : index
      %42 = vector.load %arg6[%c0_24, %c0_25] : memref<16x128xbf16, #tpu.memory_space<vmem>>, vector<16x128xbf16>
      %cst_26 = arith.constant dense<0.000000e+00> : vector<16x16xf32>
      %43 = tpu.matmul %42, %41, %cst_26 {dimension_numbers = #tpu.dot_dimension_numbers<[1], [1], [0], [0], [0, 0, 1, 0], [], []>} : vector<16x128xbf16>, vector<16x128xbf16>, vector<16x16xf32> -> vector<16x16xf32>
      %c0_27 = arith.constant 0 : index
      %c0_28 = arith.constant 0 : index
      %44 = vector.load %arg7[%c0_27, %c0_28] : memref<16x1xf32, #tpu.memory_space<vmem>>, vector<16x1xf32>
      %45 = vector.broadcast %44 : vector<16x1xf32> to vector<16x16xf32>
      %46 = arith.addf %43, %45 : vector<16x16xf32>
      %47 = arith.truncf %46 : vector<16x16xf32> to vector<16x16xbf16>
      %c0_29 = arith.constant 0 : index
      %c0_30 = arith.constant 0 : index
      %48 = vector.load %arg12[%c0_29, %c0_30] : memref<16x16xbf16, #tpu.memory_space<vmem>>, vector<16x16xbf16>
      tpu.vector_store %arg12[%c0_29, %c0_30], %47 {strides = array<i32>} : memref<16x16xbf16, #tpu.memory_space<vmem>>, vector<16x16xbf16>,
      %c0_31 = arith.constant 0 : index
      %c0_32 = arith.constant 0 : index
      %49 = vector.load %arg8[%c0_31, %c0_32] : memref<128x128xbf16, #tpu.memory_space<vmem>>, vector<128x128xbf16>
      %cst_33 = arith.constant dense<0.000000e+00> : vector<16x128xf32>
      %50 = tpu.matmul %41, %49, %cst_33 {dimension_numbers = #tpu.dot_dimension_numbers<[1], [0], [0], [1], [0, 0, 1, 1], [], []>} : vector<16x128xbf16>, vector<128x128xbf16>, vector<16x128xf32> -> vector<16x128xf32>
      %c0_34 = arith.constant 0 : index
      %c0_35 = arith.constant 0 : index
      %51 = vector.load %arg9[%c0_34, %c0_35] : memref<1x128xf32, #tpu.memory_space<vmem>>, vector<1x128xf32>
      %52 = vector.broadcast %51 : vector<1x128xf32> to vector<16x128xf32>
      %53 = arith.addf %50, %52 : vector<16x128xf32>
      %54 = arith.truncf %53 : vector<16x128xf32> to vector<16x128xbf16>
      %c0_36 = arith.constant 0 : index
      %c0_37 = arith.constant 0 : index
      %55 = vector.load %arg13[%c0_36, %c0_37] : memref<16x128xbf16, #tpu.memory_space<vmem>>, vector<16x128xbf16>
      tpu.vector_store %arg13[%c0_36, %c0_37], %54 {strides = array<i32>} : memref<16x128xbf16, #tpu.memory_space<vmem>>, vector<16x128xbf16>,
    } else {
    }
    %c0 = arith.constant 0 : index
    %c0_1 = arith.constant 0 : index
    %c0_2 = arith.constant 0 : index
    %3 = vector.load %arg3[%c0, %c0_1, %c0_2] : memref<1x16x128xbf16, #tpu.memory_space<vmem>>, vector<1x16x128xbf16>
    %4 = vector.shape_cast %3 : vector<1x16x128xbf16> to vector<16x128xbf16>
    %c0_3 = arith.constant 0 : index
    %c0_4 = arith.constant 0 : index
    %5 = vector.load %arg4[%c0_3, %c0_4] : memref<128x16xbf16, #tpu.memory_space<vmem>>, vector<128x16xbf16>
    %cst = arith.constant dense<0.000000e+00> : vector<16x16xf32>
    %6 = tpu.matmul %4, %5, %cst {dimension_numbers = #tpu.dot_dimension_numbers<[1], [0], [0], [1], [0, 0, 1, 1], [], []>} : vector<16x128xbf16>, vector<128x16xbf16>, vector<16x16xf32> -> vector<16x16xf32>
    %c0_5 = arith.constant 0 : index
    %c0_6 = arith.constant 0 : index
    %7 = vector.load %arg5[%c0_5, %c0_6] : memref<1x16xf32, #tpu.memory_space<vmem>>, vector<1x16xf32>
    %8 = vector.broadcast %7 : vector<1x16xf32> to vector<16x16xf32>
    %9 = arith.addf %6, %8 : vector<16x16xf32>
    %10 = arith.truncf %9 : vector<16x16xf32> to vector<16x16xbf16>
    %c0_7 = arith.constant 0 : index
    %c0_8 = arith.constant 0 : index
    %11 = vector.load %arg12[%c0_7, %c0_8] : memref<16x16xbf16, #tpu.memory_space<vmem>>, vector<16x16xbf16>
    %cst_9 = arith.constant dense<0.000000e+00> : vector<16x16xf32>
    %12 = tpu.matmul %10, %11, %cst_9 {dimension_numbers = #tpu.dot_dimension_numbers<[1], [0], [0], [1], [0, 0, 1, 1], [], []>} : vector<16x16xbf16>, vector<16x16xbf16>, vector<16x16xf32> -> vector<16x16xf32>
    %13 = tpu.iota {dimensions = array<i32: 1>} : vector<16x16xi32>
    %c9_i32 = arith.constant 9 : i32
    %14 = vector.broadcast %c9_i32 : i32 to vector<16x16xi32>
    %15 = arith.cmpi slt, %13, %14 : vector<16x16xi32>
    %cst_10 = arith.constant -1.000000e+30 : f32
    %16 = vector.broadcast %cst_10 : f32 to vector<16x16xf32>
    %17 = arith.select %15, %12, %16 : vector<16x16xi1>, vector<16x16xf32>
    %cst_11 = arith.constant dense<0xFF800000> : vector<16xf32>
    %18 = vector.multi_reduction <maximumf>, %17, %cst_11 [1] : vector<16x16xf32> to vector<16xf32>
    %19 = vector.shape_cast %18 : vector<16xf32> to vector<16x1xf32>
    %20 = vector.broadcast %19 : vector<16x1xf32> to vector<16x16xf32>
    %21 = arith.subf %17, %20 : vector<16x16xf32>
    %22 = math.exp %21 : vector<16x16xf32>
    %cst_12 = arith.constant dense<0.000000e+00> : vector<16xf32>
    %23 = vector.multi_reduction <add>, %22, %cst_12 [1] : vector<16x16xf32> to vector<16xf32>
    %24 = vector.shape_cast %23 : vector<16xf32> to vector<16x1xf32>
    %25 = tpu.reciprocal %24 {approx = true} : vector<16x1xf32> -> vector<16x1xf32>
    %26 = vector.broadcast %25 : vector<16x1xf32> to vector<16x16xf32>
    %27 = arith.mulf %22, %26 : vector<16x16xf32>
    %28 = arith.truncf %27 : vector<16x16xf32> to vector<16x16xbf16>
    %c0_13 = arith.constant 0 : index
    %c0_14 = arith.constant 0 : index
    %29 = vector.load %arg13[%c0_13, %c0_14] : memref<16x128xbf16, #tpu.memory_space<vmem>>, vector<16x128xbf16>
    %cst_15 = arith.constant dense<0.000000e+00> : vector<16x128xf32>
    %30 = tpu.matmul %28, %29, %cst_15 {dimension_numbers = #tpu.dot_dimension_numbers<[1], [0], [0], [1], [0, 0, 1, 1], [], []>} : vector<16x16xbf16>, vector<16x128xbf16>, vector<16x128xf32> -> vector<16x128xf32>
    %c0_16 = arith.constant 0 : index
    %c0_17 = arith.constant 0 : index
    %31 = memref.load %arg10[%c0_16, %c0_17] : memref<1x1xf32, #tpu.memory_space<smem>>
    %32 = vector.broadcast %31 : f32 to vector<16x128xf32>
    %33 = arith.mulf %32, %30 : vector<16x128xf32>
    %34 = arith.extf %4 : vector<16x128xbf16> to vector<16x128xf32>
    %35 = arith.addf %33, %34 : vector<16x128xf32>
    %36 = arith.truncf %35 : vector<16x128xf32> to vector<16x128xbf16>
    %c0_18 = arith.constant 0 : index
    %c0_19 = arith.constant 0 : index
    %c0_20 = arith.constant 0 : index
    %37 = vector.load %arg11[%c0_18, %c0_19, %c0_20] : memref<1x16x128xbf16, #tpu.memory_space<vmem>>, vector<1x16x128xbf16>
    %38 = vector.shape_cast %37 : vector<1x16x128xbf16> to vector<16x128xbf16>
    %39 = vector.shape_cast %36 : vector<16x128xbf16> to vector<1x16x128xbf16>
    tpu.vector_store %arg11[%c0_18, %c0_19, %c0_20], %39 {strides = array<i32>} : memref<1x16x128xbf16, #tpu.memory_space<vmem>>, vector<1x16x128xbf16>,
    return
  }
  func.func @transform_0(%arg0: i32, %arg1: i32) -> (i32, i32, i32) {
    %c0_i32 = arith.constant 0 : i32
    %c0_i32_0 = arith.constant 0 : i32
    %c0_i32_1 = arith.constant 0 : i32
    return %arg0, %c0_i32, %c0_i32_0 : i32, i32, i32
  }
  func.func @transform_1(%arg0: i32, %arg1: i32) -> (i32, i32, i32) {
    %c0_i32 = arith.constant 0 : i32
    %c0_i32_0 = arith.constant 0 : i32
    return %arg0, %arg1, %c0_i32 : i32, i32, i32
  }
  func.func @transform_2(%arg0: i32, %arg1: i32) -> (i32, i32) {
    %c0_i32 = arith.constant 0 : i32
    %c0_i32_0 = arith.constant 0 : i32
    %c0_i32_1 = arith.constant 0 : i32
    return %c0_i32, %c0_i32_0 : i32, i32
  }
  func.func @transform_3(%arg0: i32, %arg1: i32) -> (i32, i32) {
    %c0_i32 = arith.constant 0 : i32
    %c0_i32_0 = arith.constant 0 : i32
    %c0_i32_1 = arith.constant 0 : i32
    return %c0_i32, %c0_i32_0 : i32, i32
  }
  func.func @transform_4(%arg0: i32, %arg1: i32) -> (i32, i32) {
    %c0_i32 = arith.constant 0 : i32
    %c0_i32_0 = arith.constant 0 : i32
    %c0_i32_1 = arith.constant 0 : i32
    return %c0_i32, %c0_i32_0 : i32, i32
  }
  func.func @transform_5(%arg0: i32, %arg1: i32) -> (i32, i32) {
    %c0_i32 = arith.constant 0 : i32
    %c0_i32_0 = arith.constant 0 : i32
    %c0_i32_1 = arith.constant 0 : i32
    return %c0_i32, %c0_i32_0 : i32, i32
  }
  func.func @transform_6(%arg0: i32, %arg1: i32) -> (i32, i32) {
    %c0_i32 = arith.constant 0 : i32
    %c0_i32_0 = arith.constant 0 : i32
    %c0_i32_1 = arith.constant 0 : i32
    return %c0_i32, %c0_i32_0 : i32, i32
  }
  func.func @transform_7(%arg0: i32, %arg1: i32) -> (i32, i32) {
    %c0_i32 = arith.constant 0 : i32
    %c0_i32_0 = arith.constant 0 : i32
    %c0_i32_1 = arith.constant 0 : i32
    return %c0_i32, %c0_i32_0 : i32, i32
  }
  func.func @transform_8(%arg0: i32, %arg1: i32) -> (i32, i32) {
    %c0_i32 = arith.constant 0 : i32
    %c0_i32_0 = arith.constant 0 : i32
    %c0_i32_1 = arith.constant 0 : i32
    return %c0_i32, %c0_i32_0 : i32, i32
  }
  func.func @transform_9(%arg0: i32, %arg1: i32) -> (i32, i32, i32) {
    %c0_i32 = arith.constant 0 : i32
    %c0_i32_0 = arith.constant 0 : i32
    return %arg0, %arg1, %c0_i32 : i32, i32, i32
  }
}

module attributes {stable_mosaic.version = 11 : i64} {
  func.func @_matmul_bias_kernel(%arg0: i32, %arg1: i32, %arg2: memref<16x2048xbf16, #tpu.memory_space<vmem>>, %arg3: memref<2048x128xbf16, #tpu.memory_space<vmem>>, %arg4: memref<1x128xf32, #tpu.memory_space<vmem>>, %arg5: memref<16x128xbf16, #tpu.memory_space<vmem>>) attributes {dimension_semantics = [#tpu.dimension_semantics<parallel>, #tpu.dimension_semantics<parallel>], iteration_bounds = array<i64: 1, 2>, scalar_prefetch = 0 : i64, scratch_operands = 0 : i64, tpu.core_type = #tpu.core_type<tc>, window_params = [{transform_indices = @transform_0, window_bounds = array<i64: 16, 2048>}, {transform_indices = @transform_1, window_bounds = array<i64: 2048, 128>}, {transform_indices = @transform_2, window_bounds = array<i64: 1, 128>}, {transform_indices = @transform_3, window_bounds = array<i64: 16, 128>}]} {
    %c0 = arith.constant 0 : index
    %c0_0 = arith.constant 0 : index
    %0 = vector.load %arg2[%c0, %c0_0] : memref<16x2048xbf16, #tpu.memory_space<vmem>>, vector<16x2048xbf16>
    %c0_1 = arith.constant 0 : index
    %c0_2 = arith.constant 0 : index
    %1 = vector.load %arg3[%c0_1, %c0_2] : memref<2048x128xbf16, #tpu.memory_space<vmem>>, vector<2048x128xbf16>
    %cst = arith.constant dense<0.000000e+00> : vector<16x128xf32>
    %2 = tpu.matmul %0, %1, %cst {dimension_numbers = #tpu.dot_dimension_numbers<[1], [0], [0], [1], [0, 0, 1, 1], [], []>} : vector<16x2048xbf16>, vector<2048x128xbf16>, vector<16x128xf32> -> vector<16x128xf32>
    %c0_3 = arith.constant 0 : index
    %c0_4 = arith.constant 0 : index
    %3 = vector.load %arg4[%c0_3, %c0_4] : memref<1x128xf32, #tpu.memory_space<vmem>>, vector<1x128xf32>
    %4 = vector.broadcast %3 : vector<1x128xf32> to vector<16x128xf32>
    %5 = arith.addf %2, %4 : vector<16x128xf32>
    %cst_5 = arith.constant 0.000000e+00 : f32
    %6 = vector.broadcast %cst_5 : f32 to vector<16x128xf32>
    %7 = arith.cmpf oge, %5, %6 : vector<16x128xf32>
    %cst_6 = arith.constant 2.000000e-01 : f32
    %8 = vector.broadcast %cst_6 : f32 to vector<16x128xf32>
    %9 = arith.mulf %8, %5 : vector<16x128xf32>
    %10 = arith.select %7, %5, %9 : vector<16x128xi1>, vector<16x128xf32>
    %11 = arith.truncf %10 : vector<16x128xf32> to vector<16x128xbf16>
    %c0_7 = arith.constant 0 : index
    %c0_8 = arith.constant 0 : index
    %12 = vector.load %arg5[%c0_7, %c0_8] : memref<16x128xbf16, #tpu.memory_space<vmem>>, vector<16x128xbf16>
    tpu.vector_store %arg5[%c0_7, %c0_8], %11 {strides = array<i32>} : memref<16x128xbf16, #tpu.memory_space<vmem>>, vector<16x128xbf16>,
    return
  }
  func.func @transform_0(%arg0: i32, %arg1: i32) -> (i32, i32) {
    %c0_i32 = arith.constant 0 : i32
    %c0_i32_0 = arith.constant 0 : i32
    return %arg0, %c0_i32 : i32, i32
  }
  func.func @transform_1(%arg0: i32, %arg1: i32) -> (i32, i32) {
    %c0_i32 = arith.constant 0 : i32
    %c0_i32_0 = arith.constant 0 : i32
    return %c0_i32, %arg1 : i32, i32
  }
  func.func @transform_2(%arg0: i32, %arg1: i32) -> (i32, i32) {
    %c0_i32 = arith.constant 0 : i32
    %c0_i32_0 = arith.constant 0 : i32
    return %c0_i32, %arg1 : i32, i32
  }
  func.func @transform_3(%arg0: i32, %arg1: i32) -> (i32, i32) {
    %c0_i32 = arith.constant 0 : i32
    return %arg0, %arg1 : i32, i32
  }
}

module attributes {stable_mosaic.version = 11 : i64} {
  func.func @_attn_kernel(%arg0: i32, %arg1: i32, %arg2: memref<1x8x256xbf16, #tpu.memory_space<vmem>>, %arg3: memref<1x8x256xbf16, #tpu.memory_space<vmem>>, %arg4: memref<256x32xbf16, #tpu.memory_space<vmem>>, %arg5: memref<1x32xf32, #tpu.memory_space<vmem>>, %arg6: memref<32x256xbf16, #tpu.memory_space<vmem>>, %arg7: memref<32x1xf32, #tpu.memory_space<vmem>>, %arg8: memref<256x256xbf16, #tpu.memory_space<vmem>>, %arg9: memref<1x256xf32, #tpu.memory_space<vmem>>, %arg10: memref<1x1xf32, #tpu.memory_space<smem>>, %arg11: memref<1x8x256xf32, #tpu.memory_space<vmem>>, %arg12: memref<32x8xbf16, #tpu.memory_space<vmem>>, %arg13: memref<8x256xbf16, #tpu.memory_space<vmem>>) attributes {dimension_semantics = [#tpu.dimension_semantics<parallel>, #tpu.dimension_semantics<arbitrary>], iteration_bounds = array<i64: 2, 1>, scalar_prefetch = 0 : i64, scratch_operands = 2 : i64, tpu.core_type = #tpu.core_type<tc>, window_params = [{transform_indices = @transform_0, window_bounds = array<i64: 1, 8, 256>}, {transform_indices = @transform_1, window_bounds = array<i64: 1, 8, 256>}, {pipeline_mode = #tpu.pipeline_mode<synchronous>, transform_indices = @transform_2, window_bounds = array<i64: 256, 32>}, {pipeline_mode = #tpu.pipeline_mode<synchronous>, transform_indices = @transform_3, window_bounds = array<i64: 1, 32>}, {pipeline_mode = #tpu.pipeline_mode<synchronous>, transform_indices = @transform_4, window_bounds = array<i64: 32, 256>}, {pipeline_mode = #tpu.pipeline_mode<synchronous>, transform_indices = @transform_5, window_bounds = array<i64: 32, 1>}, {pipeline_mode = #tpu.pipeline_mode<synchronous>, transform_indices = @transform_6, window_bounds = array<i64: 256, 256>}, {pipeline_mode = #tpu.pipeline_mode<synchronous>, transform_indices = @transform_7, window_bounds = array<i64: 1, 256>}, {transform_indices = @transform_8, window_bounds = array<i64: 1, 1>}, {transform_indices = @transform_9, window_bounds = array<i64: 1, 8, 256>}]} {
    %c0_i32 = arith.constant 0 : i32
    %0 = arith.cmpi eq, %arg1, %c0_i32 : i32
    %1 = arith.extui %0 : i1 to i32
    %c0_i32_0 = arith.constant 0 : i32
    %2 = arith.cmpi ne, %1, %c0_i32_0 : i32
    scf.if %2 {
      %c0_21 = arith.constant 0 : index
      %c0_22 = arith.constant 0 : index
      %c0_23 = arith.constant 0 : index
      %39 = vector.load %arg2[%c0_21, %c0_22, %c0_23] : memref<1x8x256xbf16, #tpu.memory_space<vmem>>, vector<1x8x256xbf16>
      %40 = vector.shape_cast %39 : vector<1x8x256xbf16> to vector<8x256xbf16>
      %c0_24 = arith.constant 0 : index
      %c0_25 = arith.constant 0 : index
      %41 = vector.load %arg6[%c0_24, %c0_25] : memref<32x256xbf16, #tpu.memory_space<vmem>>, vector<32x256xbf16>
      %cst_26 = arith.constant dense<0.000000e+00> : vector<32x8xf32>
      %42 = tpu.matmul %41, %40, %cst_26 {dimension_numbers = #tpu.dot_dimension_numbers<[1], [1], [0], [0], [0, 0, 1, 0], [], []>} : vector<32x256xbf16>, vector<8x256xbf16>, vector<32x8xf32> -> vector<32x8xf32>
      %c0_27 = arith.constant 0 : index
      %c0_28 = arith.constant 0 : index
      %43 = vector.load %arg7[%c0_27, %c0_28] : memref<32x1xf32, #tpu.memory_space<vmem>>, vector<32x1xf32>
      %44 = vector.broadcast %43 : vector<32x1xf32> to vector<32x8xf32>
      %45 = arith.addf %42, %44 : vector<32x8xf32>
      %46 = arith.truncf %45 : vector<32x8xf32> to vector<32x8xbf16>
      %c0_29 = arith.constant 0 : index
      %c0_30 = arith.constant 0 : index
      %47 = vector.load %arg12[%c0_29, %c0_30] : memref<32x8xbf16, #tpu.memory_space<vmem>>, vector<32x8xbf16>
      tpu.vector_store %arg12[%c0_29, %c0_30], %46 {strides = array<i32>} : memref<32x8xbf16, #tpu.memory_space<vmem>>, vector<32x8xbf16>,
      %c0_31 = arith.constant 0 : index
      %c0_32 = arith.constant 0 : index
      %48 = vector.load %arg8[%c0_31, %c0_32] : memref<256x256xbf16, #tpu.memory_space<vmem>>, vector<256x256xbf16>
      %cst_33 = arith.constant dense<0.000000e+00> : vector<8x256xf32>
      %49 = tpu.matmul %40, %48, %cst_33 {dimension_numbers = #tpu.dot_dimension_numbers<[1], [0], [0], [1], [0, 0, 1, 1], [], []>} : vector<8x256xbf16>, vector<256x256xbf16>, vector<8x256xf32> -> vector<8x256xf32>
      %c0_34 = arith.constant 0 : index
      %c0_35 = arith.constant 0 : index
      %50 = vector.load %arg9[%c0_34, %c0_35] : memref<1x256xf32, #tpu.memory_space<vmem>>, vector<1x256xf32>
      %51 = vector.broadcast %50 : vector<1x256xf32> to vector<8x256xf32>
      %52 = arith.addf %49, %51 : vector<8x256xf32>
      %53 = arith.truncf %52 : vector<8x256xf32> to vector<8x256xbf16>
      %c0_36 = arith.constant 0 : index
      %c0_37 = arith.constant 0 : index
      %54 = vector.load %arg13[%c0_36, %c0_37] : memref<8x256xbf16, #tpu.memory_space<vmem>>, vector<8x256xbf16>
      tpu.vector_store %arg13[%c0_36, %c0_37], %53 {strides = array<i32>} : memref<8x256xbf16, #tpu.memory_space<vmem>>, vector<8x256xbf16>,
    } else {
    }
    %c0 = arith.constant 0 : index
    %c0_1 = arith.constant 0 : index
    %c0_2 = arith.constant 0 : index
    %3 = vector.load %arg3[%c0, %c0_1, %c0_2] : memref<1x8x256xbf16, #tpu.memory_space<vmem>>, vector<1x8x256xbf16>
    %4 = vector.shape_cast %3 : vector<1x8x256xbf16> to vector<8x256xbf16>
    %c0_3 = arith.constant 0 : index
    %c0_4 = arith.constant 0 : index
    %5 = vector.load %arg4[%c0_3, %c0_4] : memref<256x32xbf16, #tpu.memory_space<vmem>>, vector<256x32xbf16>
    %cst = arith.constant dense<0.000000e+00> : vector<8x32xf32>
    %6 = tpu.matmul %4, %5, %cst {dimension_numbers = #tpu.dot_dimension_numbers<[1], [0], [0], [1], [0, 0, 1, 1], [], []>} : vector<8x256xbf16>, vector<256x32xbf16>, vector<8x32xf32> -> vector<8x32xf32>
    %c0_5 = arith.constant 0 : index
    %c0_6 = arith.constant 0 : index
    %7 = vector.load %arg5[%c0_5, %c0_6] : memref<1x32xf32, #tpu.memory_space<vmem>>, vector<1x32xf32>
    %8 = vector.broadcast %7 : vector<1x32xf32> to vector<8x32xf32>
    %9 = arith.addf %6, %8 : vector<8x32xf32>
    %10 = arith.truncf %9 : vector<8x32xf32> to vector<8x32xbf16>
    %c0_7 = arith.constant 0 : index
    %c0_8 = arith.constant 0 : index
    %11 = vector.load %arg12[%c0_7, %c0_8] : memref<32x8xbf16, #tpu.memory_space<vmem>>, vector<32x8xbf16>
    %cst_9 = arith.constant dense<0.000000e+00> : vector<8x8xf32>
    %12 = tpu.matmul %10, %11, %cst_9 {dimension_numbers = #tpu.dot_dimension_numbers<[1], [0], [0], [1], [0, 0, 1, 1], [], []>} : vector<8x32xbf16>, vector<32x8xbf16>, vector<8x8xf32> -> vector<8x8xf32>
    %13 = tpu.iota {dimensions = array<i32: 1>} : vector<8x8xi32>
    %c1_i32 = arith.constant 1 : i32
    %14 = vector.broadcast %c1_i32 : i32 to vector<8x8xi32>
    %15 = arith.cmpi slt, %13, %14 : vector<8x8xi32>
    %cst_10 = arith.constant -1.000000e+30 : f32
    %16 = vector.broadcast %cst_10 : f32 to vector<8x8xf32>
    %17 = arith.select %15, %12, %16 : vector<8x8xi1>, vector<8x8xf32>
    %cst_11 = arith.constant dense<0xFF800000> : vector<8xf32>
    %18 = vector.multi_reduction <maximumf>, %17, %cst_11 [1] : vector<8x8xf32> to vector<8xf32>
    %19 = vector.shape_cast %18 : vector<8xf32> to vector<8x1xf32>
    %20 = vector.broadcast %19 : vector<8x1xf32> to vector<8x8xf32>
    %21 = arith.subf %17, %20 : vector<8x8xf32>
    %22 = math.exp %21 : vector<8x8xf32>
    %cst_12 = arith.constant dense<0.000000e+00> : vector<8xf32>
    %23 = vector.multi_reduction <add>, %22, %cst_12 [1] : vector<8x8xf32> to vector<8xf32>
    %24 = vector.shape_cast %23 : vector<8xf32> to vector<8x1xf32>
    %25 = tpu.reciprocal %24 {approx = true} : vector<8x1xf32> -> vector<8x1xf32>
    %26 = vector.broadcast %25 : vector<8x1xf32> to vector<8x8xf32>
    %27 = arith.mulf %22, %26 : vector<8x8xf32>
    %28 = arith.truncf %27 : vector<8x8xf32> to vector<8x8xbf16>
    %c0_13 = arith.constant 0 : index
    %c0_14 = arith.constant 0 : index
    %29 = vector.load %arg13[%c0_13, %c0_14] : memref<8x256xbf16, #tpu.memory_space<vmem>>, vector<8x256xbf16>
    %cst_15 = arith.constant dense<0.000000e+00> : vector<8x256xf32>
    %30 = tpu.matmul %28, %29, %cst_15 {dimension_numbers = #tpu.dot_dimension_numbers<[1], [0], [0], [1], [0, 0, 1, 1], [], []>} : vector<8x8xbf16>, vector<8x256xbf16>, vector<8x256xf32> -> vector<8x256xf32>
    %c0_16 = arith.constant 0 : index
    %c0_17 = arith.constant 0 : index
    %31 = memref.load %arg10[%c0_16, %c0_17] : memref<1x1xf32, #tpu.memory_space<smem>>
    %32 = vector.broadcast %31 : f32 to vector<8x256xf32>
    %33 = arith.mulf %32, %30 : vector<8x256xf32>
    %34 = arith.extf %4 : vector<8x256xbf16> to vector<8x256xf32>
    %35 = arith.addf %33, %34 : vector<8x256xf32>
    %c0_18 = arith.constant 0 : index
    %c0_19 = arith.constant 0 : index
    %c0_20 = arith.constant 0 : index
    %36 = vector.load %arg11[%c0_18, %c0_19, %c0_20] : memref<1x8x256xf32, #tpu.memory_space<vmem>>, vector<1x8x256xf32>
    %37 = vector.shape_cast %36 : vector<1x8x256xf32> to vector<8x256xf32>
    %38 = vector.shape_cast %35 : vector<8x256xf32> to vector<1x8x256xf32>
    tpu.vector_store %arg11[%c0_18, %c0_19, %c0_20], %38 {strides = array<i32>} : memref<1x8x256xf32, #tpu.memory_space<vmem>>, vector<1x8x256xf32>,
    return
  }
  func.func @transform_0(%arg0: i32, %arg1: i32) -> (i32, i32, i32) {
    %c0_i32 = arith.constant 0 : i32
    %c0_i32_0 = arith.constant 0 : i32
    %c0_i32_1 = arith.constant 0 : i32
    return %arg0, %c0_i32, %c0_i32_0 : i32, i32, i32
  }
  func.func @transform_1(%arg0: i32, %arg1: i32) -> (i32, i32, i32) {
    %c0_i32 = arith.constant 0 : i32
    %c0_i32_0 = arith.constant 0 : i32
    return %arg0, %arg1, %c0_i32 : i32, i32, i32
  }
  func.func @transform_2(%arg0: i32, %arg1: i32) -> (i32, i32) {
    %c0_i32 = arith.constant 0 : i32
    %c0_i32_0 = arith.constant 0 : i32
    %c0_i32_1 = arith.constant 0 : i32
    return %c0_i32, %c0_i32_0 : i32, i32
  }
  func.func @transform_3(%arg0: i32, %arg1: i32) -> (i32, i32) {
    %c0_i32 = arith.constant 0 : i32
    %c0_i32_0 = arith.constant 0 : i32
    %c0_i32_1 = arith.constant 0 : i32
    return %c0_i32, %c0_i32_0 : i32, i32
  }
  func.func @transform_4(%arg0: i32, %arg1: i32) -> (i32, i32) {
    %c0_i32 = arith.constant 0 : i32
    %c0_i32_0 = arith.constant 0 : i32
    %c0_i32_1 = arith.constant 0 : i32
    return %c0_i32, %c0_i32_0 : i32, i32
  }
  func.func @transform_5(%arg0: i32, %arg1: i32) -> (i32, i32) {
    %c0_i32 = arith.constant 0 : i32
    %c0_i32_0 = arith.constant 0 : i32
    %c0_i32_1 = arith.constant 0 : i32
    return %c0_i32, %c0_i32_0 : i32, i32
  }
  func.func @transform_6(%arg0: i32, %arg1: i32) -> (i32, i32) {
    %c0_i32 = arith.constant 0 : i32
    %c0_i32_0 = arith.constant 0 : i32
    %c0_i32_1 = arith.constant 0 : i32
    return %c0_i32, %c0_i32_0 : i32, i32
  }
  func.func @transform_7(%arg0: i32, %arg1: i32) -> (i32, i32) {
    %c0_i32 = arith.constant 0 : i32
    %c0_i32_0 = arith.constant 0 : i32
    %c0_i32_1 = arith.constant 0 : i32
    return %c0_i32, %c0_i32_0 : i32, i32
  }
  func.func @transform_8(%arg0: i32, %arg1: i32) -> (i32, i32) {
    %c0_i32 = arith.constant 0 : i32
    %c0_i32_0 = arith.constant 0 : i32
    %c0_i32_1 = arith.constant 0 : i32
    return %c0_i32, %c0_i32_0 : i32, i32
  }
  func.func @transform_9(%arg0: i32, %arg1: i32) -> (i32, i32, i32) {
    %c0_i32 = arith.constant 0 : i32
    %c0_i32_0 = arith.constant 0 : i32
    return %arg0, %arg1, %c0_i32 : i32, i32, i32
  }
}

module attributes {stable_mosaic.version = 11 : i64} {
  func.func @_matmul_bias_kernel(%arg0: i32, %arg1: i32, %arg2: memref<16x128xbf16, #tpu.memory_space<vmem>>, %arg3: memref<128x128xbf16, #tpu.memory_space<vmem>>, %arg4: memref<1x128xf32, #tpu.memory_space<vmem>>, %arg5: memref<16x128xf32, #tpu.memory_space<vmem>>) attributes {dimension_semantics = [#tpu.dimension_semantics<parallel>, #tpu.dimension_semantics<parallel>], iteration_bounds = array<i64: 1, 2>, scalar_prefetch = 0 : i64, scratch_operands = 0 : i64, tpu.core_type = #tpu.core_type<tc>, window_params = [{transform_indices = @transform_0, window_bounds = array<i64: 16, 128>}, {transform_indices = @transform_1, window_bounds = array<i64: 128, 128>}, {transform_indices = @transform_2, window_bounds = array<i64: 1, 128>}, {transform_indices = @transform_3, window_bounds = array<i64: 16, 128>}]} {
    %c0 = arith.constant 0 : index
    %c0_0 = arith.constant 0 : index
    %0 = vector.load %arg2[%c0, %c0_0] : memref<16x128xbf16, #tpu.memory_space<vmem>>, vector<16x128xbf16>
    %c0_1 = arith.constant 0 : index
    %c0_2 = arith.constant 0 : index
    %1 = vector.load %arg3[%c0_1, %c0_2] : memref<128x128xbf16, #tpu.memory_space<vmem>>, vector<128x128xbf16>
    %cst = arith.constant dense<0.000000e+00> : vector<16x128xf32>
    %2 = tpu.matmul %0, %1, %cst {dimension_numbers = #tpu.dot_dimension_numbers<[1], [0], [0], [1], [0, 0, 1, 1], [], []>} : vector<16x128xbf16>, vector<128x128xbf16>, vector<16x128xf32> -> vector<16x128xf32>
    %c0_3 = arith.constant 0 : index
    %c0_4 = arith.constant 0 : index
    %3 = vector.load %arg4[%c0_3, %c0_4] : memref<1x128xf32, #tpu.memory_space<vmem>>, vector<1x128xf32>
    %4 = vector.broadcast %3 : vector<1x128xf32> to vector<16x128xf32>
    %5 = arith.addf %2, %4 : vector<16x128xf32>
    %c0_5 = arith.constant 0 : index
    %c0_6 = arith.constant 0 : index
    %6 = vector.load %arg5[%c0_5, %c0_6] : memref<16x128xf32, #tpu.memory_space<vmem>>, vector<16x128xf32>
    tpu.vector_store %arg5[%c0_5, %c0_6], %5 {strides = array<i32>} : memref<16x128xf32, #tpu.memory_space<vmem>>, vector<16x128xf32>,
    return
  }
  func.func @transform_0(%arg0: i32, %arg1: i32) -> (i32, i32) {
    %c0_i32 = arith.constant 0 : i32
    %c0_i32_0 = arith.constant 0 : i32
    return %arg0, %c0_i32 : i32, i32
  }
  func.func @transform_1(%arg0: i32, %arg1: i32) -> (i32, i32) {
    %c0_i32 = arith.constant 0 : i32
    %c0_i32_0 = arith.constant 0 : i32
    return %c0_i32, %arg1 : i32, i32
  }
  func.func @transform_2(%arg0: i32, %arg1: i32) -> (i32, i32) {
    %c0_i32 = arith.constant 0 : i32
    %c0_i32_0 = arith.constant 0 : i32
    return %c0_i32, %arg1 : i32, i32
  }
  func.func @transform_3(%arg0: i32, %arg1: i32) -> (i32, i32) {
    %c0_i32 = arith.constant 0 : i32
    return %arg0, %arg1 : i32, i32
  }
}

module attributes {stable_mosaic.version = 11 : i64} {
  func.func @_head_kernel(%arg0: i32, %arg1: memref<2x256xf32, #tpu.memory_space<vmem>>, %arg2: memref<2x256xf32, #tpu.memory_space<vmem>>, %arg3: memref<1x256xf32, #tpu.memory_space<vmem>>, %arg4: memref<1x1xf32, #tpu.memory_space<vmem>>, %arg5: memref<2x1xf32, #tpu.memory_space<vmem>>, %arg6: memref<2x1xf32, #tpu.memory_space<vmem>>) attributes {dimension_semantics = [#tpu.dimension_semantics<arbitrary>], iteration_bounds = array<i64: 1>, scalar_prefetch = 0 : i64, scratch_operands = 1 : i64, tpu.core_type = #tpu.core_type<tc>, window_params = [{transform_indices = @transform_0, window_bounds = array<i64: 2, 256>}, {transform_indices = @transform_1, window_bounds = array<i64: 2, 256>}, {transform_indices = @transform_2, window_bounds = array<i64: 1, 256>}, {pipeline_mode = #tpu.pipeline_mode<synchronous>, transform_indices = @transform_3, window_bounds = array<i64: 1, 1>}, {pipeline_mode = #tpu.pipeline_mode<synchronous>, transform_indices = @transform_4, window_bounds = array<i64: 2, 1>}]} {
    %c0_i32 = arith.constant 0 : i32
    %0 = arith.cmpi eq, %arg0, %c0_i32 : i32
    %1 = arith.extui %0 : i1 to i32
    %c0_i32_0 = arith.constant 0 : i32
    %2 = arith.cmpi ne, %1, %c0_i32_0 : i32
    scf.if %2 {
      %cst_12 = arith.constant 0.000000e+00 : f32
      %17 = vector.broadcast %cst_12 : f32 to vector<2x1xf32>
      %c0_13 = arith.constant 0 : index
      %c0_14 = arith.constant 0 : index
      %18 = vector.load %arg6[%c0_13, %c0_14] : memref<2x1xf32, #tpu.memory_space<vmem>>, vector<2x1xf32>
      tpu.vector_store %arg6[%c0_13, %c0_14], %17 {strides = array<i32>} : memref<2x1xf32, #tpu.memory_space<vmem>>, vector<2x1xf32>,
    } else {
    }
    %c0 = arith.constant 0 : index
    %c0_1 = arith.constant 0 : index
    %3 = vector.load %arg1[%c0, %c0_1] : memref<2x256xf32, #tpu.memory_space<vmem>>, vector<2x256xf32>
    %c0_2 = arith.constant 0 : index
    %c0_3 = arith.constant 0 : index
    %4 = vector.load %arg2[%c0_2, %c0_3] : memref<2x256xf32, #tpu.memory_space<vmem>>, vector<2x256xf32>
    %c0_4 = arith.constant 0 : index
    %c0_5 = arith.constant 0 : index
    %5 = vector.load %arg3[%c0_4, %c0_5] : memref<1x256xf32, #tpu.memory_space<vmem>>, vector<1x256xf32>
    %6 = vector.broadcast %5 : vector<1x256xf32> to vector<2x256xf32>
    %7 = arith.addf %4, %6 : vector<2x256xf32>
    %8 = arith.mulf %3, %7 : vector<2x256xf32>
    %c0_6 = arith.constant 0 : index
    %c0_7 = arith.constant 0 : index
    %9 = vector.load %arg6[%c0_6, %c0_7] : memref<2x1xf32, #tpu.memory_space<vmem>>, vector<2x1xf32>
    %cst = arith.constant dense<0.000000e+00> : vector<2xf32>
    %10 = vector.multi_reduction <add>, %8, %cst [1] : vector<2x256xf32> to vector<2xf32>
    %11 = vector.shape_cast %10 : vector<2xf32> to vector<2x1xf32>
    %12 = arith.addf %9, %11 : vector<2x1xf32>
    %c0_8 = arith.constant 0 : index
    %c0_9 = arith.constant 0 : index
    %13 = vector.load %arg6[%c0_8, %c0_9] : memref<2x1xf32, #tpu.memory_space<vmem>>, vector<2x1xf32>
    tpu.vector_store %arg6[%c0_8, %c0_9], %12 {strides = array<i32>} : memref<2x1xf32, #tpu.memory_space<vmem>>, vector<2x1xf32>,
    %c0_i32_10 = arith.constant 0 : i32
    %14 = arith.cmpi eq, %arg0, %c0_i32_10 : i32
    %15 = arith.extui %14 : i1 to i32
    %c0_i32_11 = arith.constant 0 : i32
    %16 = arith.cmpi ne, %15, %c0_i32_11 : i32
    scf.if %16 {
      %c0_12 = arith.constant 0 : index
      %c0_13 = arith.constant 0 : index
      %17 = vector.load %arg6[%c0_12, %c0_13] : memref<2x1xf32, #tpu.memory_space<vmem>>, vector<2x1xf32>
      %c0_14 = arith.constant 0 : index
      %c0_15 = arith.constant 0 : index
      %18 = vector.load %arg4[%c0_14, %c0_15] : memref<1x1xf32, #tpu.memory_space<vmem>>, vector<1x1xf32>
      %19 = vector.broadcast %18 : vector<1x1xf32> to vector<2x1xf32>
      %20 = arith.addf %17, %19 : vector<2x1xf32>
      %c0_16 = arith.constant 0 : index
      %c0_17 = arith.constant 0 : index
      %21 = vector.load %arg5[%c0_16, %c0_17] : memref<2x1xf32, #tpu.memory_space<vmem>>, vector<2x1xf32>
      tpu.vector_store %arg5[%c0_16, %c0_17], %20 {strides = array<i32>} : memref<2x1xf32, #tpu.memory_space<vmem>>, vector<2x1xf32>,
    } else {
    }
    return
  }
  func.func @transform_0(%arg0: i32) -> (i32, i32) {
    %c0_i32 = arith.constant 0 : i32
    %c0_i32_0 = arith.constant 0 : i32
    return %c0_i32, %arg0 : i32, i32
  }
  func.func @transform_1(%arg0: i32) -> (i32, i32) {
    %c0_i32 = arith.constant 0 : i32
    %c0_i32_0 = arith.constant 0 : i32
    return %c0_i32, %arg0 : i32, i32
  }
  func.func @transform_2(%arg0: i32) -> (i32, i32) {
    %c0_i32 = arith.constant 0 : i32
    %c0_i32_0 = arith.constant 0 : i32
    return %c0_i32, %arg0 : i32, i32
  }
  func.func @transform_3(%arg0: i32) -> (i32, i32) {
    %c0_i32 = arith.constant 0 : i32
    %c0_i32_0 = arith.constant 0 : i32
    %c0_i32_1 = arith.constant 0 : i32
    return %c0_i32, %c0_i32_0 : i32, i32
  }
  func.func @transform_4(%arg0: i32) -> (i32, i32) {
    %c0_i32 = arith.constant 0 : i32
    %c0_i32_0 = arith.constant 0 : i32
    %c0_i32_1 = arith.constant 0 : i32
    return %c0_i32, %c0_i32_0 : i32, i32
  }
}

</mosaic_0001>

<llo_original>
// kernel: forward.8
$region0: #{forward.8}
  #allocation0 [shape = 'u32[]', space=smem, size = 0x4, offset = 0x4, fixed_abs, tag = 'smem constant byte address 0x4 - core index']
  #allocation1 [shape = 'u32[72,128]{1,0:T(1,128)}', space=vmem, size = 0x9000, scoped, tag = 'internal scratch']
  %s0 = inlined_call_operand.vmem [shape: bf16[464,128], index: 0, kind: input, shape index: {}]
  %s1 = inlined_call_operand.vmem [shape: bf16[128,128], index: 1, kind: input, shape index: {}]
  %s2 = inlined_call_operand.vmem [shape: f32[1,128], index: 2, kind: input, shape index: {}]
  %s3 = inlined_call_operand.vmem [shape: bf16[464,128], index: 3, kind: output, shape index: {}]
  %s4 = sld [smem:[#allocation0]]
  $region22: #{forward.8} parent=0
    _
  %s6 = ssub.s32 1, %s4
  %s7 = scalar_select 0, %s6, %s4
  // Predicated region
  $region2: #{forward.8} parent=0 // pred_check
    _
  $region3: #{forward.8} parent=0 // pred_check_branch
    %9 = sbr.rel (0) target = $region5
  $region4: #{forward.8} parent=0 // pred_region
    _
  $region5: #{forward.8} parent=0 // pred_fallthru
    _
  // Predicated region
  $region6: #{forward.8} parent=0 // pred_check
    _
  $region7: #{forward.8} parent=0 // pred_check_branch
    %11 = sbr.rel (0) target = $region9
  $region8: #{forward.8} parent=0 // pred_region
    _
  $region9: #{forward.8} parent=0 // pred_fallthru
    _
  // Predicated region
  $region10: #{forward.8} parent=0 // pred_check
    _
  $region11: #{forward.8} parent=0 // pred_check_branch
    %13 = sbr.rel (0) target = $region13
  $region12: #{forward.8} parent=0 // pred_region
    _
  $region13: #{forward.8} parent=0 // pred_fallthru
    _
  %v14 = vld [vmem:[%s0] sm:$0xf]
  %v15 = vld [vmem:[%s0 + $0x4] sm:$0xf]
  %v16 = vld [vmem:[%s0 + $0x8] sm:$0xf]
  %v17 = vld [vmem:[%s0 + $0xc] sm:$0xf]
  %v18 = vld [vmem:[%s0 + $0x10] sm:$0xf]
  %v19 = vld [vmem:[%s0 + $0x14] sm:$0xf]
  %v20 = vld [vmem:[%s0 + $0x18] sm:$0xf]
  %v21 = vld [vmem:[%s0 + $0x1c] sm:$0xf]
  %v22 = vld [vmem:[%s0 + $0x20] sm:$0xf]
  %v23 = vld [vmem:[%s0 + $0x24] sm:$0xf]
  %v24 = vld [vmem:[%s0 + $0x28] sm:$0xf]
  %v25 = vld [vmem:[%s0 + $0x2c] sm:$0xf]
  %v26 = vld [vmem:[%s0 + $0x30] sm:$0xf]
  %v27 = vld [vmem:[%s0 + $0x34] sm:$0xf]
  %v28 = vld [vmem:[%s0 + $0x38] sm:$0xf]
  %v29 = vld [vmem:[%s0 + $0x3c] sm:$0xf]
  %v30 = vld [vmem:[%s0 + $0x40] sm:$0xf]
  %v31 = vld [vmem:[%s0 + $0x44] sm:$0xf]
  %v32 = vld [vmem:[%s0 + $0x48] sm:$0xf]
  %v33 = vld [vmem:[%s0 + $0x4c] sm:$0xf]
  %v34 = vld [vmem:[%s0 + $0x50] sm:$0xf]
  %v35 = vld [vmem:[%s0 + $0x54] sm:$0xf]
  %v36 = vld [vmem:[%s0 + $0x58] sm:$0xf]
  %v37 = vld [vmem:[%s0 + $0x5c] sm:$0xf]
  %v38 = vld [vmem:[%s0 + $0x60] sm:$0xf]
  %v39 = vld [vmem:[%s0 + $0x64] sm:$0xf]
  %v40 = vld [vmem:[%s0 + $0x68] sm:$0xf]
  %v41 = vld [vmem:[%s0 + $0x6c] sm:$0xf]
  %v42 = vld [vmem:[%s0 + $0x70] sm:$0xf]
  %v43 = vld [vmem:[%s0 + $0x74] sm:$0xf]
  %v44 = vld [vmem:[%s0 + $0x78] sm:$0xf]
  %v45 = vld [vmem:[%s0 + $0x7c] sm:$0xf]
  %v46 = vld [vmem:[%s0 + $0x80] sm:$0xf]
  %v47 = vld [vmem:[%s0 + $0x84] sm:$0xf]
  %v48 = vld [vmem:[%s0 + $0x88] sm:$0xf]
  %v49 = vld [vmem:[%s0 + $0x8c] sm:$0xf]
  %v50 = vld [vmem:[%s0 + $0x90] sm:$0xf]
  %v51 = vld [vmem:[%s0 + $0x94] sm:$0xf]
  %v52 = vld [vmem:[%s0 + $0x98] sm:$0xf]
  %v53 = vld [vmem:[%s0 + $0x9c] sm:$0xf]
  %v54 = vld [vmem:[%s0 + $0xa0] sm:$0xf]
  %v55 = vld [vmem:[%s0 + $0xa4] sm:$0xf]
  %v56 = vld [vmem:[%s0 + $0xa8] sm:$0xf]
  %v57 = vld [vmem:[%s0 + $0xac] sm:$0xf]
  %v58 = vld [vmem:[%s0 + $0xb0] sm:$0xf]
  %v59 = vld [vmem:[%s0 + $0xb4] sm:$0xf]
  %v60 = vld [vmem:[%s0 + $0xb8] sm:$0xf]
  %v61 = vld [vmem:[%s0 + $0xbc] sm:$0xf]
  %v62 = vld [vmem:[%s0 + $0xc0] sm:$0xf]
  %v63 = vld [vmem:[%s0 + $0xc4] sm:$0xf]
  %v64 = vld [vmem:[%s0 + $0xc8] sm:$0xf]
  %v65 = vld [vmem:[%s0 + $0xcc] sm:$0xf]
  %v66 = vld [vmem:[%s0 + $0xd0] sm:$0xf]
  %v67 = vld [vmem:[%s0 + $0xd4] sm:$0xf]
  %v68 = vld [vmem:[%s0 + $0xd8] sm:$0xf]
  %v69 = vld [vmem:[%s0 + $0xdc] sm:$0xf]
  %v70 = vld [vmem:[%s0 + $0xe0] sm:$0xf]
  %v71 = vld [vmem:[%s0 + $0xe4] sm:$0xf]
  %v72 = vld [vmem:[%s1] sm:$0xf]
  %v73 = vld [vmem:[%s1 + $0x4] sm:$0xf]
  %v74 = vld [vmem:[%s1 + $0x8] sm:$0xf]
  %v75 = vld [vmem:[%s1 + $0xc] sm:$0xf]
  %v76 = vld [vmem:[%s1 + $0x10] sm:$0xf]
  %v77 = vld [vmem:[%s1 + $0x14] sm:$0xf]
  %v78 = vld [vmem:[%s1 + $0x18] sm:$0xf]
  %v79 = vld [vmem:[%s1 + $0x1c] sm:$0xf]
  %v80 = vld [vmem:[%s1 + $0x20] sm:$0xf]
  %v81 = vld [vmem:[%s1 + $0x24] sm:$0xf]
  %v82 = vld [vmem:[%s1 + $0x28] sm:$0xf]
  %v83 = vld [vmem:[%s1 + $0x2c] sm:$0xf]
  %v84 = vld [vmem:[%s1 + $0x30] sm:$0xf]
  %v85 = vld [vmem:[%s1 + $0x34] sm:$0xf]
  %v86 = vld [vmem:[%s1 + $0x38] sm:$0xf]
  %v87 = vld [vmem:[%s1 + $0x3c] sm:$0xf]
  %v88 = vld [vmem:[%s2] sm:$0x1]
  %v90 = vperm.slane %v88, 0
  %v150 = vunpack.c.l.b16 %v14
  %v151 = vunpack.c.l.b16 %v15
  %v152 = vunpack.c.l.b16 %v16
  %v153 = vunpack.c.l.b16 %v17
  %v154 = vunpack.c.l.b16 %v18
  %v155 = vunpack.c.l.b16 %v19
  %v156 = vunpack.c.l.b16 %v20
  %v157 = vunpack.c.l.b16 %v21
  %v158 = vunpack.c.l.b16 %v22
  %v159 = vunpack.c.l.b16 %v23
  %v160 = vunpack.c.l.b16 %v24
  %v161 = vunpack.c.l.b16 %v25
  %v162 = vunpack.c.l.b16 %v26
  %v163 = vunpack.c.l.b16 %v27
  %v164 = vunpack.c.l.b16 %v28
  %v165 = vunpack.c.l.b16 %v29
  %v166 = vunpack.c.l.b16 %v30
  %v167 = vunpack.c.l.b16 %v31
  %v168 = vunpack.c.l.b16 %v32
  %v169 = vunpack.c.l.b16 %v33
  %v170 = vunpack.c.l.b16 %v34
  %v171 = vunpack.c.l.b16 %v35
  %v172 = vunpack.c.l.b16 %v36
  %v173 = vunpack.c.l.b16 %v37
  %v174 = vunpack.c.l.b16 %v38
  %v175 = vunpack.c.l.b16 %v39
  %v176 = vunpack.c.l.b16 %v40
  %v177 = vunpack.c.l.b16 %v41
  %v178 = vunpack.c.l.b16 %v42
  %v179 = vunpack.c.l.b16 %v43
  %v180 = vunpack.c.l.b16 %v44
  %v181 = vunpack.c.l.b16 %v45
  %v182 = vunpack.c.l.b16 %v46
  %v183 = vunpack.c.l.b16 %v47
  %v184 = vunpack.c.l.b16 %v48
  %v185 = vunpack.c.l.b16 %v49
  %v186 = vunpack.c.l.b16 %v50
  %v187 = vunpack.c.l.b16 %v51
  %v188 = vunpack.c.l.b16 %v52
  %v189 = vunpack.c.l.b16 %v53
  %v190 = vunpack.c.l.b16 %v54
  %v191 = vunpack.c.l.b16 %v55
  %v192 = vunpack.c.l.b16 %v56
  %v193 = vunpack.c.l.b16 %v57
  %v194 = vunpack.c.l.b16 %v58
  %v195 = vunpack.c.l.b16 %v59
  %v196 = vunpack.c.l.b16 %v60
  %v197 = vunpack.c.l.b16 %v61
  %v198 = vunpack.c.l.b16 %v62
  %v199 = vunpack.c.l.b16 %v63
  %v200 = vunpack.c.l.b16 %v64
  %v201 = vunpack.c.l.b16 %v65
  %v202 = vunpack.c.l.b16 %v66
  %v203 = vunpack.c.l.b16 %v67
  %v204 = vunpack.c.l.b16 %v68
  %v205 = vunpack.c.l.b16 %v69
  %v206 = vunpack.c.l.b16 %v70
  %v207 = vunpack.c.l.b16 %v71
  %v208 = vpack.c.b16 %v151, %v150
  %v209 = vpack.c.b16 %v153, %v152
  %v210 = vpack.c.b16 %v155, %v154
  %v211 = vpack.c.b16 %v157, %v156
  %v212 = vpack.c.b16 %v159, %v158
  %v213 = vpack.c.b16 %v161, %v160
  %v214 = vpack.c.b16 %v163, %v162
  %v215 = vpack.c.b16 %v165, %v164
  %v216 = vpack.c.b16 %v167, %v166
  %v217 = vpack.c.b16 %v169, %v168
  %v218 = vpack.c.b16 %v171, %v170
  %v219 = vpack.c.b16 %v173, %v172
  %v220 = vpack.c.b16 %v175, %v174
  %v221 = vpack.c.b16 %v177, %v176
  %v222 = vpack.c.b16 %v179, %v178
  %v223 = vpack.c.b16 %v181, %v180
  %v224 = vpack.c.b16 %v183, %v182
  %v225 = vpack.c.b16 %v185, %v184
  %v226 = vpack.c.b16 %v187, %v186
  %v227 = vpack.c.b16 %v189, %v188
  %v228 = vpack.c.b16 %v191, %v190
  %v229 = vpack.c.b16 %v193, %v192
  %v230 = vpack.c.b16 %v195, %v194
  %v231 = vpack.c.b16 %v197, %v196
  %v232 = vpack.c.b16 %v199, %v198
  %v233 = vpack.c.b16 %v201, %v200
  %v234 = vpack.c.b16 %v203, %v202
  %v235 = vpack.c.b16 %v205, %v204
  %v236 = vpack.c.b16 %v207, %v206
  %v282 = vunpack.c.l.b16 %v72
  %v283 = vunpack.c.l.b16 %v73
  %v284 = vunpack.c.l.b16 %v74
  %v285 = vunpack.c.l.b16 %v75
  %v286 = vunpack.c.l.b16 %v76
  %v287 = vunpack.c.l.b16 %v77
  %v288 = vunpack.c.l.b16 %v78
  %v289 = vunpack.c.l.b16 %v79
  %v290 = vunpack.c.l.b16 %v80
  %v291 = vunpack.c.l.b16 %v81
  %v292 = vunpack.c.l.b16 %v82
  %v293 = vunpack.c.l.b16 %v83
  %v294 = vunpack.c.l.b16 %v84
  %v295 = vunpack.c.l.b16 %v85
  %v296 = vunpack.c.l.b16 %v86
  %v297 = vunpack.c.l.b16 %v87
  %v298 = vpack.c.b16 %v283, %v282
  %v299 = vpack.c.b16 %v285, %v284
  %v300 = vpack.c.b16 %v287, %v286
  %v301 = vpack.c.b16 %v289, %v288
  %v302 = vpack.c.b16 %v291, %v290
  %v303 = vpack.c.b16 %v293, %v292
  %v304 = vpack.c.b16 %v295, %v294
  %v305 = vpack.c.b16 %v297, %v296
  %314 = vmatpush.bf16.msra.mxu0 %v305
  %315 = vmatpush.bf16.msra.mxu0 %v304
  %316 = vmatpush.bf16.msra.mxu0 %v303
  %317 = vmatpush.bf16.msra.mxu0 %v302
  %318 = vmatpush.bf16.msra.mxu0 %v301
  %319 = vmatpush.bf16.msra.mxu0 %v300
  %320 = vmatpush.bf16.msra.mxu0 %v299
  %321 = vmatpush.bf16.msra.mxu0 %v298
  %322 = vmatmul.bf16.gmra.mxu0 %v208
  %v323 = vpop.f32.mrf.mxu0
  %v324 = vadd.f32 %v90, %v323
  %v325 = vpop.f32.mrf.mxu0
  %v326 = vadd.f32 %v90, %v325
  %327 = vmatmul.bf16.gmra.mxu0 %v209
  %v328 = vpop.f32.mrf.mxu0
  %v329 = vadd.f32 %v90, %v328
  %v330 = vpop.f32.mrf.mxu0
  %v331 = vadd.f32 %v90, %v330
  %332 = vmatmul.bf16.gmra.mxu0 %v210
  %v333 = vpop.f32.mrf.mxu0
  %v334 = vadd.f32 %v90, %v333
  %v335 = vpop.f32.mrf.mxu0
  %v336 = vadd.f32 %v90, %v335
  %337 = vmatmul.bf16.gmra.mxu0 %v211
  %v338 = vpop.f32.mrf.mxu0
  %v339 = vadd.f32 %v90, %v338
  %v340 = vpop.f32.mrf.mxu0
  %v341 = vadd.f32 %v90, %v340
  %342 = vmatmul.bf16.gmra.mxu0 %v212
  %v343 = vpop.f32.mrf.mxu0
  %v344 = vadd.f32 %v90, %v343
  %v345 = vpop.f32.mrf.mxu0
  %v346 = vadd.f32 %v90, %v345
  %347 = vmatmul.bf16.gmra.mxu0 %v213
  %v348 = vpop.f32.mrf.mxu0
  %v349 = vadd.f32 %v90, %v348
  %v350 = vpop.f32.mrf.mxu0
  %v351 = vadd.f32 %v90, %v350
  %352 = vmatmul.bf16.gmra.mxu0 %v214
  %v353 = vpop.f32.mrf.mxu0
  %v354 = vadd.f32 %v90, %v353
  %v355 = vpop.f32.mrf.mxu0
  %v356 = vadd.f32 %v90, %v355
  %357 = vmatmul.bf16.gmra.mxu0 %v215
  %v358 = vpop.f32.mrf.mxu0
  %v359 = vadd.f32 %v90, %v358
  %v360 = vpop.f32.mrf.mxu0
  %v361 = vadd.f32 %v90, %v360
  %362 = vmatmul.bf16.gmra.mxu0 %v216
  %v363 = vpop.f32.mrf.mxu0
  %v364 = vadd.f32 %v90, %v363
  %v365 = vpop.f32.mrf.mxu0
  %v366 = vadd.f32 %v90, %v365
  %367 = vmatmul.bf16.gmra.mxu0 %v217
  %v368 = vpop.f32.mrf.mxu0
  %v369 = vadd.f32 %v90, %v368
  %v370 = vpop.f32.mrf.mxu0
  %v371 = vadd.f32 %v90, %v370
  %372 = vmatmul.bf16.gmra.mxu0 %v218
  %v373 = vpop.f32.mrf.mxu0
  %v374 = vadd.f32 %v90, %v373
  %v375 = vpop.f32.mrf.mxu0
  %v376 = vadd.f32 %v90, %v375
  %377 = vmatmul.bf16.gmra.mxu0 %v219
  %v378 = vpop.f32.mrf.mxu0
  %v379 = vadd.f32 %v90, %v378
  %v380 = vpop.f32.mrf.mxu0
  %v381 = vadd.f32 %v90, %v380
  %382 = vmatmul.bf16.gmra.mxu0 %v220
  %v383 = vpop.f32.mrf.mxu0
  %v384 = vadd.f32 %v90, %v383
  %v385 = vpop.f32.mrf.mxu0
  %v386 = vadd.f32 %v90, %v385
  %387 = vmatmul.bf16.gmra.mxu0 %v221
  %v388 = vpop.f32.mrf.mxu0
  %v389 = vadd.f32 %v90, %v388
  %v390 = vpop.f32.mrf.mxu0
  %v391 = vadd.f32 %v90, %v390
  %392 = vmatmul.bf16.gmra.mxu0 %v222
  %v393 = vpop.f32.mrf.mxu0
  %v394 = vadd.f32 %v90, %v393
  %v395 = vpop.f32.mrf.mxu0
  %v396 = vadd.f32 %v90, %v395
  %397 = vmatmul.bf16.gmra.mxu0 %v223
  %v398 = vpop.f32.mrf.mxu0
  %v399 = vadd.f32 %v90, %v398
  %v400 = vpop.f32.mrf.mxu0
  %v401 = vadd.f32 %v90, %v400
  %402 = vmatmul.bf16.gmra.mxu0 %v224
  %v403 = vpop.f32.mrf.mxu0
  %v404 = vadd.f32 %v90, %v403
  %v405 = vpop.f32.mrf.mxu0
  %v406 = vadd.f32 %v90, %v405
  %407 = vmatmul.bf16.gmra.mxu0 %v225
  %v408 = vpop.f32.mrf.mxu0
  %v409 = vadd.f32 %v90, %v408
  %v410 = vpop.f32.mrf.mxu0
  %v411 = vadd.f32 %v90, %v410
  %412 = vmatmul.bf16.gmra.mxu0 %v226
  %v413 = vpop.f32.mrf.mxu0
  %v414 = vadd.f32 %v90, %v413
  %v415 = vpop.f32.mrf.mxu0
  %v416 = vadd.f32 %v90, %v415
  %417 = vmatmul.bf16.gmra.mxu0 %v227
  %v418 = vpop.f32.mrf.mxu0
  %v419 = vadd.f32 %v90, %v418
  %v420 = vpop.f32.mrf.mxu0
  %v421 = vadd.f32 %v90, %v420
  %422 = vmatmul.bf16.gmra.mxu0 %v228
  %v423 = vpop.f32.mrf.mxu0
  %v424 = vadd.f32 %v90, %v423
  %v425 = vpop.f32.mrf.mxu0
  %v426 = vadd.f32 %v90, %v425
  %427 = vmatmul.bf16.gmra.mxu0 %v229
  %v428 = vpop.f32.mrf.mxu0
  %v429 = vadd.f32 %v90, %v428
  %v430 = vpop.f32.mrf.mxu0
  %v431 = vadd.f32 %v90, %v430
  %432 = vmatmul.bf16.gmra.mxu0 %v230
  %v433 = vpop.f32.mrf.mxu0
  %v434 = vadd.f32 %v90, %v433
  %v435 = vpop.f32.mrf.mxu0
  %v436 = vadd.f32 %v90, %v435
  %437 = vmatmul.bf16.gmra.mxu0 %v231
  %v438 = vpop.f32.mrf.mxu0
  %v439 = vadd.f32 %v90, %v438
  %v440 = vpop.f32.mrf.mxu0
  %v441 = vadd.f32 %v90, %v440
  %442 = vmatmul.bf16.gmra.mxu0 %v232
  %v443 = vpop.f32.mrf.mxu0
  %v444 = vadd.f32 %v90, %v443
  %v445 = vpop.f32.mrf.mxu0
  %v446 = vadd.f32 %v90, %v445
  %447 = vmatmul.bf16.gmra.mxu0 %v233
  %v448 = vpop.f32.mrf.mxu0
  %v449 = vadd.f32 %v90, %v448
  %v450 = vpop.f32.mrf.mxu0
  %v451 = vadd.f32 %v90, %v450
  %452 = vmatmul.bf16.gmra.mxu0 %v234
  %v453 = vpop.f32.mrf.mxu0
  %v454 = vadd.f32 %v90, %v453
  %v455 = vpop.f32.mrf.mxu0
  %v456 = vadd.f32 %v90, %v455
  %457 = vmatmul.bf16.gmra.mxu0 %v235
  %v458 = vpop.f32.mrf.mxu0
  %v459 = vadd.f32 %v90, %v458
  %v460 = vpop.f32.mrf.mxu0
  %v461 = vadd.f32 %v90, %v460
  %462 = vmatmul.bf16.gmra.mxu0 %v236
  %v463 = vpop.f32.mrf.mxu0
  %v464 = vadd.f32 %v90, %v463
  %v465 = vpop.f32.mrf.mxu0
  %v466 = vadd.f32 %v90, %v465
  %467 = vdwg.mxu0
  %vm468 = vcmp.ge.f32.partialorder %v324, 0.0
  %vm469 = vcmp.ge.f32.partialorder %v326, 0.0
  %vm470 = vcmp.ge.f32.partialorder %v329, 0.0
  %vm471 = vcmp.ge.f32.partialorder %v331, 0.0
  %vm472 = vcmp.ge.f32.partialorder %v334, 0.0
  %vm473 = vcmp.ge.f32.partialorder %v336, 0.0
  %vm474 = vcmp.ge.f32.partialorder %v339, 0.0
  %vm475 = vcmp.ge.f32.partialorder %v341, 0.0
  %vm476 = vcmp.ge.f32.partialorder %v344, 0.0
  %vm477 = vcmp.ge.f32.partialorder %v346, 0.0
  %vm478 = vcmp.ge.f32.partialorder %v349, 0.0
  %vm479 = vcmp.ge.f32.partialorder %v351, 0.0
  %vm480 = vcmp.ge.f32.partialorder %v354, 0.0
  %vm481 = vcmp.ge.f32.partialorder %v356, 0.0
  %vm482 = vcmp.ge.f32.partialorder %v359, 0.0
  %vm483 = vcmp.ge.f32.partialorder %v361, 0.0
  %vm484 = vcmp.ge.f32.partialorder %v364, 0.0
  %vm485 = vcmp.ge.f32.partialorder %v366, 0.0
  %vm486 = vcmp.ge.f32.partialorder %v369, 0.0
  %vm487 = vcmp.ge.f32.partialorder %v371, 0.0
  %vm488 = vcmp.ge.f32.partialorder %v374, 0.0
  %vm489 = vcmp.ge.f32.partialorder %v376, 0.0
  %vm490 = vcmp.ge.f32.partialorder %v379, 0.0
  %vm491 = vcmp.ge.f32.partialorder %v381, 0.0
  %vm492 = vcmp.ge.f32.partialorder %v384, 0.0
  %vm493 = vcmp.ge.f32.partialorder %v386, 0.0
  %vm494 = vcmp.ge.f32.partialorder %v389, 0.0
  %vm495 = vcmp.ge.f32.partialorder %v391, 0.0
  %vm496 = vcmp.ge.f32.partialorder %v394, 0.0
  %vm497 = vcmp.ge.f32.partialorder %v396, 0.0
  %vm498 = vcmp.ge.f32.partialorder %v399, 0.0
  %vm499 = vcmp.ge.f32.partialorder %v401, 0.0
  %vm500 = vcmp.ge.f32.partialorder %v404, 0.0
  %vm501 = vcmp.ge.f32.partialorder %v406, 0.0
  %vm502 = vcmp.ge.f32.partialorder %v409, 0.0
  %vm503 = vcmp.ge.f32.partialorder %v411, 0.0
  %vm504 = vcmp.ge.f32.partialorder %v414, 0.0
  %vm505 = vcmp.ge.f32.partialorder %v416, 0.0
  %vm506 = vcmp.ge.f32.partialorder %v419, 0.0
  %vm507 = vcmp.ge.f32.partialorder %v421, 0.0
  %vm508 = vcmp.ge.f32.partialorder %v424, 0.0
  %vm509 = vcmp.ge.f32.partialorder %v426, 0.0
  %vm510 = vcmp.ge.f32.partialorder %v429, 0.0
  %vm511 = vcmp.ge.f32.partialorder %v431, 0.0
  %vm512 = vcmp.ge.f32.partialorder %v434, 0.0
  %vm513 = vcmp.ge.f32.partialorder %v436, 0.0
  %vm514 = vcmp.ge.f32.partialorder %v439, 0.0
  %vm515 = vcmp.ge.f32.partialorder %v441, 0.0
  %vm516 = vcmp.ge.f32.partialorder %v444, 0.0
  %vm517 = vcmp.ge.f32.partialorder %v446, 0.0
  %vm518 = vcmp.ge.f32.partialorder %v449, 0.0
  %vm519 = vcmp.ge.f32.partialorder %v451, 0.0
  %vm520 = vcmp.ge.f32.partialorder %v454, 0.0
  %vm521 = vcmp.ge.f32.partialorder %v456, 0.0
  %vm522 = vcmp.ge.f32.partialorder %v459, 0.0
  %vm523 = vcmp.ge.f32.partialorder %v461, 0.0
  %vm524 = vcmp.ge.f32.partialorder %v464, 0.0
  %vm525 = vcmp.ge.f32.partialorder %v466, 0.0
  %v526 = vmul.f32 %v324, 0.2
  %v527 = vmul.f32 %v326, 0.2
  %v528 = vmul.f32 %v329, 0.2
  %v529 = vmul.f32 %v331, 0.2
  %v530 = vmul.f32 %v334, 0.2
  %v531 = vmul.f32 %v336, 0.2
  %v532 = vmul.f32 %v339, 0.2
  %v533 = vmul.f32 %v341, 0.2
  %v534 = vmul.f32 %v344, 0.2
  %v535 = vmul.f32 %v346, 0.2
  %v536 = vmul.f32 %v349, 0.2
  %v537 = vmul.f32 %v351, 0.2
  %v538 = vmul.f32 %v354, 0.2
  %v539 = vmul.f32 %v356, 0.2
  %v540 = vmul.f32 %v359, 0.2
  %v541 = vmul.f32 %v361, 0.2
  %v542 = vmul.f32 %v364, 0.2
  %v543 = vmul.f32 %v366, 0.2
  %v544 = vmul.f32 %v369, 0.2
  %v545 = vmul.f32 %v371, 0.2
  %v546 = vmul.f32 %v374, 0.2
  %v547 = vmul.f32 %v376, 0.2
  %v548 = vmul.f32 %v379, 0.2
  %v549 = vmul.f32 %v381, 0.2
  %v550 = vmul.f32 %v384, 0.2
  %v551 = vmul.f32 %v386, 0.2
  %v552 = vmul.f32 %v389, 0.2
  %v553 = vmul.f32 %v391, 0.2
  %v554 = vmul.f32 %v394, 0.2
  %v555 = vmul.f32 %v396, 0.2
  %v556 = vmul.f32 %v399, 0.2
  %v557 = vmul.f32 %v401, 0.2
  %v558 = vmul.f32 %v404, 0.2
  %v559 = vmul.f32 %v406, 0.2
  %v560 = vmul.f32 %v409, 0.2
  %v561 = vmul.f32 %v411, 0.2
  %v562 = vmul.f32 %v414, 0.2
  %v563 = vmul.f32 %v416, 0.2
  %v564 = vmul.f32 %v419, 0.2
  %v565 = vmul.f32 %v421, 0.2
  %v566 = vmul.f32 %v424, 0.2
  %v567 = vmul.f32 %v426, 0.2
  %v568 = vmul.f32 %v429, 0.2
  %v569 = vmul.f32 %v431, 0.2
  %v570 = vmul.f32 %v434, 0.2
  %v571 = vmul.f32 %v436, 0.2
  %v572 = vmul.f32 %v439, 0.2
  %v573 = vmul.f32 %v441, 0.2
  %v574 = vmul.f32 %v444, 0.2
  %v575 = vmul.f32 %v446, 0.2
  %v576 = vmul.f32 %v449, 0.2
  %v577 = vmul.f32 %v451, 0.2
  %v578 = vmul.f32 %v454, 0.2
  %v579 = vmul.f32 %v456, 0.2
  %v580 = vmul.f32 %v459, 0.2
  %v581 = vmul.f32 %v461, 0.2
  %v582 = vmul.f32 %v464, 0.2
  %v583 = vmul.f32 %v466, 0.2
  %v584 = vsel %vm468, %v324, %v526
  %v585 = vsel %vm469, %v326, %v527
  %v586 = vsel %vm470, %v329, %v528
  %v587 = vsel %vm471, %v331, %v529
  %v588 = vsel %vm472, %v334, %v530
  %v589 = vsel %vm473, %v336, %v531
  %v590 = vsel %vm474, %v339, %v532
  %v591 = vsel %vm475, %v341, %v533
  %v592 = vsel %vm476, %v344, %v534
  %v593 = vsel %vm477, %v346, %v535
  %v594 = vsel %vm478, %v349, %v536
  %v595 = vsel %vm479, %v351, %v537
  %v596 = vsel %vm480, %v354, %v538
  %v597 = vsel %vm481, %v356, %v539
  %v598 = vsel %vm482, %v359, %v540
  %v599 = vsel %vm483, %v361, %v541
  %v600 = vsel %vm484, %v364, %v542
  %v601 = vsel %vm485, %v366, %v543
  %v602 = vsel %vm486, %v369, %v544
  %v603 = vsel %vm487, %v371, %v545
  %v604 = vsel %vm488, %v374, %v546
  %v605 = vsel %vm489, %v376, %v547
  %v606 = vsel %vm490, %v379, %v548
  %v607 = vsel %vm491, %v381, %v549
  %v608 = vsel %vm492, %v384, %v550
  %v609 = vsel %vm493, %v386, %v551
  %v610 = vsel %vm494, %v389, %v552
  %v611 = vsel %vm495, %v391, %v553
  %v612 = vsel %vm496, %v394, %v554
  %v613 = vsel %vm497, %v396, %v555
  %v614 = vsel %vm498, %v399, %v556
  %v615 = vsel %vm499, %v401, %v557
  %v616 = vsel %vm500, %v404, %v558
  %v617 = vsel %vm501, %v406, %v559
  %v618 = vsel %vm502, %v409, %v560
  %v619 = vsel %vm503, %v411, %v561
  %v620 = vsel %vm504, %v414, %v562
  %v621 = vsel %vm505, %v416, %v563
  %v622 = vsel %vm506, %v419, %v564
  %v623 = vsel %vm507, %v421, %v565
  %v624 = vsel %vm508, %v424, %v566
  %v625 = vsel %vm509, %v426, %v567
  %v626 = vsel %vm510, %v429, %v568
  %v627 = vsel %vm511, %v431, %v569
  %v628 = vsel %vm512, %v434, %v570
  %v629 = vsel %vm513, %v436, %v571
  %v630 = vsel %vm514, %v439, %v572
  %v631 = vsel %vm515, %v441, %v573
  %v632 = vsel %vm516, %v444, %v574
  %v633 = vsel %vm517, %v446, %v575
  %v634 = vsel %vm518, %v449, %v576
  %v635 = vsel %vm519, %v451, %v577
  %v636 = vsel %vm520, %v454, %v578
  %v637 = vsel %vm521, %v456, %v579
  %v638 = vsel %vm522, %v459, %v580
  %v639 = vsel %vm523, %v461, %v581
  %v640 = vsel %vm524, %v464, %v582
  %v641 = vsel %vm525, %v466, %v583
  %v642 = vpack.c.bf16 %v584, %v584
  %v643 = vpack.c.bf16 %v585, %v585
  %v644 = vpack.c.bf16 %v586, %v586
  %v645 = vpack.c.bf16 %v587, %v587
  %v646 = vpack.c.bf16 %v588, %v588
  %v647 = vpack.c.bf16 %v589, %v589
  %v648 = vpack.c.bf16 %v590, %v590
  %v649 = vpack.c.bf16 %v591, %v591
  %v650 = vpack.c.bf16 %v592, %v592
  %v651 = vpack.c.bf16 %v593, %v593
  %v652 = vpack.c.bf16 %v594, %v594
  %v653 = vpack.c.bf16 %v595, %v595
  %v654 = vpack.c.bf16 %v596, %v596
  %v655 = vpack.c.bf16 %v597, %v597
  %v656 = vpack.c.bf16 %v598, %v598
  %v657 = vpack.c.bf16 %v599, %v599
  %v658 = vpack.c.bf16 %v600, %v600
  %v659 = vpack.c.bf16 %v601, %v601
  %v660 = vpack.c.bf16 %v602, %v602
  %v661 = vpack.c.bf16 %v603, %v603
  %v662 = vpack.c.bf16 %v604, %v604
  %v663 = vpack.c.bf16 %v605, %v605
  %v664 = vpack.c.bf16 %v606, %v606
  %v665 = vpack.c.bf16 %v607, %v607
  %v666 = vpack.c.bf16 %v608, %v608
  %v667 = vpack.c.bf16 %v609, %v609
  %v668 = vpack.c.bf16 %v610, %v610
  %v669 = vpack.c.bf16 %v611, %v611
  %v670 = vpack.c.bf16 %v612, %v612
  %v671 = vpack.c.bf16 %v613, %v613
  %v672 = vpack.c.bf16 %v614, %v614
  %v673 = vpack.c.bf16 %v615, %v615
  %v674 = vpack.c.bf16 %v616, %v616
  %v675 = vpack.c.bf16 %v617, %v617
  %v676 = vpack.c.bf16 %v618, %v618
  %v677 = vpack.c.bf16 %v619, %v619
  %v678 = vpack.c.bf16 %v620, %v620
  %v679 = vpack.c.bf16 %v621, %v621
  %v680 = vpack.c.bf16 %v622, %v622
  %v681 = vpack.c.bf16 %v623, %v623
  %v682 = vpack.c.bf16 %v624, %v624
  %v683 = vpack.c.bf16 %v625, %v625
  %v684 = vpack.c.bf16 %v626, %v626
  %v685 = vpack.c.bf16 %v627, %v627
  %v686 = vpack.c.bf16 %v628, %v628
  %v687 = vpack.c.bf16 %v629, %v629
  %v688 = vpack.c.bf16 %v630, %v630
  %v689 = vpack.c.bf16 %v631, %v631
  %v690 = vpack.c.bf16 %v632, %v632
  %v691 = vpack.c.bf16 %v633, %v633
  %v692 = vpack.c.bf16 %v634, %v634
  %v693 = vpack.c.bf16 %v635, %v635
  %v694 = vpack.c.bf16 %v636, %v636
  %v695 = vpack.c.bf16 %v637, %v637
  %v696 = vpack.c.bf16 %v638, %v638
  %v697 = vpack.c.bf16 %v639, %v639
  %v698 = vpack.c.bf16 %v640, %v640
  %v699 = vpack.c.bf16 %v641, %v641
  %700 = vst [vmem:[%s3] sm:$0xf] %v642
  %701 = vst [vmem:[%s3 + $0x4] sm:$0xf] %v643
  %702 = vst [vmem:[%s3 + $0x8] sm:$0xf] %v644
  %703 = vst [vmem:[%s3 + $0xc] sm:$0xf] %v645
  %704 = vst [vmem:[%s3 + $0x10] sm:$0xf] %v646
  %705 = vst [vmem:[%s3 + $0x14] sm:$0xf] %v647
  %706 = vst [vmem:[%s3 + $0x18] sm:$0xf] %v648
  %707 = vst [vmem:[%s3 + $0x1c] sm:$0xf] %v649
  %708 = vst [vmem:[%s3 + $0x20] sm:$0xf] %v650
  %709 = vst [vmem:[%s3 + $0x24] sm:$0xf] %v651
  %710 = vst [vmem:[%s3 + $0x28] sm:$0xf] %v652
  %711 = vst [vmem:[%s3 + $0x2c] sm:$0xf] %v653
  %712 = vst [vmem:[%s3 + $0x30] sm:$0xf] %v654
  %713 = vst [vmem:[%s3 + $0x34] sm:$0xf] %v655
  %714 = vst [vmem:[%s3 + $0x38] sm:$0xf] %v656
  %715 = vst [vmem:[%s3 + $0x3c] sm:$0xf] %v657
  %716 = vst [vmem:[%s3 + $0x40] sm:$0xf] %v658
  %717 = vst [vmem:[%s3 + $0x44] sm:$0xf] %v659
  %718 = vst [vmem:[%s3 + $0x48] sm:$0xf] %v660
  %719 = vst [vmem:[%s3 + $0x4c] sm:$0xf] %v661
  %720 = vst [vmem:[%s3 + $0x50] sm:$0xf] %v662
  %721 = vst [vmem:[%s3 + $0x54] sm:$0xf] %v663
  %722 = vst [vmem:[%s3 + $0x58] sm:$0xf] %v664
  %723 = vst [vmem:[%s3 + $0x5c] sm:$0xf] %v665
  %724 = vst [vmem:[%s3 + $0x60] sm:$0xf] %v666
  %725 = vst [vmem:[%s3 + $0x64] sm:$0xf] %v667
  %726 = vst [vmem:[%s3 + $0x68] sm:$0xf] %v668
  %727 = vst [vmem:[%s3 + $0x6c] sm:$0xf] %v669
  %728 = vst [vmem:[%s3 + $0x70] sm:$0xf] %v670
  %729 = vst [vmem:[%s3 + $0x74] sm:$0xf] %v671
  %730 = vst [vmem:[%s3 + $0x78] sm:$0xf] %v672
  %731 = vst [vmem:[%s3 + $0x7c] sm:$0xf] %v673
  %732 = vst [vmem:[%s3 + $0x80] sm:$0xf] %v674
  %733 = vst [vmem:[%s3 + $0x84] sm:$0xf] %v675
  %734 = vst [vmem:[%s3 + $0x88] sm:$0xf] %v676
  %735 = vst [vmem:[%s3 + $0x8c] sm:$0xf] %v677
  %736 = vst [vmem:[%s3 + $0x90] sm:$0xf] %v678
  %737 = vst [vmem:[%s3 + $0x94] sm:$0xf] %v679
  %738 = vst [vmem:[%s3 + $0x98] sm:$0xf] %v680
  %739 = vst [vmem:[%s3 + $0x9c] sm:$0xf] %v681
  %740 = vst [vmem:[%s3 + $0xa0] sm:$0xf] %v682
  %741 = vst [vmem:[%s3 + $0xa4] sm:$0xf] %v683
  %742 = vst [vmem:[%s3 + $0xa8] sm:$0xf] %v684
  %743 = vst [vmem:[%s3 + $0xac] sm:$0xf] %v685
  %744 = vst [vmem:[%s3 + $0xb0] sm:$0xf] %v686
  %745 = vst [vmem:[%s3 + $0xb4] sm:$0xf] %v687
  %746 = vst [vmem:[%s3 + $0xb8] sm:$0xf] %v688
  %747 = vst [vmem:[%s3 + $0xbc] sm:$0xf] %v689
  %748 = vst [vmem:[%s3 + $0xc0] sm:$0xf] %v690
  %749 = vst [vmem:[%s3 + $0xc4] sm:$0xf] %v691
  %750 = vst [vmem:[%s3 + $0xc8] sm:$0xf] %v692
  %751 = vst [vmem:[%s3 + $0xcc] sm:$0xf] %v693
  %752 = vst [vmem:[%s3 + $0xd0] sm:$0xf] %v694
  %753 = vst [vmem:[%s3 + $0xd4] sm:$0xf] %v695
  %754 = vst [vmem:[%s3 + $0xd8] sm:$0xf] %v696
  %755 = vst [vmem:[%s3 + $0xdc] sm:$0xf] %v697
  %756 = vst [vmem:[%s3 + $0xe0] sm:$0xf] %v698
  %757 = vst [vmem:[%s3 + $0xe4] sm:$0xf] %v699
  // Predicated region
  $region14: #{forward.8} parent=0 // pred_check
    _
  $region15: #{forward.8} parent=0 // pred_check_branch
    %759 = sbr.rel (0) target = $region17
  $region16: #{forward.8} parent=0 // pred_region
    _
  $region17: #{forward.8} parent=0 // pred_fallthru
    _
  // Predicated region
  $region18: #{forward.8} parent=0 // pred_check
    _
  $region19: #{forward.8} parent=0 // pred_check_branch
    %761 = sbr.rel (0) target = $region21
  $region20: #{forward.8} parent=0 // pred_region
    _
  $region21: #{forward.8} parent=0 // pred_fallthru
    _

// kernel: forward.9
$region0: #{forward.9}
  #allocation0 [shape = 'u32[]', space=smem, size = 0x4, offset = 0x4, fixed_abs, tag = 'smem constant byte address 0x4 - core index']
  #allocation1 [shape = 'u32[72,128]{1,0:T(1,128)}', space=vmem, size = 0x9000, scoped, tag = 'internal scratch']
  %s0 = inlined_call_operand.vmem [shape: bf16[112,512], index: 0, kind: input, shape index: {}]
  %s1 = inlined_call_operand.vmem [shape: bf16[512,128], index: 1, kind: input, shape index: {}]
  %s2 = inlined_call_operand.vmem [shape: f32[1,128], index: 2, kind: input, shape index: {}]
  %s3 = inlined_call_operand.vmem [shape: bf16[112,128], index: 3, kind: output, shape index: {}]
  %s4 = sld [smem:[#allocation0]]
  $region22: #{forward.9} parent=0
    _
  %s6 = ssub.s32 1, %s4
  %s7 = scalar_select 0, %s6, %s4
  // Predicated region
  $region2: #{forward.9} parent=0 // pred_check
    _
  $region3: #{forward.9} parent=0 // pred_check_branch
    %9 = sbr.rel (0) target = $region5
  $region4: #{forward.9} parent=0 // pred_region
    _
  $region5: #{forward.9} parent=0 // pred_fallthru
    _
  // Predicated region
  $region6: #{forward.9} parent=0 // pred_check
    _
  $region7: #{forward.9} parent=0 // pred_check_branch
    %11 = sbr.rel (0) target = $region9
  $region8: #{forward.9} parent=0 // pred_region
    _
  $region9: #{forward.9} parent=0 // pred_fallthru
    _
  // Predicated region
  $region10: #{forward.9} parent=0 // pred_check
    _
  $region11: #{forward.9} parent=0 // pred_check_branch
    %13 = sbr.rel (0) target = $region13
  $region12: #{forward.9} parent=0 // pred_region
    _
  $region13: #{forward.9} parent=0 // pred_fallthru
    _
  %v14 = vld [vmem:[%s0] sm:$0xff]
  %v15 = vld [vmem:[%s0 + $0x8] sm:$0xff]
  %v16 = vld [vmem:[%s0 + $0x10] sm:$0xff]
  %v17 = vld [vmem:[%s0 + $0x18] sm:$0xff]
  %v18 = vld [vmem:[%s0 + $0x20] sm:$0xff]
  %v19 = vld [vmem:[%s0 + $0x28] sm:$0xff]
  %v20 = vld [vmem:[%s0 + $0x30] sm:$0xff]
  %v21 = vld [vmem:[%s0 + $0x38] sm:$0xff]
  %v22 = vld [vmem:[%s0 + $0x40] sm:$0xff]
  %v23 = vld [vmem:[%s0 + $0x48] sm:$0xff]
  %v24 = vld [vmem:[%s0 + $0x50] sm:$0xff]
  %v25 = vld [vmem:[%s0 + $0x58] sm:$0xff]
  %v26 = vld [vmem:[%s0 + $0x60] sm:$0xff]
  %v27 = vld [vmem:[%s0 + $0x68] sm:$0xff]
  %v28 = vld [vmem:[%s0 + $0x70] sm:$0xff]
  %v29 = vld [vmem:[%s0 + $0x78] sm:$0xff]
  %v30 = vld [vmem:[%s0 + $0x80] sm:$0xff]
  %v31 = vld [vmem:[%s0 + $0x88] sm:$0xff]
  %v32 = vld [vmem:[%s0 + $0x90] sm:$0xff]
  %v33 = vld [vmem:[%s0 + $0x98] sm:$0xff]
  %v34 = vld [vmem:[%s0 + $0xa0] sm:$0xff]
  %v35 = vld [vmem:[%s0 + $0xa8] sm:$0xff]
  %v36 = vld [vmem:[%s0 + $0xb0] sm:$0xff]
  %v37 = vld [vmem:[%s0 + $0xb8] sm:$0xff]
  %v38 = vld [vmem:[%s0 + $0xc0] sm:$0xff]
  %v39 = vld [vmem:[%s0 + $0xc8] sm:$0xff]
  %v40 = vld [vmem:[%s0 + $0xd0] sm:$0xff]
  %v41 = vld [vmem:[%s0 + $0xd8] sm:$0xff]
  %v42 = vld [vmem:[%s1] sm:$0xf]
  %v43 = vld [vmem:[%s1 + $0x4] sm:$0xf]
  %v44 = vld [vmem:[%s1 + $0x8] sm:$0xf]
  %v45 = vld [vmem:[%s1 + $0xc] sm:$0xf]
  %v46 = vld [vmem:[%s1 + $0x10] sm:$0xf]
  %v47 = vld [vmem:[%s1 + $0x14] sm:$0xf]
  %v48 = vld [vmem:[%s1 + $0x18] sm:$0xf]
  %v49 = vld [vmem:[%s1 + $0x1c] sm:$0xf]
  %v50 = vld [vmem:[%s1 + $0x20] sm:$0xf]
  %v51 = vld [vmem:[%s1 + $0x24] sm:$0xf]
  %v52 = vld [vmem:[%s1 + $0x28] sm:$0xf]
  %v53 = vld [vmem:[%s1 + $0x2c] sm:$0xf]
  %v54 = vld [vmem:[%s1 + $0x30] sm:$0xf]
  %v55 = vld [vmem:[%s1 + $0x34] sm:$0xf]
  %v56 = vld [vmem:[%s1 + $0x38] sm:$0xf]
  %v57 = vld [vmem:[%s1 + $0x3c] sm:$0xf]
  %v58 = vld [vmem:[%s1 + $0x40] sm:$0xf]
  %v59 = vld [vmem:[%s1 + $0x44] sm:$0xf]
  %v60 = vld [vmem:[%s1 + $0x48] sm:$0xf]
  %v61 = vld [vmem:[%s1 + $0x4c] sm:$0xf]
  %v62 = vld [vmem:[%s1 + $0x50] sm:$0xf]
  %v63 = vld [vmem:[%s1 + $0x54] sm:$0xf]
  %v64 = vld [vmem:[%s1 + $0x58] sm:$0xf]
  %v65 = vld [vmem:[%s1 + $0x5c] sm:$0xf]
  %v66 = vld [vmem:[%s1 + $0x60] sm:$0xf]
  %v67 = vld [vmem:[%s1 + $0x64] sm:$0xf]
  %v68 = vld [vmem:[%s1 + $0x68] sm:$0xf]
  %v69 = vld [vmem:[%s1 + $0x6c] sm:$0xf]
  %v70 = vld [vmem:[%s1 + $0x70] sm:$0xf]
  %v71 = vld [vmem:[%s1 + $0x74] sm:$0xf]
  %v72 = vld [vmem:[%s1 + $0x78] sm:$0xf]
  %v73 = vld [vmem:[%s1 + $0x7c] sm:$0xf]
  %v74 = vld [vmem:[%s1 + $0x80] sm:$0xf]
  %v75 = vld [vmem:[%s1 + $0x84] sm:$0xf]
  %v76 = vld [vmem:[%s1 + $0x88] sm:$0xf]
  %v77 = vld [vmem:[%s1 + $0x8c] sm:$0xf]
  %v78 = vld [vmem:[%s1 + $0x90] sm:$0xf]
  %v79 = vld [vmem:[%s1 + $0x94] sm:$0xf]
  %v80 = vld [vmem:[%s1 + $0x98] sm:$0xf]
  %v81 = vld [vmem:[%s1 + $0x9c] sm:$0xf]
  %v82 = vld [vmem:[%s1 + $0xa0] sm:$0xf]
  %v83 = vld [vmem:[%s1 + $0xa4] sm:$0xf]
  %v84 = vld [vmem:[%s1 + $0xa8] sm:$0xf]
  %v85 = vld [vmem:[%s1 + $0xac] sm:$0xf]
  %v86 = vld [vmem:[%s1 + $0xb0] sm:$0xf]
  %v87 = vld [vmem:[%s1 + $0xb4] sm:$0xf]
  %v88 = vld [vmem:[%s1 + $0xb8] sm:$0xf]
  %v89 = vld [vmem:[%s1 + $0xbc] sm:$0xf]
  %v90 = vld [vmem:[%s1 + $0xc0] sm:$0xf]
  %v91 = vld [vmem:[%s1 + $0xc4] sm:$0xf]
  %v92 = vld [vmem:[%s1 + $0xc8] sm:$0xf]
  %v93 = vld [vmem:[%s1 + $0xcc] sm:$0xf]
  %v94 = vld [vmem:[%s1 + $0xd0] sm:$0xf]
  %v95 = vld [vmem:[%s1 + $0xd4] sm:$0xf]
  %v96 = vld [vmem:[%s1 + $0xd8] sm:$0xf]
  %v97 = vld [vmem:[%s1 + $0xdc] sm:$0xf]
  %v98 = vld [vmem:[%s1 + $0xe0] sm:$0xf]
  %v99 = vld [vmem:[%s1 + $0xe4] sm:$0xf]
  %v100 = vld [vmem:[%s1 + $0xe8] sm:$0xf]
  %v101 = vld [vmem:[%s1 + $0xec] sm:$0xf]
  %v102 = vld [vmem:[%s1 + $0xf0] sm:$0xf]
  %v103 = vld [vmem:[%s1 + $0xf4] sm:$0xf]
  %v104 = vld [vmem:[%s1 + $0xf8] sm:$0xf]
  %v105 = vld [vmem:[%s1 + $0xfc] sm:$0xf]
  %v106 = vld [vmem:[%s2] sm:$0x1]
  %v108 = vperm.slane %v106, 0
  %v138 = vunpack.c.l.b16 %v14
  %v139 = vunpack.c.h.b16 %v14
  %v140 = vunpack.c.l.b16 %v15
  %v141 = vunpack.c.h.b16 %v15
  %v142 = vunpack.c.l.b16 %v16
  %v143 = vunpack.c.h.b16 %v16
  %v144 = vunpack.c.l.b16 %v17
  %v145 = vunpack.c.h.b16 %v17
  %v146 = vunpack.c.l.b16 %v18
  %v147 = vunpack.c.h.b16 %v18
  %v148 = vunpack.c.l.b16 %v19
  %v149 = vunpack.c.h.b16 %v19
  %v150 = vunpack.c.l.b16 %v20
  %v151 = vunpack.c.h.b16 %v20
  %v152 = vunpack.c.l.b16 %v21
  %v153 = vunpack.c.h.b16 %v21
  %v154 = vunpack.c.l.b16 %v22
  %v155 = vunpack.c.h.b16 %v22
  %v156 = vunpack.c.l.b16 %v23
  %v157 = vunpack.c.h.b16 %v23
  %v158 = vunpack.c.l.b16 %v24
  %v159 = vunpack.c.h.b16 %v24
  %v160 = vunpack.c.l.b16 %v25
  %v161 = vunpack.c.h.b16 %v25
  %v162 = vunpack.c.l.b16 %v26
  %v163 = vunpack.c.h.b16 %v26
  %v164 = vunpack.c.l.b16 %v27
  %v165 = vunpack.c.h.b16 %v27
  %v166 = vunpack.c.l.b16 %v28
  %v167 = vunpack.c.h.b16 %v28
  %v168 = vunpack.c.l.b16 %v29
  %v169 = vunpack.c.h.b16 %v29
  %v170 = vunpack.c.l.b16 %v30
  %v171 = vunpack.c.h.b16 %v30
  %v172 = vunpack.c.l.b16 %v31
  %v173 = vunpack.c.h.b16 %v31
  %v174 = vunpack.c.l.b16 %v32
  %v175 = vunpack.c.h.b16 %v32
  %v176 = vunpack.c.l.b16 %v33
  %v177 = vunpack.c.h.b16 %v33
  %v178 = vunpack.c.l.b16 %v34
  %v179 = vunpack.c.h.b16 %v34
  %v180 = vunpack.c.l.b16 %v35
  %v181 = vunpack.c.h.b16 %v35
  %v182 = vunpack.c.l.b16 %v36
  %v183 = vunpack.c.h.b16 %v36
  %v184 = vunpack.c.l.b16 %v37
  %v185 = vunpack.c.h.b16 %v37
  %v186 = vunpack.c.l.b16 %v38
  %v187 = vunpack.c.h.b16 %v38
  %v188 = vunpack.c.l.b16 %v39
  %v189 = vunpack.c.h.b16 %v39
  %v190 = vunpack.c.l.b16 %v40
  %v191 = vunpack.c.h.b16 %v40
  %v192 = vunpack.c.l.b16 %v41
  %v193 = vunpack.c.h.b16 %v41
  %v194 = vpack.c.b16 %v142, %v138
  %v195 = vpack.c.b16 %v143, %v139
  %v196 = vpack.c.b16 %v144, %v140
  %v197 = vpack.c.b16 %v145, %v141
  %v198 = vpack.c.b16 %v150, %v146
  %v199 = vpack.c.b16 %v151, %v147
  %v200 = vpack.c.b16 %v152, %v148
  %v201 = vpack.c.b16 %v153, %v149
  %v202 = vpack.c.b16 %v158, %v154
  %v203 = vpack.c.b16 %v159, %v155
  %v204 = vpack.c.b16 %v160, %v156
  %v205 = vpack.c.b16 %v161, %v157
  %v206 = vpack.c.b16 %v166, %v162
  %v207 = vpack.c.b16 %v167, %v163
  %v208 = vpack.c.b16 %v168, %v164
  %v209 = vpack.c.b16 %v169, %v165
  %v210 = vpack.c.b16 %v174, %v170
  %v211 = vpack.c.b16 %v175, %v171
  %v212 = vpack.c.b16 %v176, %v172
  %v213 = vpack.c.b16 %v177, %v173
  %v214 = vpack.c.b16 %v182, %v178
  %v215 = vpack.c.b16 %v183, %v179
  %v216 = vpack.c.b16 %v184, %v180
  %v217 = vpack.c.b16 %v185, %v181
  %v218 = vpack.c.b16 %v190, %v186
  %v219 = vpack.c.b16 %v191, %v187
  %v220 = vpack.c.b16 %v192, %v188
  %v221 = vpack.c.b16 %v193, %v189
  %v314 = vunpack.c.l.b16 %v42
  %v315 = vunpack.c.l.b16 %v43
  %v316 = vunpack.c.l.b16 %v44
  %v317 = vunpack.c.l.b16 %v45
  %v318 = vunpack.c.l.b16 %v46
  %v319 = vunpack.c.l.b16 %v47
  %v320 = vunpack.c.l.b16 %v48
  %v321 = vunpack.c.l.b16 %v49
  %v322 = vunpack.c.l.b16 %v50
  %v323 = vunpack.c.l.b16 %v51
  %v324 = vunpack.c.l.b16 %v52
  %v325 = vunpack.c.l.b16 %v53
  %v326 = vunpack.c.l.b16 %v54
  %v327 = vunpack.c.l.b16 %v55
  %v328 = vunpack.c.l.b16 %v56
  %v329 = vunpack.c.l.b16 %v57
  %v330 = vunpack.c.l.b16 %v58
  %v331 = vunpack.c.l.b16 %v59
  %v332 = vunpack.c.l.b16 %v60
  %v333 = vunpack.c.l.b16 %v61
  %v334 = vunpack.c.l.b16 %v62
  %v335 = vunpack.c.l.b16 %v63
  %v336 = vunpack.c.l.b16 %v64
  %v337 = vunpack.c.l.b16 %v65
  %v338 = vunpack.c.l.b16 %v66
  %v339 = vunpack.c.l.b16 %v67
  %v340 = vunpack.c.l.b16 %v68
  %v341 = vunpack.c.l.b16 %v69
  %v342 = vunpack.c.l.b16 %v70
  %v343 = vunpack.c.l.b16 %v71
  %v344 = vunpack.c.l.b16 %v72
  %v345 = vunpack.c.l.b16 %v73
  %v346 = vunpack.c.l.b16 %v74
  %v347 = vunpack.c.l.b16 %v75
  %v348 = vunpack.c.l.b16 %v76
  %v349 = vunpack.c.l.b16 %v77
  %v350 = vunpack.c.l.b16 %v78
  %v351 = vunpack.c.l.b16 %v79
  %v352 = vunpack.c.l.b16 %v80
  %v353 = vunpack.c.l.b16 %v81
  %v354 = vunpack.c.l.b16 %v82
  %v355 = vunpack.c.l.b16 %v83
  %v356 = vunpack.c.l.b16 %v84
  %v357 = vunpack.c.l.b16 %v85
  %v358 = vunpack.c.l.b16 %v86
  %v359 = vunpack.c.l.b16 %v87
  %v360 = vunpack.c.l.b16 %v88
  %v361 = vunpack.c.l.b16 %v89
  %v362 = vunpack.c.l.b16 %v90
  %v363 = vunpack.c.l.b16 %v91
  %v364 = vunpack.c.l.b16 %v92
  %v365 = vunpack.c.l.b16 %v93
  %v366 = vunpack.c.l.b16 %v94
  %v367 = vunpack.c.l.b16 %v95
  %v368 = vunpack.c.l.b16 %v96
  %v369 = vunpack.c.l.b16 %v97
  %v370 = vunpack.c.l.b16 %v98
  %v371 = vunpack.c.l.b16 %v99
  %v372 = vunpack.c.l.b16 %v100
  %v373 = vunpack.c.l.b16 %v101
  %v374 = vunpack.c.l.b16 %v102
  %v375 = vunpack.c.l.b16 %v103
  %v376 = vunpack.c.l.b16 %v104
  %v377 = vunpack.c.l.b16 %v105
  %v378 = vpack.c.b16 %v315, %v314
  %v379 = vpack.c.b16 %v317, %v316
  %v380 = vpack.c.b16 %v319, %v318
  %v381 = vpack.c.b16 %v321, %v320
  %v382 = vpack.c.b16 %v323, %v322
  %v383 = vpack.c.b16 %v325, %v324
  %v384 = vpack.c.b16 %v327, %v326
  %v385 = vpack.c.b16 %v329, %v328
  %v386 = vpack.c.b16 %v331, %v330
  %v387 = vpack.c.b16 %v333, %v332
  %v388 = vpack.c.b16 %v335, %v334
  %v389 = vpack.c.b16 %v337, %v336
  %v390 = vpack.c.b16 %v339, %v338
  %v391 = vpack.c.b16 %v341, %v340
  %v392 = vpack.c.b16 %v343, %v342
  %v393 = vpack.c.b16 %v345, %v344
  %v394 = vpack.c.b16 %v347, %v346
  %v395 = vpack.c.b16 %v349, %v348
  %v396 = vpack.c.b16 %v351, %v350
  %v397 = vpack.c.b16 %v353, %v352
  %v398 = vpack.c.b16 %v355, %v354
  %v399 = vpack.c.b16 %v357, %v356
  %v400 = vpack.c.b16 %v359, %v358
  %v401 = vpack.c.b16 %v361, %v360
  %v402 = vpack.c.b16 %v363, %v362
  %v403 = vpack.c.b16 %v365, %v364
  %v404 = vpack.c.b16 %v367, %v366
  %v405 = vpack.c.b16 %v369, %v368
  %v406 = vpack.c.b16 %v371, %v370
  %v407 = vpack.c.b16 %v373, %v372
  %v408 = vpack.c.b16 %v375, %v374
  %v409 = vpack.c.b16 %v377, %v376
  %442 = vmatpush.bf16.msra.mxu0 %v385
  %443 = vmatpush.bf16.msra.mxu0 %v384
  %444 = vmatpush.bf16.msra.mxu0 %v383
  %445 = vmatpush.bf16.msra.mxu0 %v382
  %446 = vmatpush.bf16.msra.mxu0 %v381
  %447 = vmatpush.bf16.msra.mxu0 %v380
  %448 = vmatpush.bf16.msra.mxu0 %v379
  %449 = vmatpush.bf16.msra.mxu0 %v378
  %450 = vmatmul.bf16.gmra.mxu0 %v194
  %v451 = vpop.f32.mrf.mxu0
  %v452 = vadd.f32 %v108, %v451
  %v453 = vpop.f32.mrf.mxu0
  %v454 = vadd.f32 %v108, %v453
  %455 = vmatmul.bf16.gmra.mxu0 %v198
  %v456 = vpop.f32.mrf.mxu0
  %v457 = vadd.f32 %v108, %v456
  %v458 = vpop.f32.mrf.mxu0
  %v459 = vadd.f32 %v108, %v458
  %460 = vmatmul.bf16.gmra.mxu0 %v202
  %v461 = vpop.f32.mrf.mxu0
  %v462 = vadd.f32 %v108, %v461
  %v463 = vpop.f32.mrf.mxu0
  %v464 = vadd.f32 %v108, %v463
  %465 = vmatmul.bf16.gmra.mxu0 %v206
  %v466 = vpop.f32.mrf.mxu0
  %v467 = vadd.f32 %v108, %v466
  %v468 = vpop.f32.mrf.mxu0
  %v469 = vadd.f32 %v108, %v468
  %470 = vmatmul.bf16.gmra.mxu0 %v210
  %v471 = vpop.f32.mrf.mxu0
  %v472 = vadd.f32 %v108, %v471
  %v473 = vpop.f32.mrf.mxu0
  %v474 = vadd.f32 %v108, %v473
  %475 = vmatmul.bf16.gmra.mxu0 %v214
  %v476 = vpop.f32.mrf.mxu0
  %v477 = vadd.f32 %v108, %v476
  %v478 = vpop.f32.mrf.mxu0
  %v479 = vadd.f32 %v108, %v478
  %480 = vmatmul.bf16.gmra.mxu0 %v218
  %v481 = vpop.f32.mrf.mxu0
  %v482 = vadd.f32 %v108, %v481
  %v483 = vpop.f32.mrf.mxu0
  %v484 = vadd.f32 %v108, %v483
  %485 = vdwg.mxu0
  %486 = vmatpush.bf16.msra.mxu0 %v393
  %487 = vmatpush.bf16.msra.mxu0 %v392
  %488 = vmatpush.bf16.msra.mxu0 %v391
  %489 = vmatpush.bf16.msra.mxu0 %v390
  %490 = vmatpush.bf16.msra.mxu0 %v389
  %491 = vmatpush.bf16.msra.mxu0 %v388
  %492 = vmatpush.bf16.msra.mxu0 %v387
  %493 = vmatpush.bf16.msra.mxu0 %v386
  %494 = vmatmul.bf16.gmra.mxu0 %v195
  %v495 = vpop.f32.mrf.mxu0
  %v496 = vadd.f32 %v452, %v495
  %v497 = vpop.f32.mrf.mxu0
  %v498 = vadd.f32 %v454, %v497
  %499 = vmatmul.bf16.gmra.mxu0 %v199
  %v500 = vpop.f32.mrf.mxu0
  %v501 = vadd.f32 %v457, %v500
  %v502 = vpop.f32.mrf.mxu0
  %v503 = vadd.f32 %v459, %v502
  %504 = vmatmul.bf16.gmra.mxu0 %v203
  %v505 = vpop.f32.mrf.mxu0
  %v506 = vadd.f32 %v462, %v505
  %v507 = vpop.f32.mrf.mxu0
  %v508 = vadd.f32 %v464, %v507
  %509 = vmatmul.bf16.gmra.mxu0 %v207
  %v510 = vpop.f32.mrf.mxu0
  %v511 = vadd.f32 %v467, %v510
  %v512 = vpop.f32.mrf.mxu0
  %v513 = vadd.f32 %v469, %v512
  %514 = vmatmul.bf16.gmra.mxu0 %v211
  %v515 = vpop.f32.mrf.mxu0
  %v516 = vadd.f32 %v472, %v515
  %v517 = vpop.f32.mrf.mxu0
  %v518 = vadd.f32 %v474, %v517
  %519 = vmatmul.bf16.gmra.mxu0 %v215
  %v520 = vpop.f32.mrf.mxu0
  %v521 = vadd.f32 %v477, %v520
  %v522 = vpop.f32.mrf.mxu0
  %v523 = vadd.f32 %v479, %v522
  %524 = vmatmul.bf16.gmra.mxu0 %v219
  %v525 = vpop.f32.mrf.mxu0
  %v526 = vadd.f32 %v482, %v525
  %v527 = vpop.f32.mrf.mxu0
  %v528 = vadd.f32 %v484, %v527
  %529 = vdwg.mxu0
  %530 = vmatpush.bf16.msra.mxu0 %v401
  %531 = vmatpush.bf16.msra.mxu0 %v400
  %532 = vmatpush.bf16.msra.mxu0 %v399
  %533 = vmatpush.bf16.msra.mxu0 %v398
  %534 = vmatpush.bf16.msra.mxu0 %v397
  %535 = vmatpush.bf16.msra.mxu0 %v396
  %536 = vmatpush.bf16.msra.mxu0 %v395
  %537 = vmatpush.bf16.msra.mxu0 %v394
  %538 = vmatmul.bf16.gmra.mxu0 %v196
  %v539 = vpop.f32.mrf.mxu0
  %v540 = vadd.f32 %v496, %v539
  %v541 = vpop.f32.mrf.mxu0
  %v542 = vadd.f32 %v498, %v541
  %543 = vmatmul.bf16.gmra.mxu0 %v200
  %v544 = vpop.f32.mrf.mxu0
  %v545 = vadd.f32 %v501, %v544
  %v546 = vpop.f32.mrf.mxu0
  %v547 = vadd.f32 %v503, %v546
  %548 = vmatmul.bf16.gmra.mxu0 %v204
  %v549 = vpop.f32.mrf.mxu0
  %v550 = vadd.f32 %v506, %v549
  %v551 = vpop.f32.mrf.mxu0
  %v552 = vadd.f32 %v508, %v551
  %553 = vmatmul.bf16.gmra.mxu0 %v208
  %v554 = vpop.f32.mrf.mxu0
  %v555 = vadd.f32 %v511, %v554
  %v556 = vpop.f32.mrf.mxu0
  %v557 = vadd.f32 %v513, %v556
  %558 = vmatmul.bf16.gmra.mxu0 %v212
  %v559 = vpop.f32.mrf.mxu0
  %v560 = vadd.f32 %v516, %v559
  %v561 = vpop.f32.mrf.mxu0
  %v562 = vadd.f32 %v518, %v561
  %563 = vmatmul.bf16.gmra.mxu0 %v216
  %v564 = vpop.f32.mrf.mxu0
  %v565 = vadd.f32 %v521, %v564
  %v566 = vpop.f32.mrf.mxu0
  %v567 = vadd.f32 %v523, %v566
  %568 = vmatmul.bf16.gmra.mxu0 %v220
  %v569 = vpop.f32.mrf.mxu0
  %v570 = vadd.f32 %v526, %v569
  %v571 = vpop.f32.mrf.mxu0
  %v572 = vadd.f32 %v528, %v571
  %573 = vdwg.mxu0
  %574 = vmatpush.bf16.msra.mxu0 %v409
  %575 = vmatpush.bf16.msra.mxu0 %v408
  %576 = vmatpush.bf16.msra.mxu0 %v407
  %577 = vmatpush.bf16.msra.mxu0 %v406
  %578 = vmatpush.bf16.msra.mxu0 %v405
  %579 = vmatpush.bf16.msra.mxu0 %v404
  %580 = vmatpush.bf16.msra.mxu0 %v403
  %581 = vmatpush.bf16.msra.mxu0 %v402
  %582 = vmatmul.bf16.gmra.mxu0 %v197
  %v583 = vpop.f32.mrf.mxu0
  %v584 = vadd.f32 %v540, %v583
  %v585 = vpop.f32.mrf.mxu0
  %v586 = vadd.f32 %v542, %v585
  %587 = vmatmul.bf16.gmra.mxu0 %v201
  %v588 = vpop.f32.mrf.mxu0
  %v589 = vadd.f32 %v545, %v588
  %v590 = vpop.f32.mrf.mxu0
  %v591 = vadd.f32 %v547, %v590
  %592 = vmatmul.bf16.gmra.mxu0 %v205
  %v593 = vpop.f32.mrf.mxu0
  %v594 = vadd.f32 %v550, %v593
  %v595 = vpop.f32.mrf.mxu0
  %v596 = vadd.f32 %v552, %v595
  %597 = vmatmul.bf16.gmra.mxu0 %v209
  %v598 = vpop.f32.mrf.mxu0
  %v599 = vadd.f32 %v555, %v598
  %v600 = vpop.f32.mrf.mxu0
  %v601 = vadd.f32 %v557, %v600
  %602 = vmatmul.bf16.gmra.mxu0 %v213
  %v603 = vpop.f32.mrf.mxu0
  %v604 = vadd.f32 %v560, %v603
  %v605 = vpop.f32.mrf.mxu0
  %v606 = vadd.f32 %v562, %v605
  %607 = vmatmul.bf16.gmra.mxu0 %v217
  %v608 = vpop.f32.mrf.mxu0
  %v609 = vadd.f32 %v565, %v608
  %v610 = vpop.f32.mrf.mxu0
  %v611 = vadd.f32 %v567, %v610
  %612 = vmatmul.bf16.gmra.mxu0 %v221
  %v613 = vpop.f32.mrf.mxu0
  %v614 = vadd.f32 %v570, %v613
  %v615 = vpop.f32.mrf.mxu0
  %v616 = vadd.f32 %v572, %v615
  %617 = vdwg.mxu0
  %vm618 = vcmp.ge.f32.partialorder %v584, 0.0
  %vm619 = vcmp.ge.f32.partialorder %v586, 0.0
  %vm620 = vcmp.ge.f32.partialorder %v589, 0.0
  %vm621 = vcmp.ge.f32.partialorder %v591, 0.0
  %vm622 = vcmp.ge.f32.partialorder %v594, 0.0
  %vm623 = vcmp.ge.f32.partialorder %v596, 0.0
  %vm624 = vcmp.ge.f32.partialorder %v599, 0.0
  %vm625 = vcmp.ge.f32.partialorder %v601, 0.0
  %vm626 = vcmp.ge.f32.partialorder %v604, 0.0
  %vm627 = vcmp.ge.f32.partialorder %v606, 0.0
  %vm628 = vcmp.ge.f32.partialorder %v609, 0.0
  %vm629 = vcmp.ge.f32.partialorder %v611, 0.0
  %vm630 = vcmp.ge.f32.partialorder %v614, 0.0
  %vm631 = vcmp.ge.f32.partialorder %v616, 0.0
  %v632 = vmul.f32 %v584, 0.2
  %v633 = vmul.f32 %v586, 0.2
  %v634 = vmul.f32 %v589, 0.2
  %v635 = vmul.f32 %v591, 0.2
  %v636 = vmul.f32 %v594, 0.2
  %v637 = vmul.f32 %v596, 0.2
  %v638 = vmul.f32 %v599, 0.2
  %v639 = vmul.f32 %v601, 0.2
  %v640 = vmul.f32 %v604, 0.2
  %v641 = vmul.f32 %v606, 0.2
  %v642 = vmul.f32 %v609, 0.2
  %v643 = vmul.f32 %v611, 0.2
  %v644 = vmul.f32 %v614, 0.2
  %v645 = vmul.f32 %v616, 0.2
  %v646 = vsel %vm618, %v584, %v632
  %v647 = vsel %vm619, %v586, %v633
  %v648 = vsel %vm620, %v589, %v634
  %v649 = vsel %vm621, %v591, %v635
  %v650 = vsel %vm622, %v594, %v636
  %v651 = vsel %vm623, %v596, %v637
  %v652 = vsel %vm624, %v599, %v638
  %v653 = vsel %vm625, %v601, %v639
  %v654 = vsel %vm626, %v604, %v640
  %v655 = vsel %vm627, %v606, %v641
  %v656 = vsel %vm628, %v609, %v642
  %v657 = vsel %vm629, %v611, %v643
  %v658 = vsel %vm630, %v614, %v644
  %v659 = vsel %vm631, %v616, %v645
  %v660 = vpack.c.bf16 %v646, %v646
  %v661 = vpack.c.bf16 %v647, %v647
  %v662 = vpack.c.bf16 %v648, %v648
  %v663 = vpack.c.bf16 %v649, %v649
  %v664 = vpack.c.bf16 %v650, %v650
  %v665 = vpack.c.bf16 %v651, %v651
  %v666 = vpack.c.bf16 %v652, %v652
  %v667 = vpack.c.bf16 %v653, %v653
  %v668 = vpack.c.bf16 %v654, %v654
  %v669 = vpack.c.bf16 %v655, %v655
  %v670 = vpack.c.bf16 %v656, %v656
  %v671 = vpack.c.bf16 %v657, %v657
  %v672 = vpack.c.bf16 %v658, %v658
  %v673 = vpack.c.bf16 %v659, %v659
  %674 = vst [vmem:[%s3] sm:$0xf] %v660
  %675 = vst [vmem:[%s3 + $0x4] sm:$0xf] %v661
  %676 = vst [vmem:[%s3 + $0x8] sm:$0xf] %v662
  %677 = vst [vmem:[%s3 + $0xc] sm:$0xf] %v663
  %678 = vst [vmem:[%s3 + $0x10] sm:$0xf] %v664
  %679 = vst [vmem:[%s3 + $0x14] sm:$0xf] %v665
  %680 = vst [vmem:[%s3 + $0x18] sm:$0xf] %v666
  %681 = vst [vmem:[%s3 + $0x1c] sm:$0xf] %v667
  %682 = vst [vmem:[%s3 + $0x20] sm:$0xf] %v668
  %683 = vst [vmem:[%s3 + $0x24] sm:$0xf] %v669
  %684 = vst [vmem:[%s3 + $0x28] sm:$0xf] %v670
  %685 = vst [vmem:[%s3 + $0x2c] sm:$0xf] %v671
  %686 = vst [vmem:[%s3 + $0x30] sm:$0xf] %v672
  %687 = vst [vmem:[%s3 + $0x34] sm:$0xf] %v673
  // Predicated region
  $region14: #{forward.9} parent=0 // pred_check
    _
  $region15: #{forward.9} parent=0 // pred_check_branch
    %689 = sbr.rel (0) target = $region17
  $region16: #{forward.9} parent=0 // pred_region
    _
  $region17: #{forward.9} parent=0 // pred_fallthru
    _
  // Predicated region
  $region18: #{forward.9} parent=0 // pred_check
    _
  $region19: #{forward.9} parent=0 // pred_check_branch
    %691 = sbr.rel (0) target = $region21
  $region20: #{forward.9} parent=0 // pred_region
    _
  $region21: #{forward.9} parent=0 // pred_fallthru
    _

// kernel: forward.10
$region0: #{forward.10}
  #allocation0 [shape = 'u32[]', space=smem, size = 0x4, offset = 0x4, fixed_abs, tag = 'smem constant byte address 0x4 - core index']
  #allocation1 [shape = 'u32[72,128]{1,0:T(1,128)}', space=vmem, size = 0x9000, scoped, tag = 'internal scratch']
  %s0 = inlined_call_operand.vmem [shape: bf16[32,1024], index: 0, kind: input, shape index: {}]
  %s1 = inlined_call_operand.vmem [shape: bf16[1024,128], index: 1, kind: input, shape index: {}]
  %s2 = inlined_call_operand.vmem [shape: f32[1,128], index: 2, kind: input, shape index: {}]
  %s3 = inlined_call_operand.vmem [shape: bf16[32,128], index: 3, kind: output, shape index: {}]
  %s4 = sld [smem:[#allocation0]]
  $region45: #{forward.10} parent=0
    _
  %s6 = ssub.s32 1, %s4
  %s7 = scalar_select 0, %s6, %s4
  loop: start=0, step=1, limit=4
  $region2: #{forward.10} parent=0 // loop_pre_header
    _
  $region3: #{forward.10} parent=0 // loop_header
    %s9 = sphi 0, %s13
    %p10 = scmp.ge.s32.totalorder %s9, 4
    %s16 = sphi 0, %s28
    %s17 = sphi 0, %s24
    %s18 = sphi 0, %s16
    %s19 = sphi 0, %s17
    %s20 = sphi 0, %s18
    %s21 = sphi 0, %s19
    %s31 = sphi 0, %s33
    %s34 = sphi 0, %s31
    %s35 = sphi 0, %s34
    %s51 = sphi 0, %s35
    %s57 = sphi 0, %s59
    %s60 = sphi 0, %s57
    %s61 = sphi 0, %s60
    %s77 = sphi 0, %s61
    %s83 = sphi 0, %s85
    %s86 = sphi 0, %s83
    %s87 = sphi 0, %s86
    %s103 = sphi 0, %s87
    %s111 = sphi 0, %s113
    %s114 = sphi 0, %s111
    %s115 = sphi 0, %s114
    %s131 = sphi 0, %s115
  $region4: #{forward.10} parent=0 // loop_header_branch
    %12 = sbr.rel (%p10) target = $region8
  $region5: #{forward.10} parent=0 // loop_body
    %s14 = ssub.s32 %s9, 1
    %s15 = ssub.s32 %s9, 2
    %s22 = sadd.s32 1, %s17
    %p23 = scmp.ge.s32.totalorder %s22, 1
    %s24 = scalar_select %p23, 0, %s22
    %s25 = sadd.s32 1, %s16
    %s26 = scalar_select %p23, %s25, %s16
    %p27 = scmp.ge.s32.totalorder %s26, 2
    %s28 = scalar_select %p27, 0, %s26
    %s29 = ssub.s32 %s16, %s28
    %p30 = scmp.eq.s32.totalorder %s29, 0
    %s32 = sadd.s32 %s31, 1
    %s33 = scalar_select %p30, %s31, %s32
    %p36 = pneg %p30
    %p37 = scmp.eq.s32.totalorder %s9, 1
    %p38 = por %p36, %p37
    %p39 = scmp.ne.s32.totalorder %s31, %s34
    %p40 = scmp.eq.s32.totalorder %s9, 0
    %p41 = por %p39, %p40
    %p42 = scmp.ne.s32.totalorder %s31, %s34
    %p43 = scmp.eq.s32.totalorder %s14, 1
    %p44 = por %p42, %p43
    %p45 = scmp.ne.s32.totalorder %s34, %s35
    %p46 = scmp.eq.s32.totalorder %s14, 0
    %p47 = por %p45, %p46
    %p48 = scmp.ne.s32.totalorder %s34, %s35
    %p49 = scmp.eq.s32.totalorder %s15, 1
    %p50 = por %p48, %p49
    %p52 = scmp.ne.s32.totalorder %s35, %s51
    %p53 = scmp.eq.s32.totalorder %s15, 0
    %p54 = por %p52, %p53
    %s55 = ssub.s32 %s17, %s24
    %p56 = scmp.eq.s32.totalorder %s55, 0
    %s58 = sadd.s32 %s57, 1
    %s59 = scalar_select %p56, %s57, %s58
    %p62 = pneg %p56
    %p63 = scmp.eq.s32.totalorder %s9, 1
    %p64 = por %p62, %p63
    %p65 = scmp.ne.s32.totalorder %s57, %s60
    %p66 = scmp.eq.s32.totalorder %s9, 0
    %p67 = por %p65, %p66
    %p68 = scmp.ne.s32.totalorder %s57, %s60
    %p69 = scmp.eq.s32.totalorder %s14, 1
    %p70 = por %p68, %p69
    %p71 = scmp.ne.s32.totalorder %s60, %s61
    %p72 = scmp.eq.s32.totalorder %s14, 0
    %p73 = por %p71, %p72
    %p74 = scmp.ne.s32.totalorder %s60, %s61
    %p75 = scmp.eq.s32.totalorder %s15, 1
    %p76 = por %p74, %p75
    %p78 = scmp.ne.s32.totalorder %s61, %s77
    %p79 = scmp.eq.s32.totalorder %s15, 0
    %p80 = por %p78, %p79
    %s81 = ssub.s32 %s17, %s24
    %p82 = scmp.eq.s32.totalorder %s81, 0
    %s84 = sadd.s32 %s83, 1
    %s85 = scalar_select %p82, %s83, %s84
    %p88 = pneg %p82
    %p89 = scmp.eq.s32.totalorder %s9, 1
    %p90 = por %p88, %p89
    %p91 = scmp.ne.s32.totalorder %s83, %s86
    %p92 = scmp.eq.s32.totalorder %s9, 0
    %p93 = por %p91, %p92
    %p94 = scmp.ne.s32.totalorder %s83, %s86
    %p95 = scmp.eq.s32.totalorder %s14, 1
    %p96 = por %p94, %p95
    %p97 = scmp.ne.s32.totalorder %s86, %s87
    %p98 = scmp.eq.s32.totalorder %s14, 0
    %p99 = por %p97, %p98
    %p100 = scmp.ne.s32.totalorder %s86, %s87
    %p101 = scmp.eq.s32.totalorder %s15, 1
    %p102 = por %p100, %p101
    %p104 = scmp.ne.s32.totalorder %s87, %s103
    %p105 = scmp.eq.s32.totalorder %s15, 0
    %p106 = por %p104, %p105
    %s107 = ssub.s32 %s16, %s28
    %s108 = ssub.s32 %s17, %s24
    %s109 = sor.u32 %s107, %s108
    %p110 = scmp.eq.s32.totalorder %s109, 0
    %s112 = sadd.s32 %s111, 1
    %s113 = scalar_select %p110, %s111, %s112
    %p116 = pneg %p110
    %p117 = scmp.eq.s32.totalorder %s9, 1
    %p118 = por %p116, %p117
    %p119 = scmp.ne.s32.totalorder %s111, %s114
    %p120 = scmp.eq.s32.totalorder %s9, 0
    %p121 = por %p119, %p120
    %p122 = scmp.ne.s32.totalorder %s111, %s114
    %p123 = scmp.eq.s32.totalorder %s14, 1
    %p124 = por %p122, %p123
    %p125 = scmp.ne.s32.totalorder %s114, %s115
    %p126 = scmp.eq.s32.totalorder %s14, 0
    %p127 = por %p125, %p126
    %p128 = scmp.ne.s32.totalorder %s114, %s115
    %p129 = scmp.eq.s32.totalorder %s15, 1
    %p130 = por %p128, %p129
    %p132 = scmp.ne.s32.totalorder %s115, %s131
    %p133 = scmp.eq.s32.totalorder %s15, 0
    %p134 = por %p132, %p133
    %p135 = scmp.le.s32.totalorder 1, %s9
    %p136 = scmp.lt.s32.totalorder %s9, 3
    %p137 = pnand %p135, %p136
    %p138 = pneg %p137
    // Predicated region
    $region9: #{forward.10} parent=5 // pred_check
      _
    $region10: #{forward.10} parent=5 // pred_check_branch
      %140 = sbr.rel (%p137) target = $region12
    $region11: #{forward.10} parent=5 // pred_region
      %s141 = ssub.s32 %s9, 1
      // Predicated region
      $region13: #{forward.10} parent=11 // pred_check
        %p142 = pneg %p73
      $region14: #{forward.10} parent=11 // pred_check_branch
        %144 = sbr.rel (%p142) target = $region16
      $region15: #{forward.10} parent=11 // pred_region
        %p145 = scmp.lt.s32.totalorder %s19, 0
        %s146 = scalar_select %p145, %s19, 0
        %s147 = smul.addr %s146, 4
        %s148 = scalar_lea.vmem %s1, %s147
      $region16: #{forward.10} parent=11 // pred_fallthru
        _
      // Predicated region
      $region17: #{forward.10} parent=11 // pred_check
        %p149 = pneg %p99
      $region18: #{forward.10} parent=11 // pred_check_branch
        %151 = sbr.rel (%p149) target = $region20
      $region19: #{forward.10} parent=11 // pred_region
        %p152 = scmp.lt.s32.totalorder %s19, 0
        %s153 = scalar_select %p152, %s19, 0
        %s154 = scalar_lea.vmem %s2, %s153
      $region20: #{forward.10} parent=11 // pred_fallthru
        _
    $region12: #{forward.10} parent=5 // pred_fallthru
      _
    %p155 = scmp.lt.s32.totalorder %s9, 2
    // Predicated region
    $region21: #{forward.10} parent=5 // pred_check
      %p156 = pneg %p155
    $region22: #{forward.10} parent=5 // pred_check_branch
      %158 = sbr.rel (%p156) target = $region24
    $region23: #{forward.10} parent=5 // pred_region
      // Predicated region
      $region25: #{forward.10} parent=23 // pred_check
        %p159 = pneg %p41
      $region26: #{forward.10} parent=23 // pred_check_branch
        %161 = sbr.rel (%p159) target = $region28
      $region27: #{forward.10} parent=23 // pred_region
        %s162 = smul.u32 2, %s16
        %p163 = scmp.lt.s32.totalorder %s162, 3
        %s164 = scalar_select %p163, %s162, 3
        %s165 = smul.addr %s164, 8
        %s166 = smul.addr %s165, 4
        %s167 = scalar_lea.vmem %s0, %s166
        %s168 = smul.u32 2, %s16
      $region28: #{forward.10} parent=23 // pred_fallthru
        _
    $region24: #{forward.10} parent=5 // pred_fallthru
      _
    %p169 = scmp.le.s32.totalorder 1, %s9
    %p170 = scmp.lt.s32.totalorder %s9, 3
    %p171 = pnand %p169, %p170
    %p172 = pneg %p171
    // Predicated region
    $region29: #{forward.10} parent=5 // pred_check
      _
    $region30: #{forward.10} parent=5 // pred_check_branch
      %174 = sbr.rel (%p171) target = $region32
    $region31: #{forward.10} parent=5 // pred_region
      %s175 = ssub.s32 %s9, 1
      %s176 = smul.u32 2, %s18
      %p177 = scmp.lt.s32.totalorder %s176, 3
      %s178 = scalar_select %p177, %s176, 3
      %s179 = smul.addr %s178, 8
      %s180 = smul.addr %s179, 4
      %s181 = scalar_lea.vmem %s0, %s180
      %p182 = pneg %p47
      %p183 = pneg %p44
      %p184 = scmp.lt.s32.totalorder %s19, 0
      %s185 = scalar_select %p184, %s19, 0
      %s186 = smul.addr %s185, 4
      %s187 = scalar_lea.vmem %s1, %s186
      %p188 = pneg %p73
      %p189 = pneg %p70
      %p190 = scmp.lt.s32.totalorder %s19, 0
      %s191 = scalar_select %p190, %s19, 0
      %s192 = scalar_lea.vmem %s2, %s191
      %p193 = pneg %p99
      %p194 = pneg %p96
      %p195 = pneg %p127
      %p196 = pneg %p124
      %s197 = smul.u32 2, %s18
      %p198 = scmp.lt.s32.totalorder %s197, 3
      %s199 = scalar_select %p198, %s197, 3
      %p200 = scmp.lt.s32.totalorder %s19, 0
      %s201 = scalar_select %p200, %s19, 0
      %s202 = sadd.s32 %s201, %s199
      %s203 = smul.addr %s202, 4
      %s204 = scalar_lea.vmem %s3, %s203
      %s205 = smul.u32 2, %s18
      %p206 = scmp.lt.s32.totalorder %s205, 3
      %s207 = scalar_select %p206, %s205, 3
      %s208 = smul.addr %s207, 8
      %s209 = smul.addr %s208, 4
      %s210 = scalar_lea.vmem %s0, %s209
      %s211 = smul.u32 2, %s18
      %p212 = scmp.lt.s32.totalorder %s19, 0
      %s213 = scalar_select %p212, %s19, 0
      %s214 = smul.addr %s213, 4
      %s215 = scalar_lea.vmem %s1, %s214
      %p216 = scmp.lt.s32.totalorder %s19, 0
      %s217 = scalar_select %p216, %s19, 0
      %s218 = scalar_lea.vmem %s2, %s217
      %s219 = smul.u32 2, %s18
      %p220 = scmp.lt.s32.totalorder %s219, 3
      %s221 = scalar_select %p220, %s219, 3
      %p222 = scmp.lt.s32.totalorder %s19, 0
      %s223 = scalar_select %p222, %s19, 0
      %s224 = sadd.s32 %s223, %s221
      %s225 = smul.addr %s224, 4
      %s226 = scalar_lea.vmem %s3, %s225
      %s227 = smul.u32 2, %s18
      %v228 = vld [vmem:[%s210] sm:$0xff]
      %v229 = vld [vmem:[%s210 + $0x8] sm:$0xff]
      %v230 = vld [vmem:[%s210 + $0x10] sm:$0xff]
      %v231 = vld [vmem:[%s210 + $0x18] sm:$0xff]
      %v232 = vld [vmem:[%s210 + $0x20] sm:$0xff]
      %v233 = vld [vmem:[%s210 + $0x28] sm:$0xff]
      %v234 = vld [vmem:[%s210 + $0x30] sm:$0xff]
      %v235 = vld [vmem:[%s210 + $0x38] sm:$0xff]
      %v236 = vld [vmem:[%s215] sm:$0xf]
      %v237 = vld [vmem:[%s215 + $0x4] sm:$0xf]
      %v238 = vld [vmem:[%s215 + $0x8] sm:$0xf]
      %v239 = vld [vmem:[%s215 + $0xc] sm:$0xf]
      %v240 = vld [vmem:[%s215 + $0x10] sm:$0xf]
      %v241 = vld [vmem:[%s215 + $0x14] sm:$0xf]
      %v242 = vld [vmem:[%s215 + $0x18] sm:$0xf]
      %v243 = vld [vmem:[%s215 + $0x1c] sm:$0xf]
      %v244 = vld [vmem:[%s215 + $0x20] sm:$0xf]
      %v245 = vld [vmem:[%s215 + $0x24] sm:$0xf]
      %v246 = vld [vmem:[%s215 + $0x28] sm:$0xf]
      %v247 = vld [vmem:[%s215 + $0x2c] sm:$0xf]
      %v248 = vld [vmem:[%s215 + $0x30] sm:$0xf]
      %v249 = vld [vmem:[%s215 + $0x34] sm:$0xf]
      %v250 = vld [vmem:[%s215 + $0x38] sm:$0xf]
      %v251 = vld [vmem:[%s215 + $0x3c] sm:$0xf]
      %v252 = vld [vmem:[%s215 + $0x40] sm:$0xf]
      %v253 = vld [vmem:[%s215 + $0x44] sm:$0xf]
      %v254 = vld [vmem:[%s215 + $0x48] sm:$0xf]
      %v255 = vld [vmem:[%s215 + $0x4c] sm:$0xf]
      %v256 = vld [vmem:[%s215 + $0x50] sm:$0xf]
      %v257 = vld [vmem:[%s215 + $0x54] sm:$0xf]
      %v258 = vld [vmem:[%s215 + $0x58] sm:$0xf]
      %v259 = vld [vmem:[%s215 + $0x5c] sm:$0xf]
      %v260 = vld [vmem:[%s215 + $0x60] sm:$0xf]
      %v261 = vld [vmem:[%s215 + $0x64] sm:$0xf]
      %v262 = vld [vmem:[%s215 + $0x68] sm:$0xf]
      %v263 = vld [vmem:[%s215 + $0x6c] sm:$0xf]
      %v264 = vld [vmem:[%s215 + $0x70] sm:$0xf]
      %v265 = vld [vmem:[%s215 + $0x74] sm:$0xf]
      %v266 = vld [vmem:[%s215 + $0x78] sm:$0xf]
      %v267 = vld [vmem:[%s215 + $0x7c] sm:$0xf]
      %v268 = vld [vmem:[%s215 + $0x80] sm:$0xf]
      %v269 = vld [vmem:[%s215 + $0x84] sm:$0xf]
      %v270 = vld [vmem:[%s215 + $0x88] sm:$0xf]
      %v271 = vld [vmem:[%s215 + $0x8c] sm:$0xf]
      %v272 = vld [vmem:[%s215 + $0x90] sm:$0xf]
      %v273 = vld [vmem:[%s215 + $0x94] sm:$0xf]
      %v274 = vld [vmem:[%s215 + $0x98] sm:$0xf]
      %v275 = vld [vmem:[%s215 + $0x9c] sm:$0xf]
      %v276 = vld [vmem:[%s215 + $0xa0] sm:$0xf]
      %v277 = vld [vmem:[%s215 + $0xa4] sm:$0xf]
      %v278 = vld [vmem:[%s215 + $0xa8] sm:$0xf]
      %v279 = vld [vmem:[%s215 + $0xac] sm:$0xf]
      %v280 = vld [vmem:[%s215 + $0xb0] sm:$0xf]
      %v281 = vld [vmem:[%s215 + $0xb4] sm:$0xf]
      %v282 = vld [vmem:[%s215 + $0xb8] sm:$0xf]
      %v283 = vld [vmem:[%s215 + $0xbc] sm:$0xf]
      %v284 = vld [vmem:[%s215 + $0xc0] sm:$0xf]
      %v285 = vld [vmem:[%s215 + $0xc4] sm:$0xf]
      %v286 = vld [vmem:[%s215 + $0xc8] sm:$0xf]
      %v287 = vld [vmem:[%s215 + $0xcc] sm:$0xf]
      %v288 = vld [vmem:[%s215 + $0xd0] sm:$0xf]
      %v289 = vld [vmem:[%s215 + $0xd4] sm:$0xf]
      %v290 = vld [vmem:[%s215 + $0xd8] sm:$0xf]
      %v291 = vld [vmem:[%s215 + $0xdc] sm:$0xf]
      %v292 = vld [vmem:[%s215 + $0xe0] sm:$0xf]
      %v293 = vld [vmem:[%s215 + $0xe4] sm:$0xf]
      %v294 = vld [vmem:[%s215 + $0xe8] sm:$0xf]
      %v295 = vld [vmem:[%s215 + $0xec] sm:$0xf]
      %v296 = vld [vmem:[%s215 + $0xf0] sm:$0xf]
      %v297 = vld [vmem:[%s215 + $0xf4] sm:$0xf]
      %v298 = vld [vmem:[%s215 + $0xf8] sm:$0xf]
      %v299 = vld [vmem:[%s215 + $0xfc] sm:$0xf]
      %v300 = vld [vmem:[%s215 + $0x100] sm:$0xf]
      %v301 = vld [vmem:[%s215 + $0x104] sm:$0xf]
      %v302 = vld [vmem:[%s215 + $0x108] sm:$0xf]
      %v303 = vld [vmem:[%s215 + $0x10c] sm:$0xf]
      %v304 = vld [vmem:[%s215 + $0x110] sm:$0xf]
      %v305 = vld [vmem:[%s215 + $0x114] sm:$0xf]
      %v306 = vld [vmem:[%s215 + $0x118] sm:$0xf]
      %v307 = vld [vmem:[%s215 + $0x11c] sm:$0xf]
      %v308 = vld [vmem:[%s215 + $0x120] sm:$0xf]
      %v309 = vld [vmem:[%s215 + $0x124] sm:$0xf]
      %v310 = vld [vmem:[%s215 + $0x128] sm:$0xf]
      %v311 = vld [vmem:[%s215 + $0x12c] sm:$0xf]
      %v312 = vld [vmem:[%s215 + $0x130] sm:$0xf]
      %v313 = vld [vmem:[%s215 + $0x134] sm:$0xf]
      %v314 = vld [vmem:[%s215 + $0x138] sm:$0xf]
      %v315 = vld [vmem:[%s215 + $0x13c] sm:$0xf]
      %v316 = vld [vmem:[%s215 + $0x140] sm:$0xf]
      %v317 = vld [vmem:[%s215 + $0x144] sm:$0xf]
      %v318 = vld [vmem:[%s215 + $0x148] sm:$0xf]
      %v319 = vld [vmem:[%s215 + $0x14c] sm:$0xf]
      %v320 = vld [vmem:[%s215 + $0x150] sm:$0xf]
      %v321 = vld [vmem:[%s215 + $0x154] sm:$0xf]
      %v322 = vld [vmem:[%s215 + $0x158] sm:$0xf]
      %v323 = vld [vmem:[%s215 + $0x15c] sm:$0xf]
      %v324 = vld [vmem:[%s215 + $0x160] sm:$0xf]
      %v325 = vld [vmem:[%s215 + $0x164] sm:$0xf]
      %v326 = vld [vmem:[%s215 + $0x168] sm:$0xf]
      %v327 = vld [vmem:[%s215 + $0x16c] sm:$0xf]
      %v328 = vld [vmem:[%s215 + $0x170] sm:$0xf]
      %v329 = vld [vmem:[%s215 + $0x174] sm:$0xf]
      %v330 = vld [vmem:[%s215 + $0x178] sm:$0xf]
      %v331 = vld [vmem:[%s215 + $0x17c] sm:$0xf]
      %v332 = vld [vmem:[%s215 + $0x180] sm:$0xf]
      %v333 = vld [vmem:[%s215 + $0x184] sm:$0xf]
      %v334 = vld [vmem:[%s215 + $0x188] sm:$0xf]
      %v335 = vld [vmem:[%s215 + $0x18c] sm:$0xf]
      %v336 = vld [vmem:[%s215 + $0x190] sm:$0xf]
      %v337 = vld [vmem:[%s215 + $0x194] sm:$0xf]
      %v338 = vld [vmem:[%s215 + $0x198] sm:$0xf]
      %v339 = vld [vmem:[%s215 + $0x19c] sm:$0xf]
      %v340 = vld [vmem:[%s215 + $0x1a0] sm:$0xf]
      %v341 = vld [vmem:[%s215 + $0x1a4] sm:$0xf]
      %v342 = vld [vmem:[%s215 + $0x1a8] sm:$0xf]
      %v343 = vld [vmem:[%s215 + $0x1ac] sm:$0xf]
      %v344 = vld [vmem:[%s215 + $0x1b0] sm:$0xf]
      %v345 = vld [vmem:[%s215 + $0x1b4] sm:$0xf]
      %v346 = vld [vmem:[%s215 + $0x1b8] sm:$0xf]
      %v347 = vld [vmem:[%s215 + $0x1bc] sm:$0xf]
      %v348 = vld [vmem:[%s215 + $0x1c0] sm:$0xf]
      %v349 = vld [vmem:[%s215 + $0x1c4] sm:$0xf]
      %v350 = vld [vmem:[%s215 + $0x1c8] sm:$0xf]
      %v351 = vld [vmem:[%s215 + $0x1cc] sm:$0xf]
      %v352 = vld [vmem:[%s215 + $0x1d0] sm:$0xf]
      %v353 = vld [vmem:[%s215 + $0x1d4] sm:$0xf]
      %v354 = vld [vmem:[%s215 + $0x1d8] sm:$0xf]
      %v355 = vld [vmem:[%s215 + $0x1dc] sm:$0xf]
      %v356 = vld [vmem:[%s215 + $0x1e0] sm:$0xf]
      %v357 = vld [vmem:[%s215 + $0x1e4] sm:$0xf]
      %v358 = vld [vmem:[%s215 + $0x1e8] sm:$0xf]
      %v359 = vld [vmem:[%s215 + $0x1ec] sm:$0xf]
      %v360 = vld [vmem:[%s215 + $0x1f0] sm:$0xf]
      %v361 = vld [vmem:[%s215 + $0x1f4] sm:$0xf]
      %v362 = vld [vmem:[%s215 + $0x1f8] sm:$0xf]
      %v363 = vld [vmem:[%s215 + $0x1fc] sm:$0xf]
      %v364 = vld [vmem:[%s218] sm:$0x1]
      %v366 = vperm.slane %v364, 0
      %v376 = vunpack.c.l.b16 %v228
      %v377 = vunpack.c.h.b16 %v228
      %v378 = vunpack.c.l.b16 %v229
      %v379 = vunpack.c.h.b16 %v229
      %v380 = vunpack.c.l.b16 %v230
      %v381 = vunpack.c.h.b16 %v230
      %v382 = vunpack.c.l.b16 %v231
      %v383 = vunpack.c.h.b16 %v231
      %v384 = vunpack.c.l.b16 %v232
      %v385 = vunpack.c.h.b16 %v232
      %v386 = vunpack.c.l.b16 %v233
      %v387 = vunpack.c.h.b16 %v233
      %v388 = vunpack.c.l.b16 %v234
      %v389 = vunpack.c.h.b16 %v234
      %v390 = vunpack.c.l.b16 %v235
      %v391 = vunpack.c.h.b16 %v235
      %v392 = vpack.c.b16 %v384, %v376
      %v393 = vpack.c.b16 %v385, %v377
      %v394 = vpack.c.b16 %v386, %v378
      %v395 = vpack.c.b16 %v387, %v379
      %v396 = vpack.c.b16 %v388, %v380
      %v397 = vpack.c.b16 %v389, %v381
      %v398 = vpack.c.b16 %v390, %v382
      %v399 = vpack.c.b16 %v391, %v383
      %v536 = vunpack.c.l.b16 %v236
      %v537 = vunpack.c.l.b16 %v237
      %v538 = vunpack.c.l.b16 %v238
      %v539 = vunpack.c.l.b16 %v239
      %v540 = vunpack.c.l.b16 %v240
      %v541 = vunpack.c.l.b16 %v241
      %v542 = vunpack.c.l.b16 %v242
      %v543 = vunpack.c.l.b16 %v243
      %v544 = vunpack.c.l.b16 %v244
      %v545 = vunpack.c.l.b16 %v245
      %v546 = vunpack.c.l.b16 %v246
      %v547 = vunpack.c.l.b16 %v247
      %v548 = vunpack.c.l.b16 %v248
      %v549 = vunpack.c.l.b16 %v249
      %v550 = vunpack.c.l.b16 %v250
      %v551 = vunpack.c.l.b16 %v251
      %v552 = vunpack.c.l.b16 %v252
      %v553 = vunpack.c.l.b16 %v253
      %v554 = vunpack.c.l.b16 %v254
      %v555 = vunpack.c.l.b16 %v255
      %v556 = vunpack.c.l.b16 %v256
      %v557 = vunpack.c.l.b16 %v257
      %v558 = vunpack.c.l.b16 %v258
      %v559 = vunpack.c.l.b16 %v259
      %v560 = vunpack.c.l.b16 %v260
      %v561 = vunpack.c.l.b16 %v261
      %v562 = vunpack.c.l.b16 %v262
      %v563 = vunpack.c.l.b16 %v263
      %v564 = vunpack.c.l.b16 %v264
      %v565 = vunpack.c.l.b16 %v265
      %v566 = vunpack.c.l.b16 %v266
      %v567 = vunpack.c.l.b16 %v267
      %v568 = vunpack.c.l.b16 %v268
      %v569 = vunpack.c.l.b16 %v269
      %v570 = vunpack.c.l.b16 %v270
      %v571 = vunpack.c.l.b16 %v271
      %v572 = vunpack.c.l.b16 %v272
      %v573 = vunpack.c.l.b16 %v273
      %v574 = vunpack.c.l.b16 %v274
      %v575 = vunpack.c.l.b16 %v275
      %v576 = vunpack.c.l.b16 %v276
      %v577 = vunpack.c.l.b16 %v277
      %v578 = vunpack.c.l.b16 %v278
      %v579 = vunpack.c.l.b16 %v279
      %v580 = vunpack.c.l.b16 %v280
      %v581 = vunpack.c.l.b16 %v281
      %v582 = vunpack.c.l.b16 %v282
      %v583 = vunpack.c.l.b16 %v283
      %v584 = vunpack.c.l.b16 %v284
      %v585 = vunpack.c.l.b16 %v285
      %v586 = vunpack.c.l.b16 %v286
      %v587 = vunpack.c.l.b16 %v287
      %v588 = vunpack.c.l.b16 %v288
      %v589 = vunpack.c.l.b16 %v289
      %v590 = vunpack.c.l.b16 %v290
      %v591 = vunpack.c.l.b16 %v291
      %v592 = vunpack.c.l.b16 %v292
      %v593 = vunpack.c.l.b16 %v293
      %v594 = vunpack.c.l.b16 %v294
      %v595 = vunpack.c.l.b16 %v295
      %v596 = vunpack.c.l.b16 %v296
      %v597 = vunpack.c.l.b16 %v297
      %v598 = vunpack.c.l.b16 %v298
      %v599 = vunpack.c.l.b16 %v299
      %v600 = vunpack.c.l.b16 %v300
      %v601 = vunpack.c.l.b16 %v301
      %v602 = vunpack.c.l.b16 %v302
      %v603 = vunpack.c.l.b16 %v303
      %v604 = vunpack.c.l.b16 %v304
      %v605 = vunpack.c.l.b16 %v305
      %v606 = vunpack.c.l.b16 %v306
      %v607 = vunpack.c.l.b16 %v307
      %v608 = vunpack.c.l.b16 %v308
      %v609 = vunpack.c.l.b16 %v309
      %v610 = vunpack.c.l.b16 %v310
      %v611 = vunpack.c.l.b16 %v311
      %v612 = vunpack.c.l.b16 %v312
      %v613 = vunpack.c.l.b16 %v313
      %v614 = vunpack.c.l.b16 %v314
      %v615 = vunpack.c.l.b16 %v315
      %v616 = vunpack.c.l.b16 %v316
      %v617 = vunpack.c.l.b16 %v317
      %v618 = vunpack.c.l.b16 %v318
      %v619 = vunpack.c.l.b16 %v319
      %v620 = vunpack.c.l.b16 %v320
      %v621 = vunpack.c.l.b16 %v321
      %v622 = vunpack.c.l.b16 %v322
      %v623 = vunpack.c.l.b16 %v323
      %v624 = vunpack.c.l.b16 %v324
      %v625 = vunpack.c.l.b16 %v325
      %v626 = vunpack.c.l.b16 %v326
      %v627 = vunpack.c.l.b16 %v327
      %v628 = vunpack.c.l.b16 %v328
      %v629 = vunpack.c.l.b16 %v329
      %v630 = vunpack.c.l.b16 %v330
      %v631 = vunpack.c.l.b16 %v331
      %v632 = vunpack.c.l.b16 %v332
      %v633 = vunpack.c.l.b16 %v333
      %v634 = vunpack.c.l.b16 %v334
      %v635 = vunpack.c.l.b16 %v335
      %v636 = vunpack.c.l.b16 %v336
      %v637 = vunpack.c.l.b16 %v337
      %v638 = vunpack.c.l.b16 %v338
      %v639 = vunpack.c.l.b16 %v339
      %v640 = vunpack.c.l.b16 %v340
      %v641 = vunpack.c.l.b16 %v341
      %v642 = vunpack.c.l.b16 %v342
      %v643 = vunpack.c.l.b16 %v343
      %v644 = vunpack.c.l.b16 %v344
      %v645 = vunpack.c.l.b16 %v345
      %v646 = vunpack.c.l.b16 %v346
      %v647 = vunpack.c.l.b16 %v347
      %v648 = vunpack.c.l.b16 %v348
      %v649 = vunpack.c.l.b16 %v349
      %v650 = vunpack.c.l.b16 %v350
      %v651 = vunpack.c.l.b16 %v351
      %v652 = vunpack.c.l.b16 %v352
      %v653 = vunpack.c.l.b16 %v353
      %v654 = vunpack.c.l.b16 %v354
      %v655 = vunpack.c.l.b16 %v355
      %v656 = vunpack.c.l.b16 %v356
      %v657 = vunpack.c.l.b16 %v357
      %v658 = vunpack.c.l.b16 %v358
      %v659 = vunpack.c.l.b16 %v359
      %v660 = vunpack.c.l.b16 %v360
      %v661 = vunpack.c.l.b16 %v361
      %v662 = vunpack.c.l.b16 %v362
      %v663 = vunpack.c.l.b16 %v363
      %v664 = vpack.c.b16 %v537, %v536
      %v665 = vpack.c.b16 %v539, %v538
      %v666 = vpack.c.b16 %v541, %v540
      %v667 = vpack.c.b16 %v543, %v542
      %v668 = vpack.c.b16 %v545, %v544
      %v669 = vpack.c.b16 %v547, %v546
      %v670 = vpack.c.b16 %v549, %v548
      %v671 = vpack.c.b16 %v551, %v550
      %v672 = vpack.c.b16 %v553, %v552
      %v673 = vpack.c.b16 %v555, %v554
      %v674 = vpack.c.b16 %v557, %v556
      %v675 = vpack.c.b16 %v559, %v558
      %v676 = vpack.c.b16 %v561, %v560
      %v677 = vpack.c.b16 %v563, %v562
      %v678 = vpack.c.b16 %v565, %v564
      %v679 = vpack.c.b16 %v567, %v566
      %v680 = vpack.c.b16 %v569, %v568
      %v681 = vpack.c.b16 %v571, %v570
      %v682 = vpack.c.b16 %v573, %v572
      %v683 = vpack.c.b16 %v575, %v574
      %v684 = vpack.c.b16 %v577, %v576
      %v685 = vpack.c.b16 %v579, %v578
      %v686 = vpack.c.b16 %v581, %v580
      %v687 = vpack.c.b16 %v583, %v582
      %v688 = vpack.c.b16 %v585, %v584
      %v689 = vpack.c.b16 %v587, %v586
      %v690 = vpack.c.b16 %v589, %v588
      %v691 = vpack.c.b16 %v591, %v590
      %v692 = vpack.c.b16 %v593, %v592
      %v693 = vpack.c.b16 %v595, %v594
      %v694 = vpack.c.b16 %v597, %v596
      %v695 = vpack.c.b16 %v599, %v598
      %v696 = vpack.c.b16 %v601, %v600
      %v697 = vpack.c.b16 %v603, %v602
      %v698 = vpack.c.b16 %v605, %v604
      %v699 = vpack.c.b16 %v607, %v606
      %v700 = vpack.c.b16 %v609, %v608
      %v701 = vpack.c.b16 %v611, %v610
      %v702 = vpack.c.b16 %v613, %v612
      %v703 = vpack.c.b16 %v615, %v614
      %v704 = vpack.c.b16 %v617, %v616
      %v705 = vpack.c.b16 %v619, %v618
      %v706 = vpack.c.b16 %v621, %v620
      %v707 = vpack.c.b16 %v623, %v622
      %v708 = vpack.c.b16 %v625, %v624
      %v709 = vpack.c.b16 %v627, %v626
      %v710 = vpack.c.b16 %v629, %v628
      %v711 = vpack.c.b16 %v631, %v630
      %v712 = vpack.c.b16 %v633, %v632
      %v713 = vpack.c.b16 %v635, %v634
      %v714 = vpack.c.b16 %v637, %v636
      %v715 = vpack.c.b16 %v639, %v638
      %v716 = vpack.c.b16 %v641, %v640
      %v717 = vpack.c.b16 %v643, %v642
      %v718 = vpack.c.b16 %v645, %v644
      %v719 = vpack.c.b16 %v647, %v646
      %v720 = vpack.c.b16 %v649, %v648
      %v721 = vpack.c.b16 %v651, %v650
      %v722 = vpack.c.b16 %v653, %v652
      %v723 = vpack.c.b16 %v655, %v654
      %v724 = vpack.c.b16 %v657, %v656
      %v725 = vpack.c.b16 %v659, %v658
      %v726 = vpack.c.b16 %v661, %v660
      %v727 = vpack.c.b16 %v663, %v662
      %792 = vmatpush.bf16.msra.mxu0 %v671
      %793 = vmatpush.bf16.msra.mxu0 %v670
      %794 = vmatpush.bf16.msra.mxu0 %v669
      %795 = vmatpush.bf16.msra.mxu0 %v668
      %796 = vmatpush.bf16.msra.mxu0 %v667
      %797 = vmatpush.bf16.msra.mxu0 %v666
      %798 = vmatpush.bf16.msra.mxu0 %v665
      %799 = vmatpush.bf16.msra.mxu0 %v664
      %800 = vmatmul.bf16.gmra.mxu0 %v392
      %v801 = vpop.f32.mrf.mxu0
      %v802 = vadd.f32 %v366, %v801
      %v803 = vpop.f32.mrf.mxu0
      %v804 = vadd.f32 %v366, %v803
      %805 = vdwg.mxu0
      %806 = vmatpush.bf16.msra.mxu0 %v679
      %807 = vmatpush.bf16.msra.mxu0 %v678
      %808 = vmatpush.bf16.msra.mxu0 %v677
      %809 = vmatpush.bf16.msra.mxu0 %v676
      %810 = vmatpush.bf16.msra.mxu0 %v675
      %811 = vmatpush.bf16.msra.mxu0 %v674
      %812 = vmatpush.bf16.msra.mxu0 %v673
      %813 = vmatpush.bf16.msra.mxu0 %v672
      %814 = vmatmul.bf16.gmra.mxu0 %v393
      %v815 = vpop.f32.mrf.mxu0
      %v816 = vadd.f32 %v802, %v815
      %v817 = vpop.f32.mrf.mxu0
      %v818 = vadd.f32 %v804, %v817
      %819 = vdwg.mxu0
      %820 = vmatpush.bf16.msra.mxu0 %v687
      %821 = vmatpush.bf16.msra.mxu0 %v686
      %822 = vmatpush.bf16.msra.mxu0 %v685
      %823 = vmatpush.bf16.msra.mxu0 %v684
      %824 = vmatpush.bf16.msra.mxu0 %v683
      %825 = vmatpush.bf16.msra.mxu0 %v682
      %826 = vmatpush.bf16.msra.mxu0 %v681
      %827 = vmatpush.bf16.msra.mxu0 %v680
      %828 = vmatmul.bf16.gmra.mxu0 %v394
      %v829 = vpop.f32.mrf.mxu0
      %v830 = vadd.f32 %v816, %v829
      %v831 = vpop.f32.mrf.mxu0
      %v832 = vadd.f32 %v818, %v831
      %833 = vdwg.mxu0
      %834 = vmatpush.bf16.msra.mxu0 %v695
      %835 = vmatpush.bf16.msra.mxu0 %v694
      %836 = vmatpush.bf16.msra.mxu0 %v693
      %837 = vmatpush.bf16.msra.mxu0 %v692
      %838 = vmatpush.bf16.msra.mxu0 %v691
      %839 = vmatpush.bf16.msra.mxu0 %v690
      %840 = vmatpush.bf16.msra.mxu0 %v689
      %841 = vmatpush.bf16.msra.mxu0 %v688
      %842 = vmatmul.bf16.gmra.mxu0 %v395
      %v843 = vpop.f32.mrf.mxu0
      %v844 = vadd.f32 %v830, %v843
      %v845 = vpop.f32.mrf.mxu0
      %v846 = vadd.f32 %v832, %v845
      %847 = vdwg.mxu0
      %848 = vmatpush.bf16.msra.mxu0 %v703
      %849 = vmatpush.bf16.msra.mxu0 %v702
      %850 = vmatpush.bf16.msra.mxu0 %v701
      %851 = vmatpush.bf16.msra.mxu0 %v700
      %852 = vmatpush.bf16.msra.mxu0 %v699
      %853 = vmatpush.bf16.msra.mxu0 %v698
      %854 = vmatpush.bf16.msra.mxu0 %v697
      %855 = vmatpush.bf16.msra.mxu0 %v696
      %856 = vmatmul.bf16.gmra.mxu0 %v396
      %v857 = vpop.f32.mrf.mxu0
      %v858 = vadd.f32 %v844, %v857
      %v859 = vpop.f32.mrf.mxu0
      %v860 = vadd.f32 %v846, %v859
      %861 = vdwg.mxu0
      %862 = vmatpush.bf16.msra.mxu0 %v711
      %863 = vmatpush.bf16.msra.mxu0 %v710
      %864 = vmatpush.bf16.msra.mxu0 %v709
      %865 = vmatpush.bf16.msra.mxu0 %v708
      %866 = vmatpush.bf16.msra.mxu0 %v707
      %867 = vmatpush.bf16.msra.mxu0 %v706
      %868 = vmatpush.bf16.msra.mxu0 %v705
      %869 = vmatpush.bf16.msra.mxu0 %v704
      %870 = vmatmul.bf16.gmra.mxu0 %v397
      %v871 = vpop.f32.mrf.mxu0
      %v872 = vadd.f32 %v858, %v871
      %v873 = vpop.f32.mrf.mxu0
      %v874 = vadd.f32 %v860, %v873
      %875 = vdwg.mxu0
      %876 = vmatpush.bf16.msra.mxu0 %v719
      %877 = vmatpush.bf16.msra.mxu0 %v718
      %878 = vmatpush.bf16.msra.mxu0 %v717
      %879 = vmatpush.bf16.msra.mxu0 %v716
      %880 = vmatpush.bf16.msra.mxu0 %v715
      %881 = vmatpush.bf16.msra.mxu0 %v714
      %882 = vmatpush.bf16.msra.mxu0 %v713
      %883 = vmatpush.bf16.msra.mxu0 %v712
      %884 = vmatmul.bf16.gmra.mxu0 %v398
      %v885 = vpop.f32.mrf.mxu0
      %v886 = vadd.f32 %v872, %v885
      %v887 = vpop.f32.mrf.mxu0
      %v888 = vadd.f32 %v874, %v887
      %889 = vdwg.mxu0
      %890 = vmatpush.bf16.msra.mxu0 %v727
      %891 = vmatpush.bf16.msra.mxu0 %v726
      %892 = vmatpush.bf16.msra.mxu0 %v725
      %893 = vmatpush.bf16.msra.mxu0 %v724
      %894 = vmatpush.bf16.msra.mxu0 %v723
      %895 = vmatpush.bf16.msra.mxu0 %v722
      %896 = vmatpush.bf16.msra.mxu0 %v721
      %897 = vmatpush.bf16.msra.mxu0 %v720
      %898 = vmatmul.bf16.gmra.mxu0 %v399
      %v899 = vpop.f32.mrf.mxu0
      %v900 = vadd.f32 %v886, %v899
      %v901 = vpop.f32.mrf.mxu0
      %v902 = vadd.f32 %v888, %v901
      %903 = vdwg.mxu0
      %vm904 = vcmp.ge.f32.partialorder %v900, 0.0
      %vm905 = vcmp.ge.f32.partialorder %v902, 0.0
      %v906 = vmul.f32 %v900, 0.2
      %v907 = vmul.f32 %v902, 0.2
      %v908 = vsel %vm904, %v900, %v906
      %v909 = vsel %vm905, %v902, %v907
      %v910 = vpack.c.bf16 %v908, %v908
      %v911 = vpack.c.bf16 %v909, %v909
      %912 = vst [vmem:[%s226] sm:$0xf] %v910
      %913 = vst [vmem:[%s226 + $0x4] sm:$0xf] %v911
      %s914 = smul.u32 2, %s18
      %p915 = scmp.lt.s32.totalorder %s914, 3
      %s916 = scalar_select %p915, %s914, 3
      %p917 = scmp.lt.s32.totalorder %s19, 0
      %s918 = scalar_select %p917, %s19, 0
      %s919 = sadd.s32 %s918, %s916
      %s920 = smul.addr %s919, 4
      %s921 = scalar_lea.vmem %s3, %s920
      // Predicated region
      $region33: #{forward.10} parent=31 // pred_check
        %p922 = pneg %p124
      $region34: #{forward.10} parent=31 // pred_check_branch
        %924 = sbr.rel (%p922) target = $region36
      $region35: #{forward.10} parent=31 // pred_region
        %s925 = smul.u32 2, %s18
      $region36: #{forward.10} parent=31 // pred_fallthru
        _
    $region32: #{forward.10} parent=5 // pred_fallthru
      _
    %p926 = scmp.le.s32.totalorder 2, %s9
    // Predicated region
    $region37: #{forward.10} parent=5 // pred_check
      %p927 = pneg %p926
    $region38: #{forward.10} parent=5 // pred_check_branch
      %929 = sbr.rel (%p927) target = $region40
    $region39: #{forward.10} parent=5 // pred_region
      %s930 = ssub.s32 %s9, 2
      // Predicated region
      $region41: #{forward.10} parent=39 // pred_check
        %p931 = pneg %p130
      $region42: #{forward.10} parent=39 // pred_check_branch
        %933 = sbr.rel (%p931) target = $region44
      $region43: #{forward.10} parent=39 // pred_region
        %s934 = smul.u32 2, %s20
        %p935 = scmp.lt.s32.totalorder %s934, 3
        %s936 = scalar_select %p935, %s934, 3
        %p937 = scmp.lt.s32.totalorder %s21, 0
        %s938 = scalar_select %p937, %s21, 0
        %s939 = sadd.s32 %s938, %s936
        %s940 = smul.addr %s939, 4
        %s941 = scalar_lea.vmem %s3, %s940
      $region44: #{forward.10} parent=39 // pred_fallthru
        _
    $region40: #{forward.10} parent=5 // pred_fallthru
      _
  $region6: #{forward.10} parent=0 // loop_footer
    %s13 = sadd.s32 1, %s9
  $region7: #{forward.10} parent=0 // loop_footer_branch
    %8 = sbr.rel target = $region3
  $region8: #{forward.10} parent=0 // loop_exit
    _

// kernel: forward.11
$region0: #{forward.11}
  #allocation0 [shape = 'u32[]', space=smem, size = 0x4, offset = 0x4, fixed_abs, tag = 'smem constant byte address 0x4 - core index']
  #allocation1 [shape = 'u32[72,128]{1,0:T(1,128)}', space=vmem, size = 0x9000, scoped, tag = 'internal scratch']
  #allocation2 [shape = 'bf16[16,16]{1,0:T(8,128)(2,1)}', space=vmem, size = 0x1000, scoped, tag = 'scratch operand']
  #allocation3 [shape = 'bf16[16,128]{1,0:T(8,128)(2,1)}', space=vmem, size = 0x1000, scoped, tag = 'scratch operand']
  #allocation4 [shape = 'f32[1,1]{1,0:T(1,128)S(6)}', space=smem, size = 0x200, scoped, tag = 'scoped memory for forward.11']
  %s0 = inlined_call_operand.vmem [shape: bf16[2,16,128], index: 0, kind: input, shape index: {}, may-alias: {0,1}]
  %s1 = inlined_call_operand.vmem [shape: bf16[2,16,128], index: 1, kind: input, shape index: {}, may-alias: {0,1}]
  %s2 = inlined_call_operand.vmem [shape: bf16[128,16], index: 2, kind: input, shape index: {}]
  %s3 = inlined_call_operand.vmem [shape: f32[1,16], index: 3, kind: input, shape index: {}]
  %s4 = inlined_call_operand.vmem [shape: bf16[16,128], index: 4, kind: input, shape index: {}]
  %s5 = inlined_call_operand.vmem [shape: f32[16,1], index: 5, kind: input, shape index: {}]
  %s6 = inlined_call_operand.vmem [shape: bf16[128,128], index: 6, kind: input, shape index: {}]
  %s7 = inlined_call_operand.vmem [shape: f32[1,128], index: 7, kind: input, shape index: {}]
  %s8 = inlined_call_operand.<no memory space> [shape: f32[1,1], index: 8, kind: input, shape index: {}]
  %s9 = inlined_call_operand.vmem [shape: bf16[2,16,128], index: 9, kind: output, shape index: {}]
  %s10 = sld [smem:[#allocation0]]
  $region73: #{forward.11} parent=0
    _
  %s12 = ssub.s32 1, %s10
  %s13 = scalar_select 0, %s12, %s10
  %14 = sst [smem:[#allocation4]] %s8
  loop: start=0, step=1, limit=4
  $region2: #{forward.11} parent=0 // loop_pre_header
    _
  $region3: #{forward.11} parent=0 // loop_header
    %s16 = sphi 0, %s20
    %p17 = scmp.ge.s32.totalorder %s16, 4
    %s23 = sphi 0, %s35
    %s24 = sphi 0, %s31
    %s25 = sphi 0, %s23
    %s26 = sphi 0, %s24
    %s27 = sphi 0, %s25
    %s28 = sphi 0, %s26
    %s38 = sphi 0, %s40
    %s41 = sphi 0, %s38
    %s42 = sphi 0, %s41
    %s58 = sphi 0, %s42
    %s66 = sphi 0, %s68
    %s69 = sphi 0, %s66
    %s70 = sphi 0, %s69
    %s86 = sphi 0, %s70
    %s90 = sphi 0, %s90
    %s92 = sphi 0, %s90
    %s93 = sphi 0, %s92
    %s107 = sphi 0, %s93
    %s111 = sphi 0, %s111
    %s113 = sphi 0, %s111
    %s114 = sphi 0, %s113
    %s128 = sphi 0, %s114
    %s132 = sphi 0, %s132
    %s134 = sphi 0, %s132
    %s135 = sphi 0, %s134
    %s149 = sphi 0, %s135
    %s153 = sphi 0, %s153
    %s155 = sphi 0, %s153
    %s156 = sphi 0, %s155
    %s170 = sphi 0, %s156
    %s174 = sphi 0, %s174
    %s176 = sphi 0, %s174
    %s177 = sphi 0, %s176
    %s191 = sphi 0, %s177
    %s195 = sphi 0, %s195
    %s197 = sphi 0, %s195
    %s198 = sphi 0, %s197
    %s212 = sphi 0, %s198
    %s216 = sphi 0, %s216
    %s218 = sphi 0, %s216
    %s219 = sphi 0, %s218
    %s233 = sphi 0, %s219
    %s241 = sphi 0, %s243
    %s244 = sphi 0, %s241
    %s245 = sphi 0, %s244
    %s261 = sphi 0, %s245
  $region4: #{forward.11} parent=0 // loop_header_branch
    %19 = sbr.rel (%p17) target = $region8
  $region5: #{forward.11} parent=0 // loop_body
    %s21 = ssub.s32 %s16, 1
    %s22 = ssub.s32 %s16, 2
    %s29 = sadd.s32 1, %s24
    %p30 = scmp.ge.s32.totalorder %s29, 1
    %s31 = scalar_select %p30, 0, %s29
    %s32 = sadd.s32 1, %s23
    %s33 = scalar_select %p30, %s32, %s23
    %p34 = scmp.ge.s32.totalorder %s33, 2
    %s35 = scalar_select %p34, 0, %s33
    %s36 = ssub.s32 %s23, %s35
    %p37 = scmp.eq.s32.totalorder %s36, 0
    %s39 = sadd.s32 %s38, 1
    %s40 = scalar_select %p37, %s38, %s39
    %p43 = pneg %p37
    %p44 = scmp.eq.s32.totalorder %s16, 1
    %p45 = por %p43, %p44
    %p46 = scmp.ne.s32.totalorder %s38, %s41
    %p47 = scmp.eq.s32.totalorder %s16, 0
    %p48 = por %p46, %p47
    %p49 = scmp.ne.s32.totalorder %s38, %s41
    %p50 = scmp.eq.s32.totalorder %s21, 1
    %p51 = por %p49, %p50
    %p52 = scmp.ne.s32.totalorder %s41, %s42
    %p53 = scmp.eq.s32.totalorder %s21, 0
    %p54 = por %p52, %p53
    %p55 = scmp.ne.s32.totalorder %s41, %s42
    %p56 = scmp.eq.s32.totalorder %s22, 1
    %p57 = por %p55, %p56
    %p59 = scmp.ne.s32.totalorder %s42, %s58
    %p60 = scmp.eq.s32.totalorder %s22, 0
    %p61 = por %p59, %p60
    %s62 = ssub.s32 %s23, %s35
    %s63 = ssub.s32 %s24, %s31
    %s64 = sor.u32 %s62, %s63
    %p65 = scmp.eq.s32.totalorder %s64, 0
    %s67 = sadd.s32 %s66, 1
    %s68 = scalar_select %p65, %s66, %s67
    %p71 = pneg %p65
    %p72 = scmp.eq.s32.totalorder %s16, 1
    %p73 = por %p71, %p72
    %p74 = scmp.ne.s32.totalorder %s66, %s69
    %p75 = scmp.eq.s32.totalorder %s16, 0
    %p76 = por %p74, %p75
    %p77 = scmp.ne.s32.totalorder %s66, %s69
    %p78 = scmp.eq.s32.totalorder %s21, 1
    %p79 = por %p77, %p78
    %p80 = scmp.ne.s32.totalorder %s69, %s70
    %p81 = scmp.eq.s32.totalorder %s21, 0
    %p82 = por %p80, %p81
    %p83 = scmp.ne.s32.totalorder %s69, %s70
    %p84 = scmp.eq.s32.totalorder %s22, 1
    %p85 = por %p83, %p84
    %p87 = scmp.ne.s32.totalorder %s70, %s86
    %p88 = scmp.eq.s32.totalorder %s22, 0
    %p89 = por %p87, %p88
    %s91 = sadd.s32 %s90, 1
    %p94 = scmp.eq.s32.totalorder %s16, 1
    %p95 = scmp.ne.s32.totalorder %s90, %s92
    %p96 = scmp.eq.s32.totalorder %s16, 0
    %p97 = por %p95, %p96
    %p98 = scmp.ne.s32.totalorder %s90, %s92
    %p99 = scmp.eq.s32.totalorder %s21, 1
    %p100 = por %p98, %p99
    %p101 = scmp.ne.s32.totalorder %s92, %s93
    %p102 = scmp.eq.s32.totalorder %s21, 0
    %p103 = por %p101, %p102
    %p104 = scmp.ne.s32.totalorder %s92, %s93
    %p105 = scmp.eq.s32.totalorder %s22, 1
    %p106 = por %p104, %p105
    %p108 = scmp.ne.s32.totalorder %s93, %s107
    %p109 = scmp.eq.s32.totalorder %s22, 0
    %p110 = por %p108, %p109
    %s112 = sadd.s32 %s111, 1
    %p115 = scmp.eq.s32.totalorder %s16, 1
    %p116 = scmp.ne.s32.totalorder %s111, %s113
    %p117 = scmp.eq.s32.totalorder %s16, 0
    %p118 = por %p116, %p117
    %p119 = scmp.ne.s32.totalorder %s111, %s113
    %p120 = scmp.eq.s32.totalorder %s21, 1
    %p121 = por %p119, %p120
    %p122 = scmp.ne.s32.totalorder %s113, %s114
    %p123 = scmp.eq.s32.totalorder %s21, 0
    %p124 = por %p122, %p123
    %p125 = scmp.ne.s32.totalorder %s113, %s114
    %p126 = scmp.eq.s32.totalorder %s22, 1
    %p127 = por %p125, %p126
    %p129 = scmp.ne.s32.totalorder %s114, %s128
    %p130 = scmp.eq.s32.totalorder %s22, 0
    %p131 = por %p129, %p130
    %s133 = sadd.s32 %s132, 1
    %p136 = scmp.eq.s32.totalorder %s16, 1
    %p137 = scmp.ne.s32.totalorder %s132, %s134
    %p138 = scmp.eq.s32.totalorder %s16, 0
    %p139 = por %p137, %p138
    %p140 = scmp.ne.s32.totalorder %s132, %s134
    %p141 = scmp.eq.s32.totalorder %s21, 1
    %p142 = por %p140, %p141
    %p143 = scmp.ne.s32.totalorder %s134, %s135
    %p144 = scmp.eq.s32.totalorder %s21, 0
    %p145 = por %p143, %p144
    %p146 = scmp.ne.s32.totalorder %s134, %s135
    %p147 = scmp.eq.s32.totalorder %s22, 1
    %p148 = por %p146, %p147
    %p150 = scmp.ne.s32.totalorder %s135, %s149
    %p151 = scmp.eq.s32.totalorder %s22, 0
    %p152 = por %p150, %p151
    %s154 = sadd.s32 %s153, 1
    %p157 = scmp.eq.s32.totalorder %s16, 1
    %p158 = scmp.ne.s32.totalorder %s153, %s155
    %p159 = scmp.eq.s32.totalorder %s16, 0
    %p160 = por %p158, %p159
    %p161 = scmp.ne.s32.totalorder %s153, %s155
    %p162 = scmp.eq.s32.totalorder %s21, 1
    %p163 = por %p161, %p162
    %p164 = scmp.ne.s32.totalorder %s155, %s156
    %p165 = scmp.eq.s32.totalorder %s21, 0
    %p166 = por %p164, %p165
    %p167 = scmp.ne.s32.totalorder %s155, %s156
    %p168 = scmp.eq.s32.totalorder %s22, 1
    %p169 = por %p167, %p168
    %p171 = scmp.ne.s32.totalorder %s156, %s170
    %p172 = scmp.eq.s32.totalorder %s22, 0
    %p173 = por %p171, %p172
    %s175 = sadd.s32 %s174, 1
    %p178 = scmp.eq.s32.totalorder %s16, 1
    %p179 = scmp.ne.s32.totalorder %s174, %s176
    %p180 = scmp.eq.s32.totalorder %s16, 0
    %p181 = por %p179, %p180
    %p182 = scmp.ne.s32.totalorder %s174, %s176
    %p183 = scmp.eq.s32.totalorder %s21, 1
    %p184 = por %p182, %p183
    %p185 = scmp.ne.s32.totalorder %s176, %s177
    %p186 = scmp.eq.s32.totalorder %s21, 0
    %p187 = por %p185, %p186
    %p188 = scmp.ne.s32.totalorder %s176, %s177
    %p189 = scmp.eq.s32.totalorder %s22, 1
    %p190 = por %p188, %p189
    %p192 = scmp.ne.s32.totalorder %s177, %s191
    %p193 = scmp.eq.s32.totalorder %s22, 0
    %p194 = por %p192, %p193
    %s196 = sadd.s32 %s195, 1
    %p199 = scmp.eq.s32.totalorder %s16, 1
    %p200 = scmp.ne.s32.totalorder %s195, %s197
    %p201 = scmp.eq.s32.totalorder %s16, 0
    %p202 = por %p200, %p201
    %p203 = scmp.ne.s32.totalorder %s195, %s197
    %p204 = scmp.eq.s32.totalorder %s21, 1
    %p205 = por %p203, %p204
    %p206 = scmp.ne.s32.totalorder %s197, %s198
    %p207 = scmp.eq.s32.totalorder %s21, 0
    %p208 = por %p206, %p207
    %p209 = scmp.ne.s32.totalorder %s197, %s198
    %p210 = scmp.eq.s32.totalorder %s22, 1
    %p211 = por %p209, %p210
    %p213 = scmp.ne.s32.totalorder %s198, %s212
    %p214 = scmp.eq.s32.totalorder %s22, 0
    %p215 = por %p213, %p214
    %s217 = sadd.s32 %s216, 1
    %p220 = scmp.eq.s32.totalorder %s16, 1
    %p221 = scmp.ne.s32.totalorder %s216, %s218
    %p222 = scmp.eq.s32.totalorder %s16, 0
    %p223 = por %p221, %p222
    %p224 = scmp.ne.s32.totalorder %s216, %s218
    %p225 = scmp.eq.s32.totalorder %s21, 1
    %p226 = por %p224, %p225
    %p227 = scmp.ne.s32.totalorder %s218, %s219
    %p228 = scmp.eq.s32.totalorder %s21, 0
    %p229 = por %p227, %p228
    %p230 = scmp.ne.s32.totalorder %s218, %s219
    %p231 = scmp.eq.s32.totalorder %s22, 1
    %p232 = por %p230, %p231
    %p234 = scmp.ne.s32.totalorder %s219, %s233
    %p235 = scmp.eq.s32.totalorder %s22, 0
    %p236 = por %p234, %p235
    %s237 = ssub.s32 %s23, %s35
    %s238 = ssub.s32 %s24, %s31
    %s239 = sor.u32 %s237, %s238
    %p240 = scmp.eq.s32.totalorder %s239, 0
    %s242 = sadd.s32 %s241, 1
    %s243 = scalar_select %p240, %s241, %s242
    %p246 = pneg %p240
    %p247 = scmp.eq.s32.totalorder %s16, 1
    %p248 = por %p246, %p247
    %p249 = scmp.ne.s32.totalorder %s241, %s244
    %p250 = scmp.eq.s32.totalorder %s16, 0
    %p251 = por %p249, %p250
    %p252 = scmp.ne.s32.totalorder %s241, %s244
    %p253 = scmp.eq.s32.totalorder %s21, 1
    %p254 = por %p252, %p253
    %p255 = scmp.ne.s32.totalorder %s244, %s245
    %p256 = scmp.eq.s32.totalorder %s21, 0
    %p257 = por %p255, %p256
    %p258 = scmp.ne.s32.totalorder %s244, %s245
    %p259 = scmp.eq.s32.totalorder %s22, 1
    %p260 = por %p258, %p259
    %p262 = scmp.ne.s32.totalorder %s245, %s261
    %p263 = scmp.eq.s32.totalorder %s22, 0
    %p264 = por %p262, %p263
    %p265 = scmp.le.s32.totalorder 1, %s16
    %p266 = scmp.lt.s32.totalorder %s16, 3
    %p267 = pnand %p265, %p266
    %p268 = pneg %p267
    // Predicated region
    $region9: #{forward.11} parent=5 // pred_check
      _
    $region10: #{forward.11} parent=5 // pred_check_branch
      %270 = sbr.rel (%p267) target = $region12
    $region11: #{forward.11} parent=5 // pred_region
      %s271 = ssub.s32 %s16, 1
      // Predicated region
      $region13: #{forward.11} parent=11 // pred_check
        %p272 = pneg %p103
      $region14: #{forward.11} parent=11 // pred_check_branch
        %274 = sbr.rel (%p272) target = $region16
      $region15: #{forward.11} parent=11 // pred_region
        _
      $region16: #{forward.11} parent=11 // pred_fallthru
        _
      // Predicated region
      $region17: #{forward.11} parent=11 // pred_check
        %p275 = pneg %p124
      $region18: #{forward.11} parent=11 // pred_check_branch
        %277 = sbr.rel (%p275) target = $region20
      $region19: #{forward.11} parent=11 // pred_region
        _
      $region20: #{forward.11} parent=11 // pred_fallthru
        _
      // Predicated region
      $region21: #{forward.11} parent=11 // pred_check
        %p278 = pneg %p145
      $region22: #{forward.11} parent=11 // pred_check_branch
        %280 = sbr.rel (%p278) target = $region24
      $region23: #{forward.11} parent=11 // pred_region
        _
      $region24: #{forward.11} parent=11 // pred_fallthru
        _
      // Predicated region
      $region25: #{forward.11} parent=11 // pred_check
        %p281 = pneg %p166
      $region26: #{forward.11} parent=11 // pred_check_branch
        %283 = sbr.rel (%p281) target = $region28
      $region27: #{forward.11} parent=11 // pred_region
        _
      $region28: #{forward.11} parent=11 // pred_fallthru
        _
      // Predicated region
      $region29: #{forward.11} parent=11 // pred_check
        %p284 = pneg %p187
      $region30: #{forward.11} parent=11 // pred_check_branch
        %286 = sbr.rel (%p284) target = $region32
      $region31: #{forward.11} parent=11 // pred_region
        _
      $region32: #{forward.11} parent=11 // pred_fallthru
        _
      // Predicated region
      $region33: #{forward.11} parent=11 // pred_check
        %p287 = pneg %p208
      $region34: #{forward.11} parent=11 // pred_check_branch
        %289 = sbr.rel (%p287) target = $region36
      $region35: #{forward.11} parent=11 // pred_region
        _
      $region36: #{forward.11} parent=11 // pred_fallthru
        _
      // Predicated region
      $region37: #{forward.11} parent=11 // pred_check
        %p290 = pneg %p229
      $region38: #{forward.11} parent=11 // pred_check_branch
        %292 = sbr.rel (%p290) target = $region40
      $region39: #{forward.11} parent=11 // pred_region
        _
      $region40: #{forward.11} parent=11 // pred_fallthru
        _
    $region12: #{forward.11} parent=5 // pred_fallthru
      _
    %p293 = scmp.lt.s32.totalorder %s16, 2
    // Predicated region
    $region41: #{forward.11} parent=5 // pred_check
      %p294 = pneg %p293
    $region42: #{forward.11} parent=5 // pred_check_branch
      %296 = sbr.rel (%p294) target = $region44
    $region43: #{forward.11} parent=5 // pred_region
      // Predicated region
      $region45: #{forward.11} parent=43 // pred_check
        %p297 = pneg %p48
      $region46: #{forward.11} parent=43 // pred_check_branch
        %299 = sbr.rel (%p297) target = $region48
      $region47: #{forward.11} parent=43 // pred_region
        %p300 = scmp.lt.s32.totalorder %s23, 1
        %s301 = scalar_select %p300, %s23, 1
        %s302 = smul.addr %s301, 2
        %s303 = smul.addr %s302, 4
        %s304 = scalar_lea.vmem %s0, %s303
      $region48: #{forward.11} parent=43 // pred_fallthru
        _
      // Predicated region
      $region49: #{forward.11} parent=43 // pred_check
        %p305 = pneg %p76
      $region50: #{forward.11} parent=43 // pred_check_branch
        %307 = sbr.rel (%p305) target = $region52
      $region51: #{forward.11} parent=43 // pred_region
        %s308 = smul.u32 2, %s24
        %p309 = scmp.lt.s32.totalorder %s23, 1
        %s310 = scalar_select %p309, %s23, 1
        %p311 = scmp.lt.s32.totalorder %s308, 1
        %s312 = scalar_select %p311, %s308, 1
        %s313 = smul.addr %s310, 2
        %s314 = sadd.s32 %s312, %s313
        %s315 = smul.addr %s314, 4
        %s316 = scalar_lea.vmem %s1, %s315
        %s317 = smul.u32 2, %s24
      $region52: #{forward.11} parent=43 // pred_fallthru
        _
    $region44: #{forward.11} parent=5 // pred_fallthru
      _
    %p318 = scmp.le.s32.totalorder 1, %s16
    %p319 = scmp.lt.s32.totalorder %s16, 3
    %p320 = pnand %p318, %p319
    %p321 = pneg %p320
    // Predicated region
    $region53: #{forward.11} parent=5 // pred_check
      _
    $region54: #{forward.11} parent=5 // pred_check_branch
      %323 = sbr.rel (%p320) target = $region56
    $region55: #{forward.11} parent=5 // pred_region
      %s324 = ssub.s32 %s16, 1
      %p325 = scmp.lt.s32.totalorder %s25, 1
      %s326 = scalar_select %p325, %s25, 1
      %s327 = smul.addr %s326, 2
      %s328 = smul.addr %s327, 4
      %s329 = scalar_lea.vmem %s0, %s328
      %p330 = pneg %p54
      %p331 = pneg %p51
      %s332 = smul.u32 2, %s26
      %p333 = scmp.lt.s32.totalorder %s25, 1
      %s334 = scalar_select %p333, %s25, 1
      %p335 = scmp.lt.s32.totalorder %s332, 1
      %s336 = scalar_select %p335, %s332, 1
      %s337 = smul.addr %s334, 2
      %s338 = sadd.s32 %s336, %s337
      %s339 = smul.addr %s338, 4
      %s340 = scalar_lea.vmem %s1, %s339
      %p341 = pneg %p82
      %p342 = pneg %p79
      %p343 = pneg %p103
      %p344 = pneg %p100
      %p345 = pneg %p124
      %p346 = pneg %p121
      %p347 = pneg %p145
      %p348 = pneg %p142
      %p349 = pneg %p166
      %p350 = pneg %p163
      %p351 = pneg %p187
      %p352 = pneg %p184
      %p353 = pneg %p208
      %p354 = pneg %p205
      %p355 = pneg %p229
      %p356 = pneg %p226
      %p357 = pneg %p257
      %p358 = pneg %p254
      %s359 = smul.u32 2, %s26
      %p360 = scmp.lt.s32.totalorder %s25, 1
      %s361 = scalar_select %p360, %s25, 1
      %p362 = scmp.lt.s32.totalorder %s359, 1
      %s363 = scalar_select %p362, %s359, 1
      %s364 = smul.addr %s361, 2
      %s365 = sadd.s32 %s363, %s364
      %s366 = smul.addr %s365, 4
      %s367 = scalar_lea.vmem %s9, %s366
      %p368 = scmp.lt.s32.totalorder %s25, 1
      %s369 = scalar_select %p368, %s25, 1
      %s370 = smul.addr %s369, 2
      %s371 = smul.addr %s370, 4
      %s372 = scalar_lea.vmem %s0, %s371
      %s373 = smul.u32 2, %s26
      %p374 = scmp.lt.s32.totalorder %s25, 1
      %s375 = scalar_select %p374, %s25, 1
      %p376 = scmp.lt.s32.totalorder %s373, 1
      %s377 = scalar_select %p376, %s373, 1
      %s378 = smul.addr %s375, 2
      %s379 = sadd.s32 %s377, %s378
      %s380 = smul.addr %s379, 4
      %s381 = scalar_lea.vmem %s1, %s380
      %s382 = smul.u32 2, %s26
      %s383 = smul.u32 2, %s26
      %p384 = scmp.lt.s32.totalorder %s25, 1
      %s385 = scalar_select %p384, %s25, 1
      %p386 = scmp.lt.s32.totalorder %s383, 1
      %s387 = scalar_select %p386, %s383, 1
      %s388 = smul.addr %s385, 2
      %s389 = sadd.s32 %s387, %s388
      %s390 = smul.addr %s389, 4
      %s391 = scalar_lea.vmem %s9, %s390
      %s392 = smul.u32 2, %s26
      %p394 = scmp.eq.s32.totalorder %s26, 0
      // Predicated region
      $region57: #{forward.11} parent=55 // pred_check
        %p395 = pneg %p394
      $region58: #{forward.11} parent=55 // pred_check_branch
        %397 = sbr.rel (%p395) target = $region60
      $region59: #{forward.11} parent=55 // pred_region
        %v398 = vld [vmem:[%s372] sm:$0xf]
        %v399 = vld [vmem:[%s372 + $0x4] sm:$0xf]
        %v400 = vld [vmem:[%s4] sm:$0xf]
        %v401 = vld [vmem:[%s4 + $0x4] sm:$0xf]
        %v402 = vld [vmem:[%s5] sm:$0xff]
        %v403 = vld [vmem:[%s5 + $0x8] sm:$0xff]
        %405 = vset.pattern.permute.xlu0 0
        %406 = vperm.xlu0 %405, %v402
        %v407 = vpop.permute.xlu0 %406
        %410 = vset.pattern.permute.xlu0 0
        %411 = vperm.xlu0 %410, %v403
        %v412 = vpop.permute.xlu0 %411
        %v416 = vunpack.c.l.b16 %v400
        %v417 = vunpack.c.l.b16 %v401
        %v418 = vpack.c.b16 %v417, %v416
        %v422 = vunpack.c.l.b16 %v398
        %v423 = vunpack.c.l.b16 %v399
        %v424 = vpack.c.b16 %v423, %v422
        %426 = vmatpush.bf16.xpose.msra.mxu0 0
        %427 = vmatpush.bf16.xpose.msra.mxu0 0
        %428 = vmatpush.bf16.xpose.msra.mxu0 0
        %429 = vmatpush.bf16.xpose.msra.mxu0 0
        %430 = vmatpush.bf16.xpose.msra.mxu0 0
        %431 = vmatpush.bf16.xpose.msra.mxu0 0
        %432 = vmatpush.bf16.xpose.msra.mxu0 0
        %433 = vmatpush.bf16.xpose.msra.mxu0 %v424
        %434 = vmatmul.bf16.gmra.mxu0 %v418
        %v435 = vpop.f32.mrf.mxu0
        %v436 = vadd.f32 %v407, %v435
        %v437 = vpop.f32.mrf.mxu0
        %v438 = vadd.f32 %v412, %v437
        %439 = vdwg.mxu0
        %v440 = vpack.c.bf16 %v436, %v436
        %v441 = vpack.c.bf16 %v438, %v438
        %vm442 = vcmask 125952
        %443 = vst.msk [vmem:[#allocation2] sm:$0xf] %vm442, %v440
        %444 = vst.msk [vmem:[#allocation2 + $0x4] sm:$0xf] %vm442, %v441
        %v445 = vld [vmem:[%s6] sm:$0xf]
        %v446 = vld [vmem:[%s6 + $0x4] sm:$0xf]
        %v447 = vld [vmem:[%s6 + $0x8] sm:$0xf]
        %v448 = vld [vmem:[%s6 + $0xc] sm:$0xf]
        %v449 = vld [vmem:[%s6 + $0x10] sm:$0xf]
        %v450 = vld [vmem:[%s6 + $0x14] sm:$0xf]
        %v451 = vld [vmem:[%s6 + $0x18] sm:$0xf]
        %v452 = vld [vmem:[%s6 + $0x1c] sm:$0xf]
        %v453 = vld [vmem:[%s6 + $0x20] sm:$0xf]
        %v454 = vld [vmem:[%s6 + $0x24] sm:$0xf]
        %v455 = vld [vmem:[%s6 + $0x28] sm:$0xf]
        %v456 = vld [vmem:[%s6 + $0x2c] sm:$0xf]
        %v457 = vld [vmem:[%s6 + $0x30] sm:$0xf]
        %v458 = vld [vmem:[%s6 + $0x34] sm:$0xf]
        %v459 = vld [vmem:[%s6 + $0x38] sm:$0xf]
        %v460 = vld [vmem:[%s6 + $0x3c] sm:$0xf]
        %v461 = vld [vmem:[%s7] sm:$0x1]
        %v463 = vperm.slane %v461, 0
        %v481 = vunpack.c.l.b16 %v445
        %v482 = vunpack.c.l.b16 %v446
        %v483 = vunpack.c.l.b16 %v447
        %v484 = vunpack.c.l.b16 %v448
        %v485 = vunpack.c.l.b16 %v449
        %v486 = vunpack.c.l.b16 %v450
        %v487 = vunpack.c.l.b16 %v451
        %v488 = vunpack.c.l.b16 %v452
        %v489 = vunpack.c.l.b16 %v453
        %v490 = vunpack.c.l.b16 %v454
        %v491 = vunpack.c.l.b16 %v455
        %v492 = vunpack.c.l.b16 %v456
        %v493 = vunpack.c.l.b16 %v457
        %v494 = vunpack.c.l.b16 %v458
        %v495 = vunpack.c.l.b16 %v459
        %v496 = vunpack.c.l.b16 %v460
        %v497 = vpack.c.b16 %v482, %v481
        %v498 = vpack.c.b16 %v484, %v483
        %v499 = vpack.c.b16 %v486, %v485
        %v500 = vpack.c.b16 %v488, %v487
        %v501 = vpack.c.b16 %v490, %v489
        %v502 = vpack.c.b16 %v492, %v491
        %v503 = vpack.c.b16 %v494, %v493
        %v504 = vpack.c.b16 %v496, %v495
        %513 = vmatpush.bf16.msra.mxu0 %v504
        %514 = vmatpush.bf16.msra.mxu0 %v503
        %515 = vmatpush.bf16.msra.mxu0 %v502
        %516 = vmatpush.bf16.msra.mxu0 %v501
        %517 = vmatpush.bf16.msra.mxu0 %v500
        %518 = vmatpush.bf16.msra.mxu0 %v499
        %519 = vmatpush.bf16.msra.mxu0 %v498
        %520 = vmatpush.bf16.msra.mxu0 %v497
        %521 = vmatmul.bf16.gmra.mxu0 %v424
        %v522 = vpop.f32.mrf.mxu0
        %v523 = vadd.f32 %v463, %v522
        %v524 = vpop.f32.mrf.mxu0
        %v525 = vadd.f32 %v463, %v524
        %526 = vdwg.mxu0
        %v527 = vpack.c.bf16 %v523, %v523
        %v528 = vpack.c.bf16 %v525, %v525
        %529 = vst [vmem:[#allocation3] sm:$0xf] %v527
        %530 = vst [vmem:[#allocation3 + $0x4] sm:$0xf] %v528
      $region60: #{forward.11} parent=55 // pred_fallthru
        _
      %v531 = vld [vmem:[%s381] sm:$0xf]
      %v532 = vld [vmem:[%s381 + $0x4] sm:$0xf]
      %v533 = vld [vmem:[%s2] sm:$0xf]
      %v534 = vld [vmem:[%s2 + $0x4] sm:$0xf]
      %v535 = vld [vmem:[%s2 + $0x8] sm:$0xf]
      %v536 = vld [vmem:[%s2 + $0xc] sm:$0xf]
      %v537 = vld [vmem:[%s2 + $0x10] sm:$0xf]
      %v538 = vld [vmem:[%s2 + $0x14] sm:$0xf]
      %v539 = vld [vmem:[%s2 + $0x18] sm:$0xf]
      %v540 = vld [vmem:[%s2 + $0x1c] sm:$0xf]
      %v541 = vld [vmem:[%s2 + $0x20] sm:$0xf]
      %v542 = vld [vmem:[%s2 + $0x24] sm:$0xf]
      %v543 = vld [vmem:[%s2 + $0x28] sm:$0xf]
      %v544 = vld [vmem:[%s2 + $0x2c] sm:$0xf]
      %v545 = vld [vmem:[%s2 + $0x30] sm:$0xf]
      %v546 = vld [vmem:[%s2 + $0x34] sm:$0xf]
      %v547 = vld [vmem:[%s2 + $0x38] sm:$0xf]
      %v548 = vld [vmem:[%s2 + $0x3c] sm:$0xf]
      %v549 = vld [vmem:[%s3] sm:$0x1]
      %v551 = vperm.slane %v549, 0
      %v555 = vunpack.c.l.b16 %v531
      %v556 = vunpack.c.l.b16 %v532
      %v557 = vpack.c.b16 %v556, %v555
      %v575 = vunpack.c.l.b16 %v533
      %v576 = vunpack.c.l.b16 %v534
      %v577 = vunpack.c.l.b16 %v535
      %v578 = vunpack.c.l.b16 %v536
      %v579 = vunpack.c.l.b16 %v537
      %v580 = vunpack.c.l.b16 %v538
      %v581 = vunpack.c.l.b16 %v539
      %v582 = vunpack.c.l.b16 %v540
      %v583 = vunpack.c.l.b16 %v541
      %v584 = vunpack.c.l.b16 %v542
      %v585 = vunpack.c.l.b16 %v543
      %v586 = vunpack.c.l.b16 %v544
      %v587 = vunpack.c.l.b16 %v545
      %v588 = vunpack.c.l.b16 %v546
      %v589 = vunpack.c.l.b16 %v547
      %v590 = vunpack.c.l.b16 %v548
      %v591 = vpack.c.b16 %v576, %v575
      %v592 = vpack.c.b16 %v578, %v577
      %v593 = vpack.c.b16 %v580, %v579
      %v594 = vpack.c.b16 %v582, %v581
      %v595 = vpack.c.b16 %v584, %v583
      %v596 = vpack.c.b16 %v586, %v585
      %v597 = vpack.c.b16 %v588, %v587
      %v598 = vpack.c.b16 %v590, %v589
      %607 = vmatpush.bf16.msra.mxu0 %v598
      %608 = vmatpush.bf16.msra.mxu0 %v597
      %609 = vmatpush.bf16.msra.mxu0 %v596
      %610 = vmatpush.bf16.msra.mxu0 %v595
      %611 = vmatpush.bf16.msra.mxu0 %v594
      %612 = vmatpush.bf16.msra.mxu0 %v593
      %613 = vmatpush.bf16.msra.mxu0 %v592
      %614 = vmatpush.bf16.msra.mxu0 %v591
      %615 = vmatmul.bf16.gmra.mxu0 %v557
      %v616 = vpop.f32.mrf.mxu0
      %v617 = vadd.f32 %v551, %v616
      %v618 = vpop.f32.mrf.mxu0
      %v619 = vadd.f32 %v551, %v618
      %620 = vdwg.mxu0
      %v621 = vpack.c.bf16 %v619, %v617
      %v622 = vld [vmem:[#allocation2] sm:$0xf]
      %v623 = vld [vmem:[#allocation2 + $0x4] sm:$0xf]
      %v626 = vunpack.c.l.b16 %v622
      %v627 = vunpack.c.l.b16 %v623
      %v628 = vpack.c.b16 %v627, %v626
      %vm630 = vcmask 130048
      %v632 = vsel %vm630, %v621, 0
      %634 = vmatpush.bf16.msra.mxu0 0
      %635 = vmatpush.bf16.msra.mxu0 0
      %636 = vmatpush.bf16.msra.mxu0 0
      %637 = vmatpush.bf16.msra.mxu0 0
      %638 = vmatpush.bf16.msra.mxu0 0
      %639 = vmatpush.bf16.msra.mxu0 0
      %640 = vmatpush.bf16.msra.mxu0 0
      %641 = vmatpush.bf16.msra.mxu0 %v628
      %642 = vmatmul.bf16.gmra.mxu0 %v632
      %v643 = vpop.f32.mrf.mxu0
      %v644 = vadd.f32 0.0, %v643
      %v645 = vpop.f32.mrf.mxu0
      %v646 = vadd.f32 0.0, %v645
      %647 = vdwg.mxu0
      %v648 = vlaneseq
      %v649 = vand.u32 %v648, 127
      %vm650 = vcmp.lt.s32.totalorder %v649, 9
      %v651 = vsel %vm650, %v644, -1e+30
      %v652 = vsel %vm650, %v646, -1e+30
      %v653 = vsel %vm630, %v651, -inf
      %654 = vmax.xlane.f32.xlu0 %v653
      %v655 = vpop.xlane.xlu0 %654
      %v656 = vsel %vm630, %v652, -inf
      %657 = vmax.xlane.f32.xlu0 %v656
      %v658 = vpop.xlane.xlu0 %657
      %v659 = vsub.f32 %v651, %v655
      %v660 = vsub.f32 %v652, %v658
      %v661 = vmul.f32 %v659, 1.442695
      %v662 = vpow.pop %v661
      %v663 = vmul.f32 %v660, 1.442695
      %v664 = vpow.pop %v663
      %v665 = vsel %vm630, %v662, 0.0
      %666 = vadd.xlane.f32.xlu0 %v665
      %v667 = vpop.xlane.xlu0 %666
      %v668 = vsel %vm630, %v664, 0.0
      %669 = vadd.xlane.f32.xlu0 %v668
      %v670 = vpop.xlane.xlu0 %669
      %v671 = vrcp.pop %v667
      %v672 = vrcp.pop %v670
      %v673 = vmul.f32 %v662, %v671
      %v674 = vmul.f32 %v664, %v672
      %v675 = vpack.c.bf16 %v674, %v673
      %v676 = vld [vmem:[#allocation3] sm:$0xf]
      %v677 = vld [vmem:[#allocation3 + $0x4] sm:$0xf]
      %v680 = vunpack.c.l.b16 %v676
      %v681 = vunpack.c.l.b16 %v677
      %v682 = vpack.c.b16 %v681, %v680
      %v685 = vsel %vm630, %v675, 0
      %687 = vmatpush.bf16.msra.mxu0 0
      %688 = vmatpush.bf16.msra.mxu0 0
      %689 = vmatpush.bf16.msra.mxu0 0
      %690 = vmatpush.bf16.msra.mxu0 0
      %691 = vmatpush.bf16.msra.mxu0 0
      %692 = vmatpush.bf16.msra.mxu0 0
      %693 = vmatpush.bf16.msra.mxu0 0
      %694 = vmatpush.bf16.msra.mxu0 %v682
      %695 = vmatmul.bf16.gmra.mxu0 %v685
      %v696 = vpop.f32.mrf.mxu0
      %v697 = vadd.f32 0.0, %v696
      %v698 = vpop.f32.mrf.mxu0
      %v699 = vadd.f32 0.0, %v698
      %700 = vdwg.mxu0
      %s701 = sld [smem:[#allocation4]]
      %v702 = vstv %s701
      %v703 = vmul.f32 %v702, %v697
      %v704 = vmul.f32 %v702, %v699
      %v705 = vunpack.c.l.bf16 %v531
      %v706 = vunpack.c.l.bf16 %v532
      %v707 = vadd.f32 %v703, %v705
      %v708 = vadd.f32 %v704, %v706
      %v709 = vpack.c.bf16 %v707, %v707
      %v710 = vpack.c.bf16 %v708, %v708
      %711 = vst [vmem:[%s391] sm:$0xf] %v709
      %712 = vst [vmem:[%s391 + $0x4] sm:$0xf] %v710
      %s713 = smul.u32 2, %s26
      %p714 = scmp.lt.s32.totalorder %s25, 1
      %s715 = scalar_select %p714, %s25, 1
      %p716 = scmp.lt.s32.totalorder %s713, 1
      %s717 = scalar_select %p716, %s713, 1
      %s718 = smul.addr %s715, 2
      %s719 = sadd.s32 %s717, %s718
      %s720 = smul.addr %s719, 4
      %s721 = scalar_lea.vmem %s9, %s720
      // Predicated region
      $region61: #{forward.11} parent=55 // pred_check
        %p722 = pneg %p254
      $region62: #{forward.11} parent=55 // pred_check_branch
        %724 = sbr.rel (%p722) target = $region64
      $region63: #{forward.11} parent=55 // pred_region
        %s725 = smul.u32 2, %s26
      $region64: #{forward.11} parent=55 // pred_fallthru
        _
    $region56: #{forward.11} parent=5 // pred_fallthru
      _
    %p726 = scmp.le.s32.totalorder 2, %s16
    // Predicated region
    $region65: #{forward.11} parent=5 // pred_check
      %p727 = pneg %p726
    $region66: #{forward.11} parent=5 // pred_check_branch
      %729 = sbr.rel (%p727) target = $region68
    $region67: #{forward.11} parent=5 // pred_region
      %s730 = ssub.s32 %s16, 2
      // Predicated region
      $region69: #{forward.11} parent=67 // pred_check
        %p731 = pneg %p260
      $region70: #{forward.11} parent=67 // pred_check_branch
        %733 = sbr.rel (%p731) target = $region72
      $region71: #{forward.11} parent=67 // pred_region
        %s734 = smul.u32 2, %s28
        %p735 = scmp.lt.s32.totalorder %s27, 1
        %s736 = scalar_select %p735, %s27, 1
        %p737 = scmp.lt.s32.totalorder %s734, 1
        %s738 = scalar_select %p737, %s734, 1
        %s739 = smul.addr %s736, 2
        %s740 = sadd.s32 %s738, %s739
        %s741 = smul.addr %s740, 4
        %s742 = scalar_lea.vmem %s9, %s741
      $region72: #{forward.11} parent=67 // pred_fallthru
        _
    $region68: #{forward.11} parent=5 // pred_fallthru
      _
  $region6: #{forward.11} parent=0 // loop_footer
    %s20 = sadd.s32 1, %s16
  $region7: #{forward.11} parent=0 // loop_footer_branch
    %15 = sbr.rel target = $region3
  $region8: #{forward.11} parent=0 // loop_exit
    _

// kernel: forward.12
$region0: #{forward.12}
  #allocation0 [shape = 'u32[]', space=smem, size = 0x4, offset = 0x4, fixed_abs, tag = 'smem constant byte address 0x4 - core index']
  #allocation1 [shape = 'u32[72,128]{1,0:T(1,128)}', space=vmem, size = 0x9000, scoped, tag = 'internal scratch']
  %s0 = inlined_call_operand.vmem [shape: bf16[16,2048], index: 0, kind: input, shape index: {}]
  %s1 = inlined_call_operand.vmem [shape: bf16[2048,256], index: 1, kind: input, shape index: {}]
  %s2 = inlined_call_operand.vmem [shape: f32[1,256], index: 2, kind: input, shape index: {}]
  %s3 = inlined_call_operand.vmem [shape: bf16[16,256], index: 3, kind: output, shape index: {}]
  %s4 = sld [smem:[#allocation0]]
  $region134: #{forward.12} parent=0
    _
  %s6 = ssub.s32 1, %s4
  %s7 = scalar_select 0, %s6, %s4
  $region1: #{forward.12} parent=0
    #allocation2 [shape = 'u8[1048576]{0}', space=vmem, size = 0x100000, scoped, tag = 'input window, operand 1']
    #allocation3 [shape = 'u8[8192]{0}', space=vmem, size = 0x2000, scoped, tag = 'output window, operand 0']
    loop: start=0, step=1, limit=4
    $region2: #{forward.12} parent=1 // loop_pre_header
      _
    $region3: #{forward.12} parent=1 // loop_header
      %s9 = sphi 0, %s13
      %p10 = scmp.ge.s32.totalorder %s9, 4
      %s16 = sphi 0, %s28
      %s17 = sphi 0, %s24
      %s18 = sphi 0, %s16
      %s19 = sphi 0, %s17
      %s20 = sphi 0, %s18
      %s21 = sphi 0, %s19
      %s31 = sphi 0, %s33
      %s34 = sphi 0, %s31
      %s35 = sphi 0, %s34
      %s51 = sphi 0, %s35
      %s57 = sphi 0, %s59
      %s60 = sphi 0, %s57
      %s61 = sphi 0, %s60
      %s77 = sphi 0, %s61
      %s83 = sphi 0, %s85
      %s86 = sphi 0, %s83
      %s87 = sphi 0, %s86
      %s103 = sphi 0, %s87
      %s111 = sphi 0, %s113
      %s114 = sphi 0, %s111
      %s115 = sphi 0, %s114
      %s131 = sphi 0, %s115
    $region4: #{forward.12} parent=1 // loop_header_branch
      %12 = sbr.rel (%p10) target = $region8
    $region5: #{forward.12} parent=1 // loop_body
      %s14 = ssub.s32 %s9, 1
      %s15 = ssub.s32 %s9, 2
      %s22 = sadd.s32 1, %s17
      %p23 = scmp.ge.s32.totalorder %s22, 2
      %s24 = scalar_select %p23, 0, %s22
      %s25 = sadd.s32 1, %s16
      %s26 = scalar_select %p23, %s25, %s16
      %p27 = scmp.ge.s32.totalorder %s26, 1
      %s28 = scalar_select %p27, 0, %s26
      %s29 = ssub.s32 %s16, %s28
      %p30 = scmp.eq.s32.totalorder %s29, 0
      %s32 = sadd.s32 %s31, 1
      %s33 = scalar_select %p30, %s31, %s32
      %p36 = pneg %p30
      %p37 = scmp.eq.s32.totalorder %s9, 1
      %p38 = por %p36, %p37
      %p39 = scmp.ne.s32.totalorder %s31, %s34
      %p40 = scmp.eq.s32.totalorder %s9, 0
      %p41 = por %p39, %p40
      %p42 = scmp.ne.s32.totalorder %s31, %s34
      %p43 = scmp.eq.s32.totalorder %s14, 1
      %p44 = por %p42, %p43
      %p45 = scmp.ne.s32.totalorder %s34, %s35
      %p46 = scmp.eq.s32.totalorder %s14, 0
      %p47 = por %p45, %p46
      %p48 = scmp.ne.s32.totalorder %s34, %s35
      %p49 = scmp.eq.s32.totalorder %s15, 1
      %p50 = por %p48, %p49
      %p52 = scmp.ne.s32.totalorder %s35, %s51
      %p53 = scmp.eq.s32.totalorder %s15, 0
      %p54 = por %p52, %p53
      %s55 = ssub.s32 %s17, %s24
      %p56 = scmp.eq.s32.totalorder %s55, 0
      %s58 = sadd.s32 %s57, 1
      %s59 = scalar_select %p56, %s57, %s58
      %p62 = pneg %p56
      %p63 = scmp.eq.s32.totalorder %s9, 1
      %p64 = por %p62, %p63
      %p65 = scmp.ne.s32.totalorder %s57, %s60
      %p66 = scmp.eq.s32.totalorder %s9, 0
      %p67 = por %p65, %p66
      %p68 = scmp.ne.s32.totalorder %s57, %s60
      %p69 = scmp.eq.s32.totalorder %s14, 1
      %p70 = por %p68, %p69
      %p71 = scmp.ne.s32.totalorder %s60, %s61
      %p72 = scmp.eq.s32.totalorder %s14, 0
      %p73 = por %p71, %p72
      %p74 = scmp.ne.s32.totalorder %s60, %s61
      %p75 = scmp.eq.s32.totalorder %s15, 1
      %p76 = por %p74, %p75
      %p78 = scmp.ne.s32.totalorder %s61, %s77
      %p79 = scmp.eq.s32.totalorder %s15, 0
      %p80 = por %p78, %p79
      %s81 = ssub.s32 %s17, %s24
      %p82 = scmp.eq.s32.totalorder %s81, 0
      %s84 = sadd.s32 %s83, 1
      %s85 = scalar_select %p82, %s83, %s84
      %p88 = pneg %p82
      %p89 = scmp.eq.s32.totalorder %s9, 1
      %p90 = por %p88, %p89
      %p91 = scmp.ne.s32.totalorder %s83, %s86
      %p92 = scmp.eq.s32.totalorder %s9, 0
      %p93 = por %p91, %p92
      %p94 = scmp.ne.s32.totalorder %s83, %s86
      %p95 = scmp.eq.s32.totalorder %s14, 1
      %p96 = por %p94, %p95
      %p97 = scmp.ne.s32.totalorder %s86, %s87
      %p98 = scmp.eq.s32.totalorder %s14, 0
      %p99 = por %p97, %p98
      %p100 = scmp.ne.s32.totalorder %s86, %s87
      %p101 = scmp.eq.s32.totalorder %s15, 1
      %p102 = por %p100, %p101
      %p104 = scmp.ne.s32.totalorder %s87, %s103
      %p105 = scmp.eq.s32.totalorder %s15, 0
      %p106 = por %p104, %p105
      %s107 = ssub.s32 %s16, %s28
      %s108 = ssub.s32 %s17, %s24
      %s109 = sor.u32 %s107, %s108
      %p110 = scmp.eq.s32.totalorder %s109, 0
      %s112 = sadd.s32 %s111, 1
      %s113 = scalar_select %p110, %s111, %s112
      %p116 = pneg %p110
      %p117 = scmp.eq.s32.totalorder %s9, 1
      %p118 = por %p116, %p117
      %p119 = scmp.ne.s32.totalorder %s111, %s114
      %p120 = scmp.eq.s32.totalorder %s9, 0
      %p121 = por %p119, %p120
      %p122 = scmp.ne.s32.totalorder %s111, %s114
      %p123 = scmp.eq.s32.totalorder %s14, 1
      %p124 = por %p122, %p123
      %p125 = scmp.ne.s32.totalorder %s114, %s115
      %p126 = scmp.eq.s32.totalorder %s14, 0
      %p127 = por %p125, %p126
      %p128 = scmp.ne.s32.totalorder %s114, %s115
      %p129 = scmp.eq.s32.totalorder %s15, 1
      %p130 = por %p128, %p129
      %p132 = scmp.ne.s32.totalorder %s115, %s131
      %p133 = scmp.eq.s32.totalorder %s15, 0
      %p134 = por %p132, %p133
      %p135 = scmp.le.s32.totalorder 1, %s9
      %p136 = scmp.lt.s32.totalorder %s9, 3
      %p137 = pnand %p135, %p136
      %p138 = pneg %p137
      // Predicated region
      $region9: #{forward.12} parent=5 // pred_check
        _
      $region10: #{forward.12} parent=5 // pred_check_branch
        %140 = sbr.rel (%p137) target = $region12
      $region11: #{forward.12} parent=5 // pred_region
        %s141 = ssub.s32 %s9, 1
        // Predicated region
        $region13: #{forward.12} parent=11 // pred_check
          %p142 = pneg %p47
        $region14: #{forward.12} parent=11 // pred_check_branch
          %144 = sbr.rel (%p142) target = $region16
        $region15: #{forward.12} parent=11 // pred_region
          %s145 = smul.u32 2, %s18
          %p146 = scmp.lt.s32.totalorder %s145, 1
          %s147 = scalar_select %p146, %s145, 1
          %s148 = smul.addr %s147, 16
          %s149 = smul.addr %s148, 4
          %s150 = scalar_lea.vmem %s0, %s149
          %s151 = smul.u32 2, %s18
        $region16: #{forward.12} parent=11 // pred_fallthru
          _
      $region12: #{forward.12} parent=5 // pred_fallthru
        _
      %p152 = scmp.lt.s32.totalorder %s9, 2
      // Predicated region
      $region17: #{forward.12} parent=5 // pred_check
        %p153 = pneg %p152
      $region18: #{forward.12} parent=5 // pred_check_branch
        %155 = sbr.rel (%p153) target = $region20
      $region19: #{forward.12} parent=5 // pred_region
        // Predicated region
        $region21: #{forward.12} parent=19 // pred_check
          %p156 = pneg %p67
        $region22: #{forward.12} parent=19 // pred_check_branch
          %158 = sbr.rel (%p156) target = $region24
        $region23: #{forward.12} parent=19 // pred_region
          %s159 = sand.u32 %s57, 1
          %s160 = sand.u32 %s57, 1
          %s161 = smul.addr %s160, 1024
          %s162 = scalar_lea.vmem [#allocation2], %s161
          %s163 = smul.addr %s17, 4
          %s164 = scalar_lea.vmem %s1, %s163
          // Predicated region
          $region25: #{forward.12} parent=23 // pred_check
            _
          $region26: #{forward.12} parent=23 // pred_check_branch
            %166 = sbr.rel (0) target = $region28
          $region27: #{forward.12} parent=23 // pred_region
            // Predicated region
            $region29: #{forward.12} parent=27 // pred_check
              _
            $region30: #{forward.12} parent=27 // pred_check_branch
              %168 = sbr.rel target = $region32
            $region31: #{forward.12} parent=27 // pred_region
              // Predicated region
              $region44: #{forward.12} parent=31 // pred_check
                _
              $region45: #{forward.12} parent=31 // pred_check_branch
                %694 = sbr.rel target = $region47
              $region46: #{forward.12} parent=31 // pred_region
                loop: start=0, step=1, limit=0
                $region48: #{forward.12} parent=46 // loop_pre_header
                  _
                $region49: #{forward.12} parent=46 // loop_header
                  %s696 = sphi 0, %s700
                  %p697 = scmp.ge.s32.totalorder %s696, 0
                  %s701 = sphi 0, %s1218
                  %s702 = sphi %s164, %s1221
                  %s703 = sphi %s162, %s1222
                $region50: #{forward.12} parent=46 // loop_header_branch
                  %699 = sbr.rel (%p697) target = $region54
                $region51: #{forward.12} parent=46 // loop_body
                  %v704 = vld [vmem:[%s702] sm:$0xff]
                  %705 = vst [vmem:[%s703] sm:$0xff] %v704
                  %v706 = vld [vmem:[%s702 + $0x8] sm:$0xff]
                  %707 = vst [vmem:[%s703 + $0x4] sm:$0xff] %v706
                  %v708 = vld [vmem:[%s702 + $0x10] sm:$0xff]
                  %709 = vst [vmem:[%s703 + $0x8] sm:$0xff] %v708
                  %v710 = vld [vmem:[%s702 + $0x18] sm:$0xff]
                  %711 = vst [vmem:[%s703 + $0xc] sm:$0xff] %v710
                  %v712 = vld [vmem:[%s702 + $0x20] sm:$0xff]
                  %713 = vst [vmem:[%s703 + $0x10] sm:$0xff] %v712
                  %v714 = vld [vmem:[%s702 + $0x28] sm:$0xff]
                  %715 = vst [vmem:[%s703 + $0x14] sm:$0xff] %v714
                  %v716 = vld [vmem:[%s702 + $0x30] sm:$0xff]
                  %717 = vst [vmem:[%s703 + $0x18] sm:$0xff] %v716
                  %v718 = vld [vmem:[%s702 + $0x38] sm:$0xff]
                  %719 = vst [vmem:[%s703 + $0x1c] sm:$0xff] %v718
                  %v720 = vld [vmem:[%s702 + $0x40] sm:$0xff]
                  %721 = vst [vmem:[%s703 + $0x20] sm:$0xff] %v720
                  %v722 = vld [vmem:[%s702 + $0x48] sm:$0xff]
                  %723 = vst [vmem:[%s703 + $0x24] sm:$0xff] %v722
                  %v724 = vld [vmem:[%s702 + $0x50] sm:$0xff]
                  %725 = vst [vmem:[%s703 + $0x28] sm:$0xff] %v724
                  %v726 = vld [vmem:[%s702 + $0x58] sm:$0xff]
                  %727 = vst [vmem:[%s703 + $0x2c] sm:$0xff] %v726
                  %v728 = vld [vmem:[%s702 + $0x60] sm:$0xff]
                  %729 = vst [vmem:[%s703 + $0x30] sm:$0xff] %v728
                  %v730 = vld [vmem:[%s702 + $0x68] sm:$0xff]
                  %731 = vst [vmem:[%s703 + $0x34] sm:$0xff] %v730
                  %v732 = vld [vmem:[%s702 + $0x70] sm:$0xff]
                  %733 = vst [vmem:[%s703 + $0x38] sm:$0xff] %v732
                  %v734 = vld [vmem:[%s702 + $0x78] sm:$0xff]
                  %735 = vst [vmem:[%s703 + $0x3c] sm:$0xff] %v734
                  %v736 = vld [vmem:[%s702 + $0x80] sm:$0xff]
                  %737 = vst [vmem:[%s703 + $0x40] sm:$0xff] %v736
                  %v738 = vld [vmem:[%s702 + $0x88] sm:$0xff]
                  %739 = vst [vmem:[%s703 + $0x44] sm:$0xff] %v738
                  %v740 = vld [vmem:[%s702 + $0x90] sm:$0xff]
                  %741 = vst [vmem:[%s703 + $0x48] sm:$0xff] %v740
                  %v742 = vld [vmem:[%s702 + $0x98] sm:$0xff]
                  %743 = vst [vmem:[%s703 + $0x4c] sm:$0xff] %v742
                  %v744 = vld [vmem:[%s702 + $0xa0] sm:$0xff]
                  %745 = vst [vmem:[%s703 + $0x50] sm:$0xff] %v744
                  %v746 = vld [vmem:[%s702 + $0xa8] sm:$0xff]
                  %747 = vst [vmem:[%s703 + $0x54] sm:$0xff] %v746
                  %v748 = vld [vmem:[%s702 + $0xb0] sm:$0xff]
                  %749 = vst [vmem:[%s703 + $0x58] sm:$0xff] %v748
                  %v750 = vld [vmem:[%s702 + $0xb8] sm:$0xff]
                  %751 = vst [vmem:[%s703 + $0x5c] sm:$0xff] %v750
                  %v752 = vld [vmem:[%s702 + $0xc0] sm:$0xff]
                  %753 = vst [vmem:[%s703 + $0x60] sm:$0xff] %v752
                  %v754 = vld [vmem:[%s702 + $0xc8] sm:$0xff]
                  %755 = vst [vmem:[%s703 + $0x64] sm:$0xff] %v754
                  %v756 = vld [vmem:[%s702 + $0xd0] sm:$0xff]
                  %757 = vst [vmem:[%s703 + $0x68] sm:$0xff] %v756
                  %v758 = vld [vmem:[%s702 + $0xd8] sm:$0xff]
                  %759 = vst [vmem:[%s703 + $0x6c] sm:$0xff] %v758
                  %v760 = vld [vmem:[%s702 + $0xe0] sm:$0xff]
                  %761 = vst [vmem:[%s703 + $0x70] sm:$0xff] %v760
                  %v762 = vld [vmem:[%s702 + $0xe8] sm:$0xff]
                  %763 = vst [vmem:[%s703 + $0x74] sm:$0xff] %v762
                  %v764 = vld [vmem:[%s702 + $0xf0] sm:$0xff]
                  %765 = vst [vmem:[%s703 + $0x78] sm:$0xff] %v764
                  %v766 = vld [vmem:[%s702 + $0xf8] sm:$0xff]
                  %767 = vst [vmem:[%s703 + $0x7c] sm:$0xff] %v766
                  %v768 = vld [vmem:[%s702 + $0x100] sm:$0xff]
                  %769 = vst [vmem:[%s703 + $0x80] sm:$0xff] %v768
                  %v770 = vld [vmem:[%s702 + $0x108] sm:$0xff]
                  %771 = vst [vmem:[%s703 + $0x84] sm:$0xff] %v770
                  %v772 = vld [vmem:[%s702 + $0x110] sm:$0xff]
                  %773 = vst [vmem:[%s703 + $0x88] sm:$0xff] %v772
                  %v774 = vld [vmem:[%s702 + $0x118] sm:$0xff]
                  %775 = vst [vmem:[%s703 + $0x8c] sm:$0xff] %v774
                  %v776 = vld [vmem:[%s702 + $0x120] sm:$0xff]
                  %777 = vst [vmem:[%s703 + $0x90] sm:$0xff] %v776
                  %v778 = vld [vmem:[%s702 + $0x128] sm:$0xff]
                  %779 = vst [vmem:[%s703 + $0x94] sm:$0xff] %v778
                  %v780 = vld [vmem:[%s702 + $0x130] sm:$0xff]
                  %781 = vst [vmem:[%s703 + $0x98] sm:$0xff] %v780
                  %v782 = vld [vmem:[%s702 + $0x138] sm:$0xff]
                  %783 = vst [vmem:[%s703 + $0x9c] sm:$0xff] %v782
                  %v784 = vld [vmem:[%s702 + $0x140] sm:$0xff]
                  %785 = vst [vmem:[%s703 + $0xa0] sm:$0xff] %v784
                  %v786 = vld [vmem:[%s702 + $0x148] sm:$0xff]
                  %787 = vst [vmem:[%s703 + $0xa4] sm:$0xff] %v786
                  %v788 = vld [vmem:[%s702 + $0x150] sm:$0xff]
                  %789 = vst [vmem:[%s703 + $0xa8] sm:$0xff] %v788
                  %v790 = vld [vmem:[%s702 + $0x158] sm:$0xff]
                  %791 = vst [vmem:[%s703 + $0xac] sm:$0xff] %v790
                  %v792 = vld [vmem:[%s702 + $0x160] sm:$0xff]
                  %793 = vst [vmem:[%s703 + $0xb0] sm:$0xff] %v792
                  %v794 = vld [vmem:[%s702 + $0x168] sm:$0xff]
                  %795 = vst [vmem:[%s703 + $0xb4] sm:$0xff] %v794
                  %v796 = vld [vmem:[%s702 + $0x170] sm:$0xff]
                  %797 = vst [vmem:[%s703 + $0xb8] sm:$0xff] %v796
                  %v798 = vld [vmem:[%s702 + $0x178] sm:$0xff]
                  %799 = vst [vmem:[%s703 + $0xbc] sm:$0xff] %v798
                  %v800 = vld [vmem:[%s702 + $0x180] sm:$0xff]
                  %801 = vst [vmem:[%s703 + $0xc0] sm:$0xff] %v800
                  %v802 = vld [vmem:[%s702 + $0x188] sm:$0xff]
                  %803 = vst [vmem:[%s703 + $0xc4] sm:$0xff] %v802
                  %v804 = vld [vmem:[%s702 + $0x190] sm:$0xff]
                  %805 = vst [vmem:[%s703 + $0xc8] sm:$0xff] %v804
                  %v806 = vld [vmem:[%s702 + $0x198] sm:$0xff]
                  %807 = vst [vmem:[%s703 + $0xcc] sm:$0xff] %v806
                  %v808 = vld [vmem:[%s702 + $0x1a0] sm:$0xff]
                  %809 = vst [vmem:[%s703 + $0xd0] sm:$0xff] %v808
                  %v810 = vld [vmem:[%s702 + $0x1a8] sm:$0xff]
                  %811 = vst [vmem:[%s703 + $0xd4] sm:$0xff] %v810
                  %v812 = vld [vmem:[%s702 + $0x1b0] sm:$0xff]
                  %813 = vst [vmem:[%s703 + $0xd8] sm:$0xff] %v812
                  %v814 = vld [vmem:[%s702 + $0x1b8] sm:$0xff]
                  %815 = vst [vmem:[%s703 + $0xdc] sm:$0xff] %v814
                  %v816 = vld [vmem:[%s702 + $0x1c0] sm:$0xff]
                  %817 = vst [vmem:[%s703 + $0xe0] sm:$0xff] %v816
                  %v818 = vld [vmem:[%s702 + $0x1c8] sm:$0xff]
                  %819 = vst [vmem:[%s703 + $0xe4] sm:$0xff] %v818
                  %v820 = vld [vmem:[%s702 + $0x1d0] sm:$0xff]
                  %821 = vst [vmem:[%s703 + $0xe8] sm:$0xff] %v820
                  %v822 = vld [vmem:[%s702 + $0x1d8] sm:$0xff]
                  %823 = vst [vmem:[%s703 + $0xec] sm:$0xff] %v822
                  %v824 = vld [vmem:[%s702 + $0x1e0] sm:$0xff]
                  %825 = vst [vmem:[%s703 + $0xf0] sm:$0xff] %v824
                  %v826 = vld [vmem:[%s702 + $0x1e8] sm:$0xff]
                  %827 = vst [vmem:[%s703 + $0xf4] sm:$0xff] %v826
                  %v828 = vld [vmem:[%s702 + $0x1f0] sm:$0xff]
                  %829 = vst [vmem:[%s703 + $0xf8] sm:$0xff] %v828
                  %v830 = vld [vmem:[%s702 + $0x1f8] sm:$0xff]
                  %831 = vst [vmem:[%s703 + $0xfc] sm:$0xff] %v830
                  %v832 = vld [vmem:[%s702 + $0x200] sm:$0xff]
                  %833 = vst [vmem:[%s703 + $0x100] sm:$0xff] %v832
                  %v834 = vld [vmem:[%s702 + $0x208] sm:$0xff]
                  %835 = vst [vmem:[%s703 + $0x104] sm:$0xff] %v834
                  %v836 = vld [vmem:[%s702 + $0x210] sm:$0xff]
                  %837 = vst [vmem:[%s703 + $0x108] sm:$0xff] %v836
                  %v838 = vld [vmem:[%s702 + $0x218] sm:$0xff]
                  %839 = vst [vmem:[%s703 + $0x10c] sm:$0xff] %v838
                  %v840 = vld [vmem:[%s702 + $0x220] sm:$0xff]
                  %841 = vst [vmem:[%s703 + $0x110] sm:$0xff] %v840
                  %v842 = vld [vmem:[%s702 + $0x228] sm:$0xff]
                  %843 = vst [vmem:[%s703 + $0x114] sm:$0xff] %v842
                  %v844 = vld [vmem:[%s702 + $0x230] sm:$0xff]
                  %845 = vst [vmem:[%s703 + $0x118] sm:$0xff] %v844
                  %v846 = vld [vmem:[%s702 + $0x238] sm:$0xff]
                  %847 = vst [vmem:[%s703 + $0x11c] sm:$0xff] %v846
                  %v848 = vld [vmem:[%s702 + $0x240] sm:$0xff]
                  %849 = vst [vmem:[%s703 + $0x120] sm:$0xff] %v848
                  %v850 = vld [vmem:[%s702 + $0x248] sm:$0xff]
                  %851 = vst [vmem:[%s703 + $0x124] sm:$0xff] %v850
                  %v852 = vld [vmem:[%s702 + $0x250] sm:$0xff]
                  %853 = vst [vmem:[%s703 + $0x128] sm:$0xff] %v852
                  %v854 = vld [vmem:[%s702 + $0x258] sm:$0xff]
                  %855 = vst [vmem:[%s703 + $0x12c] sm:$0xff] %v854
                  %v856 = vld [vmem:[%s702 + $0x260] sm:$0xff]
                  %857 = vst [vmem:[%s703 + $0x130] sm:$0xff] %v856
                  %v858 = vld [vmem:[%s702 + $0x268] sm:$0xff]
                  %859 = vst [vmem:[%s703 + $0x134] sm:$0xff] %v858
                  %v860 = vld [vmem:[%s702 + $0x270] sm:$0xff]
                  %861 = vst [vmem:[%s703 + $0x138] sm:$0xff] %v860
                  %v862 = vld [vmem:[%s702 + $0x278] sm:$0xff]
                  %863 = vst [vmem:[%s703 + $0x13c] sm:$0xff] %v862
                  %v864 = vld [vmem:[%s702 + $0x280] sm:$0xff]
                  %865 = vst [vmem:[%s703 + $0x140] sm:$0xff] %v864
                  %v866 = vld [vmem:[%s702 + $0x288] sm:$0xff]
                  %867 = vst [vmem:[%s703 + $0x144] sm:$0xff] %v866
                  %v868 = vld [vmem:[%s702 + $0x290] sm:$0xff]
                  %869 = vst [vmem:[%s703 + $0x148] sm:$0xff] %v868
                  %v870 = vld [vmem:[%s702 + $0x298] sm:$0xff]
                  %871 = vst [vmem:[%s703 + $0x14c] sm:$0xff] %v870
                  %v872 = vld [vmem:[%s702 + $0x2a0] sm:$0xff]
                  %873 = vst [vmem:[%s703 + $0x150] sm:$0xff] %v872
                  %v874 = vld [vmem:[%s702 + $0x2a8] sm:$0xff]
                  %875 = vst [vmem:[%s703 + $0x154] sm:$0xff] %v874
                  %v876 = vld [vmem:[%s702 + $0x2b0] sm:$0xff]
                  %877 = vst [vmem:[%s703 + $0x158] sm:$0xff] %v876
                  %v878 = vld [vmem:[%s702 + $0x2b8] sm:$0xff]
                  %879 = vst [vmem:[%s703 + $0x15c] sm:$0xff] %v878
                  %v880 = vld [vmem:[%s702 + $0x2c0] sm:$0xff]
                  %881 = vst [vmem:[%s703 + $0x160] sm:$0xff] %v880
                  %v882 = vld [vmem:[%s702 + $0x2c8] sm:$0xff]
                  %883 = vst [vmem:[%s703 + $0x164] sm:$0xff] %v882
                  %v884 = vld [vmem:[%s702 + $0x2d0] sm:$0xff]
                  %885 = vst [vmem:[%s703 + $0x168] sm:$0xff] %v884
                  %v886 = vld [vmem:[%s702 + $0x2d8] sm:$0xff]
                  %887 = vst [vmem:[%s703 + $0x16c] sm:$0xff] %v886
                  %v888 = vld [vmem:[%s702 + $0x2e0] sm:$0xff]
                  %889 = vst [vmem:[%s703 + $0x170] sm:$0xff] %v888
                  %v890 = vld [vmem:[%s702 + $0x2e8] sm:$0xff]
                  %891 = vst [vmem:[%s703 + $0x174] sm:$0xff] %v890
                  %v892 = vld [vmem:[%s702 + $0x2f0] sm:$0xff]
                  %893 = vst [vmem:[%s703 + $0x178] sm:$0xff] %v892
                  %v894 = vld [vmem:[%s702 + $0x2f8] sm:$0xff]
                  %895 = vst [vmem:[%s703 + $0x17c] sm:$0xff] %v894
                  %v896 = vld [vmem:[%s702 + $0x300] sm:$0xff]
                  %897 = vst [vmem:[%s703 + $0x180] sm:$0xff] %v896
                  %v898 = vld [vmem:[%s702 + $0x308] sm:$0xff]
                  %899 = vst [vmem:[%s703 + $0x184] sm:$0xff] %v898
                  %v900 = vld [vmem:[%s702 + $0x310] sm:$0xff]
                  %901 = vst [vmem:[%s703 + $0x188] sm:$0xff] %v900
                  %v902 = vld [vmem:[%s702 + $0x318] sm:$0xff]
                  %903 = vst [vmem:[%s703 + $0x18c] sm:$0xff] %v902
                  %v904 = vld [vmem:[%s702 + $0x320] sm:$0xff]
                  %905 = vst [vmem:[%s703 + $0x190] sm:$0xff] %v904
                  %v906 = vld [vmem:[%s702 + $0x328] sm:$0xff]
                  %907 = vst [vmem:[%s703 + $0x194] sm:$0xff] %v906
                  %v908 = vld [vmem:[%s702 + $0x330] sm:$0xff]
                  %909 = vst [vmem:[%s703 + $0x198] sm:$0xff] %v908
                  %v910 = vld [vmem:[%s702 + $0x338] sm:$0xff]
                  %911 = vst [vmem:[%s703 + $0x19c] sm:$0xff] %v910
                  %v912 = vld [vmem:[%s702 + $0x340] sm:$0xff]
                  %913 = vst [vmem:[%s703 + $0x1a0] sm:$0xff] %v912
                  %v914 = vld [vmem:[%s702 + $0x348] sm:$0xff]
                  %915 = vst [vmem:[%s703 + $0x1a4] sm:$0xff] %v914
                  %v916 = vld [vmem:[%s702 + $0x350] sm:$0xff]
                  %917 = vst [vmem:[%s703 + $0x1a8] sm:$0xff] %v916
                  %v918 = vld [vmem:[%s702 + $0x358] sm:$0xff]
                  %919 = vst [vmem:[%s703 + $0x1ac] sm:$0xff] %v918
                  %v920 = vld [vmem:[%s702 + $0x360] sm:$0xff]
                  %921 = vst [vmem:[%s703 + $0x1b0] sm:$0xff] %v920
                  %v922 = vld [vmem:[%s702 + $0x368] sm:$0xff]
                  %923 = vst [vmem:[%s703 + $0x1b4] sm:$0xff] %v922
                  %v924 = vld [vmem:[%s702 + $0x370] sm:$0xff]
                  %925 = vst [vmem:[%s703 + $0x1b8] sm:$0xff] %v924
                  %v926 = vld [vmem:[%s702 + $0x378] sm:$0xff]
                  %927 = vst [vmem:[%s703 + $0x1bc] sm:$0xff] %v926
                  %v928 = vld [vmem:[%s702 + $0x380] sm:$0xff]
                  %929 = vst [vmem:[%s703 + $0x1c0] sm:$0xff] %v928
                  %v930 = vld [vmem:[%s702 + $0x388] sm:$0xff]
                  %931 = vst [vmem:[%s703 + $0x1c4] sm:$0xff] %v930
                  %v932 = vld [vmem:[%s702 + $0x390] sm:$0xff]
                  %933 = vst [vmem:[%s703 + $0x1c8] sm:$0xff] %v932
                  %v934 = vld [vmem:[%s702 + $0x398] sm:$0xff]
                  %935 = vst [vmem:[%s703 + $0x1cc] sm:$0xff] %v934
                  %v936 = vld [vmem:[%s702 + $0x3a0] sm:$0xff]
                  %937 = vst [vmem:[%s703 + $0x1d0] sm:$0xff] %v936
                  %v938 = vld [vmem:[%s702 + $0x3a8] sm:$0xff]
                  %939 = vst [vmem:[%s703 + $0x1d4] sm:$0xff] %v938
                  %v940 = vld [vmem:[%s702 + $0x3b0] sm:$0xff]
                  %941 = vst [vmem:[%s703 + $0x1d8] sm:$0xff] %v940
                  %v942 = vld [vmem:[%s702 + $0x3b8] sm:$0xff]
                  %943 = vst [vmem:[%s703 + $0x1dc] sm:$0xff] %v942
                  %v944 = vld [vmem:[%s702 + $0x3c0] sm:$0xff]
                  %945 = vst [vmem:[%s703 + $0x1e0] sm:$0xff] %v944
                  %v946 = vld [vmem:[%s702 + $0x3c8] sm:$0xff]
                  %947 = vst [vmem:[%s703 + $0x1e4] sm:$0xff] %v946
                  %v948 = vld [vmem:[%s702 + $0x3d0] sm:$0xff]
                  %949 = vst [vmem:[%s703 + $0x1e8] sm:$0xff] %v948
                  %v950 = vld [vmem:[%s702 + $0x3d8] sm:$0xff]
                  %951 = vst [vmem:[%s703 + $0x1ec] sm:$0xff] %v950
                  %v952 = vld [vmem:[%s702 + $0x3e0] sm:$0xff]
                  %953 = vst [vmem:[%s703 + $0x1f0] sm:$0xff] %v952
                  %v954 = vld [vmem:[%s702 + $0x3e8] sm:$0xff]
                  %955 = vst [vmem:[%s703 + $0x1f4] sm:$0xff] %v954
                  %v956 = vld [vmem:[%s702 + $0x3f0] sm:$0xff]
                  %957 = vst [vmem:[%s703 + $0x1f8] sm:$0xff] %v956
                  %v958 = vld [vmem:[%s702 + $0x3f8] sm:$0xff]
                  %959 = vst [vmem:[%s703 + $0x1fc] sm:$0xff] %v958
                  %v960 = vld [vmem:[%s702 + $0x400] sm:$0xff]
                  %961 = vst [vmem:[%s703 + $0x200] sm:$0xff] %v960
                  %v962 = vld [vmem:[%s702 + $0x408] sm:$0xff]
                  %963 = vst [vmem:[%s703 + $0x204] sm:$0xff] %v962
                  %v964 = vld [vmem:[%s702 + $0x410] sm:$0xff]
                  %965 = vst [vmem:[%s703 + $0x208] sm:$0xff] %v964
                  %v966 = vld [vmem:[%s702 + $0x418] sm:$0xff]
                  %967 = vst [vmem:[%s703 + $0x20c] sm:$0xff] %v966
                  %v968 = vld [vmem:[%s702 + $0x420] sm:$0xff]
                  %969 = vst [vmem:[%s703 + $0x210] sm:$0xff] %v968
                  %v970 = vld [vmem:[%s702 + $0x428] sm:$0xff]
                  %971 = vst [vmem:[%s703 + $0x214] sm:$0xff] %v970
                  %v972 = vld [vmem:[%s702 + $0x430] sm:$0xff]
                  %973 = vst [vmem:[%s703 + $0x218] sm:$0xff] %v972
                  %v974 = vld [vmem:[%s702 + $0x438] sm:$0xff]
                  %975 = vst [vmem:[%s703 + $0x21c] sm:$0xff] %v974
                  %v976 = vld [vmem:[%s702 + $0x440] sm:$0xff]
                  %977 = vst [vmem:[%s703 + $0x220] sm:$0xff] %v976
                  %v978 = vld [vmem:[%s702 + $0x448] sm:$0xff]
                  %979 = vst [vmem:[%s703 + $0x224] sm:$0xff] %v978
                  %v980 = vld [vmem:[%s702 + $0x450] sm:$0xff]
                  %981 = vst [vmem:[%s703 + $0x228] sm:$0xff] %v980
                  %v982 = vld [vmem:[%s702 + $0x458] sm:$0xff]
                  %983 = vst [vmem:[%s703 + $0x22c] sm:$0xff] %v982
                  %v984 = vld [vmem:[%s702 + $0x460] sm:$0xff]
                  %985 = vst [vmem:[%s703 + $0x230] sm:$0xff] %v984
                  %v986 = vld [vmem:[%s702 + $0x468] sm:$0xff]
                  %987 = vst [vmem:[%s703 + $0x234] sm:$0xff] %v986
                  %v988 = vld [vmem:[%s702 + $0x470] sm:$0xff]
                  %989 = vst [vmem:[%s703 + $0x238] sm:$0xff] %v988
                  %v990 = vld [vmem:[%s702 + $0x478] sm:$0xff]
                  %991 = vst [vmem:[%s703 + $0x23c] sm:$0xff] %v990
                  %v992 = vld [vmem:[%s702 + $0x480] sm:$0xff]
                  %993 = vst [vmem:[%s703 + $0x240] sm:$0xff] %v992
                  %v994 = vld [vmem:[%s702 + $0x488] sm:$0xff]
                  %995 = vst [vmem:[%s703 + $0x244] sm:$0xff] %v994
                  %v996 = vld [vmem:[%s702 + $0x490] sm:$0xff]
                  %997 = vst [vmem:[%s703 + $0x248] sm:$0xff] %v996
                  %v998 = vld [vmem:[%s702 + $0x498] sm:$0xff]
                  %999 = vst [vmem:[%s703 + $0x24c] sm:$0xff] %v998
                  %v1000 = vld [vmem:[%s702 + $0x4a0] sm:$0xff]
                  %1001 = vst [vmem:[%s703 + $0x250] sm:$0xff] %v1000
                  %v1002 = vld [vmem:[%s702 + $0x4a8] sm:$0xff]
                  %1003 = vst [vmem:[%s703 + $0x254] sm:$0xff] %v1002
                  %v1004 = vld [vmem:[%s702 + $0x4b0] sm:$0xff]
                  %1005 = vst [vmem:[%s703 + $0x258] sm:$0xff] %v1004
                  %v1006 = vld [vmem:[%s702 + $0x4b8] sm:$0xff]
                  %1007 = vst [vmem:[%s703 + $0x25c] sm:$0xff] %v1006
                  %v1008 = vld [vmem:[%s702 + $0x4c0] sm:$0xff]
                  %1009 = vst [vmem:[%s703 + $0x260] sm:$0xff] %v1008
                  %v1010 = vld [vmem:[%s702 + $0x4c8] sm:$0xff]
                  %1011 = vst [vmem:[%s703 + $0x264] sm:$0xff] %v1010
                  %v1012 = vld [vmem:[%s702 + $0x4d0] sm:$0xff]
                  %1013 = vst [vmem:[%s703 + $0x268] sm:$0xff] %v1012
                  %v1014 = vld [vmem:[%s702 + $0x4d8] sm:$0xff]
                  %1015 = vst [vmem:[%s703 + $0x26c] sm:$0xff] %v1014
                  %v1016 = vld [vmem:[%s702 + $0x4e0] sm:$0xff]
                  %1017 = vst [vmem:[%s703 + $0x270] sm:$0xff] %v1016
                  %v1018 = vld [vmem:[%s702 + $0x4e8] sm:$0xff]
                  %1019 = vst [vmem:[%s703 + $0x274] sm:$0xff] %v1018
                  %v1020 = vld [vmem:[%s702 + $0x4f0] sm:$0xff]
                  %1021 = vst [vmem:[%s703 + $0x278] sm:$0xff] %v1020
                  %v1022 = vld [vmem:[%s702 + $0x4f8] sm:$0xff]
                  %1023 = vst [vmem:[%s703 + $0x27c] sm:$0xff] %v1022
                  %v1024 = vld [vmem:[%s702 + $0x500] sm:$0xff]
                  %1025 = vst [vmem:[%s703 + $0x280] sm:$0xff] %v1024
                  %v1026 = vld [vmem:[%s702 + $0x508] sm:$0xff]
                  %1027 = vst [vmem:[%s703 + $0x284] sm:$0xff] %v1026
                  %v1028 = vld [vmem:[%s702 + $0x510] sm:$0xff]
                  %1029 = vst [vmem:[%s703 + $0x288] sm:$0xff] %v1028
                  %v1030 = vld [vmem:[%s702 + $0x518] sm:$0xff]
                  %1031 = vst [vmem:[%s703 + $0x28c] sm:$0xff] %v1030
                  %v1032 = vld [vmem:[%s702 + $0x520] sm:$0xff]
                  %1033 = vst [vmem:[%s703 + $0x290] sm:$0xff] %v1032
                  %v1034 = vld [vmem:[%s702 + $0x528] sm:$0xff]
                  %1035 = vst [vmem:[%s703 + $0x294] sm:$0xff] %v1034
                  %v1036 = vld [vmem:[%s702 + $0x530] sm:$0xff]
                  %1037 = vst [vmem:[%s703 + $0x298] sm:$0xff] %v1036
                  %v1038 = vld [vmem:[%s702 + $0x538] sm:$0xff]
                  %1039 = vst [vmem:[%s703 + $0x29c] sm:$0xff] %v1038
                  %v1040 = vld [vmem:[%s702 + $0x540] sm:$0xff]
                  %1041 = vst [vmem:[%s703 + $0x2a0] sm:$0xff] %v1040
                  %v1042 = vld [vmem:[%s702 + $0x548] sm:$0xff]
                  %1043 = vst [vmem:[%s703 + $0x2a4] sm:$0xff] %v1042
                  %v1044 = vld [vmem:[%s702 + $0x550] sm:$0xff]
                  %1045 = vst [vmem:[%s703 + $0x2a8] sm:$0xff] %v1044
                  %v1046 = vld [vmem:[%s702 + $0x558] sm:$0xff]
                  %1047 = vst [vmem:[%s703 + $0x2ac] sm:$0xff] %v1046
                  %v1048 = vld [vmem:[%s702 + $0x560] sm:$0xff]
                  %1049 = vst [vmem:[%s703 + $0x2b0] sm:$0xff] %v1048
                  %v1050 = vld [vmem:[%s702 + $0x568] sm:$0xff]
                  %1051 = vst [vmem:[%s703 + $0x2b4] sm:$0xff] %v1050
                  %v1052 = vld [vmem:[%s702 + $0x570] sm:$0xff]
                  %1053 = vst [vmem:[%s703 + $0x2b8] sm:$0xff] %v1052
                  %v1054 = vld [vmem:[%s702 + $0x578] sm:$0xff]
                  %1055 = vst [vmem:[%s703 + $0x2bc] sm:$0xff] %v1054
                  %v1056 = vld [vmem:[%s702 + $0x580] sm:$0xff]
                  %1057 = vst [vmem:[%s703 + $0x2c0] sm:$0xff] %v1056
                  %v1058 = vld [vmem:[%s702 + $0x588] sm:$0xff]
                  %1059 = vst [vmem:[%s703 + $0x2c4] sm:$0xff] %v1058
                  %v1060 = vld [vmem:[%s702 + $0x590] sm:$0xff]
                  %1061 = vst [vmem:[%s703 + $0x2c8] sm:$0xff] %v1060
                  %v1062 = vld [vmem:[%s702 + $0x598] sm:$0xff]
                  %1063 = vst [vmem:[%s703 + $0x2cc] sm:$0xff] %v1062
                  %v1064 = vld [vmem:[%s702 + $0x5a0] sm:$0xff]
                  %1065 = vst [vmem:[%s703 + $0x2d0] sm:$0xff] %v1064
                  %v1066 = vld [vmem:[%s702 + $0x5a8] sm:$0xff]
                  %1067 = vst [vmem:[%s703 + $0x2d4] sm:$0xff] %v1066
                  %v1068 = vld [vmem:[%s702 + $0x5b0] sm:$0xff]
                  %1069 = vst [vmem:[%s703 + $0x2d8] sm:$0xff] %v1068
                  %v1070 = vld [vmem:[%s702 + $0x5b8] sm:$0xff]
                  %1071 = vst [vmem:[%s703 + $0x2dc] sm:$0xff] %v1070
                  %v1072 = vld [vmem:[%s702 + $0x5c0] sm:$0xff]
                  %1073 = vst [vmem:[%s703 + $0x2e0] sm:$0xff] %v1072
                  %v1074 = vld [vmem:[%s702 + $0x5c8] sm:$0xff]
                  %1075 = vst [vmem:[%s703 + $0x2e4] sm:$0xff] %v1074
                  %v1076 = vld [vmem:[%s702 + $0x5d0] sm:$0xff]
                  %1077 = vst [vmem:[%s703 + $0x2e8] sm:$0xff] %v1076
                  %v1078 = vld [vmem:[%s702 + $0x5d8] sm:$0xff]
                  %1079 = vst [vmem:[%s703 + $0x2ec] sm:$0xff] %v1078
                  %v1080 = vld [vmem:[%s702 + $0x5e0] sm:$0xff]
                  %1081 = vst [vmem:[%s703 + $0x2f0] sm:$0xff] %v1080
                  %v1082 = vld [vmem:[%s702 + $0x5e8] sm:$0xff]
                  %1083 = vst [vmem:[%s703 + $0x2f4] sm:$0xff] %v1082
                  %v1084 = vld [vmem:[%s702 + $0x5f0] sm:$0xff]
                  %1085 = vst [vmem:[%s703 + $0x2f8] sm:$0xff] %v1084
                  %v1086 = vld [vmem:[%s702 + $0x5f8] sm:$0xff]
                  %1087 = vst [vmem:[%s703 + $0x2fc] sm:$0xff] %v1086
                  %v1088 = vld [vmem:[%s702 + $0x600] sm:$0xff]
                  %1089 = vst [vmem:[%s703 + $0x300] sm:$0xff] %v1088
                  %v1090 = vld [vmem:[%s702 + $0x608] sm:$0xff]
                  %1091 = vst [vmem:[%s703 + $0x304] sm:$0xff] %v1090
                  %v1092 = vld [vmem:[%s702 + $0x610] sm:$0xff]
                  %1093 = vst [vmem:[%s703 + $0x308] sm:$0xff] %v1092
                  %v1094 = vld [vmem:[%s702 + $0x618] sm:$0xff]
                  %1095 = vst [vmem:[%s703 + $0x30c] sm:$0xff] %v1094
                  %v1096 = vld [vmem:[%s702 + $0x620] sm:$0xff]
                  %1097 = vst [vmem:[%s703 + $0x310] sm:$0xff] %v1096
                  %v1098 = vld [vmem:[%s702 + $0x628] sm:$0xff]
                  %1099 = vst [vmem:[%s703 + $0x314] sm:$0xff] %v1098
                  %v1100 = vld [vmem:[%s702 + $0x630] sm:$0xff]
                  %1101 = vst [vmem:[%s703 + $0x318] sm:$0xff] %v1100
                  %v1102 = vld [vmem:[%s702 + $0x638] sm:$0xff]
                  %1103 = vst [vmem:[%s703 + $0x31c] sm:$0xff] %v1102
                  %v1104 = vld [vmem:[%s702 + $0x640] sm:$0xff]
                  %1105 = vst [vmem:[%s703 + $0x320] sm:$0xff] %v1104
                  %v1106 = vld [vmem:[%s702 + $0x648] sm:$0xff]
                  %1107 = vst [vmem:[%s703 + $0x324] sm:$0xff] %v1106
                  %v1108 = vld [vmem:[%s702 + $0x650] sm:$0xff]
                  %1109 = vst [vmem:[%s703 + $0x328] sm:$0xff] %v1108
                  %v1110 = vld [vmem:[%s702 + $0x658] sm:$0xff]
                  %1111 = vst [vmem:[%s703 + $0x32c] sm:$0xff] %v1110
                  %v1112 = vld [vmem:[%s702 + $0x660] sm:$0xff]
                  %1113 = vst [vmem:[%s703 + $0x330] sm:$0xff] %v1112
                  %v1114 = vld [vmem:[%s702 + $0x668] sm:$0xff]
                  %1115 = vst [vmem:[%s703 + $0x334] sm:$0xff] %v1114
                  %v1116 = vld [vmem:[%s702 + $0x670] sm:$0xff]
                  %1117 = vst [vmem:[%s703 + $0x338] sm:$0xff] %v1116
                  %v1118 = vld [vmem:[%s702 + $0x678] sm:$0xff]
                  %1119 = vst [vmem:[%s703 + $0x33c] sm:$0xff] %v1118
                  %v1120 = vld [vmem:[%s702 + $0x680] sm:$0xff]
                  %1121 = vst [vmem:[%s703 + $0x340] sm:$0xff] %v1120
                  %v1122 = vld [vmem:[%s702 + $0x688] sm:$0xff]
                  %1123 = vst [vmem:[%s703 + $0x344] sm:$0xff] %v1122
                  %v1124 = vld [vmem:[%s702 + $0x690] sm:$0xff]
                  %1125 = vst [vmem:[%s703 + $0x348] sm:$0xff] %v1124
                  %v1126 = vld [vmem:[%s702 + $0x698] sm:$0xff]
                  %1127 = vst [vmem:[%s703 + $0x34c] sm:$0xff] %v1126
                  %v1128 = vld [vmem:[%s702 + $0x6a0] sm:$0xff]
                  %1129 = vst [vmem:[%s703 + $0x350] sm:$0xff] %v1128
                  %v1130 = vld [vmem:[%s702 + $0x6a8] sm:$0xff]
                  %1131 = vst [vmem:[%s703 + $0x354] sm:$0xff] %v1130
                  %v1132 = vld [vmem:[%s702 + $0x6b0] sm:$0xff]
                  %1133 = vst [vmem:[%s703 + $0x358] sm:$0xff] %v1132
                  %v1134 = vld [vmem:[%s702 + $0x6b8] sm:$0xff]
                  %1135 = vst [vmem:[%s703 + $0x35c] sm:$0xff] %v1134
                  %v1136 = vld [vmem:[%s702 + $0x6c0] sm:$0xff]
                  %1137 = vst [vmem:[%s703 + $0x360] sm:$0xff] %v1136
                  %v1138 = vld [vmem:[%s702 + $0x6c8] sm:$0xff]
                  %1139 = vst [vmem:[%s703 + $0x364] sm:$0xff] %v1138
                  %v1140 = vld [vmem:[%s702 + $0x6d0] sm:$0xff]
                  %1141 = vst [vmem:[%s703 + $0x368] sm:$0xff] %v1140
                  %v1142 = vld [vmem:[%s702 + $0x6d8] sm:$0xff]
                  %1143 = vst [vmem:[%s703 + $0x36c] sm:$0xff] %v1142
                  %v1144 = vld [vmem:[%s702 + $0x6e0] sm:$0xff]
                  %1145 = vst [vmem:[%s703 + $0x370] sm:$0xff] %v1144
                  %v1146 = vld [vmem:[%s702 + $0x6e8] sm:$0xff]
                  %1147 = vst [vmem:[%s703 + $0x374] sm:$0xff] %v1146
                  %v1148 = vld [vmem:[%s702 + $0x6f0] sm:$0xff]
                  %1149 = vst [vmem:[%s703 + $0x378] sm:$0xff] %v1148
                  %v1150 = vld [vmem:[%s702 + $0x6f8] sm:$0xff]
                  %1151 = vst [vmem:[%s703 + $0x37c] sm:$0xff] %v1150
                  %v1152 = vld [vmem:[%s702 + $0x700] sm:$0xff]
                  %1153 = vst [vmem:[%s703 + $0x380] sm:$0xff] %v1152
                  %v1154 = vld [vmem:[%s702 + $0x708] sm:$0xff]
                  %1155 = vst [vmem:[%s703 + $0x384] sm:$0xff] %v1154
                  %v1156 = vld [vmem:[%s702 + $0x710] sm:$0xff]
                  %1157 = vst [vmem:[%s703 + $0x388] sm:$0xff] %v1156
                  %v1158 = vld [vmem:[%s702 + $0x718] sm:$0xff]
                  %1159 = vst [vmem:[%s703 + $0x38c] sm:$0xff] %v1158
                  %v1160 = vld [vmem:[%s702 + $0x720] sm:$0xff]
                  %1161 = vst [vmem:[%s703 + $0x390] sm:$0xff] %v1160
                  %v1162 = vld [vmem:[%s702 + $0x728] sm:$0xff]
                  %1163 = vst [vmem:[%s703 + $0x394] sm:$0xff] %v1162
                  %v1164 = vld [vmem:[%s702 + $0x730] sm:$0xff]
                  %1165 = vst [vmem:[%s703 + $0x398] sm:$0xff] %v1164
                  %v1166 = vld [vmem:[%s702 + $0x738] sm:$0xff]
                  %1167 = vst [vmem:[%s703 + $0x39c] sm:$0xff] %v1166
                  %v1168 = vld [vmem:[%s702 + $0x740] sm:$0xff]
                  %1169 = vst [vmem:[%s703 + $0x3a0] sm:$0xff] %v1168
                  %v1170 = vld [vmem:[%s702 + $0x748] sm:$0xff]
                  %1171 = vst [vmem:[%s703 + $0x3a4] sm:$0xff] %v1170
                  %v1172 = vld [vmem:[%s702 + $0x750] sm:$0xff]
                  %1173 = vst [vmem:[%s703 + $0x3a8] sm:$0xff] %v1172
                  %v1174 = vld [vmem:[%s702 + $0x758] sm:$0xff]
                  %1175 = vst [vmem:[%s703 + $0x3ac] sm:$0xff] %v1174
                  %v1176 = vld [vmem:[%s702 + $0x760] sm:$0xff]
                  %1177 = vst [vmem:[%s703 + $0x3b0] sm:$0xff] %v1176
                  %v1178 = vld [vmem:[%s702 + $0x768] sm:$0xff]
                  %1179 = vst [vmem:[%s703 + $0x3b4] sm:$0xff] %v1178
                  %v1180 = vld [vmem:[%s702 + $0x770] sm:$0xff]
                  %1181 = vst [vmem:[%s703 + $0x3b8] sm:$0xff] %v1180
                  %v1182 = vld [vmem:[%s702 + $0x778] sm:$0xff]
                  %1183 = vst [vmem:[%s703 + $0x3bc] sm:$0xff] %v1182
                  %v1184 = vld [vmem:[%s702 + $0x780] sm:$0xff]
                  %1185 = vst [vmem:[%s703 + $0x3c0] sm:$0xff] %v1184
                  %v1186 = vld [vmem:[%s702 + $0x788] sm:$0xff]
                  %1187 = vst [vmem:[%s703 + $0x3c4] sm:$0xff] %v1186
                  %v1188 = vld [vmem:[%s702 + $0x790] sm:$0xff]
                  %1189 = vst [vmem:[%s703 + $0x3c8] sm:$0xff] %v1188
                  %v1190 = vld [vmem:[%s702 + $0x798] sm:$0xff]
                  %1191 = vst [vmem:[%s703 + $0x3cc] sm:$0xff] %v1190
                  %v1192 = vld [vmem:[%s702 + $0x7a0] sm:$0xff]
                  %1193 = vst [vmem:[%s703 + $0x3d0] sm:$0xff] %v1192
                  %v1194 = vld [vmem:[%s702 + $0x7a8] sm:$0xff]
                  %1195 = vst [vmem:[%s703 + $0x3d4] sm:$0xff] %v1194
                  %v1196 = vld [vmem:[%s702 + $0x7b0] sm:$0xff]
                  %1197 = vst [vmem:[%s703 + $0x3d8] sm:$0xff] %v1196
                  %v1198 = vld [vmem:[%s702 + $0x7b8] sm:$0xff]
                  %1199 = vst [vmem:[%s703 + $0x3dc] sm:$0xff] %v1198
                  %v1200 = vld [vmem:[%s702 + $0x7c0] sm:$0xff]
                  %1201 = vst [vmem:[%s703 + $0x3e0] sm:$0xff] %v1200
                  %v1202 = vld [vmem:[%s702 + $0x7c8] sm:$0xff]
                  %1203 = vst [vmem:[%s703 + $0x3e4] sm:$0xff] %v1202
                  %v1204 = vld [vmem:[%s702 + $0x7d0] sm:$0xff]
                  %1205 = vst [vmem:[%s703 + $0x3e8] sm:$0xff] %v1204
                  %v1206 = vld [vmem:[%s702 + $0x7d8] sm:$0xff]
                  %1207 = vst [vmem:[%s703 + $0x3ec] sm:$0xff] %v1206
                  %v1208 = vld [vmem:[%s702 + $0x7e0] sm:$0xff]
                  %1209 = vst [vmem:[%s703 + $0x3f0] sm:$0xff] %v1208
                  %v1210 = vld [vmem:[%s702 + $0x7e8] sm:$0xff]
                  %1211 = vst [vmem:[%s703 + $0x3f4] sm:$0xff] %v1210
                  %v1212 = vld [vmem:[%s702 + $0x7f0] sm:$0xff]
                  %1213 = vst [vmem:[%s703 + $0x3f8] sm:$0xff] %v1212
                  %v1214 = vld [vmem:[%s702 + $0x7f8] sm:$0xff]
                  %1215 = vst [vmem:[%s703 + $0x3fc] sm:$0xff] %v1214
                  %s1216 = sadd.s32 1, %s701
                  %p1217 = scmp.ge.s32.totalorder %s1216, 0
                  %s1218 = scalar_select %p1217, 0, %s1216
                  %s1219 = smul.u32 %s1218, 8
                  %s1220 = smul.u32 %s1218, 8
                  %s1221 = scalar_lea.vmem %s164, %s1219
                  %s1222 = scalar_lea.vmem %s162, %s1220 [#allocation2]
                $region52: #{forward.12} parent=46 // loop_footer
                  %s700 = sadd.s32 1, %s696
                $region53: #{forward.12} parent=46 // loop_footer_branch
                  %695 = sbr.rel target = $region49
                $region54: #{forward.12} parent=46 // loop_exit
                  _
              $region47: #{forward.12} parent=31 // pred_fallthru
                _
              // Predicated region
              $region55: #{forward.12} parent=31 // pred_check
                _
              $region56: #{forward.12} parent=31 // pred_check_branch
                %1224 = sbr.rel (0) target = $region58
              $region57: #{forward.12} parent=31 // pred_region
                loop: start=0, step=1, limit=0
                $region59: #{forward.12} parent=57 // loop_pre_header
                  _
                $region60: #{forward.12} parent=57 // loop_header
                  %s1226 = sphi 0, %s1230
                  %p1227 = scmp.ge.s32.totalorder %s1226, 0
                  %s1231 = sphi 0, %s1748
                  %s1232 = sphi %s164, %s1751
                  %s1233 = sphi %s162, %s1752
                $region61: #{forward.12} parent=57 // loop_header_branch
                  %1229 = sbr.rel (%p1227) target = $region65
                $region62: #{forward.12} parent=57 // loop_body
                  %v1234 = vld [vmem:[%s1232] sm:$0xff]
                  %1235 = vst [vmem:[%s1233] sm:$0xff] %v1234
                  %v1236 = vld [vmem:[%s1232 + $0x8] sm:$0xff]
                  %1237 = vst [vmem:[%s1233 + $0x4] sm:$0xff] %v1236
                  %v1238 = vld [vmem:[%s1232 + $0x10] sm:$0xff]
                  %1239 = vst [vmem:[%s1233 + $0x8] sm:$0xff] %v1238
                  %v1240 = vld [vmem:[%s1232 + $0x18] sm:$0xff]
                  %1241 = vst [vmem:[%s1233 + $0xc] sm:$0xff] %v1240
                  %v1242 = vld [vmem:[%s1232 + $0x20] sm:$0xff]
                  %1243 = vst [vmem:[%s1233 + $0x10] sm:$0xff] %v1242
                  %v1244 = vld [vmem:[%s1232 + $0x28] sm:$0xff]
                  %1245 = vst [vmem:[%s1233 + $0x14] sm:$0xff] %v1244
                  %v1246 = vld [vmem:[%s1232 + $0x30] sm:$0xff]
                  %1247 = vst [vmem:[%s1233 + $0x18] sm:$0xff] %v1246
                  %v1248 = vld [vmem:[%s1232 + $0x38] sm:$0xff]
                  %1249 = vst [vmem:[%s1233 + $0x1c] sm:$0xff] %v1248
                  %v1250 = vld [vmem:[%s1232 + $0x40] sm:$0xff]
                  %1251 = vst [vmem:[%s1233 + $0x20] sm:$0xff] %v1250
                  %v1252 = vld [vmem:[%s1232 + $0x48] sm:$0xff]
                  %1253 = vst [vmem:[%s1233 + $0x24] sm:$0xff] %v1252
                  %v1254 = vld [vmem:[%s1232 + $0x50] sm:$0xff]
                  %1255 = vst [vmem:[%s1233 + $0x28] sm:$0xff] %v1254
                  %v1256 = vld [vmem:[%s1232 + $0x58] sm:$0xff]
                  %1257 = vst [vmem:[%s1233 + $0x2c] sm:$0xff] %v1256
                  %v1258 = vld [vmem:[%s1232 + $0x60] sm:$0xff]
                  %1259 = vst [vmem:[%s1233 + $0x30] sm:$0xff] %v1258
                  %v1260 = vld [vmem:[%s1232 + $0x68] sm:$0xff]
                  %1261 = vst [vmem:[%s1233 + $0x34] sm:$0xff] %v1260
                  %v1262 = vld [vmem:[%s1232 + $0x70] sm:$0xff]
                  %1263 = vst [vmem:[%s1233 + $0x38] sm:$0xff] %v1262
                  %v1264 = vld [vmem:[%s1232 + $0x78] sm:$0xff]
                  %1265 = vst [vmem:[%s1233 + $0x3c] sm:$0xff] %v1264
                  %v1266 = vld [vmem:[%s1232 + $0x80] sm:$0xff]
                  %1267 = vst [vmem:[%s1233 + $0x40] sm:$0xff] %v1266
                  %v1268 = vld [vmem:[%s1232 + $0x88] sm:$0xff]
                  %1269 = vst [vmem:[%s1233 + $0x44] sm:$0xff] %v1268
                  %v1270 = vld [vmem:[%s1232 + $0x90] sm:$0xff]
                  %1271 = vst [vmem:[%s1233 + $0x48] sm:$0xff] %v1270
                  %v1272 = vld [vmem:[%s1232 + $0x98] sm:$0xff]
                  %1273 = vst [vmem:[%s1233 + $0x4c] sm:$0xff] %v1272
                  %v1274 = vld [vmem:[%s1232 + $0xa0] sm:$0xff]
                  %1275 = vst [vmem:[%s1233 + $0x50] sm:$0xff] %v1274
                  %v1276 = vld [vmem:[%s1232 + $0xa8] sm:$0xff]
                  %1277 = vst [vmem:[%s1233 + $0x54] sm:$0xff] %v1276
                  %v1278 = vld [vmem:[%s1232 + $0xb0] sm:$0xff]
                  %1279 = vst [vmem:[%s1233 + $0x58] sm:$0xff] %v1278
                  %v1280 = vld [vmem:[%s1232 + $0xb8] sm:$0xff]
                  %1281 = vst [vmem:[%s1233 + $0x5c] sm:$0xff] %v1280
                  %v1282 = vld [vmem:[%s1232 + $0xc0] sm:$0xff]
                  %1283 = vst [vmem:[%s1233 + $0x60] sm:$0xff] %v1282
                  %v1284 = vld [vmem:[%s1232 + $0xc8] sm:$0xff]
                  %1285 = vst [vmem:[%s1233 + $0x64] sm:$0xff] %v1284
                  %v1286 = vld [vmem:[%s1232 + $0xd0] sm:$0xff]
                  %1287 = vst [vmem:[%s1233 + $0x68] sm:$0xff] %v1286
                  %v1288 = vld [vmem:[%s1232 + $0xd8] sm:$0xff]
                  %1289 = vst [vmem:[%s1233 + $0x6c] sm:$0xff] %v1288
                  %v1290 = vld [vmem:[%s1232 + $0xe0] sm:$0xff]
                  %1291 = vst [vmem:[%s1233 + $0x70] sm:$0xff] %v1290
                  %v1292 = vld [vmem:[%s1232 + $0xe8] sm:$0xff]
                  %1293 = vst [vmem:[%s1233 + $0x74] sm:$0xff] %v1292
                  %v1294 = vld [vmem:[%s1232 + $0xf0] sm:$0xff]
                  %1295 = vst [vmem:[%s1233 + $0x78] sm:$0xff] %v1294
                  %v1296 = vld [vmem:[%s1232 + $0xf8] sm:$0xff]
                  %1297 = vst [vmem:[%s1233 + $0x7c] sm:$0xff] %v1296
                  %v1298 = vld [vmem:[%s1232 + $0x100] sm:$0xff]
                  %1299 = vst [vmem:[%s1233 + $0x80] sm:$0xff] %v1298
                  %v1300 = vld [vmem:[%s1232 + $0x108] sm:$0xff]
                  %1301 = vst [vmem:[%s1233 + $0x84] sm:$0xff] %v1300
                  %v1302 = vld [vmem:[%s1232 + $0x110] sm:$0xff]
                  %1303 = vst [vmem:[%s1233 + $0x88] sm:$0xff] %v1302
                  %v1304 = vld [vmem:[%s1232 + $0x118] sm:$0xff]
                  %1305 = vst [vmem:[%s1233 + $0x8c] sm:$0xff] %v1304
                  %v1306 = vld [vmem:[%s1232 + $0x120] sm:$0xff]
                  %1307 = vst [vmem:[%s1233 + $0x90] sm:$0xff] %v1306
                  %v1308 = vld [vmem:[%s1232 + $0x128] sm:$0xff]
                  %1309 = vst [vmem:[%s1233 + $0x94] sm:$0xff] %v1308
                  %v1310 = vld [vmem:[%s1232 + $0x130] sm:$0xff]
                  %1311 = vst [vmem:[%s1233 + $0x98] sm:$0xff] %v1310
                  %v1312 = vld [vmem:[%s1232 + $0x138] sm:$0xff]
                  %1313 = vst [vmem:[%s1233 + $0x9c] sm:$0xff] %v1312
                  %v1314 = vld [vmem:[%s1232 + $0x140] sm:$0xff]
                  %1315 = vst [vmem:[%s1233 + $0xa0] sm:$0xff] %v1314
                  %v1316 = vld [vmem:[%s1232 + $0x148] sm:$0xff]
                  %1317 = vst [vmem:[%s1233 + $0xa4] sm:$0xff] %v1316
                  %v1318 = vld [vmem:[%s1232 + $0x150] sm:$0xff]
                  %1319 = vst [vmem:[%s1233 + $0xa8] sm:$0xff] %v1318
                  %v1320 = vld [vmem:[%s1232 + $0x158] sm:$0xff]
                  %1321 = vst [vmem:[%s1233 + $0xac] sm:$0xff] %v1320
                  %v1322 = vld [vmem:[%s1232 + $0x160] sm:$0xff]
                  %1323 = vst [vmem:[%s1233 + $0xb0] sm:$0xff] %v1322
                  %v1324 = vld [vmem:[%s1232 + $0x168] sm:$0xff]
                  %1325 = vst [vmem:[%s1233 + $0xb4] sm:$0xff] %v1324
                  %v1326 = vld [vmem:[%s1232 + $0x170] sm:$0xff]
                  %1327 = vst [vmem:[%s1233 + $0xb8] sm:$0xff] %v1326
                  %v1328 = vld [vmem:[%s1232 + $0x178] sm:$0xff]
                  %1329 = vst [vmem:[%s1233 + $0xbc] sm:$0xff] %v1328
                  %v1330 = vld [vmem:[%s1232 + $0x180] sm:$0xff]
                  %1331 = vst [vmem:[%s1233 + $0xc0] sm:$0xff] %v1330
                  %v1332 = vld [vmem:[%s1232 + $0x188] sm:$0xff]
                  %1333 = vst [vmem:[%s1233 + $0xc4] sm:$0xff] %v1332
                  %v1334 = vld [vmem:[%s1232 + $0x190] sm:$0xff]
                  %1335 = vst [vmem:[%s1233 + $0xc8] sm:$0xff] %v1334
                  %v1336 = vld [vmem:[%s1232 + $0x198] sm:$0xff]
                  %1337 = vst [vmem:[%s1233 + $0xcc] sm:$0xff] %v1336
                  %v1338 = vld [vmem:[%s1232 + $0x1a0] sm:$0xff]
                  %1339 = vst [vmem:[%s1233 + $0xd0] sm:$0xff] %v1338
                  %v1340 = vld [vmem:[%s1232 + $0x1a8] sm:$0xff]
                  %1341 = vst [vmem:[%s1233 + $0xd4] sm:$0xff] %v1340
                  %v1342 = vld [vmem:[%s1232 + $0x1b0] sm:$0xff]
                  %1343 = vst [vmem:[%s1233 + $0xd8] sm:$0xff] %v1342
                  %v1344 = vld [vmem:[%s1232 + $0x1b8] sm:$0xff]
                  %1345 = vst [vmem:[%s1233 + $0xdc] sm:$0xff] %v1344
                  %v1346 = vld [vmem:[%s1232 + $0x1c0] sm:$0xff]
                  %1347 = vst [vmem:[%s1233 + $0xe0] sm:$0xff] %v1346
                  %v1348 = vld [vmem:[%s1232 + $0x1c8] sm:$0xff]
                  %1349 = vst [vmem:[%s1233 + $0xe4] sm:$0xff] %v1348
                  %v1350 = vld [vmem:[%s1232 + $0x1d0] sm:$0xff]
                  %1351 = vst [vmem:[%s1233 + $0xe8] sm:$0xff] %v1350
                  %v1352 = vld [vmem:[%s1232 + $0x1d8] sm:$0xff]
                  %1353 = vst [vmem:[%s1233 + $0xec] sm:$0xff] %v1352
                  %v1354 = vld [vmem:[%s1232 + $0x1e0] sm:$0xff]
                  %1355 = vst [vmem:[%s1233 + $0xf0] sm:$0xff] %v1354
                  %v1356 = vld [vmem:[%s1232 + $0x1e8] sm:$0xff]
                  %1357 = vst [vmem:[%s1233 + $0xf4] sm:$0xff] %v1356
                  %v1358 = vld [vmem:[%s1232 + $0x1f0] sm:$0xff]
                  %1359 = vst [vmem:[%s1233 + $0xf8] sm:$0xff] %v1358
                  %v1360 = vld [vmem:[%s1232 + $0x1f8] sm:$0xff]
                  %1361 = vst [vmem:[%s1233 + $0xfc] sm:$0xff] %v1360
                  %v1362 = vld [vmem:[%s1232 + $0x200] sm:$0xff]
                  %1363 = vst [vmem:[%s1233 + $0x100] sm:$0xff] %v1362
                  %v1364 = vld [vmem:[%s1232 + $0x208] sm:$0xff]
                  %1365 = vst [vmem:[%s1233 + $0x104] sm:$0xff] %v1364
                  %v1366 = vld [vmem:[%s1232 + $0x210] sm:$0xff]
                  %1367 = vst [vmem:[%s1233 + $0x108] sm:$0xff] %v1366
                  %v1368 = vld [vmem:[%s1232 + $0x218] sm:$0xff]
                  %1369 = vst [vmem:[%s1233 + $0x10c] sm:$0xff] %v1368
                  %v1370 = vld [vmem:[%s1232 + $0x220] sm:$0xff]
                  %1371 = vst [vmem:[%s1233 + $0x110] sm:$0xff] %v1370
                  %v1372 = vld [vmem:[%s1232 + $0x228] sm:$0xff]
                  %1373 = vst [vmem:[%s1233 + $0x114] sm:$0xff] %v1372
                  %v1374 = vld [vmem:[%s1232 + $0x230] sm:$0xff]
                  %1375 = vst [vmem:[%s1233 + $0x118] sm:$0xff] %v1374
                  %v1376 = vld [vmem:[%s1232 + $0x238] sm:$0xff]
                  %1377 = vst [vmem:[%s1233 + $0x11c] sm:$0xff] %v1376
                  %v1378 = vld [vmem:[%s1232 + $0x240] sm:$0xff]
                  %1379 = vst [vmem:[%s1233 + $0x120] sm:$0xff] %v1378
                  %v1380 = vld [vmem:[%s1232 + $0x248] sm:$0xff]
                  %1381 = vst [vmem:[%s1233 + $0x124] sm:$0xff] %v1380
                  %v1382 = vld [vmem:[%s1232 + $0x250] sm:$0xff]
                  %1383 = vst [vmem:[%s1233 + $0x128] sm:$0xff] %v1382
                  %v1384 = vld [vmem:[%s1232 + $0x258] sm:$0xff]
                  %1385 = vst [vmem:[%s1233 + $0x12c] sm:$0xff] %v1384
                  %v1386 = vld [vmem:[%s1232 + $0x260] sm:$0xff]
                  %1387 = vst [vmem:[%s1233 + $0x130] sm:$0xff] %v1386
                  %v1388 = vld [vmem:[%s1232 + $0x268] sm:$0xff]
                  %1389 = vst [vmem:[%s1233 + $0x134] sm:$0xff] %v1388
                  %v1390 = vld [vmem:[%s1232 + $0x270] sm:$0xff]
                  %1391 = vst [vmem:[%s1233 + $0x138] sm:$0xff] %v1390
                  %v1392 = vld [vmem:[%s1232 + $0x278] sm:$0xff]
                  %1393 = vst [vmem:[%s1233 + $0x13c] sm:$0xff] %v1392
                  %v1394 = vld [vmem:[%s1232 + $0x280] sm:$0xff]
                  %1395 = vst [vmem:[%s1233 + $0x140] sm:$0xff] %v1394
                  %v1396 = vld [vmem:[%s1232 + $0x288] sm:$0xff]
                  %1397 = vst [vmem:[%s1233 + $0x144] sm:$0xff] %v1396
                  %v1398 = vld [vmem:[%s1232 + $0x290] sm:$0xff]
                  %1399 = vst [vmem:[%s1233 + $0x148] sm:$0xff] %v1398
                  %v1400 = vld [vmem:[%s1232 + $0x298] sm:$0xff]
                  %1401 = vst [vmem:[%s1233 + $0x14c] sm:$0xff] %v1400
                  %v1402 = vld [vmem:[%s1232 + $0x2a0] sm:$0xff]
                  %1403 = vst [vmem:[%s1233 + $0x150] sm:$0xff] %v1402
                  %v1404 = vld [vmem:[%s1232 + $0x2a8] sm:$0xff]
                  %1405 = vst [vmem:[%s1233 + $0x154] sm:$0xff] %v1404
                  %v1406 = vld [vmem:[%s1232 + $0x2b0] sm:$0xff]
                  %1407 = vst [vmem:[%s1233 + $0x158] sm:$0xff] %v1406
                  %v1408 = vld [vmem:[%s1232 + $0x2b8] sm:$0xff]
                  %1409 = vst [vmem:[%s1233 + $0x15c] sm:$0xff] %v1408
                  %v1410 = vld [vmem:[%s1232 + $0x2c0] sm:$0xff]
                  %1411 = vst [vmem:[%s1233 + $0x160] sm:$0xff] %v1410
                  %v1412 = vld [vmem:[%s1232 + $0x2c8] sm:$0xff]
                  %1413 = vst [vmem:[%s1233 + $0x164] sm:$0xff] %v1412
                  %v1414 = vld [vmem:[%s1232 + $0x2d0] sm:$0xff]
                  %1415 = vst [vmem:[%s1233 + $0x168] sm:$0xff] %v1414
                  %v1416 = vld [vmem:[%s1232 + $0x2d8] sm:$0xff]
                  %1417 = vst [vmem:[%s1233 + $0x16c] sm:$0xff] %v1416
                  %v1418 = vld [vmem:[%s1232 + $0x2e0] sm:$0xff]
                  %1419 = vst [vmem:[%s1233 + $0x170] sm:$0xff] %v1418
                  %v1420 = vld [vmem:[%s1232 + $0x2e8] sm:$0xff]
                  %1421 = vst [vmem:[%s1233 + $0x174] sm:$0xff] %v1420
                  %v1422 = vld [vmem:[%s1232 + $0x2f0] sm:$0xff]
                  %1423 = vst [vmem:[%s1233 + $0x178] sm:$0xff] %v1422
                  %v1424 = vld [vmem:[%s1232 + $0x2f8] sm:$0xff]
                  %1425 = vst [vmem:[%s1233 + $0x17c] sm:$0xff] %v1424
                  %v1426 = vld [vmem:[%s1232 + $0x300] sm:$0xff]
                  %1427 = vst [vmem:[%s1233 + $0x180] sm:$0xff] %v1426
                  %v1428 = vld [vmem:[%s1232 + $0x308] sm:$0xff]
                  %1429 = vst [vmem:[%s1233 + $0x184] sm:$0xff] %v1428
                  %v1430 = vld [vmem:[%s1232 + $0x310] sm:$0xff]
                  %1431 = vst [vmem:[%s1233 + $0x188] sm:$0xff] %v1430
                  %v1432 = vld [vmem:[%s1232 + $0x318] sm:$0xff]
                  %1433 = vst [vmem:[%s1233 + $0x18c] sm:$0xff] %v1432
                  %v1434 = vld [vmem:[%s1232 + $0x320] sm:$0xff]
                  %1435 = vst [vmem:[%s1233 + $0x190] sm:$0xff] %v1434
                  %v1436 = vld [vmem:[%s1232 + $0x328] sm:$0xff]
                  %1437 = vst [vmem:[%s1233 + $0x194] sm:$0xff] %v1436
                  %v1438 = vld [vmem:[%s1232 + $0x330] sm:$0xff]
                  %1439 = vst [vmem:[%s1233 + $0x198] sm:$0xff] %v1438
                  %v1440 = vld [vmem:[%s1232 + $0x338] sm:$0xff]
                  %1441 = vst [vmem:[%s1233 + $0x19c] sm:$0xff] %v1440
                  %v1442 = vld [vmem:[%s1232 + $0x340] sm:$0xff]
                  %1443 = vst [vmem:[%s1233 + $0x1a0] sm:$0xff] %v1442
                  %v1444 = vld [vmem:[%s1232 + $0x348] sm:$0xff]
                  %1445 = vst [vmem:[%s1233 + $0x1a4] sm:$0xff] %v1444
                  %v1446 = vld [vmem:[%s1232 + $0x350] sm:$0xff]
                  %1447 = vst [vmem:[%s1233 + $0x1a8] sm:$0xff] %v1446
                  %v1448 = vld [vmem:[%s1232 + $0x358] sm:$0xff]
                  %1449 = vst [vmem:[%s1233 + $0x1ac] sm:$0xff] %v1448
                  %v1450 = vld [vmem:[%s1232 + $0x360] sm:$0xff]
                  %1451 = vst [vmem:[%s1233 + $0x1b0] sm:$0xff] %v1450
                  %v1452 = vld [vmem:[%s1232 + $0x368] sm:$0xff]
                  %1453 = vst [vmem:[%s1233 + $0x1b4] sm:$0xff] %v1452
                  %v1454 = vld [vmem:[%s1232 + $0x370] sm:$0xff]
                  %1455 = vst [vmem:[%s1233 + $0x1b8] sm:$0xff] %v1454
                  %v1456 = vld [vmem:[%s1232 + $0x378] sm:$0xff]
                  %1457 = vst [vmem:[%s1233 + $0x1bc] sm:$0xff] %v1456
                  %v1458 = vld [vmem:[%s1232 + $0x380] sm:$0xff]
                  %1459 = vst [vmem:[%s1233 + $0x1c0] sm:$0xff] %v1458
                  %v1460 = vld [vmem:[%s1232 + $0x388] sm:$0xff]
                  %1461 = vst [vmem:[%s1233 + $0x1c4] sm:$0xff] %v1460
                  %v1462 = vld [vmem:[%s1232 + $0x390] sm:$0xff]
                  %1463 = vst [vmem:[%s1233 + $0x1c8] sm:$0xff] %v1462
                  %v1464 = vld [vmem:[%s1232 + $0x398] sm:$0xff]
                  %1465 = vst [vmem:[%s1233 + $0x1cc] sm:$0xff] %v1464
                  %v1466 = vld [vmem:[%s1232 + $0x3a0] sm:$0xff]
                  %1467 = vst [vmem:[%s1233 + $0x1d0] sm:$0xff] %v1466
                  %v1468 = vld [vmem:[%s1232 + $0x3a8] sm:$0xff]
                  %1469 = vst [vmem:[%s1233 + $0x1d4] sm:$0xff] %v1468
                  %v1470 = vld [vmem:[%s1232 + $0x3b0] sm:$0xff]
                  %1471 = vst [vmem:[%s1233 + $0x1d8] sm:$0xff] %v1470
                  %v1472 = vld [vmem:[%s1232 + $0x3b8] sm:$0xff]
                  %1473 = vst [vmem:[%s1233 + $0x1dc] sm:$0xff] %v1472
                  %v1474 = vld [vmem:[%s1232 + $0x3c0] sm:$0xff]
                  %1475 = vst [vmem:[%s1233 + $0x1e0] sm:$0xff] %v1474
                  %v1476 = vld [vmem:[%s1232 + $0x3c8] sm:$0xff]
                  %1477 = vst [vmem:[%s1233 + $0x1e4] sm:$0xff] %v1476
                  %v1478 = vld [vmem:[%s1232 + $0x3d0] sm:$0xff]
                  %1479 = vst [vmem:[%s1233 + $0x1e8] sm:$0xff] %v1478
                  %v1480 = vld [vmem:[%s1232 + $0x3d8] sm:$0xff]
                  %1481 = vst [vmem:[%s1233 + $0x1ec] sm:$0xff] %v1480
                  %v1482 = vld [vmem:[%s1232 + $0x3e0] sm:$0xff]
                  %1483 = vst [vmem:[%s1233 + $0x1f0] sm:$0xff] %v1482
                  %v1484 = vld [vmem:[%s1232 + $0x3e8] sm:$0xff]
                  %1485 = vst [vmem:[%s1233 + $0x1f4] sm:$0xff] %v1484
                  %v1486 = vld [vmem:[%s1232 + $0x3f0] sm:$0xff]
                  %1487 = vst [vmem:[%s1233 + $0x1f8] sm:$0xff] %v1486
                  %v1488 = vld [vmem:[%s1232 + $0x3f8] sm:$0xff]
                  %1489 = vst [vmem:[%s1233 + $0x1fc] sm:$0xff] %v1488
                  %v1490 = vld [vmem:[%s1232 + $0x400] sm:$0xff]
                  %1491 = vst [vmem:[%s1233 + $0x200] sm:$0xff] %v1490
                  %v1492 = vld [vmem:[%s1232 + $0x408] sm:$0xff]
                  %1493 = vst [vmem:[%s1233 + $0x204] sm:$0xff] %v1492
                  %v1494 = vld [vmem:[%s1232 + $0x410] sm:$0xff]
                  %1495 = vst [vmem:[%s1233 + $0x208] sm:$0xff] %v1494
                  %v1496 = vld [vmem:[%s1232 + $0x418] sm:$0xff]
                  %1497 = vst [vmem:[%s1233 + $0x20c] sm:$0xff] %v1496
                  %v1498 = vld [vmem:[%s1232 + $0x420] sm:$0xff]
                  %1499 = vst [vmem:[%s1233 + $0x210] sm:$0xff] %v1498
                  %v1500 = vld [vmem:[%s1232 + $0x428] sm:$0xff]
                  %1501 = vst [vmem:[%s1233 + $0x214] sm:$0xff] %v1500
                  %v1502 = vld [vmem:[%s1232 + $0x430] sm:$0xff]
                  %1503 = vst [vmem:[%s1233 + $0x218] sm:$0xff] %v1502
                  %v1504 = vld [vmem:[%s1232 + $0x438] sm:$0xff]
                  %1505 = vst [vmem:[%s1233 + $0x21c] sm:$0xff] %v1504
                  %v1506 = vld [vmem:[%s1232 + $0x440] sm:$0xff]
                  %1507 = vst [vmem:[%s1233 + $0x220] sm:$0xff] %v1506
                  %v1508 = vld [vmem:[%s1232 + $0x448] sm:$0xff]
                  %1509 = vst [vmem:[%s1233 + $0x224] sm:$0xff] %v1508
                  %v1510 = vld [vmem:[%s1232 + $0x450] sm:$0xff]
                  %1511 = vst [vmem:[%s1233 + $0x228] sm:$0xff] %v1510
                  %v1512 = vld [vmem:[%s1232 + $0x458] sm:$0xff]
                  %1513 = vst [vmem:[%s1233 + $0x22c] sm:$0xff] %v1512
                  %v1514 = vld [vmem:[%s1232 + $0x460] sm:$0xff]
                  %1515 = vst [vmem:[%s1233 + $0x230] sm:$0xff] %v1514
                  %v1516 = vld [vmem:[%s1232 + $0x468] sm:$0xff]
                  %1517 = vst [vmem:[%s1233 + $0x234] sm:$0xff] %v1516
                  %v1518 = vld [vmem:[%s1232 + $0x470] sm:$0xff]
                  %1519 = vst [vmem:[%s1233 + $0x238] sm:$0xff] %v1518
                  %v1520 = vld [vmem:[%s1232 + $0x478] sm:$0xff]
                  %1521 = vst [vmem:[%s1233 + $0x23c] sm:$0xff] %v1520
                  %v1522 = vld [vmem:[%s1232 + $0x480] sm:$0xff]
                  %1523 = vst [vmem:[%s1233 + $0x240] sm:$0xff] %v1522
                  %v1524 = vld [vmem:[%s1232 + $0x488] sm:$0xff]
                  %1525 = vst [vmem:[%s1233 + $0x244] sm:$0xff] %v1524
                  %v1526 = vld [vmem:[%s1232 + $0x490] sm:$0xff]
                  %1527 = vst [vmem:[%s1233 + $0x248] sm:$0xff] %v1526
                  %v1528 = vld [vmem:[%s1232 + $0x498] sm:$0xff]
                  %1529 = vst [vmem:[%s1233 + $0x24c] sm:$0xff] %v1528
                  %v1530 = vld [vmem:[%s1232 + $0x4a0] sm:$0xff]
                  %1531 = vst [vmem:[%s1233 + $0x250] sm:$0xff] %v1530
                  %v1532 = vld [vmem:[%s1232 + $0x4a8] sm:$0xff]
                  %1533 = vst [vmem:[%s1233 + $0x254] sm:$0xff] %v1532
                  %v1534 = vld [vmem:[%s1232 + $0x4b0] sm:$0xff]
                  %1535 = vst [vmem:[%s1233 + $0x258] sm:$0xff] %v1534
                  %v1536 = vld [vmem:[%s1232 + $0x4b8] sm:$0xff]
                  %1537 = vst [vmem:[%s1233 + $0x25c] sm:$0xff] %v1536
                  %v1538 = vld [vmem:[%s1232 + $0x4c0] sm:$0xff]
                  %1539 = vst [vmem:[%s1233 + $0x260] sm:$0xff] %v1538
                  %v1540 = vld [vmem:[%s1232 + $0x4c8] sm:$0xff]
                  %1541 = vst [vmem:[%s1233 + $0x264] sm:$0xff] %v1540
                  %v1542 = vld [vmem:[%s1232 + $0x4d0] sm:$0xff]
                  %1543 = vst [vmem:[%s1233 + $0x268] sm:$0xff] %v1542
                  %v1544 = vld [vmem:[%s1232 + $0x4d8] sm:$0xff]
                  %1545 = vst [vmem:[%s1233 + $0x26c] sm:$0xff] %v1544
                  %v1546 = vld [vmem:[%s1232 + $0x4e0] sm:$0xff]
                  %1547 = vst [vmem:[%s1233 + $0x270] sm:$0xff] %v1546
                  %v1548 = vld [vmem:[%s1232 + $0x4e8] sm:$0xff]
                  %1549 = vst [vmem:[%s1233 + $0x274] sm:$0xff] %v1548
                  %v1550 = vld [vmem:[%s1232 + $0x4f0] sm:$0xff]
                  %1551 = vst [vmem:[%s1233 + $0x278] sm:$0xff] %v1550
                  %v1552 = vld [vmem:[%s1232 + $0x4f8] sm:$0xff]
                  %1553 = vst [vmem:[%s1233 + $0x27c] sm:$0xff] %v1552
                  %v1554 = vld [vmem:[%s1232 + $0x500] sm:$0xff]
                  %1555 = vst [vmem:[%s1233 + $0x280] sm:$0xff] %v1554
                  %v1556 = vld [vmem:[%s1232 + $0x508] sm:$0xff]
                  %1557 = vst [vmem:[%s1233 + $0x284] sm:$0xff] %v1556
                  %v1558 = vld [vmem:[%s1232 + $0x510] sm:$0xff]
                  %1559 = vst [vmem:[%s1233 + $0x288] sm:$0xff] %v1558
                  %v1560 = vld [vmem:[%s1232 + $0x518] sm:$0xff]
                  %1561 = vst [vmem:[%s1233 + $0x28c] sm:$0xff] %v1560
                  %v1562 = vld [vmem:[%s1232 + $0x520] sm:$0xff]
                  %1563 = vst [vmem:[%s1233 + $0x290] sm:$0xff] %v1562
                  %v1564 = vld [vmem:[%s1232 + $0x528] sm:$0xff]
                  %1565 = vst [vmem:[%s1233 + $0x294] sm:$0xff] %v1564
                  %v1566 = vld [vmem:[%s1232 + $0x530] sm:$0xff]
                  %1567 = vst [vmem:[%s1233 + $0x298] sm:$0xff] %v1566
                  %v1568 = vld [vmem:[%s1232 + $0x538] sm:$0xff]
                  %1569 = vst [vmem:[%s1233 + $0x29c] sm:$0xff] %v1568
                  %v1570 = vld [vmem:[%s1232 + $0x540] sm:$0xff]
                  %1571 = vst [vmem:[%s1233 + $0x2a0] sm:$0xff] %v1570
                  %v1572 = vld [vmem:[%s1232 + $0x548] sm:$0xff]
                  %1573 = vst [vmem:[%s1233 + $0x2a4] sm:$0xff] %v1572
                  %v1574 = vld [vmem:[%s1232 + $0x550] sm:$0xff]
                  %1575 = vst [vmem:[%s1233 + $0x2a8] sm:$0xff] %v1574
                  %v1576 = vld [vmem:[%s1232 + $0x558] sm:$0xff]
                  %1577 = vst [vmem:[%s1233 + $0x2ac] sm:$0xff] %v1576
                  %v1578 = vld [vmem:[%s1232 + $0x560] sm:$0xff]
                  %1579 = vst [vmem:[%s1233 + $0x2b0] sm:$0xff] %v1578
                  %v1580 = vld [vmem:[%s1232 + $0x568] sm:$0xff]
                  %1581 = vst [vmem:[%s1233 + $0x2b4] sm:$0xff] %v1580
                  %v1582 = vld [vmem:[%s1232 + $0x570] sm:$0xff]
                  %1583 = vst [vmem:[%s1233 + $0x2b8] sm:$0xff] %v1582
                  %v1584 = vld [vmem:[%s1232 + $0x578] sm:$0xff]
                  %1585 = vst [vmem:[%s1233 + $0x2bc] sm:$0xff] %v1584
                  %v1586 = vld [vmem:[%s1232 + $0x580] sm:$0xff]
                  %1587 = vst [vmem:[%s1233 + $0x2c0] sm:$0xff] %v1586
                  %v1588 = vld [vmem:[%s1232 + $0x588] sm:$0xff]
                  %1589 = vst [vmem:[%s1233 + $0x2c4] sm:$0xff] %v1588
                  %v1590 = vld [vmem:[%s1232 + $0x590] sm:$0xff]
                  %1591 = vst [vmem:[%s1233 + $0x2c8] sm:$0xff] %v1590
                  %v1592 = vld [vmem:[%s1232 + $0x598] sm:$0xff]
                  %1593 = vst [vmem:[%s1233 + $0x2cc] sm:$0xff] %v1592
                  %v1594 = vld [vmem:[%s1232 + $0x5a0] sm:$0xff]
                  %1595 = vst [vmem:[%s1233 + $0x2d0] sm:$0xff] %v1594
                  %v1596 = vld [vmem:[%s1232 + $0x5a8] sm:$0xff]
                  %1597 = vst [vmem:[%s1233 + $0x2d4] sm:$0xff] %v1596
                  %v1598 = vld [vmem:[%s1232 + $0x5b0] sm:$0xff]
                  %1599 = vst [vmem:[%s1233 + $0x2d8] sm:$0xff] %v1598
                  %v1600 = vld [vmem:[%s1232 + $0x5b8] sm:$0xff]
                  %1601 = vst [vmem:[%s1233 + $0x2dc] sm:$0xff] %v1600
                  %v1602 = vld [vmem:[%s1232 + $0x5c0] sm:$0xff]
                  %1603 = vst [vmem:[%s1233 + $0x2e0] sm:$0xff] %v1602
                  %v1604 = vld [vmem:[%s1232 + $0x5c8] sm:$0xff]
                  %1605 = vst [vmem:[%s1233 + $0x2e4] sm:$0xff] %v1604
                  %v1606 = vld [vmem:[%s1232 + $0x5d0] sm:$0xff]
                  %1607 = vst [vmem:[%s1233 + $0x2e8] sm:$0xff] %v1606
                  %v1608 = vld [vmem:[%s1232 + $0x5d8] sm:$0xff]
                  %1609 = vst [vmem:[%s1233 + $0x2ec] sm:$0xff] %v1608
                  %v1610 = vld [vmem:[%s1232 + $0x5e0] sm:$0xff]
                  %1611 = vst [vmem:[%s1233 + $0x2f0] sm:$0xff] %v1610
                  %v1612 = vld [vmem:[%s1232 + $0x5e8] sm:$0xff]
                  %1613 = vst [vmem:[%s1233 + $0x2f4] sm:$0xff] %v1612
                  %v1614 = vld [vmem:[%s1232 + $0x5f0] sm:$0xff]
                  %1615 = vst [vmem:[%s1233 + $0x2f8] sm:$0xff] %v1614
                  %v1616 = vld [vmem:[%s1232 + $0x5f8] sm:$0xff]
                  %1617 = vst [vmem:[%s1233 + $0x2fc] sm:$0xff] %v1616
                  %v1618 = vld [vmem:[%s1232 + $0x600] sm:$0xff]
                  %1619 = vst [vmem:[%s1233 + $0x300] sm:$0xff] %v1618
                  %v1620 = vld [vmem:[%s1232 + $0x608] sm:$0xff]
                  %1621 = vst [vmem:[%s1233 + $0x304] sm:$0xff] %v1620
                  %v1622 = vld [vmem:[%s1232 + $0x610] sm:$0xff]
                  %1623 = vst [vmem:[%s1233 + $0x308] sm:$0xff] %v1622
                  %v1624 = vld [vmem:[%s1232 + $0x618] sm:$0xff]
                  %1625 = vst [vmem:[%s1233 + $0x30c] sm:$0xff] %v1624
                  %v1626 = vld [vmem:[%s1232 + $0x620] sm:$0xff]
                  %1627 = vst [vmem:[%s1233 + $0x310] sm:$0xff] %v1626
                  %v1628 = vld [vmem:[%s1232 + $0x628] sm:$0xff]
                  %1629 = vst [vmem:[%s1233 + $0x314] sm:$0xff] %v1628
                  %v1630 = vld [vmem:[%s1232 + $0x630] sm:$0xff]
                  %1631 = vst [vmem:[%s1233 + $0x318] sm:$0xff] %v1630
                  %v1632 = vld [vmem:[%s1232 + $0x638] sm:$0xff]
                  %1633 = vst [vmem:[%s1233 + $0x31c] sm:$0xff] %v1632
                  %v1634 = vld [vmem:[%s1232 + $0x640] sm:$0xff]
                  %1635 = vst [vmem:[%s1233 + $0x320] sm:$0xff] %v1634
                  %v1636 = vld [vmem:[%s1232 + $0x648] sm:$0xff]
                  %1637 = vst [vmem:[%s1233 + $0x324] sm:$0xff] %v1636
                  %v1638 = vld [vmem:[%s1232 + $0x650] sm:$0xff]
                  %1639 = vst [vmem:[%s1233 + $0x328] sm:$0xff] %v1638
                  %v1640 = vld [vmem:[%s1232 + $0x658] sm:$0xff]
                  %1641 = vst [vmem:[%s1233 + $0x32c] sm:$0xff] %v1640
                  %v1642 = vld [vmem:[%s1232 + $0x660] sm:$0xff]
                  %1643 = vst [vmem:[%s1233 + $0x330] sm:$0xff] %v1642
                  %v1644 = vld [vmem:[%s1232 + $0x668] sm:$0xff]
                  %1645 = vst [vmem:[%s1233 + $0x334] sm:$0xff] %v1644
                  %v1646 = vld [vmem:[%s1232 + $0x670] sm:$0xff]
                  %1647 = vst [vmem:[%s1233 + $0x338] sm:$0xff] %v1646
                  %v1648 = vld [vmem:[%s1232 + $0x678] sm:$0xff]
                  %1649 = vst [vmem:[%s1233 + $0x33c] sm:$0xff] %v1648
                  %v1650 = vld [vmem:[%s1232 + $0x680] sm:$0xff]
                  %1651 = vst [vmem:[%s1233 + $0x340] sm:$0xff] %v1650
                  %v1652 = vld [vmem:[%s1232 + $0x688] sm:$0xff]
                  %1653 = vst [vmem:[%s1233 + $0x344] sm:$0xff] %v1652
                  %v1654 = vld [vmem:[%s1232 + $0x690] sm:$0xff]
                  %1655 = vst [vmem:[%s1233 + $0x348] sm:$0xff] %v1654
                  %v1656 = vld [vmem:[%s1232 + $0x698] sm:$0xff]
                  %1657 = vst [vmem:[%s1233 + $0x34c] sm:$0xff] %v1656
                  %v1658 = vld [vmem:[%s1232 + $0x6a0] sm:$0xff]
                  %1659 = vst [vmem:[%s1233 + $0x350] sm:$0xff] %v1658
                  %v1660 = vld [vmem:[%s1232 + $0x6a8] sm:$0xff]
                  %1661 = vst [vmem:[%s1233 + $0x354] sm:$0xff] %v1660
                  %v1662 = vld [vmem:[%s1232 + $0x6b0] sm:$0xff]
                  %1663 = vst [vmem:[%s1233 + $0x358] sm:$0xff] %v1662
                  %v1664 = vld [vmem:[%s1232 + $0x6b8] sm:$0xff]
                  %1665 = vst [vmem:[%s1233 + $0x35c] sm:$0xff] %v1664
                  %v1666 = vld [vmem:[%s1232 + $0x6c0] sm:$0xff]
                  %1667 = vst [vmem:[%s1233 + $0x360] sm:$0xff] %v1666
                  %v1668 = vld [vmem:[%s1232 + $0x6c8] sm:$0xff]
                  %1669 = vst [vmem:[%s1233 + $0x364] sm:$0xff] %v1668
                  %v1670 = vld [vmem:[%s1232 + $0x6d0] sm:$0xff]
                  %1671 = vst [vmem:[%s1233 + $0x368] sm:$0xff] %v1670
                  %v1672 = vld [vmem:[%s1232 + $0x6d8] sm:$0xff]
                  %1673 = vst [vmem:[%s1233 + $0x36c] sm:$0xff] %v1672
                  %v1674 = vld [vmem:[%s1232 + $0x6e0] sm:$0xff]
                  %1675 = vst [vmem:[%s1233 + $0x370] sm:$0xff] %v1674
                  %v1676 = vld [vmem:[%s1232 + $0x6e8] sm:$0xff]
                  %1677 = vst [vmem:[%s1233 + $0x374] sm:$0xff] %v1676
                  %v1678 = vld [vmem:[%s1232 + $0x6f0] sm:$0xff]
                  %1679 = vst [vmem:[%s1233 + $0x378] sm:$0xff] %v1678
                  %v1680 = vld [vmem:[%s1232 + $0x6f8] sm:$0xff]
                  %1681 = vst [vmem:[%s1233 + $0x37c] sm:$0xff] %v1680
                  %v1682 = vld [vmem:[%s1232 + $0x700] sm:$0xff]
                  %1683 = vst [vmem:[%s1233 + $0x380] sm:$0xff] %v1682
                  %v1684 = vld [vmem:[%s1232 + $0x708] sm:$0xff]
                  %1685 = vst [vmem:[%s1233 + $0x384] sm:$0xff] %v1684
                  %v1686 = vld [vmem:[%s1232 + $0x710] sm:$0xff]
                  %1687 = vst [vmem:[%s1233 + $0x388] sm:$0xff] %v1686
                  %v1688 = vld [vmem:[%s1232 + $0x718] sm:$0xff]
                  %1689 = vst [vmem:[%s1233 + $0x38c] sm:$0xff] %v1688
                  %v1690 = vld [vmem:[%s1232 + $0x720] sm:$0xff]
                  %1691 = vst [vmem:[%s1233 + $0x390] sm:$0xff] %v1690
                  %v1692 = vld [vmem:[%s1232 + $0x728] sm:$0xff]
                  %1693 = vst [vmem:[%s1233 + $0x394] sm:$0xff] %v1692
                  %v1694 = vld [vmem:[%s1232 + $0x730] sm:$0xff]
                  %1695 = vst [vmem:[%s1233 + $0x398] sm:$0xff] %v1694
                  %v1696 = vld [vmem:[%s1232 + $0x738] sm:$0xff]
                  %1697 = vst [vmem:[%s1233 + $0x39c] sm:$0xff] %v1696
                  %v1698 = vld [vmem:[%s1232 + $0x740] sm:$0xff]
                  %1699 = vst [vmem:[%s1233 + $0x3a0] sm:$0xff] %v1698
                  %v1700 = vld [vmem:[%s1232 + $0x748] sm:$0xff]
                  %1701 = vst [vmem:[%s1233 + $0x3a4] sm:$0xff] %v1700
                  %v1702 = vld [vmem:[%s1232 + $0x750] sm:$0xff]
                  %1703 = vst [vmem:[%s1233 + $0x3a8] sm:$0xff] %v1702
                  %v1704 = vld [vmem:[%s1232 + $0x758] sm:$0xff]
                  %1705 = vst [vmem:[%s1233 + $0x3ac] sm:$0xff] %v1704
                  %v1706 = vld [vmem:[%s1232 + $0x760] sm:$0xff]
                  %1707 = vst [vmem:[%s1233 + $0x3b0] sm:$0xff] %v1706
                  %v1708 = vld [vmem:[%s1232 + $0x768] sm:$0xff]
                  %1709 = vst [vmem:[%s1233 + $0x3b4] sm:$0xff] %v1708
                  %v1710 = vld [vmem:[%s1232 + $0x770] sm:$0xff]
                  %1711 = vst [vmem:[%s1233 + $0x3b8] sm:$0xff] %v1710
                  %v1712 = vld [vmem:[%s1232 + $0x778] sm:$0xff]
                  %1713 = vst [vmem:[%s1233 + $0x3bc] sm:$0xff] %v1712
                  %v1714 = vld [vmem:[%s1232 + $0x780] sm:$0xff]
                  %1715 = vst [vmem:[%s1233 + $0x3c0] sm:$0xff] %v1714
                  %v1716 = vld [vmem:[%s1232 + $0x788] sm:$0xff]
                  %1717 = vst [vmem:[%s1233 + $0x3c4] sm:$0xff] %v1716
                  %v1718 = vld [vmem:[%s1232 + $0x790] sm:$0xff]
                  %1719 = vst [vmem:[%s1233 + $0x3c8] sm:$0xff] %v1718
                  %v1720 = vld [vmem:[%s1232 + $0x798] sm:$0xff]
                  %1721 = vst [vmem:[%s1233 + $0x3cc] sm:$0xff] %v1720
                  %v1722 = vld [vmem:[%s1232 + $0x7a0] sm:$0xff]
                  %1723 = vst [vmem:[%s1233 + $0x3d0] sm:$0xff] %v1722
                  %v1724 = vld [vmem:[%s1232 + $0x7a8] sm:$0xff]
                  %1725 = vst [vmem:[%s1233 + $0x3d4] sm:$0xff] %v1724
                  %v1726 = vld [vmem:[%s1232 + $0x7b0] sm:$0xff]
                  %1727 = vst [vmem:[%s1233 + $0x3d8] sm:$0xff] %v1726
                  %v1728 = vld [vmem:[%s1232 + $0x7b8] sm:$0xff]
                  %1729 = vst [vmem:[%s1233 + $0x3dc] sm:$0xff] %v1728
                  %v1730 = vld [vmem:[%s1232 + $0x7c0] sm:$0xff]
                  %1731 = vst [vmem:[%s1233 + $0x3e0] sm:$0xff] %v1730
                  %v1732 = vld [vmem:[%s1232 + $0x7c8] sm:$0xff]
                  %1733 = vst [vmem:[%s1233 + $0x3e4] sm:$0xff] %v1732
                  %v1734 = vld [vmem:[%s1232 + $0x7d0] sm:$0xff]
                  %1735 = vst [vmem:[%s1233 + $0x3e8] sm:$0xff] %v1734
                  %v1736 = vld [vmem:[%s1232 + $0x7d8] sm:$0xff]
                  %1737 = vst [vmem:[%s1233 + $0x3ec] sm:$0xff] %v1736
                  %v1738 = vld [vmem:[%s1232 + $0x7e0] sm:$0xff]
                  %1739 = vst [vmem:[%s1233 + $0x3f0] sm:$0xff] %v1738
                  %v1740 = vld [vmem:[%s1232 + $0x7e8] sm:$0xff]
                  %1741 = vst [vmem:[%s1233 + $0x3f4] sm:$0xff] %v1740
                  %v1742 = vld [vmem:[%s1232 + $0x7f0] sm:$0xff]
                  %1743 = vst [vmem:[%s1233 + $0x3f8] sm:$0xff] %v1742
                  %v1744 = vld [vmem:[%s1232 + $0x7f8] sm:$0xff]
                  %1745 = vst [vmem:[%s1233 + $0x3fc] sm:$0xff] %v1744
                  %s1746 = sadd.s32 1, %s1231
                  %p1747 = scmp.ge.s32.totalorder %s1746, 0
                  %s1748 = scalar_select %p1747, 0, %s1746
                  %s1749 = smul.u32 %s1748, 8
                  %s1750 = smul.u32 %s1748, 8
                  %s1751 = scalar_lea.vmem %s164, %s1749
                  %s1752 = scalar_lea.vmem %s162, %s1750 [#allocation2]
                $region63: #{forward.12} parent=57 // loop_footer
                  %s1230 = sadd.s32 1, %s1226
                $region64: #{forward.12} parent=57 // loop_footer_branch
                  %1225 = sbr.rel target = $region60
                $region65: #{forward.12} parent=57 // loop_exit
                  _
                %s1754 = ssub.s32 16, 1
                loop: start=0, step=1, limit=1
                $region66: #{forward.12} parent=57 // loop_pre_header
                  _
                $region67: #{forward.12} parent=57 // loop_header
                  %s1756 = sphi 0, %s1760
                  %p1757 = scmp.ge.s32.totalorder %s1756, 1
                  %s1761 = sphi %s164, %s164
                  %s1762 = sphi %s162, %s162
                $region68: #{forward.12} parent=57 // loop_header_branch
                  %1759 = sbr.rel (%p1757) target = $region72
                $region69: #{forward.12} parent=57 // loop_body
                  %v1763 = vld [vmem:[%s1761] sm:%s1754]
                  %1764 = vst [vmem:[%s1762] sm:%s1754] %v1763
                  %v1765 = vld [vmem:[%s1761 + $0x8] sm:%s1754]
                  %1766 = vst [vmem:[%s1762 + $0x4] sm:%s1754] %v1765
                  %v1767 = vld [vmem:[%s1761 + $0x10] sm:%s1754]
                  %1768 = vst [vmem:[%s1762 + $0x8] sm:%s1754] %v1767
                  %v1769 = vld [vmem:[%s1761 + $0x18] sm:%s1754]
                  %1770 = vst [vmem:[%s1762 + $0xc] sm:%s1754] %v1769
                  %v1771 = vld [vmem:[%s1761 + $0x20] sm:%s1754]
                  %1772 = vst [vmem:[%s1762 + $0x10] sm:%s1754] %v1771
                  %v1773 = vld [vmem:[%s1761 + $0x28] sm:%s1754]
                  %1774 = vst [vmem:[%s1762 + $0x14] sm:%s1754] %v1773
                  %v1775 = vld [vmem:[%s1761 + $0x30] sm:%s1754]
                  %1776 = vst [vmem:[%s1762 + $0x18] sm:%s1754] %v1775
                  %v1777 = vld [vmem:[%s1761 + $0x38] sm:%s1754]
                  %1778 = vst [vmem:[%s1762 + $0x1c] sm:%s1754] %v1777
                  %v1779 = vld [vmem:[%s1761 + $0x40] sm:%s1754]
                  %1780 = vst [vmem:[%s1762 + $0x20] sm:%s1754] %v1779
                  %v1781 = vld [vmem:[%s1761 + $0x48] sm:%s1754]
                  %1782 = vst [vmem:[%s1762 + $0x24] sm:%s1754] %v1781
                  %v1783 = vld [vmem:[%s1761 + $0x50] sm:%s1754]
                  %1784 = vst [vmem:[%s1762 + $0x28] sm:%s1754] %v1783
                  %v1785 = vld [vmem:[%s1761 + $0x58] sm:%s1754]
                  %1786 = vst [vmem:[%s1762 + $0x2c] sm:%s1754] %v1785
                  %v1787 = vld [vmem:[%s1761 + $0x60] sm:%s1754]
                  %1788 = vst [vmem:[%s1762 + $0x30] sm:%s1754] %v1787
                  %v1789 = vld [vmem:[%s1761 + $0x68] sm:%s1754]
                  %1790 = vst [vmem:[%s1762 + $0x34] sm:%s1754] %v1789
                  %v1791 = vld [vmem:[%s1761 + $0x70] sm:%s1754]
                  %1792 = vst [vmem:[%s1762 + $0x38] sm:%s1754] %v1791
                  %v1793 = vld [vmem:[%s1761 + $0x78] sm:%s1754]
                  %1794 = vst [vmem:[%s1762 + $0x3c] sm:%s1754] %v1793
                  %v1795 = vld [vmem:[%s1761 + $0x80] sm:%s1754]
                  %1796 = vst [vmem:[%s1762 + $0x40] sm:%s1754] %v1795
                  %v1797 = vld [vmem:[%s1761 + $0x88] sm:%s1754]
                  %1798 = vst [vmem:[%s1762 + $0x44] sm:%s1754] %v1797
                  %v1799 = vld [vmem:[%s1761 + $0x90] sm:%s1754]
                  %1800 = vst [vmem:[%s1762 + $0x48] sm:%s1754] %v1799
                  %v1801 = vld [vmem:[%s1761 + $0x98] sm:%s1754]
                  %1802 = vst [vmem:[%s1762 + $0x4c] sm:%s1754] %v1801
                  %v1803 = vld [vmem:[%s1761 + $0xa0] sm:%s1754]
                  %1804 = vst [vmem:[%s1762 + $0x50] sm:%s1754] %v1803
                  %v1805 = vld [vmem:[%s1761 + $0xa8] sm:%s1754]
                  %1806 = vst [vmem:[%s1762 + $0x54] sm:%s1754] %v1805
                  %v1807 = vld [vmem:[%s1761 + $0xb0] sm:%s1754]
                  %1808 = vst [vmem:[%s1762 + $0x58] sm:%s1754] %v1807
                  %v1809 = vld [vmem:[%s1761 + $0xb8] sm:%s1754]
                  %1810 = vst [vmem:[%s1762 + $0x5c] sm:%s1754] %v1809
                  %v1811 = vld [vmem:[%s1761 + $0xc0] sm:%s1754]
                  %1812 = vst [vmem:[%s1762 + $0x60] sm:%s1754] %v1811
                  %v1813 = vld [vmem:[%s1761 + $0xc8] sm:%s1754]
                  %1814 = vst [vmem:[%s1762 + $0x64] sm:%s1754] %v1813
                  %v1815 = vld [vmem:[%s1761 + $0xd0] sm:%s1754]
                  %1816 = vst [vmem:[%s1762 + $0x68] sm:%s1754] %v1815
                  %v1817 = vld [vmem:[%s1761 + $0xd8] sm:%s1754]
                  %1818 = vst [vmem:[%s1762 + $0x6c] sm:%s1754] %v1817
                  %v1819 = vld [vmem:[%s1761 + $0xe0] sm:%s1754]
                  %1820 = vst [vmem:[%s1762 + $0x70] sm:%s1754] %v1819
                  %v1821 = vld [vmem:[%s1761 + $0xe8] sm:%s1754]
                  %1822 = vst [vmem:[%s1762 + $0x74] sm:%s1754] %v1821
                  %v1823 = vld [vmem:[%s1761 + $0xf0] sm:%s1754]
                  %1824 = vst [vmem:[%s1762 + $0x78] sm:%s1754] %v1823
                  %v1825 = vld [vmem:[%s1761 + $0xf8] sm:%s1754]
                  %1826 = vst [vmem:[%s1762 + $0x7c] sm:%s1754] %v1825
                  %v1827 = vld [vmem:[%s1761 + $0x100] sm:%s1754]
                  %1828 = vst [vmem:[%s1762 + $0x80] sm:%s1754] %v1827
                  %v1829 = vld [vmem:[%s1761 + $0x108] sm:%s1754]
                  %1830 = vst [vmem:[%s1762 + $0x84] sm:%s1754] %v1829
                  %v1831 = vld [vmem:[%s1761 + $0x110] sm:%s1754]
                  %1832 = vst [vmem:[%s1762 + $0x88] sm:%s1754] %v1831
                  %v1833 = vld [vmem:[%s1761 + $0x118] sm:%s1754]
                  %1834 = vst [vmem:[%s1762 + $0x8c] sm:%s1754] %v1833
                  %v1835 = vld [vmem:[%s1761 + $0x120] sm:%s1754]
                  %1836 = vst [vmem:[%s1762 + $0x90] sm:%s1754] %v1835
                  %v1837 = vld [vmem:[%s1761 + $0x128] sm:%s1754]
                  %1838 = vst [vmem:[%s1762 + $0x94] sm:%s1754] %v1837
                  %v1839 = vld [vmem:[%s1761 + $0x130] sm:%s1754]
                  %1840 = vst [vmem:[%s1762 + $0x98] sm:%s1754] %v1839
                  %v1841 = vld [vmem:[%s1761 + $0x138] sm:%s1754]
                  %1842 = vst [vmem:[%s1762 + $0x9c] sm:%s1754] %v1841
                  %v1843 = vld [vmem:[%s1761 + $0x140] sm:%s1754]
                  %1844 = vst [vmem:[%s1762 + $0xa0] sm:%s1754] %v1843
                  %v1845 = vld [vmem:[%s1761 + $0x148] sm:%s1754]
                  %1846 = vst [vmem:[%s1762 + $0xa4] sm:%s1754] %v1845
                  %v1847 = vld [vmem:[%s1761 + $0x150] sm:%s1754]
                  %1848 = vst [vmem:[%s1762 + $0xa8] sm:%s1754] %v1847
                  %v1849 = vld [vmem:[%s1761 + $0x158] sm:%s1754]
                  %1850 = vst [vmem:[%s1762 + $0xac] sm:%s1754] %v1849
                  %v1851 = vld [vmem:[%s1761 + $0x160] sm:%s1754]
                  %1852 = vst [vmem:[%s1762 + $0xb0] sm:%s1754] %v1851
                  %v1853 = vld [vmem:[%s1761 + $0x168] sm:%s1754]
                  %1854 = vst [vmem:[%s1762 + $0xb4] sm:%s1754] %v1853
                  %v1855 = vld [vmem:[%s1761 + $0x170] sm:%s1754]
                  %1856 = vst [vmem:[%s1762 + $0xb8] sm:%s1754] %v1855
                  %v1857 = vld [vmem:[%s1761 + $0x178] sm:%s1754]
                  %1858 = vst [vmem:[%s1762 + $0xbc] sm:%s1754] %v1857
                  %v1859 = vld [vmem:[%s1761 + $0x180] sm:%s1754]
                  %1860 = vst [vmem:[%s1762 + $0xc0] sm:%s1754] %v1859
                  %v1861 = vld [vmem:[%s1761 + $0x188] sm:%s1754]
                  %1862 = vst [vmem:[%s1762 + $0xc4] sm:%s1754] %v1861
                  %v1863 = vld [vmem:[%s1761 + $0x190] sm:%s1754]
                  %1864 = vst [vmem:[%s1762 + $0xc8] sm:%s1754] %v1863
                  %v1865 = vld [vmem:[%s1761 + $0x198] sm:%s1754]
                  %1866 = vst [vmem:[%s1762 + $0xcc] sm:%s1754] %v1865
                  %v1867 = vld [vmem:[%s1761 + $0x1a0] sm:%s1754]
                  %1868 = vst [vmem:[%s1762 + $0xd0] sm:%s1754] %v1867
                  %v1869 = vld [vmem:[%s1761 + $0x1a8] sm:%s1754]
                  %1870 = vst [vmem:[%s1762 + $0xd4] sm:%s1754] %v1869
                  %v1871 = vld [vmem:[%s1761 + $0x1b0] sm:%s1754]
                  %1872 = vst [vmem:[%s1762 + $0xd8] sm:%s1754] %v1871
                  %v1873 = vld [vmem:[%s1761 + $0x1b8] sm:%s1754]
                  %1874 = vst [vmem:[%s1762 + $0xdc] sm:%s1754] %v1873
                  %v1875 = vld [vmem:[%s1761 + $0x1c0] sm:%s1754]
                  %1876 = vst [vmem:[%s1762 + $0xe0] sm:%s1754] %v1875
                  %v1877 = vld [vmem:[%s1761 + $0x1c8] sm:%s1754]
                  %1878 = vst [vmem:[%s1762 + $0xe4] sm:%s1754] %v1877
                  %v1879 = vld [vmem:[%s1761 + $0x1d0] sm:%s1754]
                  %1880 = vst [vmem:[%s1762 + $0xe8] sm:%s1754] %v1879
                  %v1881 = vld [vmem:[%s1761 + $0x1d8] sm:%s1754]
                  %1882 = vst [vmem:[%s1762 + $0xec] sm:%s1754] %v1881
                  %v1883 = vld [vmem:[%s1761 + $0x1e0] sm:%s1754]
                  %1884 = vst [vmem:[%s1762 + $0xf0] sm:%s1754] %v1883
                  %v1885 = vld [vmem:[%s1761 + $0x1e8] sm:%s1754]
                  %1886 = vst [vmem:[%s1762 + $0xf4] sm:%s1754] %v1885
                  %v1887 = vld [vmem:[%s1761 + $0x1f0] sm:%s1754]
                  %1888 = vst [vmem:[%s1762 + $0xf8] sm:%s1754] %v1887
                  %v1889 = vld [vmem:[%s1761 + $0x1f8] sm:%s1754]
                  %1890 = vst [vmem:[%s1762 + $0xfc] sm:%s1754] %v1889
                  %v1891 = vld [vmem:[%s1761 + $0x200] sm:%s1754]
                  %1892 = vst [vmem:[%s1762 + $0x100] sm:%s1754] %v1891
                  %v1893 = vld [vmem:[%s1761 + $0x208] sm:%s1754]
                  %1894 = vst [vmem:[%s1762 + $0x104] sm:%s1754] %v1893
                  %v1895 = vld [vmem:[%s1761 + $0x210] sm:%s1754]
                  %1896 = vst [vmem:[%s1762 + $0x108] sm:%s1754] %v1895
                  %v1897 = vld [vmem:[%s1761 + $0x218] sm:%s1754]
                  %1898 = vst [vmem:[%s1762 + $0x10c] sm:%s1754] %v1897
                  %v1899 = vld [vmem:[%s1761 + $0x220] sm:%s1754]
                  %1900 = vst [vmem:[%s1762 + $0x110] sm:%s1754] %v1899
                  %v1901 = vld [vmem:[%s1761 + $0x228] sm:%s1754]
                  %1902 = vst [vmem:[%s1762 + $0x114] sm:%s1754] %v1901
                  %v1903 = vld [vmem:[%s1761 + $0x230] sm:%s1754]
                  %1904 = vst [vmem:[%s1762 + $0x118] sm:%s1754] %v1903
                  %v1905 = vld [vmem:[%s1761 + $0x238] sm:%s1754]
                  %1906 = vst [vmem:[%s1762 + $0x11c] sm:%s1754] %v1905
                  %v1907 = vld [vmem:[%s1761 + $0x240] sm:%s1754]
                  %1908 = vst [vmem:[%s1762 + $0x120] sm:%s1754] %v1907
                  %v1909 = vld [vmem:[%s1761 + $0x248] sm:%s1754]
                  %1910 = vst [vmem:[%s1762 + $0x124] sm:%s1754] %v1909
                  %v1911 = vld [vmem:[%s1761 + $0x250] sm:%s1754]
                  %1912 = vst [vmem:[%s1762 + $0x128] sm:%s1754] %v1911
                  %v1913 = vld [vmem:[%s1761 + $0x258] sm:%s1754]
                  %1914 = vst [vmem:[%s1762 + $0x12c] sm:%s1754] %v1913
                  %v1915 = vld [vmem:[%s1761 + $0x260] sm:%s1754]
                  %1916 = vst [vmem:[%s1762 + $0x130] sm:%s1754] %v1915
                  %v1917 = vld [vmem:[%s1761 + $0x268] sm:%s1754]
                  %1918 = vst [vmem:[%s1762 + $0x134] sm:%s1754] %v1917
                  %v1919 = vld [vmem:[%s1761 + $0x270] sm:%s1754]
                  %1920 = vst [vmem:[%s1762 + $0x138] sm:%s1754] %v1919
                  %v1921 = vld [vmem:[%s1761 + $0x278] sm:%s1754]
                  %1922 = vst [vmem:[%s1762 + $0x13c] sm:%s1754] %v1921
                  %v1923 = vld [vmem:[%s1761 + $0x280] sm:%s1754]
                  %1924 = vst [vmem:[%s1762 + $0x140] sm:%s1754] %v1923
                  %v1925 = vld [vmem:[%s1761 + $0x288] sm:%s1754]
                  %1926 = vst [vmem:[%s1762 + $0x144] sm:%s1754] %v1925
                  %v1927 = vld [vmem:[%s1761 + $0x290] sm:%s1754]
                  %1928 = vst [vmem:[%s1762 + $0x148] sm:%s1754] %v1927
                  %v1929 = vld [vmem:[%s1761 + $0x298] sm:%s1754]
                  %1930 = vst [vmem:[%s1762 + $0x14c] sm:%s1754] %v1929
                  %v1931 = vld [vmem:[%s1761 + $0x2a0] sm:%s1754]
                  %1932 = vst [vmem:[%s1762 + $0x150] sm:%s1754] %v1931
                  %v1933 = vld [vmem:[%s1761 + $0x2a8] sm:%s1754]
                  %1934 = vst [vmem:[%s1762 + $0x154] sm:%s1754] %v1933
                  %v1935 = vld [vmem:[%s1761 + $0x2b0] sm:%s1754]
                  %1936 = vst [vmem:[%s1762 + $0x158] sm:%s1754] %v1935
                  %v1937 = vld [vmem:[%s1761 + $0x2b8] sm:%s1754]
                  %1938 = vst [vmem:[%s1762 + $0x15c] sm:%s1754] %v1937
                  %v1939 = vld [vmem:[%s1761 + $0x2c0] sm:%s1754]
                  %1940 = vst [vmem:[%s1762 + $0x160] sm:%s1754] %v1939
                  %v1941 = vld [vmem:[%s1761 + $0x2c8] sm:%s1754]
                  %1942 = vst [vmem:[%s1762 + $0x164] sm:%s1754] %v1941
                  %v1943 = vld [vmem:[%s1761 + $0x2d0] sm:%s1754]
                  %1944 = vst [vmem:[%s1762 + $0x168] sm:%s1754] %v1943
                  %v1945 = vld [vmem:[%s1761 + $0x2d8] sm:%s1754]
                  %1946 = vst [vmem:[%s1762 + $0x16c] sm:%s1754] %v1945
                  %v1947 = vld [vmem:[%s1761 + $0x2e0] sm:%s1754]
                  %1948 = vst [vmem:[%s1762 + $0x170] sm:%s1754] %v1947
                  %v1949 = vld [vmem:[%s1761 + $0x2e8] sm:%s1754]
                  %1950 = vst [vmem:[%s1762 + $0x174] sm:%s1754] %v1949
                  %v1951 = vld [vmem:[%s1761 + $0x2f0] sm:%s1754]
                  %1952 = vst [vmem:[%s1762 + $0x178] sm:%s1754] %v1951
                  %v1953 = vld [vmem:[%s1761 + $0x2f8] sm:%s1754]
                  %1954 = vst [vmem:[%s1762 + $0x17c] sm:%s1754] %v1953
                  %v1955 = vld [vmem:[%s1761 + $0x300] sm:%s1754]
                  %1956 = vst [vmem:[%s1762 + $0x180] sm:%s1754] %v1955
                  %v1957 = vld [vmem:[%s1761 + $0x308] sm:%s1754]
                  %1958 = vst [vmem:[%s1762 + $0x184] sm:%s1754] %v1957
                  %v1959 = vld [vmem:[%s1761 + $0x310] sm:%s1754]
                  %1960 = vst [vmem:[%s1762 + $0x188] sm:%s1754] %v1959
                  %v1961 = vld [vmem:[%s1761 + $0x318] sm:%s1754]
                  %1962 = vst [vmem:[%s1762 + $0x18c] sm:%s1754] %v1961
                  %v1963 = vld [vmem:[%s1761 + $0x320] sm:%s1754]
                  %1964 = vst [vmem:[%s1762 + $0x190] sm:%s1754] %v1963
                  %v1965 = vld [vmem:[%s1761 + $0x328] sm:%s1754]
                  %1966 = vst [vmem:[%s1762 + $0x194] sm:%s1754] %v1965
                  %v1967 = vld [vmem:[%s1761 + $0x330] sm:%s1754]
                  %1968 = vst [vmem:[%s1762 + $0x198] sm:%s1754] %v1967
                  %v1969 = vld [vmem:[%s1761 + $0x338] sm:%s1754]
                  %1970 = vst [vmem:[%s1762 + $0x19c] sm:%s1754] %v1969
                  %v1971 = vld [vmem:[%s1761 + $0x340] sm:%s1754]
                  %1972 = vst [vmem:[%s1762 + $0x1a0] sm:%s1754] %v1971
                  %v1973 = vld [vmem:[%s1761 + $0x348] sm:%s1754]
                  %1974 = vst [vmem:[%s1762 + $0x1a4] sm:%s1754] %v1973
                  %v1975 = vld [vmem:[%s1761 + $0x350] sm:%s1754]
                  %1976 = vst [vmem:[%s1762 + $0x1a8] sm:%s1754] %v1975
                  %v1977 = vld [vmem:[%s1761 + $0x358] sm:%s1754]
                  %1978 = vst [vmem:[%s1762 + $0x1ac] sm:%s1754] %v1977
                  %v1979 = vld [vmem:[%s1761 + $0x360] sm:%s1754]
                  %1980 = vst [vmem:[%s1762 + $0x1b0] sm:%s1754] %v1979
                  %v1981 = vld [vmem:[%s1761 + $0x368] sm:%s1754]
                  %1982 = vst [vmem:[%s1762 + $0x1b4] sm:%s1754] %v1981
                  %v1983 = vld [vmem:[%s1761 + $0x370] sm:%s1754]
                  %1984 = vst [vmem:[%s1762 + $0x1b8] sm:%s1754] %v1983
                  %v1985 = vld [vmem:[%s1761 + $0x378] sm:%s1754]
                  %1986 = vst [vmem:[%s1762 + $0x1bc] sm:%s1754] %v1985
                  %v1987 = vld [vmem:[%s1761 + $0x380] sm:%s1754]
                  %1988 = vst [vmem:[%s1762 + $0x1c0] sm:%s1754] %v1987
                  %v1989 = vld [vmem:[%s1761 + $0x388] sm:%s1754]
                  %1990 = vst [vmem:[%s1762 + $0x1c4] sm:%s1754] %v1989
                  %v1991 = vld [vmem:[%s1761 + $0x390] sm:%s1754]
                  %1992 = vst [vmem:[%s1762 + $0x1c8] sm:%s1754] %v1991
                  %v1993 = vld [vmem:[%s1761 + $0x398] sm:%s1754]
                  %1994 = vst [vmem:[%s1762 + $0x1cc] sm:%s1754] %v1993
                  %v1995 = vld [vmem:[%s1761 + $0x3a0] sm:%s1754]
                  %1996 = vst [vmem:[%s1762 + $0x1d0] sm:%s1754] %v1995
                  %v1997 = vld [vmem:[%s1761 + $0x3a8] sm:%s1754]
                  %1998 = vst [vmem:[%s1762 + $0x1d4] sm:%s1754] %v1997
                  %v1999 = vld [vmem:[%s1761 + $0x3b0] sm:%s1754]
                  %2000 = vst [vmem:[%s1762 + $0x1d8] sm:%s1754] %v1999
                  %v2001 = vld [vmem:[%s1761 + $0x3b8] sm:%s1754]
                  %2002 = vst [vmem:[%s1762 + $0x1dc] sm:%s1754] %v2001
                  %v2003 = vld [vmem:[%s1761 + $0x3c0] sm:%s1754]
                  %2004 = vst [vmem:[%s1762 + $0x1e0] sm:%s1754] %v2003
                  %v2005 = vld [vmem:[%s1761 + $0x3c8] sm:%s1754]
                  %2006 = vst [vmem:[%s1762 + $0x1e4] sm:%s1754] %v2005
                  %v2007 = vld [vmem:[%s1761 + $0x3d0] sm:%s1754]
                  %2008 = vst [vmem:[%s1762 + $0x1e8] sm:%s1754] %v2007
                  %v2009 = vld [vmem:[%s1761 + $0x3d8] sm:%s1754]
                  %2010 = vst [vmem:[%s1762 + $0x1ec] sm:%s1754] %v2009
                  %v2011 = vld [vmem:[%s1761 + $0x3e0] sm:%s1754]
                  %2012 = vst [vmem:[%s1762 + $0x1f0] sm:%s1754] %v2011
                  %v2013 = vld [vmem:[%s1761 + $0x3e8] sm:%s1754]
                  %2014 = vst [vmem:[%s1762 + $0x1f4] sm:%s1754] %v2013
                  %v2015 = vld [vmem:[%s1761 + $0x3f0] sm:%s1754]
                  %2016 = vst [vmem:[%s1762 + $0x1f8] sm:%s1754] %v2015
                  %v2017 = vld [vmem:[%s1761 + $0x3f8] sm:%s1754]
                  %2018 = vst [vmem:[%s1762 + $0x1fc] sm:%s1754] %v2017
                  %v2019 = vld [vmem:[%s1761 + $0x400] sm:%s1754]
                  %2020 = vst [vmem:[%s1762 + $0x200] sm:%s1754] %v2019
                  %v2021 = vld [vmem:[%s1761 + $0x408] sm:%s1754]
                  %2022 = vst [vmem:[%s1762 + $0x204] sm:%s1754] %v2021
                  %v2023 = vld [vmem:[%s1761 + $0x410] sm:%s1754]
                  %2024 = vst [vmem:[%s1762 + $0x208] sm:%s1754] %v2023
                  %v2025 = vld [vmem:[%s1761 + $0x418] sm:%s1754]
                  %2026 = vst [vmem:[%s1762 + $0x20c] sm:%s1754] %v2025
                  %v2027 = vld [vmem:[%s1761 + $0x420] sm:%s1754]
                  %2028 = vst [vmem:[%s1762 + $0x210] sm:%s1754] %v2027
                  %v2029 = vld [vmem:[%s1761 + $0x428] sm:%s1754]
                  %2030 = vst [vmem:[%s1762 + $0x214] sm:%s1754] %v2029
                  %v2031 = vld [vmem:[%s1761 + $0x430] sm:%s1754]
                  %2032 = vst [vmem:[%s1762 + $0x218] sm:%s1754] %v2031
                  %v2033 = vld [vmem:[%s1761 + $0x438] sm:%s1754]
                  %2034 = vst [vmem:[%s1762 + $0x21c] sm:%s1754] %v2033
                  %v2035 = vld [vmem:[%s1761 + $0x440] sm:%s1754]
                  %2036 = vst [vmem:[%s1762 + $0x220] sm:%s1754] %v2035
                  %v2037 = vld [vmem:[%s1761 + $0x448] sm:%s1754]
                  %2038 = vst [vmem:[%s1762 + $0x224] sm:%s1754] %v2037
                  %v2039 = vld [vmem:[%s1761 + $0x450] sm:%s1754]
                  %2040 = vst [vmem:[%s1762 + $0x228] sm:%s1754] %v2039
                  %v2041 = vld [vmem:[%s1761 + $0x458] sm:%s1754]
                  %2042 = vst [vmem:[%s1762 + $0x22c] sm:%s1754] %v2041
                  %v2043 = vld [vmem:[%s1761 + $0x460] sm:%s1754]
                  %2044 = vst [vmem:[%s1762 + $0x230] sm:%s1754] %v2043
                  %v2045 = vld [vmem:[%s1761 + $0x468] sm:%s1754]
                  %2046 = vst [vmem:[%s1762 + $0x234] sm:%s1754] %v2045
                  %v2047 = vld [vmem:[%s1761 + $0x470] sm:%s1754]
                  %2048 = vst [vmem:[%s1762 + $0x238] sm:%s1754] %v2047
                  %v2049 = vld [vmem:[%s1761 + $0x478] sm:%s1754]
                  %2050 = vst [vmem:[%s1762 + $0x23c] sm:%s1754] %v2049
                  %v2051 = vld [vmem:[%s1761 + $0x480] sm:%s1754]
                  %2052 = vst [vmem:[%s1762 + $0x240] sm:%s1754] %v2051
                  %v2053 = vld [vmem:[%s1761 + $0x488] sm:%s1754]
                  %2054 = vst [vmem:[%s1762 + $0x244] sm:%s1754] %v2053
                  %v2055 = vld [vmem:[%s1761 + $0x490] sm:%s1754]
                  %2056 = vst [vmem:[%s1762 + $0x248] sm:%s1754] %v2055
                  %v2057 = vld [vmem:[%s1761 + $0x498] sm:%s1754]
                  %2058 = vst [vmem:[%s1762 + $0x24c] sm:%s1754] %v2057
                  %v2059 = vld [vmem:[%s1761 + $0x4a0] sm:%s1754]
                  %2060 = vst [vmem:[%s1762 + $0x250] sm:%s1754] %v2059
                  %v2061 = vld [vmem:[%s1761 + $0x4a8] sm:%s1754]
                  %2062 = vst [vmem:[%s1762 + $0x254] sm:%s1754] %v2061
                  %v2063 = vld [vmem:[%s1761 + $0x4b0] sm:%s1754]
                  %2064 = vst [vmem:[%s1762 + $0x258] sm:%s1754] %v2063
                  %v2065 = vld [vmem:[%s1761 + $0x4b8] sm:%s1754]
                  %2066 = vst [vmem:[%s1762 + $0x25c] sm:%s1754] %v2065
                  %v2067 = vld [vmem:[%s1761 + $0x4c0] sm:%s1754]
                  %2068 = vst [vmem:[%s1762 + $0x260] sm:%s1754] %v2067
                  %v2069 = vld [vmem:[%s1761 + $0x4c8] sm:%s1754]
                  %2070 = vst [vmem:[%s1762 + $0x264] sm:%s1754] %v2069
                  %v2071 = vld [vmem:[%s1761 + $0x4d0] sm:%s1754]
                  %2072 = vst [vmem:[%s1762 + $0x268] sm:%s1754] %v2071
                  %v2073 = vld [vmem:[%s1761 + $0x4d8] sm:%s1754]
                  %2074 = vst [vmem:[%s1762 + $0x26c] sm:%s1754] %v2073
                  %v2075 = vld [vmem:[%s1761 + $0x4e0] sm:%s1754]
                  %2076 = vst [vmem:[%s1762 + $0x270] sm:%s1754] %v2075
                  %v2077 = vld [vmem:[%s1761 + $0x4e8] sm:%s1754]
                  %2078 = vst [vmem:[%s1762 + $0x274] sm:%s1754] %v2077
                  %v2079 = vld [vmem:[%s1761 + $0x4f0] sm:%s1754]
                  %2080 = vst [vmem:[%s1762 + $0x278] sm:%s1754] %v2079
                  %v2081 = vld [vmem:[%s1761 + $0x4f8] sm:%s1754]
                  %2082 = vst [vmem:[%s1762 + $0x27c] sm:%s1754] %v2081
                  %v2083 = vld [vmem:[%s1761 + $0x500] sm:%s1754]
                  %2084 = vst [vmem:[%s1762 + $0x280] sm:%s1754] %v2083
                  %v2085 = vld [vmem:[%s1761 + $0x508] sm:%s1754]
                  %2086 = vst [vmem:[%s1762 + $0x284] sm:%s1754] %v2085
                  %v2087 = vld [vmem:[%s1761 + $0x510] sm:%s1754]
                  %2088 = vst [vmem:[%s1762 + $0x288] sm:%s1754] %v2087
                  %v2089 = vld [vmem:[%s1761 + $0x518] sm:%s1754]
                  %2090 = vst [vmem:[%s1762 + $0x28c] sm:%s1754] %v2089
                  %v2091 = vld [vmem:[%s1761 + $0x520] sm:%s1754]
                  %2092 = vst [vmem:[%s1762 + $0x290] sm:%s1754] %v2091
                  %v2093 = vld [vmem:[%s1761 + $0x528] sm:%s1754]
                  %2094 = vst [vmem:[%s1762 + $0x294] sm:%s1754] %v2093
                  %v2095 = vld [vmem:[%s1761 + $0x530] sm:%s1754]
                  %2096 = vst [vmem:[%s1762 + $0x298] sm:%s1754] %v2095
                  %v2097 = vld [vmem:[%s1761 + $0x538] sm:%s1754]
                  %2098 = vst [vmem:[%s1762 + $0x29c] sm:%s1754] %v2097
                  %v2099 = vld [vmem:[%s1761 + $0x540] sm:%s1754]
                  %2100 = vst [vmem:[%s1762 + $0x2a0] sm:%s1754] %v2099
                  %v2101 = vld [vmem:[%s1761 + $0x548] sm:%s1754]
                  %2102 = vst [vmem:[%s1762 + $0x2a4] sm:%s1754] %v2101
                  %v2103 = vld [vmem:[%s1761 + $0x550] sm:%s1754]
                  %2104 = vst [vmem:[%s1762 + $0x2a8] sm:%s1754] %v2103
                  %v2105 = vld [vmem:[%s1761 + $0x558] sm:%s1754]
                  %2106 = vst [vmem:[%s1762 + $0x2ac] sm:%s1754] %v2105
                  %v2107 = vld [vmem:[%s1761 + $0x560] sm:%s1754]
                  %2108 = vst [vmem:[%s1762 + $0x2b0] sm:%s1754] %v2107
                  %v2109 = vld [vmem:[%s1761 + $0x568] sm:%s1754]
                  %2110 = vst [vmem:[%s1762 + $0x2b4] sm:%s1754] %v2109
                  %v2111 = vld [vmem:[%s1761 + $0x570] sm:%s1754]
                  %2112 = vst [vmem:[%s1762 + $0x2b8] sm:%s1754] %v2111
                  %v2113 = vld [vmem:[%s1761 + $0x578] sm:%s1754]
                  %2114 = vst [vmem:[%s1762 + $0x2bc] sm:%s1754] %v2113
                  %v2115 = vld [vmem:[%s1761 + $0x580] sm:%s1754]
                  %2116 = vst [vmem:[%s1762 + $0x2c0] sm:%s1754] %v2115
                  %v2117 = vld [vmem:[%s1761 + $0x588] sm:%s1754]
                  %2118 = vst [vmem:[%s1762 + $0x2c4] sm:%s1754] %v2117
                  %v2119 = vld [vmem:[%s1761 + $0x590] sm:%s1754]
                  %2120 = vst [vmem:[%s1762 + $0x2c8] sm:%s1754] %v2119
                  %v2121 = vld [vmem:[%s1761 + $0x598] sm:%s1754]
                  %2122 = vst [vmem:[%s1762 + $0x2cc] sm:%s1754] %v2121
                  %v2123 = vld [vmem:[%s1761 + $0x5a0] sm:%s1754]
                  %2124 = vst [vmem:[%s1762 + $0x2d0] sm:%s1754] %v2123
                  %v2125 = vld [vmem:[%s1761 + $0x5a8] sm:%s1754]
                  %2126 = vst [vmem:[%s1762 + $0x2d4] sm:%s1754] %v2125
                  %v2127 = vld [vmem:[%s1761 + $0x5b0] sm:%s1754]
                  %2128 = vst [vmem:[%s1762 + $0x2d8] sm:%s1754] %v2127
                  %v2129 = vld [vmem:[%s1761 + $0x5b8] sm:%s1754]
                  %2130 = vst [vmem:[%s1762 + $0x2dc] sm:%s1754] %v2129
                  %v2131 = vld [vmem:[%s1761 + $0x5c0] sm:%s1754]
                  %2132 = vst [vmem:[%s1762 + $0x2e0] sm:%s1754] %v2131
                  %v2133 = vld [vmem:[%s1761 + $0x5c8] sm:%s1754]
                  %2134 = vst [vmem:[%s1762 + $0x2e4] sm:%s1754] %v2133
                  %v2135 = vld [vmem:[%s1761 + $0x5d0] sm:%s1754]
                  %2136 = vst [vmem:[%s1762 + $0x2e8] sm:%s1754] %v2135
                  %v2137 = vld [vmem:[%s1761 + $0x5d8] sm:%s1754]
                  %2138 = vst [vmem:[%s1762 + $0x2ec] sm:%s1754] %v2137
                  %v2139 = vld [vmem:[%s1761 + $0x5e0] sm:%s1754]
                  %2140 = vst [vmem:[%s1762 + $0x2f0] sm:%s1754] %v2139
                  %v2141 = vld [vmem:[%s1761 + $0x5e8] sm:%s1754]
                  %2142 = vst [vmem:[%s1762 + $0x2f4] sm:%s1754] %v2141
                  %v2143 = vld [vmem:[%s1761 + $0x5f0] sm:%s1754]
                  %2144 = vst [vmem:[%s1762 + $0x2f8] sm:%s1754] %v2143
                  %v2145 = vld [vmem:[%s1761 + $0x5f8] sm:%s1754]
                  %2146 = vst [vmem:[%s1762 + $0x2fc] sm:%s1754] %v2145
                  %v2147 = vld [vmem:[%s1761 + $0x600] sm:%s1754]
                  %2148 = vst [vmem:[%s1762 + $0x300] sm:%s1754] %v2147
                  %v2149 = vld [vmem:[%s1761 + $0x608] sm:%s1754]
                  %2150 = vst [vmem:[%s1762 + $0x304] sm:%s1754] %v2149
                  %v2151 = vld [vmem:[%s1761 + $0x610] sm:%s1754]
                  %2152 = vst [vmem:[%s1762 + $0x308] sm:%s1754] %v2151
                  %v2153 = vld [vmem:[%s1761 + $0x618] sm:%s1754]
                  %2154 = vst [vmem:[%s1762 + $0x30c] sm:%s1754] %v2153
                  %v2155 = vld [vmem:[%s1761 + $0x620] sm:%s1754]
                  %2156 = vst [vmem:[%s1762 + $0x310] sm:%s1754] %v2155
                  %v2157 = vld [vmem:[%s1761 + $0x628] sm:%s1754]
                  %2158 = vst [vmem:[%s1762 + $0x314] sm:%s1754] %v2157
                  %v2159 = vld [vmem:[%s1761 + $0x630] sm:%s1754]
                  %2160 = vst [vmem:[%s1762 + $0x318] sm:%s1754] %v2159
                  %v2161 = vld [vmem:[%s1761 + $0x638] sm:%s1754]
                  %2162 = vst [vmem:[%s1762 + $0x31c] sm:%s1754] %v2161
                  %v2163 = vld [vmem:[%s1761 + $0x640] sm:%s1754]
                  %2164 = vst [vmem:[%s1762 + $0x320] sm:%s1754] %v2163
                  %v2165 = vld [vmem:[%s1761 + $0x648] sm:%s1754]
                  %2166 = vst [vmem:[%s1762 + $0x324] sm:%s1754] %v2165
                  %v2167 = vld [vmem:[%s1761 + $0x650] sm:%s1754]
                  %2168 = vst [vmem:[%s1762 + $0x328] sm:%s1754] %v2167
                  %v2169 = vld [vmem:[%s1761 + $0x658] sm:%s1754]
                  %2170 = vst [vmem:[%s1762 + $0x32c] sm:%s1754] %v2169
                  %v2171 = vld [vmem:[%s1761 + $0x660] sm:%s1754]
                  %2172 = vst [vmem:[%s1762 + $0x330] sm:%s1754] %v2171
                  %v2173 = vld [vmem:[%s1761 + $0x668] sm:%s1754]
                  %2174 = vst [vmem:[%s1762 + $0x334] sm:%s1754] %v2173
                  %v2175 = vld [vmem:[%s1761 + $0x670] sm:%s1754]
                  %2176 = vst [vmem:[%s1762 + $0x338] sm:%s1754] %v2175
                  %v2177 = vld [vmem:[%s1761 + $0x678] sm:%s1754]
                  %2178 = vst [vmem:[%s1762 + $0x33c] sm:%s1754] %v2177
                  %v2179 = vld [vmem:[%s1761 + $0x680] sm:%s1754]
                  %2180 = vst [vmem:[%s1762 + $0x340] sm:%s1754] %v2179
                  %v2181 = vld [vmem:[%s1761 + $0x688] sm:%s1754]
                  %2182 = vst [vmem:[%s1762 + $0x344] sm:%s1754] %v2181
                  %v2183 = vld [vmem:[%s1761 + $0x690] sm:%s1754]
                  %2184 = vst [vmem:[%s1762 + $0x348] sm:%s1754] %v2183
                  %v2185 = vld [vmem:[%s1761 + $0x698] sm:%s1754]
                  %2186 = vst [vmem:[%s1762 + $0x34c] sm:%s1754] %v2185
                  %v2187 = vld [vmem:[%s1761 + $0x6a0] sm:%s1754]
                  %2188 = vst [vmem:[%s1762 + $0x350] sm:%s1754] %v2187
                  %v2189 = vld [vmem:[%s1761 + $0x6a8] sm:%s1754]
                  %2190 = vst [vmem:[%s1762 + $0x354] sm:%s1754] %v2189
                  %v2191 = vld [vmem:[%s1761 + $0x6b0] sm:%s1754]
                  %2192 = vst [vmem:[%s1762 + $0x358] sm:%s1754] %v2191
                  %v2193 = vld [vmem:[%s1761 + $0x6b8] sm:%s1754]
                  %2194 = vst [vmem:[%s1762 + $0x35c] sm:%s1754] %v2193
                  %v2195 = vld [vmem:[%s1761 + $0x6c0] sm:%s1754]
                  %2196 = vst [vmem:[%s1762 + $0x360] sm:%s1754] %v2195
                  %v2197 = vld [vmem:[%s1761 + $0x6c8] sm:%s1754]
                  %2198 = vst [vmem:[%s1762 + $0x364] sm:%s1754] %v2197
                  %v2199 = vld [vmem:[%s1761 + $0x6d0] sm:%s1754]
                  %2200 = vst [vmem:[%s1762 + $0x368] sm:%s1754] %v2199
                  %v2201 = vld [vmem:[%s1761 + $0x6d8] sm:%s1754]
                  %2202 = vst [vmem:[%s1762 + $0x36c] sm:%s1754] %v2201
                  %v2203 = vld [vmem:[%s1761 + $0x6e0] sm:%s1754]
                  %2204 = vst [vmem:[%s1762 + $0x370] sm:%s1754] %v2203
                  %v2205 = vld [vmem:[%s1761 + $0x6e8] sm:%s1754]
                  %2206 = vst [vmem:[%s1762 + $0x374] sm:%s1754] %v2205
                  %v2207 = vld [vmem:[%s1761 + $0x6f0] sm:%s1754]
                  %2208 = vst [vmem:[%s1762 + $0x378] sm:%s1754] %v2207
                  %v2209 = vld [vmem:[%s1761 + $0x6f8] sm:%s1754]
                  %2210 = vst [vmem:[%s1762 + $0x37c] sm:%s1754] %v2209
                  %v2211 = vld [vmem:[%s1761 + $0x700] sm:%s1754]
                  %2212 = vst [vmem:[%s1762 + $0x380] sm:%s1754] %v2211
                  %v2213 = vld [vmem:[%s1761 + $0x708] sm:%s1754]
                  %2214 = vst [vmem:[%s1762 + $0x384] sm:%s1754] %v2213
                  %v2215 = vld [vmem:[%s1761 + $0x710] sm:%s1754]
                  %2216 = vst [vmem:[%s1762 + $0x388] sm:%s1754] %v2215
                  %v2217 = vld [vmem:[%s1761 + $0x718] sm:%s1754]
                  %2218 = vst [vmem:[%s1762 + $0x38c] sm:%s1754] %v2217
                  %v2219 = vld [vmem:[%s1761 + $0x720] sm:%s1754]
                  %2220 = vst [vmem:[%s1762 + $0x390] sm:%s1754] %v2219
                  %v2221 = vld [vmem:[%s1761 + $0x728] sm:%s1754]
                  %2222 = vst [vmem:[%s1762 + $0x394] sm:%s1754] %v2221
                  %v2223 = vld [vmem:[%s1761 + $0x730] sm:%s1754]
                  %2224 = vst [vmem:[%s1762 + $0x398] sm:%s1754] %v2223
                  %v2225 = vld [vmem:[%s1761 + $0x738] sm:%s1754]
                  %2226 = vst [vmem:[%s1762 + $0x39c] sm:%s1754] %v2225
                  %v2227 = vld [vmem:[%s1761 + $0x740] sm:%s1754]
                  %2228 = vst [vmem:[%s1762 + $0x3a0] sm:%s1754] %v2227
                  %v2229 = vld [vmem:[%s1761 + $0x748] sm:%s1754]
                  %2230 = vst [vmem:[%s1762 + $0x3a4] sm:%s1754] %v2229
                  %v2231 = vld [vmem:[%s1761 + $0x750] sm:%s1754]
                  %2232 = vst [vmem:[%s1762 + $0x3a8] sm:%s1754] %v2231
                  %v2233 = vld [vmem:[%s1761 + $0x758] sm:%s1754]
                  %2234 = vst [vmem:[%s1762 + $0x3ac] sm:%s1754] %v2233
                  %v2235 = vld [vmem:[%s1761 + $0x760] sm:%s1754]
                  %2236 = vst [vmem:[%s1762 + $0x3b0] sm:%s1754] %v2235
                  %v2237 = vld [vmem:[%s1761 + $0x768] sm:%s1754]
                  %2238 = vst [vmem:[%s1762 + $0x3b4] sm:%s1754] %v2237
                  %v2239 = vld [vmem:[%s1761 + $0x770] sm:%s1754]
                  %2240 = vst [vmem:[%s1762 + $0x3b8] sm:%s1754] %v2239
                  %v2241 = vld [vmem:[%s1761 + $0x778] sm:%s1754]
                  %2242 = vst [vmem:[%s1762 + $0x3bc] sm:%s1754] %v2241
                  %v2243 = vld [vmem:[%s1761 + $0x780] sm:%s1754]
                  %2244 = vst [vmem:[%s1762 + $0x3c0] sm:%s1754] %v2243
                  %v2245 = vld [vmem:[%s1761 + $0x788] sm:%s1754]
                  %2246 = vst [vmem:[%s1762 + $0x3c4] sm:%s1754] %v2245
                  %v2247 = vld [vmem:[%s1761 + $0x790] sm:%s1754]
                  %2248 = vst [vmem:[%s1762 + $0x3c8] sm:%s1754] %v2247
                  %v2249 = vld [vmem:[%s1761 + $0x798] sm:%s1754]
                  %2250 = vst [vmem:[%s1762 + $0x3cc] sm:%s1754] %v2249
                  %v2251 = vld [vmem:[%s1761 + $0x7a0] sm:%s1754]
                  %2252 = vst [vmem:[%s1762 + $0x3d0] sm:%s1754] %v2251
                  %v2253 = vld [vmem:[%s1761 + $0x7a8] sm:%s1754]
                  %2254 = vst [vmem:[%s1762 + $0x3d4] sm:%s1754] %v2253
                  %v2255 = vld [vmem:[%s1761 + $0x7b0] sm:%s1754]
                  %2256 = vst [vmem:[%s1762 + $0x3d8] sm:%s1754] %v2255
                  %v2257 = vld [vmem:[%s1761 + $0x7b8] sm:%s1754]
                  %2258 = vst [vmem:[%s1762 + $0x3dc] sm:%s1754] %v2257
                  %v2259 = vld [vmem:[%s1761 + $0x7c0] sm:%s1754]
                  %2260 = vst [vmem:[%s1762 + $0x3e0] sm:%s1754] %v2259
                  %v2261 = vld [vmem:[%s1761 + $0x7c8] sm:%s1754]
                  %2262 = vst [vmem:[%s1762 + $0x3e4] sm:%s1754] %v2261
                  %v2263 = vld [vmem:[%s1761 + $0x7d0] sm:%s1754]
                  %2264 = vst [vmem:[%s1762 + $0x3e8] sm:%s1754] %v2263
                  %v2265 = vld [vmem:[%s1761 + $0x7d8] sm:%s1754]
                  %2266 = vst [vmem:[%s1762 + $0x3ec] sm:%s1754] %v2265
                  %v2267 = vld [vmem:[%s1761 + $0x7e0] sm:%s1754]
                  %2268 = vst [vmem:[%s1762 + $0x3f0] sm:%s1754] %v2267
                  %v2269 = vld [vmem:[%s1761 + $0x7e8] sm:%s1754]
                  %2270 = vst [vmem:[%s1762 + $0x3f4] sm:%s1754] %v2269
                  %v2271 = vld [vmem:[%s1761 + $0x7f0] sm:%s1754]
                  %2272 = vst [vmem:[%s1762 + $0x3f8] sm:%s1754] %v2271
                  %v2273 = vld [vmem:[%s1761 + $0x7f8] sm:%s1754]
                  %2274 = vst [vmem:[%s1762 + $0x3fc] sm:%s1754] %v2273
                $region70: #{forward.12} parent=57 // loop_footer
                  %s1760 = sadd.s32 1, %s1756
                $region71: #{forward.12} parent=57 // loop_footer_branch
                  %1755 = sbr.rel target = $region67
                $region72: #{forward.12} parent=57 // loop_exit
                  _
              $region58: #{forward.12} parent=31 // pred_fallthru
                _
            $region32: #{forward.12} parent=27 // pred_fallthru
              _
            // Predicated region
            $region33: #{forward.12} parent=27 // pred_check
              _
            $region34: #{forward.12} parent=27 // pred_check_branch
              %170 = sbr.rel (0) target = $region36
            $region35: #{forward.12} parent=27 // pred_region
              %s172 = ssub.s32 16, 1
              loop: start=0, step=1, limit=1
              $region37: #{forward.12} parent=35 // loop_pre_header
                _
              $region38: #{forward.12} parent=35 // loop_header
                %s174 = sphi 0, %s178
                %p175 = scmp.ge.s32.totalorder %s174, 1
                %s179 = sphi %s164, %s164
                %s180 = sphi %s162, %s162
              $region39: #{forward.12} parent=35 // loop_header_branch
                %177 = sbr.rel (%p175) target = $region43
              $region40: #{forward.12} parent=35 // loop_body
                %v181 = vld [vmem:[%s179] sm:%s172]
                %182 = vst [vmem:[%s180] sm:%s172] %v181
                %v183 = vld [vmem:[%s179 + $0x8] sm:%s172]
                %184 = vst [vmem:[%s180 + $0x4] sm:%s172] %v183
                %v185 = vld [vmem:[%s179 + $0x10] sm:%s172]
                %186 = vst [vmem:[%s180 + $0x8] sm:%s172] %v185
                %v187 = vld [vmem:[%s179 + $0x18] sm:%s172]
                %188 = vst [vmem:[%s180 + $0xc] sm:%s172] %v187
                %v189 = vld [vmem:[%s179 + $0x20] sm:%s172]
                %190 = vst [vmem:[%s180 + $0x10] sm:%s172] %v189
                %v191 = vld [vmem:[%s179 + $0x28] sm:%s172]
                %192 = vst [vmem:[%s180 + $0x14] sm:%s172] %v191
                %v193 = vld [vmem:[%s179 + $0x30] sm:%s172]
                %194 = vst [vmem:[%s180 + $0x18] sm:%s172] %v193
                %v195 = vld [vmem:[%s179 + $0x38] sm:%s172]
                %196 = vst [vmem:[%s180 + $0x1c] sm:%s172] %v195
                %v197 = vld [vmem:[%s179 + $0x40] sm:%s172]
                %198 = vst [vmem:[%s180 + $0x20] sm:%s172] %v197
                %v199 = vld [vmem:[%s179 + $0x48] sm:%s172]
                %200 = vst [vmem:[%s180 + $0x24] sm:%s172] %v199
                %v201 = vld [vmem:[%s179 + $0x50] sm:%s172]
                %202 = vst [vmem:[%s180 + $0x28] sm:%s172] %v201
                %v203 = vld [vmem:[%s179 + $0x58] sm:%s172]
                %204 = vst [vmem:[%s180 + $0x2c] sm:%s172] %v203
                %v205 = vld [vmem:[%s179 + $0x60] sm:%s172]
                %206 = vst [vmem:[%s180 + $0x30] sm:%s172] %v205
                %v207 = vld [vmem:[%s179 + $0x68] sm:%s172]
                %208 = vst [vmem:[%s180 + $0x34] sm:%s172] %v207
                %v209 = vld [vmem:[%s179 + $0x70] sm:%s172]
                %210 = vst [vmem:[%s180 + $0x38] sm:%s172] %v209
                %v211 = vld [vmem:[%s179 + $0x78] sm:%s172]
                %212 = vst [vmem:[%s180 + $0x3c] sm:%s172] %v211
                %v213 = vld [vmem:[%s179 + $0x80] sm:%s172]
                %214 = vst [vmem:[%s180 + $0x40] sm:%s172] %v213
                %v215 = vld [vmem:[%s179 + $0x88] sm:%s172]
                %216 = vst [vmem:[%s180 + $0x44] sm:%s172] %v215
                %v217 = vld [vmem:[%s179 + $0x90] sm:%s172]
                %218 = vst [vmem:[%s180 + $0x48] sm:%s172] %v217
                %v219 = vld [vmem:[%s179 + $0x98] sm:%s172]
                %220 = vst [vmem:[%s180 + $0x4c] sm:%s172] %v219
                %v221 = vld [vmem:[%s179 + $0xa0] sm:%s172]
                %222 = vst [vmem:[%s180 + $0x50] sm:%s172] %v221
                %v223 = vld [vmem:[%s179 + $0xa8] sm:%s172]
                %224 = vst [vmem:[%s180 + $0x54] sm:%s172] %v223
                %v225 = vld [vmem:[%s179 + $0xb0] sm:%s172]
                %226 = vst [vmem:[%s180 + $0x58] sm:%s172] %v225
                %v227 = vld [vmem:[%s179 + $0xb8] sm:%s172]
                %228 = vst [vmem:[%s180 + $0x5c] sm:%s172] %v227
                %v229 = vld [vmem:[%s179 + $0xc0] sm:%s172]
                %230 = vst [vmem:[%s180 + $0x60] sm:%s172] %v229
                %v231 = vld [vmem:[%s179 + $0xc8] sm:%s172]
                %232 = vst [vmem:[%s180 + $0x64] sm:%s172] %v231
                %v233 = vld [vmem:[%s179 + $0xd0] sm:%s172]
                %234 = vst [vmem:[%s180 + $0x68] sm:%s172] %v233
                %v235 = vld [vmem:[%s179 + $0xd8] sm:%s172]
                %236 = vst [vmem:[%s180 + $0x6c] sm:%s172] %v235
                %v237 = vld [vmem:[%s179 + $0xe0] sm:%s172]
                %238 = vst [vmem:[%s180 + $0x70] sm:%s172] %v237
                %v239 = vld [vmem:[%s179 + $0xe8] sm:%s172]
                %240 = vst [vmem:[%s180 + $0x74] sm:%s172] %v239
                %v241 = vld [vmem:[%s179 + $0xf0] sm:%s172]
                %242 = vst [vmem:[%s180 + $0x78] sm:%s172] %v241
                %v243 = vld [vmem:[%s179 + $0xf8] sm:%s172]
                %244 = vst [vmem:[%s180 + $0x7c] sm:%s172] %v243
                %v245 = vld [vmem:[%s179 + $0x100] sm:%s172]
                %246 = vst [vmem:[%s180 + $0x80] sm:%s172] %v245
                %v247 = vld [vmem:[%s179 + $0x108] sm:%s172]
                %248 = vst [vmem:[%s180 + $0x84] sm:%s172] %v247
                %v249 = vld [vmem:[%s179 + $0x110] sm:%s172]
                %250 = vst [vmem:[%s180 + $0x88] sm:%s172] %v249
                %v251 = vld [vmem:[%s179 + $0x118] sm:%s172]
                %252 = vst [vmem:[%s180 + $0x8c] sm:%s172] %v251
                %v253 = vld [vmem:[%s179 + $0x120] sm:%s172]
                %254 = vst [vmem:[%s180 + $0x90] sm:%s172] %v253
                %v255 = vld [vmem:[%s179 + $0x128] sm:%s172]
                %256 = vst [vmem:[%s180 + $0x94] sm:%s172] %v255
                %v257 = vld [vmem:[%s179 + $0x130] sm:%s172]
                %258 = vst [vmem:[%s180 + $0x98] sm:%s172] %v257
                %v259 = vld [vmem:[%s179 + $0x138] sm:%s172]
                %260 = vst [vmem:[%s180 + $0x9c] sm:%s172] %v259
                %v261 = vld [vmem:[%s179 + $0x140] sm:%s172]
                %262 = vst [vmem:[%s180 + $0xa0] sm:%s172] %v261
                %v263 = vld [vmem:[%s179 + $0x148] sm:%s172]
                %264 = vst [vmem:[%s180 + $0xa4] sm:%s172] %v263
                %v265 = vld [vmem:[%s179 + $0x150] sm:%s172]
                %266 = vst [vmem:[%s180 + $0xa8] sm:%s172] %v265
                %v267 = vld [vmem:[%s179 + $0x158] sm:%s172]
                %268 = vst [vmem:[%s180 + $0xac] sm:%s172] %v267
                %v269 = vld [vmem:[%s179 + $0x160] sm:%s172]
                %270 = vst [vmem:[%s180 + $0xb0] sm:%s172] %v269
                %v271 = vld [vmem:[%s179 + $0x168] sm:%s172]
                %272 = vst [vmem:[%s180 + $0xb4] sm:%s172] %v271
                %v273 = vld [vmem:[%s179 + $0x170] sm:%s172]
                %274 = vst [vmem:[%s180 + $0xb8] sm:%s172] %v273
                %v275 = vld [vmem:[%s179 + $0x178] sm:%s172]
                %276 = vst [vmem:[%s180 + $0xbc] sm:%s172] %v275
                %v277 = vld [vmem:[%s179 + $0x180] sm:%s172]
                %278 = vst [vmem:[%s180 + $0xc0] sm:%s172] %v277
                %v279 = vld [vmem:[%s179 + $0x188] sm:%s172]
                %280 = vst [vmem:[%s180 + $0xc4] sm:%s172] %v279
                %v281 = vld [vmem:[%s179 + $0x190] sm:%s172]
                %282 = vst [vmem:[%s180 + $0xc8] sm:%s172] %v281
                %v283 = vld [vmem:[%s179 + $0x198] sm:%s172]
                %284 = vst [vmem:[%s180 + $0xcc] sm:%s172] %v283
                %v285 = vld [vmem:[%s179 + $0x1a0] sm:%s172]
                %286 = vst [vmem:[%s180 + $0xd0] sm:%s172] %v285
                %v287 = vld [vmem:[%s179 + $0x1a8] sm:%s172]
                %288 = vst [vmem:[%s180 + $0xd4] sm:%s172] %v287
                %v289 = vld [vmem:[%s179 + $0x1b0] sm:%s172]
                %290 = vst [vmem:[%s180 + $0xd8] sm:%s172] %v289
                %v291 = vld [vmem:[%s179 + $0x1b8] sm:%s172]
                %292 = vst [vmem:[%s180 + $0xdc] sm:%s172] %v291
                %v293 = vld [vmem:[%s179 + $0x1c0] sm:%s172]
                %294 = vst [vmem:[%s180 + $0xe0] sm:%s172] %v293
                %v295 = vld [vmem:[%s179 + $0x1c8] sm:%s172]
                %296 = vst [vmem:[%s180 + $0xe4] sm:%s172] %v295
                %v297 = vld [vmem:[%s179 + $0x1d0] sm:%s172]
                %298 = vst [vmem:[%s180 + $0xe8] sm:%s172] %v297
                %v299 = vld [vmem:[%s179 + $0x1d8] sm:%s172]
                %300 = vst [vmem:[%s180 + $0xec] sm:%s172] %v299
                %v301 = vld [vmem:[%s179 + $0x1e0] sm:%s172]
                %302 = vst [vmem:[%s180 + $0xf0] sm:%s172] %v301
                %v303 = vld [vmem:[%s179 + $0x1e8] sm:%s172]
                %304 = vst [vmem:[%s180 + $0xf4] sm:%s172] %v303
                %v305 = vld [vmem:[%s179 + $0x1f0] sm:%s172]
                %306 = vst [vmem:[%s180 + $0xf8] sm:%s172] %v305
                %v307 = vld [vmem:[%s179 + $0x1f8] sm:%s172]
                %308 = vst [vmem:[%s180 + $0xfc] sm:%s172] %v307
                %v309 = vld [vmem:[%s179 + $0x200] sm:%s172]
                %310 = vst [vmem:[%s180 + $0x100] sm:%s172] %v309
                %v311 = vld [vmem:[%s179 + $0x208] sm:%s172]
                %312 = vst [vmem:[%s180 + $0x104] sm:%s172] %v311
                %v313 = vld [vmem:[%s179 + $0x210] sm:%s172]
                %314 = vst [vmem:[%s180 + $0x108] sm:%s172] %v313
                %v315 = vld [vmem:[%s179 + $0x218] sm:%s172]
                %316 = vst [vmem:[%s180 + $0x10c] sm:%s172] %v315
                %v317 = vld [vmem:[%s179 + $0x220] sm:%s172]
                %318 = vst [vmem:[%s180 + $0x110] sm:%s172] %v317
                %v319 = vld [vmem:[%s179 + $0x228] sm:%s172]
                %320 = vst [vmem:[%s180 + $0x114] sm:%s172] %v319
                %v321 = vld [vmem:[%s179 + $0x230] sm:%s172]
                %322 = vst [vmem:[%s180 + $0x118] sm:%s172] %v321
                %v323 = vld [vmem:[%s179 + $0x238] sm:%s172]
                %324 = vst [vmem:[%s180 + $0x11c] sm:%s172] %v323
                %v325 = vld [vmem:[%s179 + $0x240] sm:%s172]
                %326 = vst [vmem:[%s180 + $0x120] sm:%s172] %v325
                %v327 = vld [vmem:[%s179 + $0x248] sm:%s172]
                %328 = vst [vmem:[%s180 + $0x124] sm:%s172] %v327
                %v329 = vld [vmem:[%s179 + $0x250] sm:%s172]
                %330 = vst [vmem:[%s180 + $0x128] sm:%s172] %v329
                %v331 = vld [vmem:[%s179 + $0x258] sm:%s172]
                %332 = vst [vmem:[%s180 + $0x12c] sm:%s172] %v331
                %v333 = vld [vmem:[%s179 + $0x260] sm:%s172]
                %334 = vst [vmem:[%s180 + $0x130] sm:%s172] %v333
                %v335 = vld [vmem:[%s179 + $0x268] sm:%s172]
                %336 = vst [vmem:[%s180 + $0x134] sm:%s172] %v335
                %v337 = vld [vmem:[%s179 + $0x270] sm:%s172]
                %338 = vst [vmem:[%s180 + $0x138] sm:%s172] %v337
                %v339 = vld [vmem:[%s179 + $0x278] sm:%s172]
                %340 = vst [vmem:[%s180 + $0x13c] sm:%s172] %v339
                %v341 = vld [vmem:[%s179 + $0x280] sm:%s172]
                %342 = vst [vmem:[%s180 + $0x140] sm:%s172] %v341
                %v343 = vld [vmem:[%s179 + $0x288] sm:%s172]
                %344 = vst [vmem:[%s180 + $0x144] sm:%s172] %v343
                %v345 = vld [vmem:[%s179 + $0x290] sm:%s172]
                %346 = vst [vmem:[%s180 + $0x148] sm:%s172] %v345
                %v347 = vld [vmem:[%s179 + $0x298] sm:%s172]
                %348 = vst [vmem:[%s180 + $0x14c] sm:%s172] %v347
                %v349 = vld [vmem:[%s179 + $0x2a0] sm:%s172]
                %350 = vst [vmem:[%s180 + $0x150] sm:%s172] %v349
                %v351 = vld [vmem:[%s179 + $0x2a8] sm:%s172]
                %352 = vst [vmem:[%s180 + $0x154] sm:%s172] %v351
                %v353 = vld [vmem:[%s179 + $0x2b0] sm:%s172]
                %354 = vst [vmem:[%s180 + $0x158] sm:%s172] %v353
                %v355 = vld [vmem:[%s179 + $0x2b8] sm:%s172]
                %356 = vst [vmem:[%s180 + $0x15c] sm:%s172] %v355
                %v357 = vld [vmem:[%s179 + $0x2c0] sm:%s172]
                %358 = vst [vmem:[%s180 + $0x160] sm:%s172] %v357
                %v359 = vld [vmem:[%s179 + $0x2c8] sm:%s172]
                %360 = vst [vmem:[%s180 + $0x164] sm:%s172] %v359
                %v361 = vld [vmem:[%s179 + $0x2d0] sm:%s172]
                %362 = vst [vmem:[%s180 + $0x168] sm:%s172] %v361
                %v363 = vld [vmem:[%s179 + $0x2d8] sm:%s172]
                %364 = vst [vmem:[%s180 + $0x16c] sm:%s172] %v363
                %v365 = vld [vmem:[%s179 + $0x2e0] sm:%s172]
                %366 = vst [vmem:[%s180 + $0x170] sm:%s172] %v365
                %v367 = vld [vmem:[%s179 + $0x2e8] sm:%s172]
                %368 = vst [vmem:[%s180 + $0x174] sm:%s172] %v367
                %v369 = vld [vmem:[%s179 + $0x2f0] sm:%s172]
                %370 = vst [vmem:[%s180 + $0x178] sm:%s172] %v369
                %v371 = vld [vmem:[%s179 + $0x2f8] sm:%s172]
                %372 = vst [vmem:[%s180 + $0x17c] sm:%s172] %v371
                %v373 = vld [vmem:[%s179 + $0x300] sm:%s172]
                %374 = vst [vmem:[%s180 + $0x180] sm:%s172] %v373
                %v375 = vld [vmem:[%s179 + $0x308] sm:%s172]
                %376 = vst [vmem:[%s180 + $0x184] sm:%s172] %v375
                %v377 = vld [vmem:[%s179 + $0x310] sm:%s172]
                %378 = vst [vmem:[%s180 + $0x188] sm:%s172] %v377
                %v379 = vld [vmem:[%s179 + $0x318] sm:%s172]
                %380 = vst [vmem:[%s180 + $0x18c] sm:%s172] %v379
                %v381 = vld [vmem:[%s179 + $0x320] sm:%s172]
                %382 = vst [vmem:[%s180 + $0x190] sm:%s172] %v381
                %v383 = vld [vmem:[%s179 + $0x328] sm:%s172]
                %384 = vst [vmem:[%s180 + $0x194] sm:%s172] %v383
                %v385 = vld [vmem:[%s179 + $0x330] sm:%s172]
                %386 = vst [vmem:[%s180 + $0x198] sm:%s172] %v385
                %v387 = vld [vmem:[%s179 + $0x338] sm:%s172]
                %388 = vst [vmem:[%s180 + $0x19c] sm:%s172] %v387
                %v389 = vld [vmem:[%s179 + $0x340] sm:%s172]
                %390 = vst [vmem:[%s180 + $0x1a0] sm:%s172] %v389
                %v391 = vld [vmem:[%s179 + $0x348] sm:%s172]
                %392 = vst [vmem:[%s180 + $0x1a4] sm:%s172] %v391
                %v393 = vld [vmem:[%s179 + $0x350] sm:%s172]
                %394 = vst [vmem:[%s180 + $0x1a8] sm:%s172] %v393
                %v395 = vld [vmem:[%s179 + $0x358] sm:%s172]
                %396 = vst [vmem:[%s180 + $0x1ac] sm:%s172] %v395
                %v397 = vld [vmem:[%s179 + $0x360] sm:%s172]
                %398 = vst [vmem:[%s180 + $0x1b0] sm:%s172] %v397
                %v399 = vld [vmem:[%s179 + $0x368] sm:%s172]
                %400 = vst [vmem:[%s180 + $0x1b4] sm:%s172] %v399
                %v401 = vld [vmem:[%s179 + $0x370] sm:%s172]
                %402 = vst [vmem:[%s180 + $0x1b8] sm:%s172] %v401
                %v403 = vld [vmem:[%s179 + $0x378] sm:%s172]
                %404 = vst [vmem:[%s180 + $0x1bc] sm:%s172] %v403
                %v405 = vld [vmem:[%s179 + $0x380] sm:%s172]
                %406 = vst [vmem:[%s180 + $0x1c0] sm:%s172] %v405
                %v407 = vld [vmem:[%s179 + $0x388] sm:%s172]
                %408 = vst [vmem:[%s180 + $0x1c4] sm:%s172] %v407
                %v409 = vld [vmem:[%s179 + $0x390] sm:%s172]
                %410 = vst [vmem:[%s180 + $0x1c8] sm:%s172] %v409
                %v411 = vld [vmem:[%s179 + $0x398] sm:%s172]
                %412 = vst [vmem:[%s180 + $0x1cc] sm:%s172] %v411
                %v413 = vld [vmem:[%s179 + $0x3a0] sm:%s172]
                %414 = vst [vmem:[%s180 + $0x1d0] sm:%s172] %v413
                %v415 = vld [vmem:[%s179 + $0x3a8] sm:%s172]
                %416 = vst [vmem:[%s180 + $0x1d4] sm:%s172] %v415
                %v417 = vld [vmem:[%s179 + $0x3b0] sm:%s172]
                %418 = vst [vmem:[%s180 + $0x1d8] sm:%s172] %v417
                %v419 = vld [vmem:[%s179 + $0x3b8] sm:%s172]
                %420 = vst [vmem:[%s180 + $0x1dc] sm:%s172] %v419
                %v421 = vld [vmem:[%s179 + $0x3c0] sm:%s172]
                %422 = vst [vmem:[%s180 + $0x1e0] sm:%s172] %v421
                %v423 = vld [vmem:[%s179 + $0x3c8] sm:%s172]
                %424 = vst [vmem:[%s180 + $0x1e4] sm:%s172] %v423
                %v425 = vld [vmem:[%s179 + $0x3d0] sm:%s172]
                %426 = vst [vmem:[%s180 + $0x1e8] sm:%s172] %v425
                %v427 = vld [vmem:[%s179 + $0x3d8] sm:%s172]
                %428 = vst [vmem:[%s180 + $0x1ec] sm:%s172] %v427
                %v429 = vld [vmem:[%s179 + $0x3e0] sm:%s172]
                %430 = vst [vmem:[%s180 + $0x1f0] sm:%s172] %v429
                %v431 = vld [vmem:[%s179 + $0x3e8] sm:%s172]
                %432 = vst [vmem:[%s180 + $0x1f4] sm:%s172] %v431
                %v433 = vld [vmem:[%s179 + $0x3f0] sm:%s172]
                %434 = vst [vmem:[%s180 + $0x1f8] sm:%s172] %v433
                %v435 = vld [vmem:[%s179 + $0x3f8] sm:%s172]
                %436 = vst [vmem:[%s180 + $0x1fc] sm:%s172] %v435
                %v437 = vld [vmem:[%s179 + $0x400] sm:%s172]
                %438 = vst [vmem:[%s180 + $0x200] sm:%s172] %v437
                %v439 = vld [vmem:[%s179 + $0x408] sm:%s172]
                %440 = vst [vmem:[%s180 + $0x204] sm:%s172] %v439
                %v441 = vld [vmem:[%s179 + $0x410] sm:%s172]
                %442 = vst [vmem:[%s180 + $0x208] sm:%s172] %v441
                %v443 = vld [vmem:[%s179 + $0x418] sm:%s172]
                %444 = vst [vmem:[%s180 + $0x20c] sm:%s172] %v443
                %v445 = vld [vmem:[%s179 + $0x420] sm:%s172]
                %446 = vst [vmem:[%s180 + $0x210] sm:%s172] %v445
                %v447 = vld [vmem:[%s179 + $0x428] sm:%s172]
                %448 = vst [vmem:[%s180 + $0x214] sm:%s172] %v447
                %v449 = vld [vmem:[%s179 + $0x430] sm:%s172]
                %450 = vst [vmem:[%s180 + $0x218] sm:%s172] %v449
                %v451 = vld [vmem:[%s179 + $0x438] sm:%s172]
                %452 = vst [vmem:[%s180 + $0x21c] sm:%s172] %v451
                %v453 = vld [vmem:[%s179 + $0x440] sm:%s172]
                %454 = vst [vmem:[%s180 + $0x220] sm:%s172] %v453
                %v455 = vld [vmem:[%s179 + $0x448] sm:%s172]
                %456 = vst [vmem:[%s180 + $0x224] sm:%s172] %v455
                %v457 = vld [vmem:[%s179 + $0x450] sm:%s172]
                %458 = vst [vmem:[%s180 + $0x228] sm:%s172] %v457
                %v459 = vld [vmem:[%s179 + $0x458] sm:%s172]
                %460 = vst [vmem:[%s180 + $0x22c] sm:%s172] %v459
                %v461 = vld [vmem:[%s179 + $0x460] sm:%s172]
                %462 = vst [vmem:[%s180 + $0x230] sm:%s172] %v461
                %v463 = vld [vmem:[%s179 + $0x468] sm:%s172]
                %464 = vst [vmem:[%s180 + $0x234] sm:%s172] %v463
                %v465 = vld [vmem:[%s179 + $0x470] sm:%s172]
                %466 = vst [vmem:[%s180 + $0x238] sm:%s172] %v465
                %v467 = vld [vmem:[%s179 + $0x478] sm:%s172]
                %468 = vst [vmem:[%s180 + $0x23c] sm:%s172] %v467
                %v469 = vld [vmem:[%s179 + $0x480] sm:%s172]
                %470 = vst [vmem:[%s180 + $0x240] sm:%s172] %v469
                %v471 = vld [vmem:[%s179 + $0x488] sm:%s172]
                %472 = vst [vmem:[%s180 + $0x244] sm:%s172] %v471
                %v473 = vld [vmem:[%s179 + $0x490] sm:%s172]
                %474 = vst [vmem:[%s180 + $0x248] sm:%s172] %v473
                %v475 = vld [vmem:[%s179 + $0x498] sm:%s172]
                %476 = vst [vmem:[%s180 + $0x24c] sm:%s172] %v475
                %v477 = vld [vmem:[%s179 + $0x4a0] sm:%s172]
                %478 = vst [vmem:[%s180 + $0x250] sm:%s172] %v477
                %v479 = vld [vmem:[%s179 + $0x4a8] sm:%s172]
                %480 = vst [vmem:[%s180 + $0x254] sm:%s172] %v479
                %v481 = vld [vmem:[%s179 + $0x4b0] sm:%s172]
                %482 = vst [vmem:[%s180 + $0x258] sm:%s172] %v481
                %v483 = vld [vmem:[%s179 + $0x4b8] sm:%s172]
                %484 = vst [vmem:[%s180 + $0x25c] sm:%s172] %v483
                %v485 = vld [vmem:[%s179 + $0x4c0] sm:%s172]
                %486 = vst [vmem:[%s180 + $0x260] sm:%s172] %v485
                %v487 = vld [vmem:[%s179 + $0x4c8] sm:%s172]
                %488 = vst [vmem:[%s180 + $0x264] sm:%s172] %v487
                %v489 = vld [vmem:[%s179 + $0x4d0] sm:%s172]
                %490 = vst [vmem:[%s180 + $0x268] sm:%s172] %v489
                %v491 = vld [vmem:[%s179 + $0x4d8] sm:%s172]
                %492 = vst [vmem:[%s180 + $0x26c] sm:%s172] %v491
                %v493 = vld [vmem:[%s179 + $0x4e0] sm:%s172]
                %494 = vst [vmem:[%s180 + $0x270] sm:%s172] %v493
                %v495 = vld [vmem:[%s179 + $0x4e8] sm:%s172]
                %496 = vst [vmem:[%s180 + $0x274] sm:%s172] %v495
                %v497 = vld [vmem:[%s179 + $0x4f0] sm:%s172]
                %498 = vst [vmem:[%s180 + $0x278] sm:%s172] %v497
                %v499 = vld [vmem:[%s179 + $0x4f8] sm:%s172]
                %500 = vst [vmem:[%s180 + $0x27c] sm:%s172] %v499
                %v501 = vld [vmem:[%s179 + $0x500] sm:%s172]
                %502 = vst [vmem:[%s180 + $0x280] sm:%s172] %v501
                %v503 = vld [vmem:[%s179 + $0x508] sm:%s172]
                %504 = vst [vmem:[%s180 + $0x284] sm:%s172] %v503
                %v505 = vld [vmem:[%s179 + $0x510] sm:%s172]
                %506 = vst [vmem:[%s180 + $0x288] sm:%s172] %v505
                %v507 = vld [vmem:[%s179 + $0x518] sm:%s172]
                %508 = vst [vmem:[%s180 + $0x28c] sm:%s172] %v507
                %v509 = vld [vmem:[%s179 + $0x520] sm:%s172]
                %510 = vst [vmem:[%s180 + $0x290] sm:%s172] %v509
                %v511 = vld [vmem:[%s179 + $0x528] sm:%s172]
                %512 = vst [vmem:[%s180 + $0x294] sm:%s172] %v511
                %v513 = vld [vmem:[%s179 + $0x530] sm:%s172]
                %514 = vst [vmem:[%s180 + $0x298] sm:%s172] %v513
                %v515 = vld [vmem:[%s179 + $0x538] sm:%s172]
                %516 = vst [vmem:[%s180 + $0x29c] sm:%s172] %v515
                %v517 = vld [vmem:[%s179 + $0x540] sm:%s172]
                %518 = vst [vmem:[%s180 + $0x2a0] sm:%s172] %v517
                %v519 = vld [vmem:[%s179 + $0x548] sm:%s172]
                %520 = vst [vmem:[%s180 + $0x2a4] sm:%s172] %v519
                %v521 = vld [vmem:[%s179 + $0x550] sm:%s172]
                %522 = vst [vmem:[%s180 + $0x2a8] sm:%s172] %v521
                %v523 = vld [vmem:[%s179 + $0x558] sm:%s172]
                %524 = vst [vmem:[%s180 + $0x2ac] sm:%s172] %v523
                %v525 = vld [vmem:[%s179 + $0x560] sm:%s172]
                %526 = vst [vmem:[%s180 + $0x2b0] sm:%s172] %v525
                %v527 = vld [vmem:[%s179 + $0x568] sm:%s172]
                %528 = vst [vmem:[%s180 + $0x2b4] sm:%s172] %v527
                %v529 = vld [vmem:[%s179 + $0x570] sm:%s172]
                %530 = vst [vmem:[%s180 + $0x2b8] sm:%s172] %v529
                %v531 = vld [vmem:[%s179 + $0x578] sm:%s172]
                %532 = vst [vmem:[%s180 + $0x2bc] sm:%s172] %v531
                %v533 = vld [vmem:[%s179 + $0x580] sm:%s172]
                %534 = vst [vmem:[%s180 + $0x2c0] sm:%s172] %v533
                %v535 = vld [vmem:[%s179 + $0x588] sm:%s172]
                %536 = vst [vmem:[%s180 + $0x2c4] sm:%s172] %v535
                %v537 = vld [vmem:[%s179 + $0x590] sm:%s172]
                %538 = vst [vmem:[%s180 + $0x2c8] sm:%s172] %v537
                %v539 = vld [vmem:[%s179 + $0x598] sm:%s172]
                %540 = vst [vmem:[%s180 + $0x2cc] sm:%s172] %v539
                %v541 = vld [vmem:[%s179 + $0x5a0] sm:%s172]
                %542 = vst [vmem:[%s180 + $0x2d0] sm:%s172] %v541
                %v543 = vld [vmem:[%s179 + $0x5a8] sm:%s172]
                %544 = vst [vmem:[%s180 + $0x2d4] sm:%s172] %v543
                %v545 = vld [vmem:[%s179 + $0x5b0] sm:%s172]
                %546 = vst [vmem:[%s180 + $0x2d8] sm:%s172] %v545
                %v547 = vld [vmem:[%s179 + $0x5b8] sm:%s172]
                %548 = vst [vmem:[%s180 + $0x2dc] sm:%s172] %v547
                %v549 = vld [vmem:[%s179 + $0x5c0] sm:%s172]
                %550 = vst [vmem:[%s180 + $0x2e0] sm:%s172] %v549
                %v551 = vld [vmem:[%s179 + $0x5c8] sm:%s172]
                %552 = vst [vmem:[%s180 + $0x2e4] sm:%s172] %v551
                %v553 = vld [vmem:[%s179 + $0x5d0] sm:%s172]
                %554 = vst [vmem:[%s180 + $0x2e8] sm:%s172] %v553
                %v555 = vld [vmem:[%s179 + $0x5d8] sm:%s172]
                %556 = vst [vmem:[%s180 + $0x2ec] sm:%s172] %v555
                %v557 = vld [vmem:[%s179 + $0x5e0] sm:%s172]
                %558 = vst [vmem:[%s180 + $0x2f0] sm:%s172] %v557
                %v559 = vld [vmem:[%s179 + $0x5e8] sm:%s172]
                %560 = vst [vmem:[%s180 + $0x2f4] sm:%s172] %v559
                %v561 = vld [vmem:[%s179 + $0x5f0] sm:%s172]
                %562 = vst [vmem:[%s180 + $0x2f8] sm:%s172] %v561
                %v563 = vld [vmem:[%s179 + $0x5f8] sm:%s172]
                %564 = vst [vmem:[%s180 + $0x2fc] sm:%s172] %v563
                %v565 = vld [vmem:[%s179 + $0x600] sm:%s172]
                %566 = vst [vmem:[%s180 + $0x300] sm:%s172] %v565
                %v567 = vld [vmem:[%s179 + $0x608] sm:%s172]
                %568 = vst [vmem:[%s180 + $0x304] sm:%s172] %v567
                %v569 = vld [vmem:[%s179 + $0x610] sm:%s172]
                %570 = vst [vmem:[%s180 + $0x308] sm:%s172] %v569
                %v571 = vld [vmem:[%s179 + $0x618] sm:%s172]
                %572 = vst [vmem:[%s180 + $0x30c] sm:%s172] %v571
                %v573 = vld [vmem:[%s179 + $0x620] sm:%s172]
                %574 = vst [vmem:[%s180 + $0x310] sm:%s172] %v573
                %v575 = vld [vmem:[%s179 + $0x628] sm:%s172]
                %576 = vst [vmem:[%s180 + $0x314] sm:%s172] %v575
                %v577 = vld [vmem:[%s179 + $0x630] sm:%s172]
                %578 = vst [vmem:[%s180 + $0x318] sm:%s172] %v577
                %v579 = vld [vmem:[%s179 + $0x638] sm:%s172]
                %580 = vst [vmem:[%s180 + $0x31c] sm:%s172] %v579
                %v581 = vld [vmem:[%s179 + $0x640] sm:%s172]
                %582 = vst [vmem:[%s180 + $0x320] sm:%s172] %v581
                %v583 = vld [vmem:[%s179 + $0x648] sm:%s172]
                %584 = vst [vmem:[%s180 + $0x324] sm:%s172] %v583
                %v585 = vld [vmem:[%s179 + $0x650] sm:%s172]
                %586 = vst [vmem:[%s180 + $0x328] sm:%s172] %v585
                %v587 = vld [vmem:[%s179 + $0x658] sm:%s172]
                %588 = vst [vmem:[%s180 + $0x32c] sm:%s172] %v587
                %v589 = vld [vmem:[%s179 + $0x660] sm:%s172]
                %590 = vst [vmem:[%s180 + $0x330] sm:%s172] %v589
                %v591 = vld [vmem:[%s179 + $0x668] sm:%s172]
                %592 = vst [vmem:[%s180 + $0x334] sm:%s172] %v591
                %v593 = vld [vmem:[%s179 + $0x670] sm:%s172]
                %594 = vst [vmem:[%s180 + $0x338] sm:%s172] %v593
                %v595 = vld [vmem:[%s179 + $0x678] sm:%s172]
                %596 = vst [vmem:[%s180 + $0x33c] sm:%s172] %v595
                %v597 = vld [vmem:[%s179 + $0x680] sm:%s172]
                %598 = vst [vmem:[%s180 + $0x340] sm:%s172] %v597
                %v599 = vld [vmem:[%s179 + $0x688] sm:%s172]
                %600 = vst [vmem:[%s180 + $0x344] sm:%s172] %v599
                %v601 = vld [vmem:[%s179 + $0x690] sm:%s172]
                %602 = vst [vmem:[%s180 + $0x348] sm:%s172] %v601
                %v603 = vld [vmem:[%s179 + $0x698] sm:%s172]
                %604 = vst [vmem:[%s180 + $0x34c] sm:%s172] %v603
                %v605 = vld [vmem:[%s179 + $0x6a0] sm:%s172]
                %606 = vst [vmem:[%s180 + $0x350] sm:%s172] %v605
                %v607 = vld [vmem:[%s179 + $0x6a8] sm:%s172]
                %608 = vst [vmem:[%s180 + $0x354] sm:%s172] %v607
                %v609 = vld [vmem:[%s179 + $0x6b0] sm:%s172]
                %610 = vst [vmem:[%s180 + $0x358] sm:%s172] %v609
                %v611 = vld [vmem:[%s179 + $0x6b8] sm:%s172]
                %612 = vst [vmem:[%s180 + $0x35c] sm:%s172] %v611
                %v613 = vld [vmem:[%s179 + $0x6c0] sm:%s172]
                %614 = vst [vmem:[%s180 + $0x360] sm:%s172] %v613
                %v615 = vld [vmem:[%s179 + $0x6c8] sm:%s172]
                %616 = vst [vmem:[%s180 + $0x364] sm:%s172] %v615
                %v617 = vld [vmem:[%s179 + $0x6d0] sm:%s172]
                %618 = vst [vmem:[%s180 + $0x368] sm:%s172] %v617
                %v619 = vld [vmem:[%s179 + $0x6d8] sm:%s172]
                %620 = vst [vmem:[%s180 + $0x36c] sm:%s172] %v619
                %v621 = vld [vmem:[%s179 + $0x6e0] sm:%s172]
                %622 = vst [vmem:[%s180 + $0x370] sm:%s172] %v621
                %v623 = vld [vmem:[%s179 + $0x6e8] sm:%s172]
                %624 = vst [vmem:[%s180 + $0x374] sm:%s172] %v623
                %v625 = vld [vmem:[%s179 + $0x6f0] sm:%s172]
                %626 = vst [vmem:[%s180 + $0x378] sm:%s172] %v625
                %v627 = vld [vmem:[%s179 + $0x6f8] sm:%s172]
                %628 = vst [vmem:[%s180 + $0x37c] sm:%s172] %v627
                %v629 = vld [vmem:[%s179 + $0x700] sm:%s172]
                %630 = vst [vmem:[%s180 + $0x380] sm:%s172] %v629
                %v631 = vld [vmem:[%s179 + $0x708] sm:%s172]
                %632 = vst [vmem:[%s180 + $0x384] sm:%s172] %v631
                %v633 = vld [vmem:[%s179 + $0x710] sm:%s172]
                %634 = vst [vmem:[%s180 + $0x388] sm:%s172] %v633
                %v635 = vld [vmem:[%s179 + $0x718] sm:%s172]
                %636 = vst [vmem:[%s180 + $0x38c] sm:%s172] %v635
                %v637 = vld [vmem:[%s179 + $0x720] sm:%s172]
                %638 = vst [vmem:[%s180 + $0x390] sm:%s172] %v637
                %v639 = vld [vmem:[%s179 + $0x728] sm:%s172]
                %640 = vst [vmem:[%s180 + $0x394] sm:%s172] %v639
                %v641 = vld [vmem:[%s179 + $0x730] sm:%s172]
                %642 = vst [vmem:[%s180 + $0x398] sm:%s172] %v641
                %v643 = vld [vmem:[%s179 + $0x738] sm:%s172]
                %644 = vst [vmem:[%s180 + $0x39c] sm:%s172] %v643
                %v645 = vld [vmem:[%s179 + $0x740] sm:%s172]
                %646 = vst [vmem:[%s180 + $0x3a0] sm:%s172] %v645
                %v647 = vld [vmem:[%s179 + $0x748] sm:%s172]
                %648 = vst [vmem:[%s180 + $0x3a4] sm:%s172] %v647
                %v649 = vld [vmem:[%s179 + $0x750] sm:%s172]
                %650 = vst [vmem:[%s180 + $0x3a8] sm:%s172] %v649
                %v651 = vld [vmem:[%s179 + $0x758] sm:%s172]
                %652 = vst [vmem:[%s180 + $0x3ac] sm:%s172] %v651
                %v653 = vld [vmem:[%s179 + $0x760] sm:%s172]
                %654 = vst [vmem:[%s180 + $0x3b0] sm:%s172] %v653
                %v655 = vld [vmem:[%s179 + $0x768] sm:%s172]
                %656 = vst [vmem:[%s180 + $0x3b4] sm:%s172] %v655
                %v657 = vld [vmem:[%s179 + $0x770] sm:%s172]
                %658 = vst [vmem:[%s180 + $0x3b8] sm:%s172] %v657
                %v659 = vld [vmem:[%s179 + $0x778] sm:%s172]
                %660 = vst [vmem:[%s180 + $0x3bc] sm:%s172] %v659
                %v661 = vld [vmem:[%s179 + $0x780] sm:%s172]
                %662 = vst [vmem:[%s180 + $0x3c0] sm:%s172] %v661
                %v663 = vld [vmem:[%s179 + $0x788] sm:%s172]
                %664 = vst [vmem:[%s180 + $0x3c4] sm:%s172] %v663
                %v665 = vld [vmem:[%s179 + $0x790] sm:%s172]
                %666 = vst [vmem:[%s180 + $0x3c8] sm:%s172] %v665
                %v667 = vld [vmem:[%s179 + $0x798] sm:%s172]
                %668 = vst [vmem:[%s180 + $0x3cc] sm:%s172] %v667
                %v669 = vld [vmem:[%s179 + $0x7a0] sm:%s172]
                %670 = vst [vmem:[%s180 + $0x3d0] sm:%s172] %v669
                %v671 = vld [vmem:[%s179 + $0x7a8] sm:%s172]
                %672 = vst [vmem:[%s180 + $0x3d4] sm:%s172] %v671
                %v673 = vld [vmem:[%s179 + $0x7b0] sm:%s172]
                %674 = vst [vmem:[%s180 + $0x3d8] sm:%s172] %v673
                %v675 = vld [vmem:[%s179 + $0x7b8] sm:%s172]
                %676 = vst [vmem:[%s180 + $0x3dc] sm:%s172] %v675
                %v677 = vld [vmem:[%s179 + $0x7c0] sm:%s172]
                %678 = vst [vmem:[%s180 + $0x3e0] sm:%s172] %v677
                %v679 = vld [vmem:[%s179 + $0x7c8] sm:%s172]
                %680 = vst [vmem:[%s180 + $0x3e4] sm:%s172] %v679
                %v681 = vld [vmem:[%s179 + $0x7d0] sm:%s172]
                %682 = vst [vmem:[%s180 + $0x3e8] sm:%s172] %v681
                %v683 = vld [vmem:[%s179 + $0x7d8] sm:%s172]
                %684 = vst [vmem:[%s180 + $0x3ec] sm:%s172] %v683
                %v685 = vld [vmem:[%s179 + $0x7e0] sm:%s172]
                %686 = vst [vmem:[%s180 + $0x3f0] sm:%s172] %v685
                %v687 = vld [vmem:[%s179 + $0x7e8] sm:%s172]
                %688 = vst [vmem:[%s180 + $0x3f4] sm:%s172] %v687
                %v689 = vld [vmem:[%s179 + $0x7f0] sm:%s172]
                %690 = vst [vmem:[%s180 + $0x3f8] sm:%s172] %v689
                %v691 = vld [vmem:[%s179 + $0x7f8] sm:%s172]
                %692 = vst [vmem:[%s180 + $0x3fc] sm:%s172] %v691
              $region41: #{forward.12} parent=35 // loop_footer
                %s178 = sadd.s32 1, %s174
              $region42: #{forward.12} parent=35 // loop_footer_branch
                %173 = sbr.rel target = $region38
              $region43: #{forward.12} parent=35 // loop_exit
                _
            $region36: #{forward.12} parent=27 // pred_fallthru
              _
          $region28: #{forward.12} parent=23 // pred_fallthru
            _
          %2275 = vnop
        $region24: #{forward.12} parent=19 // pred_fallthru
          _
        // Predicated region
        $region73: #{forward.12} parent=19 // pred_check
          %p2276 = pneg %p93
        $region74: #{forward.12} parent=19 // pred_check_branch
          %2278 = sbr.rel (%p2276) target = $region76
        $region75: #{forward.12} parent=19 // pred_region
          %p2279 = scmp.lt.s32.totalorder %s17, 1
          %s2280 = scalar_select %p2279, %s17, 1
          %s2281 = scalar_lea.vmem %s2, %s2280
        $region76: #{forward.12} parent=19 // pred_fallthru
          _
      $region20: #{forward.12} parent=5 // pred_fallthru
        _
      %p2282 = scmp.le.s32.totalorder 1, %s9
      %p2283 = scmp.lt.s32.totalorder %s9, 3
      %p2284 = pnand %p2282, %p2283
      %p2285 = pneg %p2284
      // Predicated region
      $region77: #{forward.12} parent=5 // pred_check
        _
      $region78: #{forward.12} parent=5 // pred_check_branch
        %2287 = sbr.rel (%p2284) target = $region80
      $region79: #{forward.12} parent=5 // pred_region
        %s2288 = ssub.s32 %s9, 1
        %s2289 = sand.u32 %s60, 1
        %s2290 = sand.u32 %s60, 1
        %s2291 = smul.addr %s2290, 1024
        %s2292 = scalar_lea.vmem [#allocation2], %s2291
        // Predicated region
        $region81: #{forward.12} parent=79 // pred_check
          %p2293 = pneg %p73
        $region82: #{forward.12} parent=79 // pred_check_branch
          %2295 = sbr.rel (%p2293) target = $region84
        $region83: #{forward.12} parent=79 // pred_region
          _
        $region84: #{forward.12} parent=79 // pred_fallthru
          _
        %s2296 = smul.u32 2, %s18
        %p2297 = scmp.lt.s32.totalorder %s2296, 1
        %s2298 = scalar_select %p2297, %s2296, 1
        %s2299 = smul.addr %s2298, 16
        %s2300 = smul.addr %s2299, 4
        %s2301 = scalar_lea.vmem %s0, %s2300
        %p2302 = pneg %p47
        %p2303 = pneg %p44
        %s2304 = sand.u32 %s60, 1
        %s2305 = sand.u32 %s60, 1
        %s2306 = smul.addr %s2305, 1024
        %s2307 = scalar_lea.vmem [#allocation2], %s2306
        %p2308 = pneg %p73
        %p2309 = pneg %p70
        %p2310 = scmp.lt.s32.totalorder %s19, 1
        %s2311 = scalar_select %p2310, %s19, 1
        %s2312 = scalar_lea.vmem %s2, %s2311
        %p2313 = pneg %p99
        %p2314 = pneg %p96
        %p2315 = pneg %p127
        %p2316 = pneg %p124
        %s2317 = sand.u32 %s114, 1
        %s2318 = sand.u32 %s114, 1
        %s2319 = smul.addr %s2318, 8
        %s2320 = scalar_lea.vmem [#allocation3], %s2319
        %s2321 = smul.u32 2, %s18
        %p2322 = scmp.lt.s32.totalorder %s2321, 1
        %s2323 = scalar_select %p2322, %s2321, 1
        %s2324 = smul.addr %s2323, 16
        %s2325 = smul.addr %s2324, 4
        %s2326 = scalar_lea.vmem %s0, %s2325
        %s2327 = smul.u32 2, %s18
        %p2328 = scmp.lt.s32.totalorder %s19, 1
        %s2329 = scalar_select %p2328, %s19, 1
        %s2330 = scalar_lea.vmem %s2, %s2329
        %s2331 = smul.u32 2, %s18
        %v2332 = vld [vmem:[%s2326] sm:$0xff]
        %v2333 = vld [vmem:[%s2326 + $0x8] sm:$0xff]
        %v2334 = vld [vmem:[%s2326 + $0x10] sm:$0xff]
        %v2335 = vld [vmem:[%s2326 + $0x18] sm:$0xff]
        %v2336 = vld [vmem:[%s2326 + $0x20] sm:$0xff]
        %v2337 = vld [vmem:[%s2326 + $0x28] sm:$0xff]
        %v2338 = vld [vmem:[%s2326 + $0x30] sm:$0xff]
        %v2339 = vld [vmem:[%s2326 + $0x38] sm:$0xff]
        %v2340 = vld [vmem:[%s2326 + $0x40] sm:$0xff]
        %v2341 = vld [vmem:[%s2326 + $0x48] sm:$0xff]
        %v2342 = vld [vmem:[%s2326 + $0x50] sm:$0xff]
        %v2343 = vld [vmem:[%s2326 + $0x58] sm:$0xff]
        %v2344 = vld [vmem:[%s2326 + $0x60] sm:$0xff]
        %v2345 = vld [vmem:[%s2326 + $0x68] sm:$0xff]
        %v2346 = vld [vmem:[%s2326 + $0x70] sm:$0xff]
        %v2347 = vld [vmem:[%s2326 + $0x78] sm:$0xff]
        %v2348 = vld [vmem:[%s2292] sm:$0xf]
        %v2349 = vld [vmem:[%s2292 + $0x4] sm:$0xf]
        %v2350 = vld [vmem:[%s2292 + $0x8] sm:$0xf]
        %v2351 = vld [vmem:[%s2292 + $0xc] sm:$0xf]
        %v2352 = vld [vmem:[%s2292 + $0x10] sm:$0xf]
        %v2353 = vld [vmem:[%s2292 + $0x14] sm:$0xf]
        %v2354 = vld [vmem:[%s2292 + $0x18] sm:$0xf]
        %v2355 = vld [vmem:[%s2292 + $0x1c] sm:$0xf]
        %v2356 = vld [vmem:[%s2292 + $0x20] sm:$0xf]
        %v2357 = vld [vmem:[%s2292 + $0x24] sm:$0xf]
        %v2358 = vld [vmem:[%s2292 + $0x28] sm:$0xf]
        %v2359 = vld [vmem:[%s2292 + $0x2c] sm:$0xf]
        %v2360 = vld [vmem:[%s2292 + $0x30] sm:$0xf]
        %v2361 = vld [vmem:[%s2292 + $0x34] sm:$0xf]
        %v2362 = vld [vmem:[%s2292 + $0x38] sm:$0xf]
        %v2363 = vld [vmem:[%s2292 + $0x3c] sm:$0xf]
        %v2364 = vld [vmem:[%s2292 + $0x40] sm:$0xf]
        %v2365 = vld [vmem:[%s2292 + $0x44] sm:$0xf]
        %v2366 = vld [vmem:[%s2292 + $0x48] sm:$0xf]
        %v2367 = vld [vmem:[%s2292 + $0x4c] sm:$0xf]
        %v2368 = vld [vmem:[%s2292 + $0x50] sm:$0xf]
        %v2369 = vld [vmem:[%s2292 + $0x54] sm:$0xf]
        %v2370 = vld [vmem:[%s2292 + $0x58] sm:$0xf]
        %v2371 = vld [vmem:[%s2292 + $0x5c] sm:$0xf]
        %v2372 = vld [vmem:[%s2292 + $0x60] sm:$0xf]
        %v2373 = vld [vmem:[%s2292 + $0x64] sm:$0xf]
        %v2374 = vld [vmem:[%s2292 + $0x68] sm:$0xf]
        %v2375 = vld [vmem:[%s2292 + $0x6c] sm:$0xf]
        %v2376 = vld [vmem:[%s2292 + $0x70] sm:$0xf]
        %v2377 = vld [vmem:[%s2292 + $0x74] sm:$0xf]
        %v2378 = vld [vmem:[%s2292 + $0x78] sm:$0xf]
        %v2379 = vld [vmem:[%s2292 + $0x7c] sm:$0xf]
        %v2380 = vld [vmem:[%s2292 + $0x80] sm:$0xf]
        %v2381 = vld [vmem:[%s2292 + $0x84] sm:$0xf]
        %v2382 = vld [vmem:[%s2292 + $0x88] sm:$0xf]
        %v2383 = vld [vmem:[%s2292 + $0x8c] sm:$0xf]
        %v2384 = vld [vmem:[%s2292 + $0x90] sm:$0xf]
        %v2385 = vld [vmem:[%s2292 + $0x94] sm:$0xf]
        %v2386 = vld [vmem:[%s2292 + $0x98] sm:$0xf]
        %v2387 = vld [vmem:[%s2292 + $0x9c] sm:$0xf]
        %v2388 = vld [vmem:[%s2292 + $0xa0] sm:$0xf]
        %v2389 = vld [vmem:[%s2292 + $0xa4] sm:$0xf]
        %v2390 = vld [vmem:[%s2292 + $0xa8] sm:$0xf]
        %v2391 = vld [vmem:[%s2292 + $0xac] sm:$0xf]
        %v2392 = vld [vmem:[%s2292 + $0xb0] sm:$0xf]
        %v2393 = vld [vmem:[%s2292 + $0xb4] sm:$0xf]
        %v2394 = vld [vmem:[%s2292 + $0xb8] sm:$0xf]
        %v2395 = vld [vmem:[%s2292 + $0xbc] sm:$0xf]
        %v2396 = vld [vmem:[%s2292 + $0xc0] sm:$0xf]
        %v2397 = vld [vmem:[%s2292 + $0xc4] sm:$0xf]
        %v2398 = vld [vmem:[%s2292 + $0xc8] sm:$0xf]
        %v2399 = vld [vmem:[%s2292 + $0xcc] sm:$0xf]
        %v2400 = vld [vmem:[%s2292 + $0xd0] sm:$0xf]
        %v2401 = vld [vmem:[%s2292 + $0xd4] sm:$0xf]
        %v2402 = vld [vmem:[%s2292 + $0xd8] sm:$0xf]
        %v2403 = vld [vmem:[%s2292 + $0xdc] sm:$0xf]
        %v2404 = vld [vmem:[%s2292 + $0xe0] sm:$0xf]
        %v2405 = vld [vmem:[%s2292 + $0xe4] sm:$0xf]
        %v2406 = vld [vmem:[%s2292 + $0xe8] sm:$0xf]
        %v2407 = vld [vmem:[%s2292 + $0xec] sm:$0xf]
        %v2408 = vld [vmem:[%s2292 + $0xf0] sm:$0xf]
        %v2409 = vld [vmem:[%s2292 + $0xf4] sm:$0xf]
        %v2410 = vld [vmem:[%s2292 + $0xf8] sm:$0xf]
        %v2411 = vld [vmem:[%s2292 + $0xfc] sm:$0xf]
        %v2412 = vld [vmem:[%s2292 + $0x100] sm:$0xf]
        %v2413 = vld [vmem:[%s2292 + $0x104] sm:$0xf]
        %v2414 = vld [vmem:[%s2292 + $0x108] sm:$0xf]
        %v2415 = vld [vmem:[%s2292 + $0x10c] sm:$0xf]
        %v2416 = vld [vmem:[%s2292 + $0x110] sm:$0xf]
        %v2417 = vld [vmem:[%s2292 + $0x114] sm:$0xf]
        %v2418 = vld [vmem:[%s2292 + $0x118] sm:$0xf]
        %v2419 = vld [vmem:[%s2292 + $0x11c] sm:$0xf]
        %v2420 = vld [vmem:[%s2292 + $0x120] sm:$0xf]
        %v2421 = vld [vmem:[%s2292 + $0x124] sm:$0xf]
        %v2422 = vld [vmem:[%s2292 + $0x128] sm:$0xf]
        %v2423 = vld [vmem:[%s2292 + $0x12c] sm:$0xf]
        %v2424 = vld [vmem:[%s2292 + $0x130] sm:$0xf]
        %v2425 = vld [vmem:[%s2292 + $0x134] sm:$0xf]
        %v2426 = vld [vmem:[%s2292 + $0x138] sm:$0xf]
        %v2427 = vld [vmem:[%s2292 + $0x13c] sm:$0xf]
        %v2428 = vld [vmem:[%s2292 + $0x140] sm:$0xf]
        %v2429 = vld [vmem:[%s2292 + $0x144] sm:$0xf]
        %v2430 = vld [vmem:[%s2292 + $0x148] sm:$0xf]
        %v2431 = vld [vmem:[%s2292 + $0x14c] sm:$0xf]
        %v2432 = vld [vmem:[%s2292 + $0x150] sm:$0xf]
        %v2433 = vld [vmem:[%s2292 + $0x154] sm:$0xf]
        %v2434 = vld [vmem:[%s2292 + $0x158] sm:$0xf]
        %v2435 = vld [vmem:[%s2292 + $0x15c] sm:$0xf]
        %v2436 = vld [vmem:[%s2292 + $0x160] sm:$0xf]
        %v2437 = vld [vmem:[%s2292 + $0x164] sm:$0xf]
        %v2438 = vld [vmem:[%s2292 + $0x168] sm:$0xf]
        %v2439 = vld [vmem:[%s2292 + $0x16c] sm:$0xf]
        %v2440 = vld [vmem:[%s2292 + $0x170] sm:$0xf]
        %v2441 = vld [vmem:[%s2292 + $0x174] sm:$0xf]
        %v2442 = vld [vmem:[%s2292 + $0x178] sm:$0xf]
        %v2443 = vld [vmem:[%s2292 + $0x17c] sm:$0xf]
        %v2444 = vld [vmem:[%s2292 + $0x180] sm:$0xf]
        %v2445 = vld [vmem:[%s2292 + $0x184] sm:$0xf]
        %v2446 = vld [vmem:[%s2292 + $0x188] sm:$0xf]
        %v2447 = vld [vmem:[%s2292 + $0x18c] sm:$0xf]
        %v2448 = vld [vmem:[%s2292 + $0x190] sm:$0xf]
        %v2449 = vld [vmem:[%s2292 + $0x194] sm:$0xf]
        %v2450 = vld [vmem:[%s2292 + $0x198] sm:$0xf]
        %v2451 = vld [vmem:[%s2292 + $0x19c] sm:$0xf]
        %v2452 = vld [vmem:[%s2292 + $0x1a0] sm:$0xf]
        %v2453 = vld [vmem:[%s2292 + $0x1a4] sm:$0xf]
        %v2454 = vld [vmem:[%s2292 + $0x1a8] sm:$0xf]
        %v2455 = vld [vmem:[%s2292 + $0x1ac] sm:$0xf]
        %v2456 = vld [vmem:[%s2292 + $0x1b0] sm:$0xf]
        %v2457 = vld [vmem:[%s2292 + $0x1b4] sm:$0xf]
        %v2458 = vld [vmem:[%s2292 + $0x1b8] sm:$0xf]
        %v2459 = vld [vmem:[%s2292 + $0x1bc] sm:$0xf]
        %v2460 = vld [vmem:[%s2292 + $0x1c0] sm:$0xf]
        %v2461 = vld [vmem:[%s2292 + $0x1c4] sm:$0xf]
        %v2462 = vld [vmem:[%s2292 + $0x1c8] sm:$0xf]
        %v2463 = vld [vmem:[%s2292 + $0x1cc] sm:$0xf]
        %v2464 = vld [vmem:[%s2292 + $0x1d0] sm:$0xf]
        %v2465 = vld [vmem:[%s2292 + $0x1d4] sm:$0xf]
        %v2466 = vld [vmem:[%s2292 + $0x1d8] sm:$0xf]
        %v2467 = vld [vmem:[%s2292 + $0x1dc] sm:$0xf]
        %v2468 = vld [vmem:[%s2292 + $0x1e0] sm:$0xf]
        %v2469 = vld [vmem:[%s2292 + $0x1e4] sm:$0xf]
        %v2470 = vld [vmem:[%s2292 + $0x1e8] sm:$0xf]
        %v2471 = vld [vmem:[%s2292 + $0x1ec] sm:$0xf]
        %v2472 = vld [vmem:[%s2292 + $0x1f0] sm:$0xf]
        %v2473 = vld [vmem:[%s2292 + $0x1f4] sm:$0xf]
        %v2474 = vld [vmem:[%s2292 + $0x1f8] sm:$0xf]
        %v2475 = vld [vmem:[%s2292 + $0x1fc] sm:$0xf]
        %v2476 = vld [vmem:[%s2292 + $0x200] sm:$0xf]
        %v2477 = vld [vmem:[%s2292 + $0x204] sm:$0xf]
        %v2478 = vld [vmem:[%s2292 + $0x208] sm:$0xf]
        %v2479 = vld [vmem:[%s2292 + $0x20c] sm:$0xf]
        %v2480 = vld [vmem:[%s2292 + $0x210] sm:$0xf]
        %v2481 = vld [vmem:[%s2292 + $0x214] sm:$0xf]
        %v2482 = vld [vmem:[%s2292 + $0x218] sm:$0xf]
        %v2483 = vld [vmem:[%s2292 + $0x21c] sm:$0xf]
        %v2484 = vld [vmem:[%s2292 + $0x220] sm:$0xf]
        %v2485 = vld [vmem:[%s2292 + $0x224] sm:$0xf]
        %v2486 = vld [vmem:[%s2292 + $0x228] sm:$0xf]
        %v2487 = vld [vmem:[%s2292 + $0x22c] sm:$0xf]
        %v2488 = vld [vmem:[%s2292 + $0x230] sm:$0xf]
        %v2489 = vld [vmem:[%s2292 + $0x234] sm:$0xf]
        %v2490 = vld [vmem:[%s2292 + $0x238] sm:$0xf]
        %v2491 = vld [vmem:[%s2292 + $0x23c] sm:$0xf]
        %v2492 = vld [vmem:[%s2292 + $0x240] sm:$0xf]
        %v2493 = vld [vmem:[%s2292 + $0x244] sm:$0xf]
        %v2494 = vld [vmem:[%s2292 + $0x248] sm:$0xf]
        %v2495 = vld [vmem:[%s2292 + $0x24c] sm:$0xf]
        %v2496 = vld [vmem:[%s2292 + $0x250] sm:$0xf]
        %v2497 = vld [vmem:[%s2292 + $0x254] sm:$0xf]
        %v2498 = vld [vmem:[%s2292 + $0x258] sm:$0xf]
        %v2499 = vld [vmem:[%s2292 + $0x25c] sm:$0xf]
        %v2500 = vld [vmem:[%s2292 + $0x260] sm:$0xf]
        %v2501 = vld [vmem:[%s2292 + $0x264] sm:$0xf]
        %v2502 = vld [vmem:[%s2292 + $0x268] sm:$0xf]
        %v2503 = vld [vmem:[%s2292 + $0x26c] sm:$0xf]
        %v2504 = vld [vmem:[%s2292 + $0x270] sm:$0xf]
        %v2505 = vld [vmem:[%s2292 + $0x274] sm:$0xf]
        %v2506 = vld [vmem:[%s2292 + $0x278] sm:$0xf]
        %v2507 = vld [vmem:[%s2292 + $0x27c] sm:$0xf]
        %v2508 = vld [vmem:[%s2292 + $0x280] sm:$0xf]
        %v2509 = vld [vmem:[%s2292 + $0x284] sm:$0xf]
        %v2510 = vld [vmem:[%s2292 + $0x288] sm:$0xf]
        %v2511 = vld [vmem:[%s2292 + $0x28c] sm:$0xf]
        %v2512 = vld [vmem:[%s2292 + $0x290] sm:$0xf]
        %v2513 = vld [vmem:[%s2292 + $0x294] sm:$0xf]
        %v2514 = vld [vmem:[%s2292 + $0x298] sm:$0xf]
        %v2515 = vld [vmem:[%s2292 + $0x29c] sm:$0xf]
        %v2516 = vld [vmem:[%s2292 + $0x2a0] sm:$0xf]
        %v2517 = vld [vmem:[%s2292 + $0x2a4] sm:$0xf]
        %v2518 = vld [vmem:[%s2292 + $0x2a8] sm:$0xf]
        %v2519 = vld [vmem:[%s2292 + $0x2ac] sm:$0xf]
        %v2520 = vld [vmem:[%s2292 + $0x2b0] sm:$0xf]
        %v2521 = vld [vmem:[%s2292 + $0x2b4] sm:$0xf]
        %v2522 = vld [vmem:[%s2292 + $0x2b8] sm:$0xf]
        %v2523 = vld [vmem:[%s2292 + $0x2bc] sm:$0xf]
        %v2524 = vld [vmem:[%s2292 + $0x2c0] sm:$0xf]
        %v2525 = vld [vmem:[%s2292 + $0x2c4] sm:$0xf]
        %v2526 = vld [vmem:[%s2292 + $0x2c8] sm:$0xf]
        %v2527 = vld [vmem:[%s2292 + $0x2cc] sm:$0xf]
        %v2528 = vld [vmem:[%s2292 + $0x2d0] sm:$0xf]
        %v2529 = vld [vmem:[%s2292 + $0x2d4] sm:$0xf]
        %v2530 = vld [vmem:[%s2292 + $0x2d8] sm:$0xf]
        %v2531 = vld [vmem:[%s2292 + $0x2dc] sm:$0xf]
        %v2532 = vld [vmem:[%s2292 + $0x2e0] sm:$0xf]
        %v2533 = vld [vmem:[%s2292 + $0x2e4] sm:$0xf]
        %v2534 = vld [vmem:[%s2292 + $0x2e8] sm:$0xf]
        %v2535 = vld [vmem:[%s2292 + $0x2ec] sm:$0xf]
        %v2536 = vld [vmem:[%s2292 + $0x2f0] sm:$0xf]
        %v2537 = vld [vmem:[%s2292 + $0x2f4] sm:$0xf]
        %v2538 = vld [vmem:[%s2292 + $0x2f8] sm:$0xf]
        %v2539 = vld [vmem:[%s2292 + $0x2fc] sm:$0xf]
        %v2540 = vld [vmem:[%s2292 + $0x300] sm:$0xf]
        %v2541 = vld [vmem:[%s2292 + $0x304] sm:$0xf]
        %v2542 = vld [vmem:[%s2292 + $0x308] sm:$0xf]
        %v2543 = vld [vmem:[%s2292 + $0x30c] sm:$0xf]
        %v2544 = vld [vmem:[%s2292 + $0x310] sm:$0xf]
        %v2545 = vld [vmem:[%s2292 + $0x314] sm:$0xf]
        %v2546 = vld [vmem:[%s2292 + $0x318] sm:$0xf]
        %v2547 = vld [vmem:[%s2292 + $0x31c] sm:$0xf]
        %v2548 = vld [vmem:[%s2292 + $0x320] sm:$0xf]
        %v2549 = vld [vmem:[%s2292 + $0x324] sm:$0xf]
        %v2550 = vld [vmem:[%s2292 + $0x328] sm:$0xf]
        %v2551 = vld [vmem:[%s2292 + $0x32c] sm:$0xf]
        %v2552 = vld [vmem:[%s2292 + $0x330] sm:$0xf]
        %v2553 = vld [vmem:[%s2292 + $0x334] sm:$0xf]
        %v2554 = vld [vmem:[%s2292 + $0x338] sm:$0xf]
        %v2555 = vld [vmem:[%s2292 + $0x33c] sm:$0xf]
        %v2556 = vld [vmem:[%s2292 + $0x340] sm:$0xf]
        %v2557 = vld [vmem:[%s2292 + $0x344] sm:$0xf]
        %v2558 = vld [vmem:[%s2292 + $0x348] sm:$0xf]
        %v2559 = vld [vmem:[%s2292 + $0x34c] sm:$0xf]
        %v2560 = vld [vmem:[%s2292 + $0x350] sm:$0xf]
        %v2561 = vld [vmem:[%s2292 + $0x354] sm:$0xf]
        %v2562 = vld [vmem:[%s2292 + $0x358] sm:$0xf]
        %v2563 = vld [vmem:[%s2292 + $0x35c] sm:$0xf]
        %v2564 = vld [vmem:[%s2292 + $0x360] sm:$0xf]
        %v2565 = vld [vmem:[%s2292 + $0x364] sm:$0xf]
        %v2566 = vld [vmem:[%s2292 + $0x368] sm:$0xf]
        %v2567 = vld [vmem:[%s2292 + $0x36c] sm:$0xf]
        %v2568 = vld [vmem:[%s2292 + $0x370] sm:$0xf]
        %v2569 = vld [vmem:[%s2292 + $0x374] sm:$0xf]
        %v2570 = vld [vmem:[%s2292 + $0x378] sm:$0xf]
        %v2571 = vld [vmem:[%s2292 + $0x37c] sm:$0xf]
        %v2572 = vld [vmem:[%s2292 + $0x380] sm:$0xf]
        %v2573 = vld [vmem:[%s2292 + $0x384] sm:$0xf]
        %v2574 = vld [vmem:[%s2292 + $0x388] sm:$0xf]
        %v2575 = vld [vmem:[%s2292 + $0x38c] sm:$0xf]
        %v2576 = vld [vmem:[%s2292 + $0x390] sm:$0xf]
        %v2577 = vld [vmem:[%s2292 + $0x394] sm:$0xf]
        %v2578 = vld [vmem:[%s2292 + $0x398] sm:$0xf]
        %v2579 = vld [vmem:[%s2292 + $0x39c] sm:$0xf]
        %v2580 = vld [vmem:[%s2292 + $0x3a0] sm:$0xf]
        %v2581 = vld [vmem:[%s2292 + $0x3a4] sm:$0xf]
        %v2582 = vld [vmem:[%s2292 + $0x3a8] sm:$0xf]
        %v2583 = vld [vmem:[%s2292 + $0x3ac] sm:$0xf]
        %v2584 = vld [vmem:[%s2292 + $0x3b0] sm:$0xf]
        %v2585 = vld [vmem:[%s2292 + $0x3b4] sm:$0xf]
        %v2586 = vld [vmem:[%s2292 + $0x3b8] sm:$0xf]
        %v2587 = vld [vmem:[%s2292 + $0x3bc] sm:$0xf]
        %v2588 = vld [vmem:[%s2292 + $0x3c0] sm:$0xf]
        %v2589 = vld [vmem:[%s2292 + $0x3c4] sm:$0xf]
        %v2590 = vld [vmem:[%s2292 + $0x3c8] sm:$0xf]
        %v2591 = vld [vmem:[%s2292 + $0x3cc] sm:$0xf]
        %v2592 = vld [vmem:[%s2292 + $0x3d0] sm:$0xf]
        %v2593 = vld [vmem:[%s2292 + $0x3d4] sm:$0xf]
        %v2594 = vld [vmem:[%s2292 + $0x3d8] sm:$0xf]
        %v2595 = vld [vmem:[%s2292 + $0x3dc] sm:$0xf]
        %v2596 = vld [vmem:[%s2292 + $0x3e0] sm:$0xf]
        %v2597 = vld [vmem:[%s2292 + $0x3e4] sm:$0xf]
        %v2598 = vld [vmem:[%s2292 + $0x3e8] sm:$0xf]
        %v2599 = vld [vmem:[%s2292 + $0x3ec] sm:$0xf]
        %v2600 = vld [vmem:[%s2292 + $0x3f0] sm:$0xf]
        %v2601 = vld [vmem:[%s2292 + $0x3f4] sm:$0xf]
        %v2602 = vld [vmem:[%s2292 + $0x3f8] sm:$0xf]
        %v2603 = vld [vmem:[%s2292 + $0x3fc] sm:$0xf]
        %v2604 = vld [vmem:[%s2330] sm:$0x1]
        %v2606 = vperm.slane %v2604, 0
        %v2624 = vunpack.c.l.b16 %v2332
        %v2625 = vunpack.c.h.b16 %v2332
        %v2626 = vunpack.c.l.b16 %v2333
        %v2627 = vunpack.c.h.b16 %v2333
        %v2628 = vunpack.c.l.b16 %v2334
        %v2629 = vunpack.c.h.b16 %v2334
        %v2630 = vunpack.c.l.b16 %v2335
        %v2631 = vunpack.c.h.b16 %v2335
        %v2632 = vunpack.c.l.b16 %v2336
        %v2633 = vunpack.c.h.b16 %v2336
        %v2634 = vunpack.c.l.b16 %v2337
        %v2635 = vunpack.c.h.b16 %v2337
        %v2636 = vunpack.c.l.b16 %v2338
        %v2637 = vunpack.c.h.b16 %v2338
        %v2638 = vunpack.c.l.b16 %v2339
        %v2639 = vunpack.c.h.b16 %v2339
        %v2640 = vunpack.c.l.b16 %v2340
        %v2641 = vunpack.c.h.b16 %v2340
        %v2642 = vunpack.c.l.b16 %v2341
        %v2643 = vunpack.c.h.b16 %v2341
        %v2644 = vunpack.c.l.b16 %v2342
        %v2645 = vunpack.c.h.b16 %v2342
        %v2646 = vunpack.c.l.b16 %v2343
        %v2647 = vunpack.c.h.b16 %v2343
        %v2648 = vunpack.c.l.b16 %v2344
        %v2649 = vunpack.c.h.b16 %v2344
        %v2650 = vunpack.c.l.b16 %v2345
        %v2651 = vunpack.c.h.b16 %v2345
        %v2652 = vunpack.c.l.b16 %v2346
        %v2653 = vunpack.c.h.b16 %v2346
        %v2654 = vunpack.c.l.b16 %v2347
        %v2655 = vunpack.c.h.b16 %v2347
        %v2656 = vpack.c.b16 %v2640, %v2624
        %v2657 = vpack.c.b16 %v2641, %v2625
        %v2658 = vpack.c.b16 %v2642, %v2626
        %v2659 = vpack.c.b16 %v2643, %v2627
        %v2660 = vpack.c.b16 %v2644, %v2628
        %v2661 = vpack.c.b16 %v2645, %v2629
        %v2662 = vpack.c.b16 %v2646, %v2630
        %v2663 = vpack.c.b16 %v2647, %v2631
        %v2664 = vpack.c.b16 %v2648, %v2632
        %v2665 = vpack.c.b16 %v2649, %v2633
        %v2666 = vpack.c.b16 %v2650, %v2634
        %v2667 = vpack.c.b16 %v2651, %v2635
        %v2668 = vpack.c.b16 %v2652, %v2636
        %v2669 = vpack.c.b16 %v2653, %v2637
        %v2670 = vpack.c.b16 %v2654, %v2638
        %v2671 = vpack.c.b16 %v2655, %v2639
        %v2944 = vunpack.c.l.b16 %v2348
        %v2945 = vunpack.c.l.b16 %v2349
        %v2946 = vunpack.c.l.b16 %v2350
        %v2947 = vunpack.c.l.b16 %v2351
        %v2948 = vunpack.c.l.b16 %v2352
        %v2949 = vunpack.c.l.b16 %v2353
        %v2950 = vunpack.c.l.b16 %v2354
        %v2951 = vunpack.c.l.b16 %v2355
        %v2952 = vunpack.c.l.b16 %v2356
        %v2953 = vunpack.c.l.b16 %v2357
        %v2954 = vunpack.c.l.b16 %v2358
        %v2955 = vunpack.c.l.b16 %v2359
        %v2956 = vunpack.c.l.b16 %v2360
        %v2957 = vunpack.c.l.b16 %v2361
        %v2958 = vunpack.c.l.b16 %v2362
        %v2959 = vunpack.c.l.b16 %v2363
        %v2960 = vunpack.c.l.b16 %v2364
        %v2961 = vunpack.c.l.b16 %v2365
        %v2962 = vunpack.c.l.b16 %v2366
        %v2963 = vunpack.c.l.b16 %v2367
        %v2964 = vunpack.c.l.b16 %v2368
        %v2965 = vunpack.c.l.b16 %v2369
        %v2966 = vunpack.c.l.b16 %v2370
        %v2967 = vunpack.c.l.b16 %v2371
        %v2968 = vunpack.c.l.b16 %v2372
        %v2969 = vunpack.c.l.b16 %v2373
        %v2970 = vunpack.c.l.b16 %v2374
        %v2971 = vunpack.c.l.b16 %v2375
        %v2972 = vunpack.c.l.b16 %v2376
        %v2973 = vunpack.c.l.b16 %v2377
        %v2974 = vunpack.c.l.b16 %v2378
        %v2975 = vunpack.c.l.b16 %v2379
        %v2976 = vunpack.c.l.b16 %v2380
        %v2977 = vunpack.c.l.b16 %v2381
        %v2978 = vunpack.c.l.b16 %v2382
        %v2979 = vunpack.c.l.b16 %v2383
        %v2980 = vunpack.c.l.b16 %v2384
        %v2981 = vunpack.c.l.b16 %v2385
        %v2982 = vunpack.c.l.b16 %v2386
        %v2983 = vunpack.c.l.b16 %v2387
        %v2984 = vunpack.c.l.b16 %v2388
        %v2985 = vunpack.c.l.b16 %v2389
        %v2986 = vunpack.c.l.b16 %v2390
        %v2987 = vunpack.c.l.b16 %v2391
        %v2988 = vunpack.c.l.b16 %v2392
        %v2989 = vunpack.c.l.b16 %v2393
        %v2990 = vunpack.c.l.b16 %v2394
        %v2991 = vunpack.c.l.b16 %v2395
        %v2992 = vunpack.c.l.b16 %v2396
        %v2993 = vunpack.c.l.b16 %v2397
        %v2994 = vunpack.c.l.b16 %v2398
        %v2995 = vunpack.c.l.b16 %v2399
        %v2996 = vunpack.c.l.b16 %v2400
        %v2997 = vunpack.c.l.b16 %v2401
        %v2998 = vunpack.c.l.b16 %v2402
        %v2999 = vunpack.c.l.b16 %v2403
        %v3000 = vunpack.c.l.b16 %v2404
        %v3001 = vunpack.c.l.b16 %v2405
        %v3002 = vunpack.c.l.b16 %v2406
        %v3003 = vunpack.c.l.b16 %v2407
        %v3004 = vunpack.c.l.b16 %v2408
        %v3005 = vunpack.c.l.b16 %v2409
        %v3006 = vunpack.c.l.b16 %v2410
        %v3007 = vunpack.c.l.b16 %v2411
        %v3008 = vunpack.c.l.b16 %v2412
        %v3009 = vunpack.c.l.b16 %v2413
        %v3010 = vunpack.c.l.b16 %v2414
        %v3011 = vunpack.c.l.b16 %v2415
        %v3012 = vunpack.c.l.b16 %v2416
        %v3013 = vunpack.c.l.b16 %v2417
        %v3014 = vunpack.c.l.b16 %v2418
        %v3015 = vunpack.c.l.b16 %v2419
        %v3016 = vunpack.c.l.b16 %v2420
        %v3017 = vunpack.c.l.b16 %v2421
        %v3018 = vunpack.c.l.b16 %v2422
        %v3019 = vunpack.c.l.b16 %v2423
        %v3020 = vunpack.c.l.b16 %v2424
        %v3021 = vunpack.c.l.b16 %v2425
        %v3022 = vunpack.c.l.b16 %v2426
        %v3023 = vunpack.c.l.b16 %v2427
        %v3024 = vunpack.c.l.b16 %v2428
        %v3025 = vunpack.c.l.b16 %v2429
        %v3026 = vunpack.c.l.b16 %v2430
        %v3027 = vunpack.c.l.b16 %v2431
        %v3028 = vunpack.c.l.b16 %v2432
        %v3029 = vunpack.c.l.b16 %v2433
        %v3030 = vunpack.c.l.b16 %v2434
        %v3031 = vunpack.c.l.b16 %v2435
        %v3032 = vunpack.c.l.b16 %v2436
        %v3033 = vunpack.c.l.b16 %v2437
        %v3034 = vunpack.c.l.b16 %v2438
        %v3035 = vunpack.c.l.b16 %v2439
        %v3036 = vunpack.c.l.b16 %v2440
        %v3037 = vunpack.c.l.b16 %v2441
        %v3038 = vunpack.c.l.b16 %v2442
        %v3039 = vunpack.c.l.b16 %v2443
        %v3040 = vunpack.c.l.b16 %v2444
        %v3041 = vunpack.c.l.b16 %v2445
        %v3042 = vunpack.c.l.b16 %v2446
        %v3043 = vunpack.c.l.b16 %v2447
        %v3044 = vunpack.c.l.b16 %v2448
        %v3045 = vunpack.c.l.b16 %v2449
        %v3046 = vunpack.c.l.b16 %v2450
        %v3047 = vunpack.c.l.b16 %v2451
        %v3048 = vunpack.c.l.b16 %v2452
        %v3049 = vunpack.c.l.b16 %v2453
        %v3050 = vunpack.c.l.b16 %v2454
        %v3051 = vunpack.c.l.b16 %v2455
        %v3052 = vunpack.c.l.b16 %v2456
        %v3053 = vunpack.c.l.b16 %v2457
        %v3054 = vunpack.c.l.b16 %v2458
        %v3055 = vunpack.c.l.b16 %v2459
        %v3056 = vunpack.c.l.b16 %v2460
        %v3057 = vunpack.c.l.b16 %v2461
        %v3058 = vunpack.c.l.b16 %v2462
        %v3059 = vunpack.c.l.b16 %v2463
        %v3060 = vunpack.c.l.b16 %v2464
        %v3061 = vunpack.c.l.b16 %v2465
        %v3062 = vunpack.c.l.b16 %v2466
        %v3063 = vunpack.c.l.b16 %v2467
        %v3064 = vunpack.c.l.b16 %v2468
        %v3065 = vunpack.c.l.b16 %v2469
        %v3066 = vunpack.c.l.b16 %v2470
        %v3067 = vunpack.c.l.b16 %v2471
        %v3068 = vunpack.c.l.b16 %v2472
        %v3069 = vunpack.c.l.b16 %v2473
        %v3070 = vunpack.c.l.b16 %v2474
        %v3071 = vunpack.c.l.b16 %v2475
        %v3072 = vunpack.c.l.b16 %v2476
        %v3073 = vunpack.c.l.b16 %v2477
        %v3074 = vunpack.c.l.b16 %v2478
        %v3075 = vunpack.c.l.b16 %v2479
        %v3076 = vunpack.c.l.b16 %v2480
        %v3077 = vunpack.c.l.b16 %v2481
        %v3078 = vunpack.c.l.b16 %v2482
        %v3079 = vunpack.c.l.b16 %v2483
        %v3080 = vunpack.c.l.b16 %v2484
        %v3081 = vunpack.c.l.b16 %v2485
        %v3082 = vunpack.c.l.b16 %v2486
        %v3083 = vunpack.c.l.b16 %v2487
        %v3084 = vunpack.c.l.b16 %v2488
        %v3085 = vunpack.c.l.b16 %v2489
        %v3086 = vunpack.c.l.b16 %v2490
        %v3087 = vunpack.c.l.b16 %v2491
        %v3088 = vunpack.c.l.b16 %v2492
        %v3089 = vunpack.c.l.b16 %v2493
        %v3090 = vunpack.c.l.b16 %v2494
        %v3091 = vunpack.c.l.b16 %v2495
        %v3092 = vunpack.c.l.b16 %v2496
        %v3093 = vunpack.c.l.b16 %v2497
        %v3094 = vunpack.c.l.b16 %v2498
        %v3095 = vunpack.c.l.b16 %v2499
        %v3096 = vunpack.c.l.b16 %v2500
        %v3097 = vunpack.c.l.b16 %v2501
        %v3098 = vunpack.c.l.b16 %v2502
        %v3099 = vunpack.c.l.b16 %v2503
        %v3100 = vunpack.c.l.b16 %v2504
        %v3101 = vunpack.c.l.b16 %v2505
        %v3102 = vunpack.c.l.b16 %v2506
        %v3103 = vunpack.c.l.b16 %v2507
        %v3104 = vunpack.c.l.b16 %v2508
        %v3105 = vunpack.c.l.b16 %v2509
        %v3106 = vunpack.c.l.b16 %v2510
        %v3107 = vunpack.c.l.b16 %v2511
        %v3108 = vunpack.c.l.b16 %v2512
        %v3109 = vunpack.c.l.b16 %v2513
        %v3110 = vunpack.c.l.b16 %v2514
        %v3111 = vunpack.c.l.b16 %v2515
        %v3112 = vunpack.c.l.b16 %v2516
        %v3113 = vunpack.c.l.b16 %v2517
        %v3114 = vunpack.c.l.b16 %v2518
        %v3115 = vunpack.c.l.b16 %v2519
        %v3116 = vunpack.c.l.b16 %v2520
        %v3117 = vunpack.c.l.b16 %v2521
        %v3118 = vunpack.c.l.b16 %v2522
        %v3119 = vunpack.c.l.b16 %v2523
        %v3120 = vunpack.c.l.b16 %v2524
        %v3121 = vunpack.c.l.b16 %v2525
        %v3122 = vunpack.c.l.b16 %v2526
        %v3123 = vunpack.c.l.b16 %v2527
        %v3124 = vunpack.c.l.b16 %v2528
        %v3125 = vunpack.c.l.b16 %v2529
        %v3126 = vunpack.c.l.b16 %v2530
        %v3127 = vunpack.c.l.b16 %v2531
        %v3128 = vunpack.c.l.b16 %v2532
        %v3129 = vunpack.c.l.b16 %v2533
        %v3130 = vunpack.c.l.b16 %v2534
        %v3131 = vunpack.c.l.b16 %v2535
        %v3132 = vunpack.c.l.b16 %v2536
        %v3133 = vunpack.c.l.b16 %v2537
        %v3134 = vunpack.c.l.b16 %v2538
        %v3135 = vunpack.c.l.b16 %v2539
        %v3136 = vunpack.c.l.b16 %v2540
        %v3137 = vunpack.c.l.b16 %v2541
        %v3138 = vunpack.c.l.b16 %v2542
        %v3139 = vunpack.c.l.b16 %v2543
        %v3140 = vunpack.c.l.b16 %v2544
        %v3141 = vunpack.c.l.b16 %v2545
        %v3142 = vunpack.c.l.b16 %v2546
        %v3143 = vunpack.c.l.b16 %v2547
        %v3144 = vunpack.c.l.b16 %v2548
        %v3145 = vunpack.c.l.b16 %v2549
        %v3146 = vunpack.c.l.b16 %v2550
        %v3147 = vunpack.c.l.b16 %v2551
        %v3148 = vunpack.c.l.b16 %v2552
        %v3149 = vunpack.c.l.b16 %v2553
        %v3150 = vunpack.c.l.b16 %v2554
        %v3151 = vunpack.c.l.b16 %v2555
        %v3152 = vunpack.c.l.b16 %v2556
        %v3153 = vunpack.c.l.b16 %v2557
        %v3154 = vunpack.c.l.b16 %v2558
        %v3155 = vunpack.c.l.b16 %v2559
        %v3156 = vunpack.c.l.b16 %v2560
        %v3157 = vunpack.c.l.b16 %v2561
        %v3158 = vunpack.c.l.b16 %v2562
        %v3159 = vunpack.c.l.b16 %v2563
        %v3160 = vunpack.c.l.b16 %v2564
        %v3161 = vunpack.c.l.b16 %v2565
        %v3162 = vunpack.c.l.b16 %v2566
        %v3163 = vunpack.c.l.b16 %v2567
        %v3164 = vunpack.c.l.b16 %v2568
        %v3165 = vunpack.c.l.b16 %v2569
        %v3166 = vunpack.c.l.b16 %v2570
        %v3167 = vunpack.c.l.b16 %v2571
        %v3168 = vunpack.c.l.b16 %v2572
        %v3169 = vunpack.c.l.b16 %v2573
        %v3170 = vunpack.c.l.b16 %v2574
        %v3171 = vunpack.c.l.b16 %v2575
        %v3172 = vunpack.c.l.b16 %v2576
        %v3173 = vunpack.c.l.b16 %v2577
        %v3174 = vunpack.c.l.b16 %v2578
        %v3175 = vunpack.c.l.b16 %v2579
        %v3176 = vunpack.c.l.b16 %v2580
        %v3177 = vunpack.c.l.b16 %v2581
        %v3178 = vunpack.c.l.b16 %v2582
        %v3179 = vunpack.c.l.b16 %v2583
        %v3180 = vunpack.c.l.b16 %v2584
        %v3181 = vunpack.c.l.b16 %v2585
        %v3182 = vunpack.c.l.b16 %v2586
        %v3183 = vunpack.c.l.b16 %v2587
        %v3184 = vunpack.c.l.b16 %v2588
        %v3185 = vunpack.c.l.b16 %v2589
        %v3186 = vunpack.c.l.b16 %v2590
        %v3187 = vunpack.c.l.b16 %v2591
        %v3188 = vunpack.c.l.b16 %v2592
        %v3189 = vunpack.c.l.b16 %v2593
        %v3190 = vunpack.c.l.b16 %v2594
        %v3191 = vunpack.c.l.b16 %v2595
        %v3192 = vunpack.c.l.b16 %v2596
        %v3193 = vunpack.c.l.b16 %v2597
        %v3194 = vunpack.c.l.b16 %v2598
        %v3195 = vunpack.c.l.b16 %v2599
        %v3196 = vunpack.c.l.b16 %v2600
        %v3197 = vunpack.c.l.b16 %v2601
        %v3198 = vunpack.c.l.b16 %v2602
        %v3199 = vunpack.c.l.b16 %v2603
        %v3200 = vpack.c.b16 %v2945, %v2944
        %v3201 = vpack.c.b16 %v2947, %v2946
        %v3202 = vpack.c.b16 %v2949, %v2948
        %v3203 = vpack.c.b16 %v2951, %v2950
        %v3204 = vpack.c.b16 %v2953, %v2952
        %v3205 = vpack.c.b16 %v2955, %v2954
        %v3206 = vpack.c.b16 %v2957, %v2956
        %v3207 = vpack.c.b16 %v2959, %v2958
        %v3208 = vpack.c.b16 %v2961, %v2960
        %v3209 = vpack.c.b16 %v2963, %v2962
        %v3210 = vpack.c.b16 %v2965, %v2964
        %v3211 = vpack.c.b16 %v2967, %v2966
        %v3212 = vpack.c.b16 %v2969, %v2968
        %v3213 = vpack.c.b16 %v2971, %v2970
        %v3214 = vpack.c.b16 %v2973, %v2972
        %v3215 = vpack.c.b16 %v2975, %v2974
        %v3216 = vpack.c.b16 %v2977, %v2976
        %v3217 = vpack.c.b16 %v2979, %v2978
        %v3218 = vpack.c.b16 %v2981, %v2980
        %v3219 = vpack.c.b16 %v2983, %v2982
        %v3220 = vpack.c.b16 %v2985, %v2984
        %v3221 = vpack.c.b16 %v2987, %v2986
        %v3222 = vpack.c.b16 %v2989, %v2988
        %v3223 = vpack.c.b16 %v2991, %v2990
        %v3224 = vpack.c.b16 %v2993, %v2992
        %v3225 = vpack.c.b16 %v2995, %v2994
        %v3226 = vpack.c.b16 %v2997, %v2996
        %v3227 = vpack.c.b16 %v2999, %v2998
        %v3228 = vpack.c.b16 %v3001, %v3000
        %v3229 = vpack.c.b16 %v3003, %v3002
        %v3230 = vpack.c.b16 %v3005, %v3004
        %v3231 = vpack.c.b16 %v3007, %v3006
        %v3232 = vpack.c.b16 %v3009, %v3008
        %v3233 = vpack.c.b16 %v3011, %v3010
        %v3234 = vpack.c.b16 %v3013, %v3012
        %v3235 = vpack.c.b16 %v3015, %v3014
        %v3236 = vpack.c.b16 %v3017, %v3016
        %v3237 = vpack.c.b16 %v3019, %v3018
        %v3238 = vpack.c.b16 %v3021, %v3020
        %v3239 = vpack.c.b16 %v3023, %v3022
        %v3240 = vpack.c.b16 %v3025, %v3024
        %v3241 = vpack.c.b16 %v3027, %v3026
        %v3242 = vpack.c.b16 %v3029, %v3028
        %v3243 = vpack.c.b16 %v3031, %v3030
        %v3244 = vpack.c.b16 %v3033, %v3032
        %v3245 = vpack.c.b16 %v3035, %v3034
        %v3246 = vpack.c.b16 %v3037, %v3036
        %v3247 = vpack.c.b16 %v3039, %v3038
        %v3248 = vpack.c.b16 %v3041, %v3040
        %v3249 = vpack.c.b16 %v3043, %v3042
        %v3250 = vpack.c.b16 %v3045, %v3044
        %v3251 = vpack.c.b16 %v3047, %v3046
        %v3252 = vpack.c.b16 %v3049, %v3048
        %v3253 = vpack.c.b16 %v3051, %v3050
        %v3254 = vpack.c.b16 %v3053, %v3052
        %v3255 = vpack.c.b16 %v3055, %v3054
        %v3256 = vpack.c.b16 %v3057, %v3056
        %v3257 = vpack.c.b16 %v3059, %v3058
        %v3258 = vpack.c.b16 %v3061, %v3060
        %v3259 = vpack.c.b16 %v3063, %v3062
        %v3260 = vpack.c.b16 %v3065, %v3064
        %v3261 = vpack.c.b16 %v3067, %v3066
        %v3262 = vpack.c.b16 %v3069, %v3068
        %v3263 = vpack.c.b16 %v3071, %v3070
        %v3264 = vpack.c.b16 %v3073, %v3072
        %v3265 = vpack.c.b16 %v3075, %v3074
        %v3266 = vpack.c.b16 %v3077, %v3076
        %v3267 = vpack.c.b16 %v3079, %v3078
        %v3268 = vpack.c.b16 %v3081, %v3080
        %v3269 = vpack.c.b16 %v3083, %v3082
        %v3270 = vpack.c.b16 %v3085, %v3084
        %v3271 = vpack.c.b16 %v3087, %v3086
        %v3272 = vpack.c.b16 %v3089, %v3088
        %v3273 = vpack.c.b16 %v3091, %v3090
        %v3274 = vpack.c.b16 %v3093, %v3092
        %v3275 = vpack.c.b16 %v3095, %v3094
        %v3276 = vpack.c.b16 %v3097, %v3096
        %v3277 = vpack.c.b16 %v3099, %v3098
        %v3278 = vpack.c.b16 %v3101, %v3100
        %v3279 = vpack.c.b16 %v3103, %v3102
        %v3280 = vpack.c.b16 %v3105, %v3104
        %v3281 = vpack.c.b16 %v3107, %v3106
        %v3282 = vpack.c.b16 %v3109, %v3108
        %v3283 = vpack.c.b16 %v3111, %v3110
        %v3284 = vpack.c.b16 %v3113, %v3112
        %v3285 = vpack.c.b16 %v3115, %v3114
        %v3286 = vpack.c.b16 %v3117, %v3116
        %v3287 = vpack.c.b16 %v3119, %v3118
        %v3288 = vpack.c.b16 %v3121, %v3120
        %v3289 = vpack.c.b16 %v3123, %v3122
        %v3290 = vpack.c.b16 %v3125, %v3124
        %v3291 = vpack.c.b16 %v3127, %v3126
        %v3292 = vpack.c.b16 %v3129, %v3128
        %v3293 = vpack.c.b16 %v3131, %v3130
        %v3294 = vpack.c.b16 %v3133, %v3132
        %v3295 = vpack.c.b16 %v3135, %v3134
        %v3296 = vpack.c.b16 %v3137, %v3136
        %v3297 = vpack.c.b16 %v3139, %v3138
        %v3298 = vpack.c.b16 %v3141, %v3140
        %v3299 = vpack.c.b16 %v3143, %v3142
        %v3300 = vpack.c.b16 %v3145, %v3144
        %v3301 = vpack.c.b16 %v3147, %v3146
        %v3302 = vpack.c.b16 %v3149, %v3148
        %v3303 = vpack.c.b16 %v3151, %v3150
        %v3304 = vpack.c.b16 %v3153, %v3152
        %v3305 = vpack.c.b16 %v3155, %v3154
        %v3306 = vpack.c.b16 %v3157, %v3156
        %v3307 = vpack.c.b16 %v3159, %v3158
        %v3308 = vpack.c.b16 %v3161, %v3160
        %v3309 = vpack.c.b16 %v3163, %v3162
        %v3310 = vpack.c.b16 %v3165, %v3164
        %v3311 = vpack.c.b16 %v3167, %v3166
        %v3312 = vpack.c.b16 %v3169, %v3168
        %v3313 = vpack.c.b16 %v3171, %v3170
        %v3314 = vpack.c.b16 %v3173, %v3172
        %v3315 = vpack.c.b16 %v3175, %v3174
        %v3316 = vpack.c.b16 %v3177, %v3176
        %v3317 = vpack.c.b16 %v3179, %v3178
        %v3318 = vpack.c.b16 %v3181, %v3180
        %v3319 = vpack.c.b16 %v3183, %v3182
        %v3320 = vpack.c.b16 %v3185, %v3184
        %v3321 = vpack.c.b16 %v3187, %v3186
        %v3322 = vpack.c.b16 %v3189, %v3188
        %v3323 = vpack.c.b16 %v3191, %v3190
        %v3324 = vpack.c.b16 %v3193, %v3192
        %v3325 = vpack.c.b16 %v3195, %v3194
        %v3326 = vpack.c.b16 %v3197, %v3196
        %v3327 = vpack.c.b16 %v3199, %v3198
        %3456 = vmatpush.bf16.msra.mxu0 %v3207
        %3457 = vmatpush.bf16.msra.mxu0 %v3206
        %3458 = vmatpush.bf16.msra.mxu0 %v3205
        %3459 = vmatpush.bf16.msra.mxu0 %v3204
        %3460 = vmatpush.bf16.msra.mxu0 %v3203
        %3461 = vmatpush.bf16.msra.mxu0 %v3202
        %3462 = vmatpush.bf16.msra.mxu0 %v3201
        %3463 = vmatpush.bf16.msra.mxu0 %v3200
        %3464 = vmatmul.bf16.gmra.mxu0 %v2656
        %v3465 = vpop.f32.mrf.mxu0
        %v3466 = vadd.f32 %v2606, %v3465
        %v3467 = vpop.f32.mrf.mxu0
        %v3468 = vadd.f32 %v2606, %v3467
        %3469 = vdwg.mxu0
        %3470 = vmatpush.bf16.msra.mxu0 %v3215
        %3471 = vmatpush.bf16.msra.mxu0 %v3214
        %3472 = vmatpush.bf16.msra.mxu0 %v3213
        %3473 = vmatpush.bf16.msra.mxu0 %v3212
        %3474 = vmatpush.bf16.msra.mxu0 %v3211
        %3475 = vmatpush.bf16.msra.mxu0 %v3210
        %3476 = vmatpush.bf16.msra.mxu0 %v3209
        %3477 = vmatpush.bf16.msra.mxu0 %v3208
        %3478 = vmatmul.bf16.gmra.mxu0 %v2657
        %v3479 = vpop.f32.mrf.mxu0
        %v3480 = vadd.f32 %v3466, %v3479
        %v3481 = vpop.f32.mrf.mxu0
        %v3482 = vadd.f32 %v3468, %v3481
        %3483 = vdwg.mxu0
        %3484 = vmatpush.bf16.msra.mxu0 %v3223
        %3485 = vmatpush.bf16.msra.mxu0 %v3222
        %3486 = vmatpush.bf16.msra.mxu0 %v3221
        %3487 = vmatpush.bf16.msra.mxu0 %v3220
        %3488 = vmatpush.bf16.msra.mxu0 %v3219
        %3489 = vmatpush.bf16.msra.mxu0 %v3218
        %3490 = vmatpush.bf16.msra.mxu0 %v3217
        %3491 = vmatpush.bf16.msra.mxu0 %v3216
        %3492 = vmatmul.bf16.gmra.mxu0 %v2658
        %v3493 = vpop.f32.mrf.mxu0
        %v3494 = vadd.f32 %v3480, %v3493
        %v3495 = vpop.f32.mrf.mxu0
        %v3496 = vadd.f32 %v3482, %v3495
        %3497 = vdwg.mxu0
        %3498 = vmatpush.bf16.msra.mxu0 %v3231
        %3499 = vmatpush.bf16.msra.mxu0 %v3230
        %3500 = vmatpush.bf16.msra.mxu0 %v3229
        %3501 = vmatpush.bf16.msra.mxu0 %v3228
        %3502 = vmatpush.bf16.msra.mxu0 %v3227
        %3503 = vmatpush.bf16.msra.mxu0 %v3226
        %3504 = vmatpush.bf16.msra.mxu0 %v3225
        %3505 = vmatpush.bf16.msra.mxu0 %v3224
        %3506 = vmatmul.bf16.gmra.mxu0 %v2659
        %v3507 = vpop.f32.mrf.mxu0
        %v3508 = vadd.f32 %v3494, %v3507
        %v3509 = vpop.f32.mrf.mxu0
        %v3510 = vadd.f32 %v3496, %v3509
        %3511 = vdwg.mxu0
        %3512 = vmatpush.bf16.msra.mxu0 %v3239
        %3513 = vmatpush.bf16.msra.mxu0 %v3238
        %3514 = vmatpush.bf16.msra.mxu0 %v3237
        %3515 = vmatpush.bf16.msra.mxu0 %v3236
        %3516 = vmatpush.bf16.msra.mxu0 %v3235
        %3517 = vmatpush.bf16.msra.mxu0 %v3234
        %3518 = vmatpush.bf16.msra.mxu0 %v3233
        %3519 = vmatpush.bf16.msra.mxu0 %v3232
        %3520 = vmatmul.bf16.gmra.mxu0 %v2660
        %v3521 = vpop.f32.mrf.mxu0
        %v3522 = vadd.f32 %v3508, %v3521
        %v3523 = vpop.f32.mrf.mxu0
        %v3524 = vadd.f32 %v3510, %v3523
        %3525 = vdwg.mxu0
        %3526 = vmatpush.bf16.msra.mxu0 %v3247
        %3527 = vmatpush.bf16.msra.mxu0 %v3246
        %3528 = vmatpush.bf16.msra.mxu0 %v3245
        %3529 = vmatpush.bf16.msra.mxu0 %v3244
        %3530 = vmatpush.bf16.msra.mxu0 %v3243
        %3531 = vmatpush.bf16.msra.mxu0 %v3242
        %3532 = vmatpush.bf16.msra.mxu0 %v3241
        %3533 = vmatpush.bf16.msra.mxu0 %v3240
        %3534 = vmatmul.bf16.gmra.mxu0 %v2661
        %v3535 = vpop.f32.mrf.mxu0
        %v3536 = vadd.f32 %v3522, %v3535
        %v3537 = vpop.f32.mrf.mxu0
        %v3538 = vadd.f32 %v3524, %v3537
        %3539 = vdwg.mxu0
        %3540 = vmatpush.bf16.msra.mxu0 %v3255
        %3541 = vmatpush.bf16.msra.mxu0 %v3254
        %3542 = vmatpush.bf16.msra.mxu0 %v3253
        %3543 = vmatpush.bf16.msra.mxu0 %v3252
        %3544 = vmatpush.bf16.msra.mxu0 %v3251
        %3545 = vmatpush.bf16.msra.mxu0 %v3250
        %3546 = vmatpush.bf16.msra.mxu0 %v3249
        %3547 = vmatpush.bf16.msra.mxu0 %v3248
        %3548 = vmatmul.bf16.gmra.mxu0 %v2662
        %v3549 = vpop.f32.mrf.mxu0
        %v3550 = vadd.f32 %v3536, %v3549
        %v3551 = vpop.f32.mrf.mxu0
        %v3552 = vadd.f32 %v3538, %v3551
        %3553 = vdwg.mxu0
        %3554 = vmatpush.bf16.msra.mxu0 %v3263
        %3555 = vmatpush.bf16.msra.mxu0 %v3262
        %3556 = vmatpush.bf16.msra.mxu0 %v3261
        %3557 = vmatpush.bf16.msra.mxu0 %v3260
        %3558 = vmatpush.bf16.msra.mxu0 %v3259
        %3559 = vmatpush.bf16.msra.mxu0 %v3258
        %3560 = vmatpush.bf16.msra.mxu0 %v3257
        %3561 = vmatpush.bf16.msra.mxu0 %v3256
        %3562 = vmatmul.bf16.gmra.mxu0 %v2663
        %v3563 = vpop.f32.mrf.mxu0
        %v3564 = vadd.f32 %v3550, %v3563
        %v3565 = vpop.f32.mrf.mxu0
        %v3566 = vadd.f32 %v3552, %v3565
        %3567 = vdwg.mxu0
        %3568 = vmatpush.bf16.msra.mxu0 %v3271
        %3569 = vmatpush.bf16.msra.mxu0 %v3270
        %3570 = vmatpush.bf16.msra.mxu0 %v3269
        %3571 = vmatpush.bf16.msra.mxu0 %v3268
        %3572 = vmatpush.bf16.msra.mxu0 %v3267
        %3573 = vmatpush.bf16.msra.mxu0 %v3266
        %3574 = vmatpush.bf16.msra.mxu0 %v3265
        %3575 = vmatpush.bf16.msra.mxu0 %v3264
        %3576 = vmatmul.bf16.gmra.mxu0 %v2664
        %v3577 = vpop.f32.mrf.mxu0
        %v3578 = vadd.f32 %v3564, %v3577
        %v3579 = vpop.f32.mrf.mxu0
        %v3580 = vadd.f32 %v3566, %v3579
        %3581 = vdwg.mxu0
        %3582 = vmatpush.bf16.msra.mxu0 %v3279
        %3583 = vmatpush.bf16.msra.mxu0 %v3278
        %3584 = vmatpush.bf16.msra.mxu0 %v3277
        %3585 = vmatpush.bf16.msra.mxu0 %v3276
        %3586 = vmatpush.bf16.msra.mxu0 %v3275
        %3587 = vmatpush.bf16.msra.mxu0 %v3274
        %3588 = vmatpush.bf16.msra.mxu0 %v3273
        %3589 = vmatpush.bf16.msra.mxu0 %v3272
        %3590 = vmatmul.bf16.gmra.mxu0 %v2665
        %v3591 = vpop.f32.mrf.mxu0
        %v3592 = vadd.f32 %v3578, %v3591
        %v3593 = vpop.f32.mrf.mxu0
        %v3594 = vadd.f32 %v3580, %v3593
        %3595 = vdwg.mxu0
        %3596 = vmatpush.bf16.msra.mxu0 %v3287
        %3597 = vmatpush.bf16.msra.mxu0 %v3286
        %3598 = vmatpush.bf16.msra.mxu0 %v3285
        %3599 = vmatpush.bf16.msra.mxu0 %v3284
        %3600 = vmatpush.bf16.msra.mxu0 %v3283
        %3601 = vmatpush.bf16.msra.mxu0 %v3282
        %3602 = vmatpush.bf16.msra.mxu0 %v3281
        %3603 = vmatpush.bf16.msra.mxu0 %v3280
        %3604 = vmatmul.bf16.gmra.mxu0 %v2666
        %v3605 = vpop.f32.mrf.mxu0
        %v3606 = vadd.f32 %v3592, %v3605
        %v3607 = vpop.f32.mrf.mxu0
        %v3608 = vadd.f32 %v3594, %v3607
        %3609 = vdwg.mxu0
        %3610 = vmatpush.bf16.msra.mxu0 %v3295
        %3611 = vmatpush.bf16.msra.mxu0 %v3294
        %3612 = vmatpush.bf16.msra.mxu0 %v3293
        %3613 = vmatpush.bf16.msra.mxu0 %v3292
        %3614 = vmatpush.bf16.msra.mxu0 %v3291
        %3615 = vmatpush.bf16.msra.mxu0 %v3290
        %3616 = vmatpush.bf16.msra.mxu0 %v3289
        %3617 = vmatpush.bf16.msra.mxu0 %v3288
        %3618 = vmatmul.bf16.gmra.mxu0 %v2667
        %v3619 = vpop.f32.mrf.mxu0
        %v3620 = vadd.f32 %v3606, %v3619
        %v3621 = vpop.f32.mrf.mxu0
        %v3622 = vadd.f32 %v3608, %v3621
        %3623 = vdwg.mxu0
        %3624 = vmatpush.bf16.msra.mxu0 %v3303
        %3625 = vmatpush.bf16.msra.mxu0 %v3302
        %3626 = vmatpush.bf16.msra.mxu0 %v3301
        %3627 = vmatpush.bf16.msra.mxu0 %v3300
        %3628 = vmatpush.bf16.msra.mxu0 %v3299
        %3629 = vmatpush.bf16.msra.mxu0 %v3298
        %3630 = vmatpush.bf16.msra.mxu0 %v3297
        %3631 = vmatpush.bf16.msra.mxu0 %v3296
        %3632 = vmatmul.bf16.gmra.mxu0 %v2668
        %v3633 = vpop.f32.mrf.mxu0
        %v3634 = vadd.f32 %v3620, %v3633
        %v3635 = vpop.f32.mrf.mxu0
        %v3636 = vadd.f32 %v3622, %v3635
        %3637 = vdwg.mxu0
        %3638 = vmatpush.bf16.msra.mxu0 %v3311
        %3639 = vmatpush.bf16.msra.mxu0 %v3310
        %3640 = vmatpush.bf16.msra.mxu0 %v3309
        %3641 = vmatpush.bf16.msra.mxu0 %v3308
        %3642 = vmatpush.bf16.msra.mxu0 %v3307
        %3643 = vmatpush.bf16.msra.mxu0 %v3306
        %3644 = vmatpush.bf16.msra.mxu0 %v3305
        %3645 = vmatpush.bf16.msra.mxu0 %v3304
        %3646 = vmatmul.bf16.gmra.mxu0 %v2669
        %v3647 = vpop.f32.mrf.mxu0
        %v3648 = vadd.f32 %v3634, %v3647
        %v3649 = vpop.f32.mrf.mxu0
        %v3650 = vadd.f32 %v3636, %v3649
        %3651 = vdwg.mxu0
        %3652 = vmatpush.bf16.msra.mxu0 %v3319
        %3653 = vmatpush.bf16.msra.mxu0 %v3318
        %3654 = vmatpush.bf16.msra.mxu0 %v3317
        %3655 = vmatpush.bf16.msra.mxu0 %v3316
        %3656 = vmatpush.bf16.msra.mxu0 %v3315
        %3657 = vmatpush.bf16.msra.mxu0 %v3314
        %3658 = vmatpush.bf16.msra.mxu0 %v3313
        %3659 = vmatpush.bf16.msra.mxu0 %v3312
        %3660 = vmatmul.bf16.gmra.mxu0 %v2670
        %v3661 = vpop.f32.mrf.mxu0
        %v3662 = vadd.f32 %v3648, %v3661
        %v3663 = vpop.f32.mrf.mxu0
        %v3664 = vadd.f32 %v3650, %v3663
        %3665 = vdwg.mxu0
        %3666 = vmatpush.bf16.msra.mxu0 %v3327
        %3667 = vmatpush.bf16.msra.mxu0 %v3326
        %3668 = vmatpush.bf16.msra.mxu0 %v3325
        %3669 = vmatpush.bf16.msra.mxu0 %v3324
        %3670 = vmatpush.bf16.msra.mxu0 %v3323
        %3671 = vmatpush.bf16.msra.mxu0 %v3322
        %3672 = vmatpush.bf16.msra.mxu0 %v3321
        %3673 = vmatpush.bf16.msra.mxu0 %v3320
        %3674 = vmatmul.bf16.gmra.mxu0 %v2671
        %v3675 = vpop.f32.mrf.mxu0
        %v3676 = vadd.f32 %v3662, %v3675
        %v3677 = vpop.f32.mrf.mxu0
        %v3678 = vadd.f32 %v3664, %v3677
        %3679 = vdwg.mxu0
        %vm3680 = vcmp.ge.f32.partialorder %v3676, 0.0
        %vm3681 = vcmp.ge.f32.partialorder %v3678, 0.0
        %v3682 = vmul.f32 %v3676, 0.2
        %v3683 = vmul.f32 %v3678, 0.2
        %v3684 = vsel %vm3680, %v3676, %v3682
        %v3685 = vsel %vm3681, %v3678, %v3683
        %v3686 = vpack.c.bf16 %v3684, %v3684
        %v3687 = vpack.c.bf16 %v3685, %v3685
        %3688 = vst [vmem:[%s2320] sm:$0xf] %v3686
        %3689 = vst [vmem:[%s2320 + $0x4] sm:$0xf] %v3687
        %s3690 = sand.u32 %s114, 1
        %s3691 = sand.u32 %s114, 1
        %s3692 = smul.addr %s3691, 8
        %s3693 = scalar_lea.vmem [#allocation3], %s3692
        // Predicated region
        $region85: #{forward.12} parent=79 // pred_check
          %p3694 = pneg %p124
        $region86: #{forward.12} parent=79 // pred_check_branch
          %3696 = sbr.rel (%p3694) target = $region88
        $region87: #{forward.12} parent=79 // pred_region
          %s3697 = smul.u32 2, %s18
          %s3698 = smul.addr %s3697, 2
          %s3699 = sadd.s32 %s19, %s3698
          %s3700 = smul.addr %s3699, 4
          %s3701 = scalar_lea.vmem %s3, %s3700
          // Predicated region
          $region89: #{forward.12} parent=87 // pred_check
            _
          $region90: #{forward.12} parent=87 // pred_check_branch
            %3703 = sbr.rel (0) target = $region92
          $region91: #{forward.12} parent=87 // pred_region
            // Predicated region
            $region93: #{forward.12} parent=91 // pred_check
              _
            $region94: #{forward.12} parent=91 // pred_check_branch
              %3705 = sbr.rel target = $region96
            $region95: #{forward.12} parent=91 // pred_region
              // Predicated region
              $region108: #{forward.12} parent=95 // pred_check
                _
              $region109: #{forward.12} parent=95 // pred_check_branch
                %3723 = sbr.rel (0) target = $region111
              $region110: #{forward.12} parent=95 // pred_region
                loop: start=0, step=1, limit=1
                $region112: #{forward.12} parent=110 // loop_pre_header
                  _
                $region113: #{forward.12} parent=110 // loop_header
                  %s3725 = sphi 0, %s3729
                  %p3726 = scmp.ge.s32.totalorder %s3725, 1
                  %s3730 = sphi %s3693, %s3693
                  %s3731 = sphi %s3701, %s3701
                $region114: #{forward.12} parent=110 // loop_header_branch
                  %3728 = sbr.rel (%p3726) target = $region118
                $region115: #{forward.12} parent=110 // loop_body
                  _
                $region116: #{forward.12} parent=110 // loop_footer
                  %s3729 = sadd.s32 1, %s3725
                $region117: #{forward.12} parent=110 // loop_footer_branch
                  %3724 = sbr.rel target = $region113
                $region118: #{forward.12} parent=110 // loop_exit
                  _
                %s3733 = ssub.s32 16, 1
                loop: start=0, step=1, limit=1
                $region119: #{forward.12} parent=110 // loop_pre_header
                  _
                $region120: #{forward.12} parent=110 // loop_header
                  %s3735 = sphi 0, %s3739
                  %p3736 = scmp.ge.s32.totalorder %s3735, 1
                  %s3740 = sphi %s3693, %s3693
                  %s3741 = sphi %s3701, %s3701
                $region121: #{forward.12} parent=110 // loop_header_branch
                  %3738 = sbr.rel (%p3736) target = $region125
                $region122: #{forward.12} parent=110 // loop_body
                  %v3742 = vld [vmem:[%s3740] sm:%s3733]
                  %3743 = vst [vmem:[%s3741] sm:%s3733] %v3742
                  %v3744 = vld [vmem:[%s3740 + $0x4] sm:%s3733]
                  %3745 = vst [vmem:[%s3741 + $0x8] sm:%s3733] %v3744
                $region123: #{forward.12} parent=110 // loop_footer
                  %s3739 = sadd.s32 1, %s3735
                $region124: #{forward.12} parent=110 // loop_footer_branch
                  %3734 = sbr.rel target = $region120
                $region125: #{forward.12} parent=110 // loop_exit
                  _
              $region111: #{forward.12} parent=95 // pred_fallthru
                _
            $region96: #{forward.12} parent=91 // pred_fallthru
              _
            // Predicated region
            $region97: #{forward.12} parent=91 // pred_check
              _
            $region98: #{forward.12} parent=91 // pred_check_branch
              %3707 = sbr.rel (0) target = $region100
            $region99: #{forward.12} parent=91 // pred_region
              %s3709 = ssub.s32 16, 1
              loop: start=0, step=1, limit=1
              $region101: #{forward.12} parent=99 // loop_pre_header
                _
              $region102: #{forward.12} parent=99 // loop_header
                %s3711 = sphi 0, %s3715
                %p3712 = scmp.ge.s32.totalorder %s3711, 1
                %s3716 = sphi %s3693, %s3693
                %s3717 = sphi %s3701, %s3701
              $region103: #{forward.12} parent=99 // loop_header_branch
                %3714 = sbr.rel (%p3712) target = $region107
              $region104: #{forward.12} parent=99 // loop_body
                %v3718 = vld [vmem:[%s3716] sm:%s3709]
                %3719 = vst [vmem:[%s3717] sm:%s3709] %v3718
                %v3720 = vld [vmem:[%s3716 + $0x4] sm:%s3709]
                %3721 = vst [vmem:[%s3717 + $0x8] sm:%s3709] %v3720
              $region105: #{forward.12} parent=99 // loop_footer
                %s3715 = sadd.s32 1, %s3711
              $region106: #{forward.12} parent=99 // loop_footer_branch
                %3710 = sbr.rel target = $region102
              $region107: #{forward.12} parent=99 // loop_exit
                _
            $region100: #{forward.12} parent=91 // pred_fallthru
              _
          $region92: #{forward.12} parent=87 // pred_fallthru
            _
          %3746 = vnop
        $region88: #{forward.12} parent=79 // pred_fallthru
          _
      $region80: #{forward.12} parent=5 // pred_fallthru
        _
      %p3747 = scmp.le.s32.totalorder 2, %s9
      // Predicated region
      $region126: #{forward.12} parent=5 // pred_check
        %p3748 = pneg %p3747
      $region127: #{forward.12} parent=5 // pred_check_branch
        %3750 = sbr.rel (%p3748) target = $region129
      $region128: #{forward.12} parent=5 // pred_region
        %s3751 = ssub.s32 %s9, 2
        // Predicated region
        $region130: #{forward.12} parent=128 // pred_check
          %p3752 = pneg %p130
        $region131: #{forward.12} parent=128 // pred_check_branch
          %3754 = sbr.rel (%p3752) target = $region133
        $region132: #{forward.12} parent=128 // pred_region
          %s3755 = sand.u32 %s115, 1
          %s3756 = sand.u32 %s115, 1
          %s3757 = smul.addr %s3756, 8
          %s3758 = scalar_lea.vmem [#allocation3], %s3757
        $region133: #{forward.12} parent=128 // pred_fallthru
          _
      $region129: #{forward.12} parent=5 // pred_fallthru
        _
    $region6: #{forward.12} parent=1 // loop_footer
      %s13 = sadd.s32 1, %s9
    $region7: #{forward.12} parent=1 // loop_footer_branch
      %8 = sbr.rel target = $region3
    $region8: #{forward.12} parent=1 // loop_exit
      _

// kernel: forward.14
$region0: #{forward.14}
  #allocation0 [shape = 'u32[]', space=smem, size = 0x4, offset = 0x4, fixed_abs, tag = 'smem constant byte address 0x4 - core index']
  #allocation1 [shape = 'u32[72,128]{1,0:T(1,128)}', space=vmem, size = 0x9000, scoped, tag = 'internal scratch']
  %s0 = inlined_call_operand.vmem [shape: bf16[16,128], index: 0, kind: input, shape index: {}]
  %s1 = inlined_call_operand.vmem [shape: bf16[128,256], index: 1, kind: input, shape index: {}]
  %s2 = inlined_call_operand.vmem [shape: f32[1,256], index: 2, kind: input, shape index: {}]
  %s3 = inlined_call_operand.vmem [shape: f32[16,256], index: 3, kind: output, shape index: {}]
  %s4 = sld [smem:[#allocation0]]
  $region120: #{forward.14} parent=0
    _
  %s6 = ssub.s32 1, %s4
  %s7 = scalar_select 0, %s6, %s4
  $region1: #{forward.14} parent=0
    #allocation2 [shape = 'u8[65536]{0}', space=vmem, size = 0x10000, scoped, tag = 'input window, operand 1']
    #allocation3 [shape = 'u8[16384]{0}', space=vmem, size = 0x4000, scoped, tag = 'output window, operand 0']
    loop: start=0, step=1, limit=4
    $region2: #{forward.14} parent=1 // loop_pre_header
      _
    $region3: #{forward.14} parent=1 // loop_header
      %s9 = sphi 0, %s13
      %p10 = scmp.ge.s32.totalorder %s9, 4
      %s16 = sphi 0, %s28
      %s17 = sphi 0, %s24
      %s18 = sphi 0, %s16
      %s19 = sphi 0, %s17
      %s20 = sphi 0, %s18
      %s21 = sphi 0, %s19
      %s31 = sphi 0, %s33
      %s34 = sphi 0, %s31
      %s35 = sphi 0, %s34
      %s51 = sphi 0, %s35
      %s57 = sphi 0, %s59
      %s60 = sphi 0, %s57
      %s61 = sphi 0, %s60
      %s77 = sphi 0, %s61
      %s83 = sphi 0, %s85
      %s86 = sphi 0, %s83
      %s87 = sphi 0, %s86
      %s103 = sphi 0, %s87
      %s111 = sphi 0, %s113
      %s114 = sphi 0, %s111
      %s115 = sphi 0, %s114
      %s131 = sphi 0, %s115
    $region4: #{forward.14} parent=1 // loop_header_branch
      %12 = sbr.rel (%p10) target = $region8
    $region5: #{forward.14} parent=1 // loop_body
      %s14 = ssub.s32 %s9, 1
      %s15 = ssub.s32 %s9, 2
      %s22 = sadd.s32 1, %s17
      %p23 = scmp.ge.s32.totalorder %s22, 2
      %s24 = scalar_select %p23, 0, %s22
      %s25 = sadd.s32 1, %s16
      %s26 = scalar_select %p23, %s25, %s16
      %p27 = scmp.ge.s32.totalorder %s26, 1
      %s28 = scalar_select %p27, 0, %s26
      %s29 = ssub.s32 %s16, %s28
      %p30 = scmp.eq.s32.totalorder %s29, 0
      %s32 = sadd.s32 %s31, 1
      %s33 = scalar_select %p30, %s31, %s32
      %p36 = pneg %p30
      %p37 = scmp.eq.s32.totalorder %s9, 1
      %p38 = por %p36, %p37
      %p39 = scmp.ne.s32.totalorder %s31, %s34
      %p40 = scmp.eq.s32.totalorder %s9, 0
      %p41 = por %p39, %p40
      %p42 = scmp.ne.s32.totalorder %s31, %s34
      %p43 = scmp.eq.s32.totalorder %s14, 1
      %p44 = por %p42, %p43
      %p45 = scmp.ne.s32.totalorder %s34, %s35
      %p46 = scmp.eq.s32.totalorder %s14, 0
      %p47 = por %p45, %p46
      %p48 = scmp.ne.s32.totalorder %s34, %s35
      %p49 = scmp.eq.s32.totalorder %s15, 1
      %p50 = por %p48, %p49
      %p52 = scmp.ne.s32.totalorder %s35, %s51
      %p53 = scmp.eq.s32.totalorder %s15, 0
      %p54 = por %p52, %p53
      %s55 = ssub.s32 %s17, %s24
      %p56 = scmp.eq.s32.totalorder %s55, 0
      %s58 = sadd.s32 %s57, 1
      %s59 = scalar_select %p56, %s57, %s58
      %p62 = pneg %p56
      %p63 = scmp.eq.s32.totalorder %s9, 1
      %p64 = por %p62, %p63
      %p65 = scmp.ne.s32.totalorder %s57, %s60
      %p66 = scmp.eq.s32.totalorder %s9, 0
      %p67 = por %p65, %p66
      %p68 = scmp.ne.s32.totalorder %s57, %s60
      %p69 = scmp.eq.s32.totalorder %s14, 1
      %p70 = por %p68, %p69
      %p71 = scmp.ne.s32.totalorder %s60, %s61
      %p72 = scmp.eq.s32.totalorder %s14, 0
      %p73 = por %p71, %p72
      %p74 = scmp.ne.s32.totalorder %s60, %s61
      %p75 = scmp.eq.s32.totalorder %s15, 1
      %p76 = por %p74, %p75
      %p78 = scmp.ne.s32.totalorder %s61, %s77
      %p79 = scmp.eq.s32.totalorder %s15, 0
      %p80 = por %p78, %p79
      %s81 = ssub.s32 %s17, %s24
      %p82 = scmp.eq.s32.totalorder %s81, 0
      %s84 = sadd.s32 %s83, 1
      %s85 = scalar_select %p82, %s83, %s84
      %p88 = pneg %p82
      %p89 = scmp.eq.s32.totalorder %s9, 1
      %p90 = por %p88, %p89
      %p91 = scmp.ne.s32.totalorder %s83, %s86
      %p92 = scmp.eq.s32.totalorder %s9, 0
      %p93 = por %p91, %p92
      %p94 = scmp.ne.s32.totalorder %s83, %s86
      %p95 = scmp.eq.s32.totalorder %s14, 1
      %p96 = por %p94, %p95
      %p97 = scmp.ne.s32.totalorder %s86, %s87
      %p98 = scmp.eq.s32.totalorder %s14, 0
      %p99 = por %p97, %p98
      %p100 = scmp.ne.s32.totalorder %s86, %s87
      %p101 = scmp.eq.s32.totalorder %s15, 1
      %p102 = por %p100, %p101
      %p104 = scmp.ne.s32.totalorder %s87, %s103
      %p105 = scmp.eq.s32.totalorder %s15, 0
      %p106 = por %p104, %p105
      %s107 = ssub.s32 %s16, %s28
      %s108 = ssub.s32 %s17, %s24
      %s109 = sor.u32 %s107, %s108
      %p110 = scmp.eq.s32.totalorder %s109, 0
      %s112 = sadd.s32 %s111, 1
      %s113 = scalar_select %p110, %s111, %s112
      %p116 = pneg %p110
      %p117 = scmp.eq.s32.totalorder %s9, 1
      %p118 = por %p116, %p117
      %p119 = scmp.ne.s32.totalorder %s111, %s114
      %p120 = scmp.eq.s32.totalorder %s9, 0
      %p121 = por %p119, %p120
      %p122 = scmp.ne.s32.totalorder %s111, %s114
      %p123 = scmp.eq.s32.totalorder %s14, 1
      %p124 = por %p122, %p123
      %p125 = scmp.ne.s32.totalorder %s114, %s115
      %p126 = scmp.eq.s32.totalorder %s14, 0
      %p127 = por %p125, %p126
      %p128 = scmp.ne.s32.totalorder %s114, %s115
      %p129 = scmp.eq.s32.totalorder %s15, 1
      %p130 = por %p128, %p129
      %p132 = scmp.ne.s32.totalorder %s115, %s131
      %p133 = scmp.eq.s32.totalorder %s15, 0
      %p134 = por %p132, %p133
      %p135 = scmp.le.s32.totalorder 1, %s9
      %p136 = scmp.lt.s32.totalorder %s9, 3
      %p137 = pnand %p135, %p136
      %p138 = pneg %p137
      // Predicated region
      $region9: #{forward.14} parent=5 // pred_check
        _
      $region10: #{forward.14} parent=5 // pred_check_branch
        %140 = sbr.rel (%p137) target = $region12
      $region11: #{forward.14} parent=5 // pred_region
        %s141 = ssub.s32 %s9, 1
        // Predicated region
        $region13: #{forward.14} parent=11 // pred_check
          %p142 = pneg %p47
        $region14: #{forward.14} parent=11 // pred_check_branch
          %144 = sbr.rel (%p142) target = $region16
        $region15: #{forward.14} parent=11 // pred_region
          %s145 = smul.u32 2, %s18
          %p146 = scmp.lt.s32.totalorder %s145, 1
          %s147 = scalar_select %p146, %s145, 1
          %s148 = smul.addr %s147, 4
          %s149 = scalar_lea.vmem %s0, %s148
          %s150 = smul.u32 2, %s18
        $region16: #{forward.14} parent=11 // pred_fallthru
          _
      $region12: #{forward.14} parent=5 // pred_fallthru
        _
      %p151 = scmp.lt.s32.totalorder %s9, 2
      // Predicated region
      $region17: #{forward.14} parent=5 // pred_check
        %p152 = pneg %p151
      $region18: #{forward.14} parent=5 // pred_check_branch
        %154 = sbr.rel (%p152) target = $region20
      $region19: #{forward.14} parent=5 // pred_region
        // Predicated region
        $region21: #{forward.14} parent=19 // pred_check
          %p155 = pneg %p67
        $region22: #{forward.14} parent=19 // pred_check_branch
          %157 = sbr.rel (%p155) target = $region24
        $region23: #{forward.14} parent=19 // pred_region
          %s158 = sand.u32 %s57, 1
          %s159 = sand.u32 %s57, 1
          %s160 = smul.addr %s159, 64
          %s161 = scalar_lea.vmem [#allocation2], %s160
          %s162 = smul.addr %s17, 4
          %s163 = scalar_lea.vmem %s1, %s162
          // Predicated region
          $region25: #{forward.14} parent=23 // pred_check
            _
          $region26: #{forward.14} parent=23 // pred_check_branch
            %165 = sbr.rel (0) target = $region28
          $region27: #{forward.14} parent=23 // pred_region
            // Predicated region
            $region29: #{forward.14} parent=27 // pred_check
              _
            $region30: #{forward.14} parent=27 // pred_check_branch
              %167 = sbr.rel target = $region32
            $region31: #{forward.14} parent=27 // pred_region
              // Predicated region
              $region44: #{forward.14} parent=31 // pred_check
                _
              $region45: #{forward.14} parent=31 // pred_check_branch
                %213 = sbr.rel (0) target = $region47
              $region46: #{forward.14} parent=31 // pred_region
                loop: start=0, step=1, limit=1
                $region48: #{forward.14} parent=46 // loop_pre_header
                  _
                $region49: #{forward.14} parent=46 // loop_header
                  %s215 = sphi 0, %s219
                  %p216 = scmp.ge.s32.totalorder %s215, 1
                  %s220 = sphi %s163, %s163
                  %s221 = sphi %s161, %s161
                $region50: #{forward.14} parent=46 // loop_header_branch
                  %218 = sbr.rel (%p216) target = $region54
                $region51: #{forward.14} parent=46 // loop_body
                  _
                $region52: #{forward.14} parent=46 // loop_footer
                  %s219 = sadd.s32 1, %s215
                $region53: #{forward.14} parent=46 // loop_footer_branch
                  %214 = sbr.rel target = $region49
                $region54: #{forward.14} parent=46 // loop_exit
                  _
                %s223 = ssub.s32 16, 1
                loop: start=0, step=1, limit=1
                $region55: #{forward.14} parent=46 // loop_pre_header
                  _
                $region56: #{forward.14} parent=46 // loop_header
                  %s225 = sphi 0, %s229
                  %p226 = scmp.ge.s32.totalorder %s225, 1
                  %s230 = sphi %s163, %s163
                  %s231 = sphi %s161, %s161
                $region57: #{forward.14} parent=46 // loop_header_branch
                  %228 = sbr.rel (%p226) target = $region61
                $region58: #{forward.14} parent=46 // loop_body
                  %v232 = vld [vmem:[%s230] sm:%s223]
                  %233 = vst [vmem:[%s231] sm:%s223] %v232
                  %v234 = vld [vmem:[%s230 + $0x8] sm:%s223]
                  %235 = vst [vmem:[%s231 + $0x4] sm:%s223] %v234
                  %v236 = vld [vmem:[%s230 + $0x10] sm:%s223]
                  %237 = vst [vmem:[%s231 + $0x8] sm:%s223] %v236
                  %v238 = vld [vmem:[%s230 + $0x18] sm:%s223]
                  %239 = vst [vmem:[%s231 + $0xc] sm:%s223] %v238
                  %v240 = vld [vmem:[%s230 + $0x20] sm:%s223]
                  %241 = vst [vmem:[%s231 + $0x10] sm:%s223] %v240
                  %v242 = vld [vmem:[%s230 + $0x28] sm:%s223]
                  %243 = vst [vmem:[%s231 + $0x14] sm:%s223] %v242
                  %v244 = vld [vmem:[%s230 + $0x30] sm:%s223]
                  %245 = vst [vmem:[%s231 + $0x18] sm:%s223] %v244
                  %v246 = vld [vmem:[%s230 + $0x38] sm:%s223]
                  %247 = vst [vmem:[%s231 + $0x1c] sm:%s223] %v246
                  %v248 = vld [vmem:[%s230 + $0x40] sm:%s223]
                  %249 = vst [vmem:[%s231 + $0x20] sm:%s223] %v248
                  %v250 = vld [vmem:[%s230 + $0x48] sm:%s223]
                  %251 = vst [vmem:[%s231 + $0x24] sm:%s223] %v250
                  %v252 = vld [vmem:[%s230 + $0x50] sm:%s223]
                  %253 = vst [vmem:[%s231 + $0x28] sm:%s223] %v252
                  %v254 = vld [vmem:[%s230 + $0x58] sm:%s223]
                  %255 = vst [vmem:[%s231 + $0x2c] sm:%s223] %v254
                  %v256 = vld [vmem:[%s230 + $0x60] sm:%s223]
                  %257 = vst [vmem:[%s231 + $0x30] sm:%s223] %v256
                  %v258 = vld [vmem:[%s230 + $0x68] sm:%s223]
                  %259 = vst [vmem:[%s231 + $0x34] sm:%s223] %v258
                  %v260 = vld [vmem:[%s230 + $0x70] sm:%s223]
                  %261 = vst [vmem:[%s231 + $0x38] sm:%s223] %v260
                  %v262 = vld [vmem:[%s230 + $0x78] sm:%s223]
                  %263 = vst [vmem:[%s231 + $0x3c] sm:%s223] %v262
                $region59: #{forward.14} parent=46 // loop_footer
                  %s229 = sadd.s32 1, %s225
                $region60: #{forward.14} parent=46 // loop_footer_branch
                  %224 = sbr.rel target = $region56
                $region61: #{forward.14} parent=46 // loop_exit
                  _
              $region47: #{forward.14} parent=31 // pred_fallthru
                _
            $region32: #{forward.14} parent=27 // pred_fallthru
              _
            // Predicated region
            $region33: #{forward.14} parent=27 // pred_check
              _
            $region34: #{forward.14} parent=27 // pred_check_branch
              %169 = sbr.rel (0) target = $region36
            $region35: #{forward.14} parent=27 // pred_region
              %s171 = ssub.s32 16, 1
              loop: start=0, step=1, limit=1
              $region37: #{forward.14} parent=35 // loop_pre_header
                _
              $region38: #{forward.14} parent=35 // loop_header
                %s173 = sphi 0, %s177
                %p174 = scmp.ge.s32.totalorder %s173, 1
                %s178 = sphi %s163, %s163
                %s179 = sphi %s161, %s161
              $region39: #{forward.14} parent=35 // loop_header_branch
                %176 = sbr.rel (%p174) target = $region43
              $region40: #{forward.14} parent=35 // loop_body
                %v180 = vld [vmem:[%s178] sm:%s171]
                %181 = vst [vmem:[%s179] sm:%s171] %v180
                %v182 = vld [vmem:[%s178 + $0x8] sm:%s171]
                %183 = vst [vmem:[%s179 + $0x4] sm:%s171] %v182
                %v184 = vld [vmem:[%s178 + $0x10] sm:%s171]
                %185 = vst [vmem:[%s179 + $0x8] sm:%s171] %v184
                %v186 = vld [vmem:[%s178 + $0x18] sm:%s171]
                %187 = vst [vmem:[%s179 + $0xc] sm:%s171] %v186
                %v188 = vld [vmem:[%s178 + $0x20] sm:%s171]
                %189 = vst [vmem:[%s179 + $0x10] sm:%s171] %v188
                %v190 = vld [vmem:[%s178 + $0x28] sm:%s171]
                %191 = vst [vmem:[%s179 + $0x14] sm:%s171] %v190
                %v192 = vld [vmem:[%s178 + $0x30] sm:%s171]
                %193 = vst [vmem:[%s179 + $0x18] sm:%s171] %v192
                %v194 = vld [vmem:[%s178 + $0x38] sm:%s171]
                %195 = vst [vmem:[%s179 + $0x1c] sm:%s171] %v194
                %v196 = vld [vmem:[%s178 + $0x40] sm:%s171]
                %197 = vst [vmem:[%s179 + $0x20] sm:%s171] %v196
                %v198 = vld [vmem:[%s178 + $0x48] sm:%s171]
                %199 = vst [vmem:[%s179 + $0x24] sm:%s171] %v198
                %v200 = vld [vmem:[%s178 + $0x50] sm:%s171]
                %201 = vst [vmem:[%s179 + $0x28] sm:%s171] %v200
                %v202 = vld [vmem:[%s178 + $0x58] sm:%s171]
                %203 = vst [vmem:[%s179 + $0x2c] sm:%s171] %v202
                %v204 = vld [vmem:[%s178 + $0x60] sm:%s171]
                %205 = vst [vmem:[%s179 + $0x30] sm:%s171] %v204
                %v206 = vld [vmem:[%s178 + $0x68] sm:%s171]
                %207 = vst [vmem:[%s179 + $0x34] sm:%s171] %v206
                %v208 = vld [vmem:[%s178 + $0x70] sm:%s171]
                %209 = vst [vmem:[%s179 + $0x38] sm:%s171] %v208
                %v210 = vld [vmem:[%s178 + $0x78] sm:%s171]
                %211 = vst [vmem:[%s179 + $0x3c] sm:%s171] %v210
              $region41: #{forward.14} parent=35 // loop_footer
                %s177 = sadd.s32 1, %s173
              $region42: #{forward.14} parent=35 // loop_footer_branch
                %172 = sbr.rel target = $region38
              $region43: #{forward.14} parent=35 // loop_exit
                _
            $region36: #{forward.14} parent=27 // pred_fallthru
              _
          $region28: #{forward.14} parent=23 // pred_fallthru
            _
          %264 = vnop
        $region24: #{forward.14} parent=19 // pred_fallthru
          _
        // Predicated region
        $region62: #{forward.14} parent=19 // pred_check
          %p265 = pneg %p93
        $region63: #{forward.14} parent=19 // pred_check_branch
          %267 = sbr.rel (%p265) target = $region65
        $region64: #{forward.14} parent=19 // pred_region
          %p268 = scmp.lt.s32.totalorder %s17, 1
          %s269 = scalar_select %p268, %s17, 1
          %s270 = scalar_lea.vmem %s2, %s269
        $region65: #{forward.14} parent=19 // pred_fallthru
          _
      $region20: #{forward.14} parent=5 // pred_fallthru
        _
      %p271 = scmp.le.s32.totalorder 1, %s9
      %p272 = scmp.lt.s32.totalorder %s9, 3
      %p273 = pnand %p271, %p272
      %p274 = pneg %p273
      // Predicated region
      $region66: #{forward.14} parent=5 // pred_check
        _
      $region67: #{forward.14} parent=5 // pred_check_branch
        %276 = sbr.rel (%p273) target = $region69
      $region68: #{forward.14} parent=5 // pred_region
        %s277 = ssub.s32 %s9, 1
        %s278 = sand.u32 %s60, 1
        %s279 = sand.u32 %s60, 1
        %s280 = smul.addr %s279, 64
        %s281 = scalar_lea.vmem [#allocation2], %s280
        // Predicated region
        $region70: #{forward.14} parent=68 // pred_check
          %p282 = pneg %p73
        $region71: #{forward.14} parent=68 // pred_check_branch
          %284 = sbr.rel (%p282) target = $region73
        $region72: #{forward.14} parent=68 // pred_region
          _
        $region73: #{forward.14} parent=68 // pred_fallthru
          _
        %s285 = smul.u32 2, %s18
        %p286 = scmp.lt.s32.totalorder %s285, 1
        %s287 = scalar_select %p286, %s285, 1
        %s288 = smul.addr %s287, 4
        %s289 = scalar_lea.vmem %s0, %s288
        %p290 = pneg %p47
        %p291 = pneg %p44
        %s292 = sand.u32 %s60, 1
        %s293 = sand.u32 %s60, 1
        %s294 = smul.addr %s293, 64
        %s295 = scalar_lea.vmem [#allocation2], %s294
        %p296 = pneg %p73
        %p297 = pneg %p70
        %p298 = scmp.lt.s32.totalorder %s19, 1
        %s299 = scalar_select %p298, %s19, 1
        %s300 = scalar_lea.vmem %s2, %s299
        %p301 = pneg %p99
        %p302 = pneg %p96
        %p303 = pneg %p127
        %p304 = pneg %p124
        %s305 = sand.u32 %s114, 1
        %s306 = sand.u32 %s114, 1
        %s307 = smul.addr %s306, 16
        %s308 = scalar_lea.vmem [#allocation3], %s307
        %s309 = smul.u32 2, %s18
        %p310 = scmp.lt.s32.totalorder %s309, 1
        %s311 = scalar_select %p310, %s309, 1
        %s312 = smul.addr %s311, 4
        %s313 = scalar_lea.vmem %s0, %s312
        %s314 = smul.u32 2, %s18
        %p315 = scmp.lt.s32.totalorder %s19, 1
        %s316 = scalar_select %p315, %s19, 1
        %s317 = scalar_lea.vmem %s2, %s316
        %s318 = smul.u32 2, %s18
        %v319 = vld [vmem:[%s313] sm:$0xf]
        %v320 = vld [vmem:[%s313 + $0x4] sm:$0xf]
        %v321 = vld [vmem:[%s281] sm:$0xf]
        %v322 = vld [vmem:[%s281 + $0x4] sm:$0xf]
        %v323 = vld [vmem:[%s281 + $0x8] sm:$0xf]
        %v324 = vld [vmem:[%s281 + $0xc] sm:$0xf]
        %v325 = vld [vmem:[%s281 + $0x10] sm:$0xf]
        %v326 = vld [vmem:[%s281 + $0x14] sm:$0xf]
        %v327 = vld [vmem:[%s281 + $0x18] sm:$0xf]
        %v328 = vld [vmem:[%s281 + $0x1c] sm:$0xf]
        %v329 = vld [vmem:[%s281 + $0x20] sm:$0xf]
        %v330 = vld [vmem:[%s281 + $0x24] sm:$0xf]
        %v331 = vld [vmem:[%s281 + $0x28] sm:$0xf]
        %v332 = vld [vmem:[%s281 + $0x2c] sm:$0xf]
        %v333 = vld [vmem:[%s281 + $0x30] sm:$0xf]
        %v334 = vld [vmem:[%s281 + $0x34] sm:$0xf]
        %v335 = vld [vmem:[%s281 + $0x38] sm:$0xf]
        %v336 = vld [vmem:[%s281 + $0x3c] sm:$0xf]
        %v337 = vld [vmem:[%s317] sm:$0x1]
        %v339 = vperm.slane %v337, 0
        %v343 = vunpack.c.l.b16 %v319
        %v344 = vunpack.c.l.b16 %v320
        %v345 = vpack.c.b16 %v344, %v343
        %v363 = vunpack.c.l.b16 %v321
        %v364 = vunpack.c.l.b16 %v322
        %v365 = vunpack.c.l.b16 %v323
        %v366 = vunpack.c.l.b16 %v324
        %v367 = vunpack.c.l.b16 %v325
        %v368 = vunpack.c.l.b16 %v326
        %v369 = vunpack.c.l.b16 %v327
        %v370 = vunpack.c.l.b16 %v328
        %v371 = vunpack.c.l.b16 %v329
        %v372 = vunpack.c.l.b16 %v330
        %v373 = vunpack.c.l.b16 %v331
        %v374 = vunpack.c.l.b16 %v332
        %v375 = vunpack.c.l.b16 %v333
        %v376 = vunpack.c.l.b16 %v334
        %v377 = vunpack.c.l.b16 %v335
        %v378 = vunpack.c.l.b16 %v336
        %v379 = vpack.c.b16 %v364, %v363
        %v380 = vpack.c.b16 %v366, %v365
        %v381 = vpack.c.b16 %v368, %v367
        %v382 = vpack.c.b16 %v370, %v369
        %v383 = vpack.c.b16 %v372, %v371
        %v384 = vpack.c.b16 %v374, %v373
        %v385 = vpack.c.b16 %v376, %v375
        %v386 = vpack.c.b16 %v378, %v377
        %395 = vmatpush.bf16.msra.mxu0 %v386
        %396 = vmatpush.bf16.msra.mxu0 %v385
        %397 = vmatpush.bf16.msra.mxu0 %v384
        %398 = vmatpush.bf16.msra.mxu0 %v383
        %399 = vmatpush.bf16.msra.mxu0 %v382
        %400 = vmatpush.bf16.msra.mxu0 %v381
        %401 = vmatpush.bf16.msra.mxu0 %v380
        %402 = vmatpush.bf16.msra.mxu0 %v379
        %403 = vmatmul.bf16.gmra.mxu0 %v345
        %v404 = vpop.f32.mrf.mxu0
        %v405 = vadd.f32 %v339, %v404
        %v406 = vpop.f32.mrf.mxu0
        %v407 = vadd.f32 %v339, %v406
        %408 = vdwg.mxu0
        %409 = vst [vmem:[%s308] sm:$0xff] %v405
        %410 = vst [vmem:[%s308 + $0x8] sm:$0xff] %v407
        %s411 = sand.u32 %s114, 1
        %s412 = sand.u32 %s114, 1
        %s413 = smul.addr %s412, 16
        %s414 = scalar_lea.vmem [#allocation3], %s413
        // Predicated region
        $region74: #{forward.14} parent=68 // pred_check
          %p415 = pneg %p124
        $region75: #{forward.14} parent=68 // pred_check_branch
          %417 = sbr.rel (%p415) target = $region77
        $region76: #{forward.14} parent=68 // pred_region
          %s418 = smul.u32 2, %s18
          %s419 = smul.addr %s418, 2
          %s420 = sadd.s32 %s19, %s419
          %s421 = smul.addr %s420, 8
          %s422 = scalar_lea.vmem %s3, %s421
          // Predicated region
          $region78: #{forward.14} parent=76 // pred_check
            _
          $region79: #{forward.14} parent=76 // pred_check_branch
            %424 = sbr.rel (0) target = $region81
          $region80: #{forward.14} parent=76 // pred_region
            // Predicated region
            $region82: #{forward.14} parent=80 // pred_check
              _
            $region83: #{forward.14} parent=80 // pred_check_branch
              %426 = sbr.rel (0) target = $region85
            $region84: #{forward.14} parent=80 // pred_region
              // Predicated region
              $region97: #{forward.14} parent=84 // pred_check
                _
              $region98: #{forward.14} parent=84 // pred_check_branch
                %444 = sbr.rel (0) target = $region100
              $region99: #{forward.14} parent=84 // pred_region
                loop: start=0, step=1, limit=1
                $region101: #{forward.14} parent=99 // loop_pre_header
                  _
                $region102: #{forward.14} parent=99 // loop_header
                  %s446 = sphi 0, %s450
                  %p447 = scmp.ge.s32.totalorder %s446, 1
                  %s451 = sphi %s414, %s414
                  %s452 = sphi %s422, %s422
                $region103: #{forward.14} parent=99 // loop_header_branch
                  %449 = sbr.rel (%p447) target = $region107
                $region104: #{forward.14} parent=99 // loop_body
                  %v453 = vld [vmem:[%s451] sm:$0xff]
                  %454 = vst [vmem:[%s452] sm:$0xff] %v453
                  %v455 = vld [vmem:[%s451 + $0x8] sm:$0xff]
                  %456 = vst [vmem:[%s452 + $0x10] sm:$0xff] %v455
                $region105: #{forward.14} parent=99 // loop_footer
                  %s450 = sadd.s32 1, %s446
                $region106: #{forward.14} parent=99 // loop_footer_branch
                  %445 = sbr.rel target = $region102
                $region107: #{forward.14} parent=99 // loop_exit
                  _
              $region100: #{forward.14} parent=84 // pred_fallthru
                _
              // Predicated region
              $region108: #{forward.14} parent=84 // pred_check
                _
              $region109: #{forward.14} parent=84 // pred_check_branch
                %458 = sbr.rel target = $region111
              $region110: #{forward.14} parent=84 // pred_region
                _
              $region111: #{forward.14} parent=84 // pred_fallthru
                _
            $region85: #{forward.14} parent=80 // pred_fallthru
              _
            // Predicated region
            $region86: #{forward.14} parent=80 // pred_check
              _
            $region87: #{forward.14} parent=80 // pred_check_branch
              %428 = sbr.rel target = $region89
            $region88: #{forward.14} parent=80 // pred_region
              %s430 = ssub.s32 256, 1
              loop: start=0, step=1, limit=1
              $region90: #{forward.14} parent=88 // loop_pre_header
                _
              $region91: #{forward.14} parent=88 // loop_header
                %s432 = sphi 0, %s436
                %p433 = scmp.ge.s32.totalorder %s432, 1
                %s437 = sphi %s414, %s414
                %s438 = sphi %s422, %s422
              $region92: #{forward.14} parent=88 // loop_header_branch
                %435 = sbr.rel (%p433) target = $region96
              $region93: #{forward.14} parent=88 // loop_body
                %v439 = vld [vmem:[%s437] sm:%s430]
                %440 = vst [vmem:[%s438] sm:%s430] %v439
                %v441 = vld [vmem:[%s437 + $0x8] sm:%s430]
                %442 = vst [vmem:[%s438 + $0x10] sm:%s430] %v441
              $region94: #{forward.14} parent=88 // loop_footer
                %s436 = sadd.s32 1, %s432
              $region95: #{forward.14} parent=88 // loop_footer_branch
                %431 = sbr.rel target = $region91
              $region96: #{forward.14} parent=88 // loop_exit
                _
            $region89: #{forward.14} parent=80 // pred_fallthru
              _
          $region81: #{forward.14} parent=76 // pred_fallthru
            _
          %459 = vnop
        $region77: #{forward.14} parent=68 // pred_fallthru
          _
      $region69: #{forward.14} parent=5 // pred_fallthru
        _
      %p460 = scmp.le.s32.totalorder 2, %s9
      // Predicated region
      $region112: #{forward.14} parent=5 // pred_check
        %p461 = pneg %p460
      $region113: #{forward.14} parent=5 // pred_check_branch
        %463 = sbr.rel (%p461) target = $region115
      $region114: #{forward.14} parent=5 // pred_region
        %s464 = ssub.s32 %s9, 2
        // Predicated region
        $region116: #{forward.14} parent=114 // pred_check
          %p465 = pneg %p130
        $region117: #{forward.14} parent=114 // pred_check_branch
          %467 = sbr.rel (%p465) target = $region119
        $region118: #{forward.14} parent=114 // pred_region
          %s468 = sand.u32 %s115, 1
          %s469 = sand.u32 %s115, 1
          %s470 = smul.addr %s469, 16
          %s471 = scalar_lea.vmem [#allocation3], %s470
        $region119: #{forward.14} parent=114 // pred_fallthru
          _
      $region115: #{forward.14} parent=5 // pred_fallthru
        _
    $region6: #{forward.14} parent=1 // loop_footer
      %s13 = sadd.s32 1, %s9
    $region7: #{forward.14} parent=1 // loop_footer_branch
      %8 = sbr.rel target = $region3
    $region8: #{forward.14} parent=1 // loop_exit
      _

// kernel: forward.13
$region0: #{forward.13}
  #allocation0 [shape = 'u32[]', space=smem, size = 0x4, offset = 0x4, fixed_abs, tag = 'smem constant byte address 0x4 - core index']
  #allocation1 [shape = 'u32[72,128]{1,0:T(1,128)}', space=vmem, size = 0x9000, scoped, tag = 'internal scratch']
  #allocation2 [shape = 'bf16[32,8]{1,0:T(8,128)(2,1)}', space=vmem, size = 0x2000, scoped, tag = 'scratch operand']
  #allocation3 [shape = 'bf16[8,256]{1,0:T(8,128)(2,1)}', space=vmem, size = 0x1000, scoped, tag = 'scratch operand']
  #allocation4 [shape = 'f32[1,1]{1,0:T(1,128)S(6)}', space=smem, size = 0x200, scoped, tag = 'scoped memory for forward.13']
  %s0 = inlined_call_operand.vmem [shape: bf16[2,8,256], index: 0, kind: input, shape index: {}, may-alias: {0,1}]
  %s1 = inlined_call_operand.vmem [shape: bf16[2,8,256], index: 1, kind: input, shape index: {}, may-alias: {0,1}]
  %s2 = inlined_call_operand.vmem [shape: bf16[256,32], index: 2, kind: input, shape index: {}]
  %s3 = inlined_call_operand.vmem [shape: f32[1,32], index: 3, kind: input, shape index: {}]
  %s4 = inlined_call_operand.vmem [shape: bf16[32,256], index: 4, kind: input, shape index: {}]
  %s5 = inlined_call_operand.vmem [shape: f32[32,1], index: 5, kind: input, shape index: {}]
  %s6 = inlined_call_operand.vmem [shape: bf16[256,256], index: 6, kind: input, shape index: {}]
  %s7 = inlined_call_operand.vmem [shape: f32[1,256], index: 7, kind: input, shape index: {}]
  %s8 = inlined_call_operand.<no memory space> [shape: f32[1,1], index: 8, kind: input, shape index: {}]
  %s9 = inlined_call_operand.vmem [shape: f32[2,8,256], index: 9, kind: output, shape index: {}]
  %s10 = sld [smem:[#allocation0]]
  $region73: #{forward.13} parent=0
    _
  %s12 = ssub.s32 1, %s10
  %s13 = scalar_select 0, %s12, %s10
  %14 = sst [smem:[#allocation4]] %s8
  loop: start=0, step=1, limit=4
  $region2: #{forward.13} parent=0 // loop_pre_header
    _
  $region3: #{forward.13} parent=0 // loop_header
    %s16 = sphi 0, %s20
    %p17 = scmp.ge.s32.totalorder %s16, 4
    %s23 = sphi 0, %s35
    %s24 = sphi 0, %s31
    %s25 = sphi 0, %s23
    %s26 = sphi 0, %s24
    %s27 = sphi 0, %s25
    %s28 = sphi 0, %s26
    %s38 = sphi 0, %s40
    %s41 = sphi 0, %s38
    %s42 = sphi 0, %s41
    %s58 = sphi 0, %s42
    %s66 = sphi 0, %s68
    %s69 = sphi 0, %s66
    %s70 = sphi 0, %s69
    %s86 = sphi 0, %s70
    %s90 = sphi 0, %s90
    %s92 = sphi 0, %s90
    %s93 = sphi 0, %s92
    %s107 = sphi 0, %s93
    %s111 = sphi 0, %s111
    %s113 = sphi 0, %s111
    %s114 = sphi 0, %s113
    %s128 = sphi 0, %s114
    %s132 = sphi 0, %s132
    %s134 = sphi 0, %s132
    %s135 = sphi 0, %s134
    %s149 = sphi 0, %s135
    %s153 = sphi 0, %s153
    %s155 = sphi 0, %s153
    %s156 = sphi 0, %s155
    %s170 = sphi 0, %s156
    %s174 = sphi 0, %s174
    %s176 = sphi 0, %s174
    %s177 = sphi 0, %s176
    %s191 = sphi 0, %s177
    %s195 = sphi 0, %s195
    %s197 = sphi 0, %s195
    %s198 = sphi 0, %s197
    %s212 = sphi 0, %s198
    %s216 = sphi 0, %s216
    %s218 = sphi 0, %s216
    %s219 = sphi 0, %s218
    %s233 = sphi 0, %s219
    %s241 = sphi 0, %s243
    %s244 = sphi 0, %s241
    %s245 = sphi 0, %s244
    %s261 = sphi 0, %s245
  $region4: #{forward.13} parent=0 // loop_header_branch
    %19 = sbr.rel (%p17) target = $region8
  $region5: #{forward.13} parent=0 // loop_body
    %s21 = ssub.s32 %s16, 1
    %s22 = ssub.s32 %s16, 2
    %s29 = sadd.s32 1, %s24
    %p30 = scmp.ge.s32.totalorder %s29, 1
    %s31 = scalar_select %p30, 0, %s29
    %s32 = sadd.s32 1, %s23
    %s33 = scalar_select %p30, %s32, %s23
    %p34 = scmp.ge.s32.totalorder %s33, 2
    %s35 = scalar_select %p34, 0, %s33
    %s36 = ssub.s32 %s23, %s35
    %p37 = scmp.eq.s32.totalorder %s36, 0
    %s39 = sadd.s32 %s38, 1
    %s40 = scalar_select %p37, %s38, %s39
    %p43 = pneg %p37
    %p44 = scmp.eq.s32.totalorder %s16, 1
    %p45 = por %p43, %p44
    %p46 = scmp.ne.s32.totalorder %s38, %s41
    %p47 = scmp.eq.s32.totalorder %s16, 0
    %p48 = por %p46, %p47
    %p49 = scmp.ne.s32.totalorder %s38, %s41
    %p50 = scmp.eq.s32.totalorder %s21, 1
    %p51 = por %p49, %p50
    %p52 = scmp.ne.s32.totalorder %s41, %s42
    %p53 = scmp.eq.s32.totalorder %s21, 0
    %p54 = por %p52, %p53
    %p55 = scmp.ne.s32.totalorder %s41, %s42
    %p56 = scmp.eq.s32.totalorder %s22, 1
    %p57 = por %p55, %p56
    %p59 = scmp.ne.s32.totalorder %s42, %s58
    %p60 = scmp.eq.s32.totalorder %s22, 0
    %p61 = por %p59, %p60
    %s62 = ssub.s32 %s23, %s35
    %s63 = ssub.s32 %s24, %s31
    %s64 = sor.u32 %s62, %s63
    %p65 = scmp.eq.s32.totalorder %s64, 0
    %s67 = sadd.s32 %s66, 1
    %s68 = scalar_select %p65, %s66, %s67
    %p71 = pneg %p65
    %p72 = scmp.eq.s32.totalorder %s16, 1
    %p73 = por %p71, %p72
    %p74 = scmp.ne.s32.totalorder %s66, %s69
    %p75 = scmp.eq.s32.totalorder %s16, 0
    %p76 = por %p74, %p75
    %p77 = scmp.ne.s32.totalorder %s66, %s69
    %p78 = scmp.eq.s32.totalorder %s21, 1
    %p79 = por %p77, %p78
    %p80 = scmp.ne.s32.totalorder %s69, %s70
    %p81 = scmp.eq.s32.totalorder %s21, 0
    %p82 = por %p80, %p81
    %p83 = scmp.ne.s32.totalorder %s69, %s70
    %p84 = scmp.eq.s32.totalorder %s22, 1
    %p85 = por %p83, %p84
    %p87 = scmp.ne.s32.totalorder %s70, %s86
    %p88 = scmp.eq.s32.totalorder %s22, 0
    %p89 = por %p87, %p88
    %s91 = sadd.s32 %s90, 1
    %p94 = scmp.eq.s32.totalorder %s16, 1
    %p95 = scmp.ne.s32.totalorder %s90, %s92
    %p96 = scmp.eq.s32.totalorder %s16, 0
    %p97 = por %p95, %p96
    %p98 = scmp.ne.s32.totalorder %s90, %s92
    %p99 = scmp.eq.s32.totalorder %s21, 1
    %p100 = por %p98, %p99
    %p101 = scmp.ne.s32.totalorder %s92, %s93
    %p102 = scmp.eq.s32.totalorder %s21, 0
    %p103 = por %p101, %p102
    %p104 = scmp.ne.s32.totalorder %s92, %s93
    %p105 = scmp.eq.s32.totalorder %s22, 1
    %p106 = por %p104, %p105
    %p108 = scmp.ne.s32.totalorder %s93, %s107
    %p109 = scmp.eq.s32.totalorder %s22, 0
    %p110 = por %p108, %p109
    %s112 = sadd.s32 %s111, 1
    %p115 = scmp.eq.s32.totalorder %s16, 1
    %p116 = scmp.ne.s32.totalorder %s111, %s113
    %p117 = scmp.eq.s32.totalorder %s16, 0
    %p118 = por %p116, %p117
    %p119 = scmp.ne.s32.totalorder %s111, %s113
    %p120 = scmp.eq.s32.totalorder %s21, 1
    %p121 = por %p119, %p120
    %p122 = scmp.ne.s32.totalorder %s113, %s114
    %p123 = scmp.eq.s32.totalorder %s21, 0
    %p124 = por %p122, %p123
    %p125 = scmp.ne.s32.totalorder %s113, %s114
    %p126 = scmp.eq.s32.totalorder %s22, 1
    %p127 = por %p125, %p126
    %p129 = scmp.ne.s32.totalorder %s114, %s128
    %p130 = scmp.eq.s32.totalorder %s22, 0
    %p131 = por %p129, %p130
    %s133 = sadd.s32 %s132, 1
    %p136 = scmp.eq.s32.totalorder %s16, 1
    %p137 = scmp.ne.s32.totalorder %s132, %s134
    %p138 = scmp.eq.s32.totalorder %s16, 0
    %p139 = por %p137, %p138
    %p140 = scmp.ne.s32.totalorder %s132, %s134
    %p141 = scmp.eq.s32.totalorder %s21, 1
    %p142 = por %p140, %p141
    %p143 = scmp.ne.s32.totalorder %s134, %s135
    %p144 = scmp.eq.s32.totalorder %s21, 0
    %p145 = por %p143, %p144
    %p146 = scmp.ne.s32.totalorder %s134, %s135
    %p147 = scmp.eq.s32.totalorder %s22, 1
    %p148 = por %p146, %p147
    %p150 = scmp.ne.s32.totalorder %s135, %s149
    %p151 = scmp.eq.s32.totalorder %s22, 0
    %p152 = por %p150, %p151
    %s154 = sadd.s32 %s153, 1
    %p157 = scmp.eq.s32.totalorder %s16, 1
    %p158 = scmp.ne.s32.totalorder %s153, %s155
    %p159 = scmp.eq.s32.totalorder %s16, 0
    %p160 = por %p158, %p159
    %p161 = scmp.ne.s32.totalorder %s153, %s155
    %p162 = scmp.eq.s32.totalorder %s21, 1
    %p163 = por %p161, %p162
    %p164 = scmp.ne.s32.totalorder %s155, %s156
    %p165 = scmp.eq.s32.totalorder %s21, 0
    %p166 = por %p164, %p165
    %p167 = scmp.ne.s32.totalorder %s155, %s156
    %p168 = scmp.eq.s32.totalorder %s22, 1
    %p169 = por %p167, %p168
    %p171 = scmp.ne.s32.totalorder %s156, %s170
    %p172 = scmp.eq.s32.totalorder %s22, 0
    %p173 = por %p171, %p172
    %s175 = sadd.s32 %s174, 1
    %p178 = scmp.eq.s32.totalorder %s16, 1
    %p179 = scmp.ne.s32.totalorder %s174, %s176
    %p180 = scmp.eq.s32.totalorder %s16, 0
    %p181 = por %p179, %p180
    %p182 = scmp.ne.s32.totalorder %s174, %s176
    %p183 = scmp.eq.s32.totalorder %s21, 1
    %p184 = por %p182, %p183
    %p185 = scmp.ne.s32.totalorder %s176, %s177
    %p186 = scmp.eq.s32.totalorder %s21, 0
    %p187 = por %p185, %p186
    %p188 = scmp.ne.s32.totalorder %s176, %s177
    %p189 = scmp.eq.s32.totalorder %s22, 1
    %p190 = por %p188, %p189
    %p192 = scmp.ne.s32.totalorder %s177, %s191
    %p193 = scmp.eq.s32.totalorder %s22, 0
    %p194 = por %p192, %p193
    %s196 = sadd.s32 %s195, 1
    %p199 = scmp.eq.s32.totalorder %s16, 1
    %p200 = scmp.ne.s32.totalorder %s195, %s197
    %p201 = scmp.eq.s32.totalorder %s16, 0
    %p202 = por %p200, %p201
    %p203 = scmp.ne.s32.totalorder %s195, %s197
    %p204 = scmp.eq.s32.totalorder %s21, 1
    %p205 = por %p203, %p204
    %p206 = scmp.ne.s32.totalorder %s197, %s198
    %p207 = scmp.eq.s32.totalorder %s21, 0
    %p208 = por %p206, %p207
    %p209 = scmp.ne.s32.totalorder %s197, %s198
    %p210 = scmp.eq.s32.totalorder %s22, 1
    %p211 = por %p209, %p210
    %p213 = scmp.ne.s32.totalorder %s198, %s212
    %p214 = scmp.eq.s32.totalorder %s22, 0
    %p215 = por %p213, %p214
    %s217 = sadd.s32 %s216, 1
    %p220 = scmp.eq.s32.totalorder %s16, 1
    %p221 = scmp.ne.s32.totalorder %s216, %s218
    %p222 = scmp.eq.s32.totalorder %s16, 0
    %p223 = por %p221, %p222
    %p224 = scmp.ne.s32.totalorder %s216, %s218
    %p225 = scmp.eq.s32.totalorder %s21, 1
    %p226 = por %p224, %p225
    %p227 = scmp.ne.s32.totalorder %s218, %s219
    %p228 = scmp.eq.s32.totalorder %s21, 0
    %p229 = por %p227, %p228
    %p230 = scmp.ne.s32.totalorder %s218, %s219
    %p231 = scmp.eq.s32.totalorder %s22, 1
    %p232 = por %p230, %p231
    %p234 = scmp.ne.s32.totalorder %s219, %s233
    %p235 = scmp.eq.s32.totalorder %s22, 0
    %p236 = por %p234, %p235
    %s237 = ssub.s32 %s23, %s35
    %s238 = ssub.s32 %s24, %s31
    %s239 = sor.u32 %s237, %s238
    %p240 = scmp.eq.s32.totalorder %s239, 0
    %s242 = sadd.s32 %s241, 1
    %s243 = scalar_select %p240, %s241, %s242
    %p246 = pneg %p240
    %p247 = scmp.eq.s32.totalorder %s16, 1
    %p248 = por %p246, %p247
    %p249 = scmp.ne.s32.totalorder %s241, %s244
    %p250 = scmp.eq.s32.totalorder %s16, 0
    %p251 = por %p249, %p250
    %p252 = scmp.ne.s32.totalorder %s241, %s244
    %p253 = scmp.eq.s32.totalorder %s21, 1
    %p254 = por %p252, %p253
    %p255 = scmp.ne.s32.totalorder %s244, %s245
    %p256 = scmp.eq.s32.totalorder %s21, 0
    %p257 = por %p255, %p256
    %p258 = scmp.ne.s32.totalorder %s244, %s245
    %p259 = scmp.eq.s32.totalorder %s22, 1
    %p260 = por %p258, %p259
    %p262 = scmp.ne.s32.totalorder %s245, %s261
    %p263 = scmp.eq.s32.totalorder %s22, 0
    %p264 = por %p262, %p263
    %p265 = scmp.le.s32.totalorder 1, %s16
    %p266 = scmp.lt.s32.totalorder %s16, 3
    %p267 = pnand %p265, %p266
    %p268 = pneg %p267
    // Predicated region
    $region9: #{forward.13} parent=5 // pred_check
      _
    $region10: #{forward.13} parent=5 // pred_check_branch
      %270 = sbr.rel (%p267) target = $region12
    $region11: #{forward.13} parent=5 // pred_region
      %s271 = ssub.s32 %s16, 1
      // Predicated region
      $region13: #{forward.13} parent=11 // pred_check
        %p272 = pneg %p103
      $region14: #{forward.13} parent=11 // pred_check_branch
        %274 = sbr.rel (%p272) target = $region16
      $region15: #{forward.13} parent=11 // pred_region
        _
      $region16: #{forward.13} parent=11 // pred_fallthru
        _
      // Predicated region
      $region17: #{forward.13} parent=11 // pred_check
        %p275 = pneg %p124
      $region18: #{forward.13} parent=11 // pred_check_branch
        %277 = sbr.rel (%p275) target = $region20
      $region19: #{forward.13} parent=11 // pred_region
        _
      $region20: #{forward.13} parent=11 // pred_fallthru
        _
      // Predicated region
      $region21: #{forward.13} parent=11 // pred_check
        %p278 = pneg %p145
      $region22: #{forward.13} parent=11 // pred_check_branch
        %280 = sbr.rel (%p278) target = $region24
      $region23: #{forward.13} parent=11 // pred_region
        _
      $region24: #{forward.13} parent=11 // pred_fallthru
        _
      // Predicated region
      $region25: #{forward.13} parent=11 // pred_check
        %p281 = pneg %p166
      $region26: #{forward.13} parent=11 // pred_check_branch
        %283 = sbr.rel (%p281) target = $region28
      $region27: #{forward.13} parent=11 // pred_region
        _
      $region28: #{forward.13} parent=11 // pred_fallthru
        _
      // Predicated region
      $region29: #{forward.13} parent=11 // pred_check
        %p284 = pneg %p187
      $region30: #{forward.13} parent=11 // pred_check_branch
        %286 = sbr.rel (%p284) target = $region32
      $region31: #{forward.13} parent=11 // pred_region
        _
      $region32: #{forward.13} parent=11 // pred_fallthru
        _
      // Predicated region
      $region33: #{forward.13} parent=11 // pred_check
        %p287 = pneg %p208
      $region34: #{forward.13} parent=11 // pred_check_branch
        %289 = sbr.rel (%p287) target = $region36
      $region35: #{forward.13} parent=11 // pred_region
        _
      $region36: #{forward.13} parent=11 // pred_fallthru
        _
      // Predicated region
      $region37: #{forward.13} parent=11 // pred_check
        %p290 = pneg %p229
      $region38: #{forward.13} parent=11 // pred_check_branch
        %292 = sbr.rel (%p290) target = $region40
      $region39: #{forward.13} parent=11 // pred_region
        _
      $region40: #{forward.13} parent=11 // pred_fallthru
        _
    $region12: #{forward.13} parent=5 // pred_fallthru
      _
    %p293 = scmp.lt.s32.totalorder %s16, 2
    // Predicated region
    $region41: #{forward.13} parent=5 // pred_check
      %p294 = pneg %p293
    $region42: #{forward.13} parent=5 // pred_check_branch
      %296 = sbr.rel (%p294) target = $region44
    $region43: #{forward.13} parent=5 // pred_region
      // Predicated region
      $region45: #{forward.13} parent=43 // pred_check
        %p297 = pneg %p48
      $region46: #{forward.13} parent=43 // pred_check_branch
        %299 = sbr.rel (%p297) target = $region48
      $region47: #{forward.13} parent=43 // pred_region
        %p300 = scmp.lt.s32.totalorder %s23, 1
        %s301 = scalar_select %p300, %s23, 1
        %s302 = smul.addr %s301, 2
        %s303 = smul.addr %s302, 4
        %s304 = scalar_lea.vmem %s0, %s303
      $region48: #{forward.13} parent=43 // pred_fallthru
        _
      // Predicated region
      $region49: #{forward.13} parent=43 // pred_check
        %p305 = pneg %p76
      $region50: #{forward.13} parent=43 // pred_check_branch
        %307 = sbr.rel (%p305) target = $region52
      $region51: #{forward.13} parent=43 // pred_region
        %p308 = scmp.lt.s32.totalorder %s23, 1
        %s309 = scalar_select %p308, %s23, 1
        %p310 = scmp.lt.s32.totalorder %s24, 0
        %s311 = scalar_select %p310, %s24, 0
        %s312 = smul.addr %s311, 2
        %s313 = smul.addr %s309, 2
        %s314 = sadd.s32 %s312, %s313
        %s315 = smul.addr %s314, 4
        %s316 = scalar_lea.vmem %s1, %s315
      $region52: #{forward.13} parent=43 // pred_fallthru
        _
    $region44: #{forward.13} parent=5 // pred_fallthru
      _
    %p317 = scmp.le.s32.totalorder 1, %s16
    %p318 = scmp.lt.s32.totalorder %s16, 3
    %p319 = pnand %p317, %p318
    %p320 = pneg %p319
    // Predicated region
    $region53: #{forward.13} parent=5 // pred_check
      _
    $region54: #{forward.13} parent=5 // pred_check_branch
      %322 = sbr.rel (%p319) target = $region56
    $region55: #{forward.13} parent=5 // pred_region
      %s323 = ssub.s32 %s16, 1
      %p324 = scmp.lt.s32.totalorder %s25, 1
      %s325 = scalar_select %p324, %s25, 1
      %s326 = smul.addr %s325, 2
      %s327 = smul.addr %s326, 4
      %s328 = scalar_lea.vmem %s0, %s327
      %p329 = pneg %p54
      %p330 = pneg %p51
      %p331 = scmp.lt.s32.totalorder %s25, 1
      %s332 = scalar_select %p331, %s25, 1
      %p333 = scmp.lt.s32.totalorder %s26, 0
      %s334 = scalar_select %p333, %s26, 0
      %s335 = smul.addr %s334, 2
      %s336 = smul.addr %s332, 2
      %s337 = sadd.s32 %s335, %s336
      %s338 = smul.addr %s337, 4
      %s339 = scalar_lea.vmem %s1, %s338
      %p340 = pneg %p82
      %p341 = pneg %p79
      %p342 = pneg %p103
      %p343 = pneg %p100
      %p344 = pneg %p124
      %p345 = pneg %p121
      %p346 = pneg %p145
      %p347 = pneg %p142
      %p348 = pneg %p166
      %p349 = pneg %p163
      %p350 = pneg %p187
      %p351 = pneg %p184
      %p352 = pneg %p208
      %p353 = pneg %p205
      %p354 = pneg %p229
      %p355 = pneg %p226
      %p356 = pneg %p257
      %p357 = pneg %p254
      %p358 = scmp.lt.s32.totalorder %s25, 1
      %s359 = scalar_select %p358, %s25, 1
      %p360 = scmp.lt.s32.totalorder %s26, 0
      %s361 = scalar_select %p360, %s26, 0
      %s362 = smul.addr %s361, 2
      %s363 = smul.addr %s359, 2
      %s364 = sadd.s32 %s362, %s363
      %s365 = smul.addr %s364, 8
      %s366 = scalar_lea.vmem %s9, %s365
      %p367 = scmp.lt.s32.totalorder %s25, 1
      %s368 = scalar_select %p367, %s25, 1
      %s369 = smul.addr %s368, 2
      %s370 = smul.addr %s369, 4
      %s371 = scalar_lea.vmem %s0, %s370
      %p372 = scmp.lt.s32.totalorder %s25, 1
      %s373 = scalar_select %p372, %s25, 1
      %p374 = scmp.lt.s32.totalorder %s26, 0
      %s375 = scalar_select %p374, %s26, 0
      %s376 = smul.addr %s375, 2
      %s377 = smul.addr %s373, 2
      %s378 = sadd.s32 %s376, %s377
      %s379 = smul.addr %s378, 4
      %s380 = scalar_lea.vmem %s1, %s379
      %p381 = scmp.lt.s32.totalorder %s25, 1
      %s382 = scalar_select %p381, %s25, 1
      %p383 = scmp.lt.s32.totalorder %s26, 0
      %s384 = scalar_select %p383, %s26, 0
      %s385 = smul.addr %s384, 2
      %s386 = smul.addr %s382, 2
      %s387 = sadd.s32 %s385, %s386
      %s388 = smul.addr %s387, 8
      %s389 = scalar_lea.vmem %s9, %s388
      %p391 = scmp.eq.s32.totalorder %s26, 0
      // Predicated region
      $region57: #{forward.13} parent=55 // pred_check
        %p392 = pneg %p391
      $region58: #{forward.13} parent=55 // pred_check_branch
        %394 = sbr.rel (%p392) target = $region60
      $region59: #{forward.13} parent=55 // pred_region
        %v395 = vld [vmem:[%s371] sm:$0xff]
        %v396 = vld [vmem:[%s4] sm:$0xff]
        %v397 = vld [vmem:[%s4 + $0x8] sm:$0xff]
        %v398 = vld [vmem:[%s4 + $0x10] sm:$0xff]
        %v399 = vld [vmem:[%s4 + $0x18] sm:$0xff]
        %v400 = vld [vmem:[%s5] sm:$0xff]
        %v401 = vld [vmem:[%s5 + $0x8] sm:$0xff]
        %v402 = vld [vmem:[%s5 + $0x10] sm:$0xff]
        %v403 = vld [vmem:[%s5 + $0x18] sm:$0xff]
        %405 = vset.pattern.permute.xlu0 0
        %406 = vperm.xlu0 %405, %v400
        %v407 = vpop.permute.xlu0 %406
        %410 = vset.pattern.permute.xlu0 0
        %411 = vperm.xlu0 %410, %v401
        %v412 = vpop.permute.xlu0 %411
        %415 = vset.pattern.permute.xlu0 0
        %416 = vperm.xlu0 %415, %v402
        %v417 = vpop.permute.xlu0 %416
        %420 = vset.pattern.permute.xlu0 0
        %421 = vperm.xlu0 %420, %v403
        %v422 = vpop.permute.xlu0 %421
        %v428 = vunpack.c.l.b16 %v396
        %v429 = vunpack.c.h.b16 %v396
        %v430 = vunpack.c.l.b16 %v397
        %v431 = vunpack.c.h.b16 %v397
        %v432 = vunpack.c.l.b16 %v398
        %v433 = vunpack.c.h.b16 %v398
        %v434 = vunpack.c.l.b16 %v399
        %v435 = vunpack.c.h.b16 %v399
        %v436 = vpack.c.b16 %v430, %v428
        %v437 = vpack.c.b16 %v431, %v429
        %v438 = vpack.c.b16 %v434, %v432
        %v439 = vpack.c.b16 %v435, %v433
        %v445 = vunpack.c.l.b16 %v395
        %v446 = vunpack.c.h.b16 %v395
        %v447 = vpack.c.b16 %v445, %v445
        %v448 = vpack.c.b16 %v446, %v446
        %451 = vmatpush.bf16.xpose.msra.mxu0 0
        %452 = vmatpush.bf16.xpose.msra.mxu0 0
        %453 = vmatpush.bf16.xpose.msra.mxu0 0
        %454 = vmatpush.bf16.xpose.msra.mxu0 0
        %455 = vmatpush.bf16.xpose.msra.mxu0 0
        %456 = vmatpush.bf16.xpose.msra.mxu0 0
        %457 = vmatpush.bf16.xpose.msra.mxu0 0
        %458 = vmatpush.bf16.xpose.msra.mxu0 %v447
        %459 = vmatmul.bf16.gmra.mxu0 %v436
        %v460 = vpop.f32.mrf.mxu0
        %v461 = vadd.f32 %v407, %v460
        %v462 = vpop.f32.mrf.mxu0
        %v463 = vadd.f32 %v412, %v462
        %464 = vmatmul.bf16.gmra.mxu0 %v438
        %v465 = vpop.f32.mrf.mxu0
        %v466 = vadd.f32 %v417, %v465
        %v467 = vpop.f32.mrf.mxu0
        %v468 = vadd.f32 %v422, %v467
        %469 = vdwg.mxu0
        %470 = vmatpush.bf16.xpose.msra.mxu0 0
        %471 = vmatpush.bf16.xpose.msra.mxu0 0
        %472 = vmatpush.bf16.xpose.msra.mxu0 0
        %473 = vmatpush.bf16.xpose.msra.mxu0 0
        %474 = vmatpush.bf16.xpose.msra.mxu0 0
        %475 = vmatpush.bf16.xpose.msra.mxu0 0
        %476 = vmatpush.bf16.xpose.msra.mxu0 0
        %477 = vmatpush.bf16.xpose.msra.mxu0 %v448
        %478 = vmatmul.bf16.gmra.mxu0 %v437
        %v479 = vpop.f32.mrf.mxu0
        %v480 = vadd.f32 %v461, %v479
        %v481 = vpop.f32.mrf.mxu0
        %v482 = vadd.f32 %v463, %v481
        %483 = vmatmul.bf16.gmra.mxu0 %v439
        %v484 = vpop.f32.mrf.mxu0
        %v485 = vadd.f32 %v466, %v484
        %v486 = vpop.f32.mrf.mxu0
        %v487 = vadd.f32 %v468, %v486
        %488 = vdwg.mxu0
        %v489 = vpack.c.bf16 %v480, %v480
        %v490 = vpack.c.bf16 %v482, %v482
        %v491 = vpack.c.bf16 %v485, %v485
        %v492 = vpack.c.bf16 %v487, %v487
        %vm493 = vcmask 60416
        %494 = vst.msk [vmem:[#allocation2] sm:$0xf] %vm493, %v489
        %495 = vst.msk [vmem:[#allocation2 + $0x4] sm:$0xf] %vm493, %v490
        %496 = vst.msk [vmem:[#allocation2 + $0x8] sm:$0xf] %vm493, %v491
        %497 = vst.msk [vmem:[#allocation2 + $0xc] sm:$0xf] %vm493, %v492
        %v498 = vld [vmem:[%s6] sm:$0xff]
        %v499 = vld [vmem:[%s6 + $0x8] sm:$0xff]
        %v500 = vld [vmem:[%s6 + $0x10] sm:$0xff]
        %v501 = vld [vmem:[%s6 + $0x18] sm:$0xff]
        %v502 = vld [vmem:[%s6 + $0x20] sm:$0xff]
        %v503 = vld [vmem:[%s6 + $0x28] sm:$0xff]
        %v504 = vld [vmem:[%s6 + $0x30] sm:$0xff]
        %v505 = vld [vmem:[%s6 + $0x38] sm:$0xff]
        %v506 = vld [vmem:[%s6 + $0x40] sm:$0xff]
        %v507 = vld [vmem:[%s6 + $0x48] sm:$0xff]
        %v508 = vld [vmem:[%s6 + $0x50] sm:$0xff]
        %v509 = vld [vmem:[%s6 + $0x58] sm:$0xff]
        %v510 = vld [vmem:[%s6 + $0x60] sm:$0xff]
        %v511 = vld [vmem:[%s6 + $0x68] sm:$0xff]
        %v512 = vld [vmem:[%s6 + $0x70] sm:$0xff]
        %v513 = vld [vmem:[%s6 + $0x78] sm:$0xff]
        %v514 = vld [vmem:[%s6 + $0x80] sm:$0xff]
        %v515 = vld [vmem:[%s6 + $0x88] sm:$0xff]
        %v516 = vld [vmem:[%s6 + $0x90] sm:$0xff]
        %v517 = vld [vmem:[%s6 + $0x98] sm:$0xff]
        %v518 = vld [vmem:[%s6 + $0xa0] sm:$0xff]
        %v519 = vld [vmem:[%s6 + $0xa8] sm:$0xff]
        %v520 = vld [vmem:[%s6 + $0xb0] sm:$0xff]
        %v521 = vld [vmem:[%s6 + $0xb8] sm:$0xff]
        %v522 = vld [vmem:[%s6 + $0xc0] sm:$0xff]
        %v523 = vld [vmem:[%s6 + $0xc8] sm:$0xff]
        %v524 = vld [vmem:[%s6 + $0xd0] sm:$0xff]
        %v525 = vld [vmem:[%s6 + $0xd8] sm:$0xff]
        %v526 = vld [vmem:[%s6 + $0xe0] sm:$0xff]
        %v527 = vld [vmem:[%s6 + $0xe8] sm:$0xff]
        %v528 = vld [vmem:[%s6 + $0xf0] sm:$0xff]
        %v529 = vld [vmem:[%s6 + $0xf8] sm:$0xff]
        %v530 = vld [vmem:[%s7] sm:$0x3]
        %v532 = vperm.slane %v530, 0
        %v533 = vperm.slane %v530, 1
        %v568 = vunpack.c.l.b16 %v498
        %v569 = vunpack.c.h.b16 %v498
        %v570 = vunpack.c.l.b16 %v499
        %v571 = vunpack.c.h.b16 %v499
        %v572 = vunpack.c.l.b16 %v500
        %v573 = vunpack.c.h.b16 %v500
        %v574 = vunpack.c.l.b16 %v501
        %v575 = vunpack.c.h.b16 %v501
        %v576 = vunpack.c.l.b16 %v502
        %v577 = vunpack.c.h.b16 %v502
        %v578 = vunpack.c.l.b16 %v503
        %v579 = vunpack.c.h.b16 %v503
        %v580 = vunpack.c.l.b16 %v504
        %v581 = vunpack.c.h.b16 %v504
        %v582 = vunpack.c.l.b16 %v505
        %v583 = vunpack.c.h.b16 %v505
        %v584 = vunpack.c.l.b16 %v506
        %v585 = vunpack.c.h.b16 %v506
        %v586 = vunpack.c.l.b16 %v507
        %v587 = vunpack.c.h.b16 %v507
        %v588 = vunpack.c.l.b16 %v508
        %v589 = vunpack.c.h.b16 %v508
        %v590 = vunpack.c.l.b16 %v509
        %v591 = vunpack.c.h.b16 %v509
        %v592 = vunpack.c.l.b16 %v510
        %v593 = vunpack.c.h.b16 %v510
        %v594 = vunpack.c.l.b16 %v511
        %v595 = vunpack.c.h.b16 %v511
        %v596 = vunpack.c.l.b16 %v512
        %v597 = vunpack.c.h.b16 %v512
        %v598 = vunpack.c.l.b16 %v513
        %v599 = vunpack.c.h.b16 %v513
        %v600 = vunpack.c.l.b16 %v514
        %v601 = vunpack.c.h.b16 %v514
        %v602 = vunpack.c.l.b16 %v515
        %v603 = vunpack.c.h.b16 %v515
        %v604 = vunpack.c.l.b16 %v516
        %v605 = vunpack.c.h.b16 %v516
        %v606 = vunpack.c.l.b16 %v517
        %v607 = vunpack.c.h.b16 %v517
        %v608 = vunpack.c.l.b16 %v518
        %v609 = vunpack.c.h.b16 %v518
        %v610 = vunpack.c.l.b16 %v519
        %v611 = vunpack.c.h.b16 %v519
        %v612 = vunpack.c.l.b16 %v520
        %v613 = vunpack.c.h.b16 %v520
        %v614 = vunpack.c.l.b16 %v521
        %v615 = vunpack.c.h.b16 %v521
        %v616 = vunpack.c.l.b16 %v522
        %v617 = vunpack.c.h.b16 %v522
        %v618 = vunpack.c.l.b16 %v523
        %v619 = vunpack.c.h.b16 %v523
        %v620 = vunpack.c.l.b16 %v524
        %v621 = vunpack.c.h.b16 %v524
        %v622 = vunpack.c.l.b16 %v525
        %v623 = vunpack.c.h.b16 %v525
        %v624 = vunpack.c.l.b16 %v526
        %v625 = vunpack.c.h.b16 %v526
        %v626 = vunpack.c.l.b16 %v527
        %v627 = vunpack.c.h.b16 %v527
        %v628 = vunpack.c.l.b16 %v528
        %v629 = vunpack.c.h.b16 %v528
        %v630 = vunpack.c.l.b16 %v529
        %v631 = vunpack.c.h.b16 %v529
        %v632 = vpack.c.b16 %v570, %v568
        %v633 = vpack.c.b16 %v571, %v569
        %v634 = vpack.c.b16 %v574, %v572
        %v635 = vpack.c.b16 %v575, %v573
        %v636 = vpack.c.b16 %v578, %v576
        %v637 = vpack.c.b16 %v579, %v577
        %v638 = vpack.c.b16 %v582, %v580
        %v639 = vpack.c.b16 %v583, %v581
        %v640 = vpack.c.b16 %v586, %v584
        %v641 = vpack.c.b16 %v587, %v585
        %v642 = vpack.c.b16 %v590, %v588
        %v643 = vpack.c.b16 %v591, %v589
        %v644 = vpack.c.b16 %v594, %v592
        %v645 = vpack.c.b16 %v595, %v593
        %v646 = vpack.c.b16 %v598, %v596
        %v647 = vpack.c.b16 %v599, %v597
        %v648 = vpack.c.b16 %v602, %v600
        %v649 = vpack.c.b16 %v603, %v601
        %v650 = vpack.c.b16 %v606, %v604
        %v651 = vpack.c.b16 %v607, %v605
        %v652 = vpack.c.b16 %v610, %v608
        %v653 = vpack.c.b16 %v611, %v609
        %v654 = vpack.c.b16 %v614, %v612
        %v655 = vpack.c.b16 %v615, %v613
        %v656 = vpack.c.b16 %v618, %v616
        %v657 = vpack.c.b16 %v619, %v617
        %v658 = vpack.c.b16 %v622, %v620
        %v659 = vpack.c.b16 %v623, %v621
        %v660 = vpack.c.b16 %v626, %v624
        %v661 = vpack.c.b16 %v627, %v625
        %v662 = vpack.c.b16 %v630, %v628
        %v663 = vpack.c.b16 %v631, %v629
        %696 = vmatpush.bf16.msra.mxu0 %v646
        %697 = vmatpush.bf16.msra.mxu0 %v644
        %698 = vmatpush.bf16.msra.mxu0 %v642
        %699 = vmatpush.bf16.msra.mxu0 %v640
        %700 = vmatpush.bf16.msra.mxu0 %v638
        %701 = vmatpush.bf16.msra.mxu0 %v636
        %702 = vmatpush.bf16.msra.mxu0 %v634
        %703 = vmatpush.bf16.msra.mxu0 %v632
        %704 = vmatmul.bf16.gmra.mxu0 %v447
        %v705 = vpop.f32.mrf.mxu0
        %v706 = vadd.f32 %v532, %v705
        %v707 = vpop.f32.mrf.mxu0
        %708 = vdwg.mxu0
        %709 = vmatpush.bf16.msra.mxu0 %v662
        %710 = vmatpush.bf16.msra.mxu0 %v660
        %711 = vmatpush.bf16.msra.mxu0 %v658
        %712 = vmatpush.bf16.msra.mxu0 %v656
        %713 = vmatpush.bf16.msra.mxu0 %v654
        %714 = vmatpush.bf16.msra.mxu0 %v652
        %715 = vmatpush.bf16.msra.mxu0 %v650
        %716 = vmatpush.bf16.msra.mxu0 %v648
        %717 = vmatmul.bf16.gmra.mxu0 %v448
        %v718 = vpop.f32.mrf.mxu0
        %v719 = vadd.f32 %v706, %v718
        %v720 = vpop.f32.mrf.mxu0
        %721 = vdwg.mxu0
        %722 = vmatpush.bf16.msra.mxu0 %v647
        %723 = vmatpush.bf16.msra.mxu0 %v645
        %724 = vmatpush.bf16.msra.mxu0 %v643
        %725 = vmatpush.bf16.msra.mxu0 %v641
        %726 = vmatpush.bf16.msra.mxu0 %v639
        %727 = vmatpush.bf16.msra.mxu0 %v637
        %728 = vmatpush.bf16.msra.mxu0 %v635
        %729 = vmatpush.bf16.msra.mxu0 %v633
        %730 = vmatmul.bf16.gmra.mxu0 %v447
        %v731 = vpop.f32.mrf.mxu0
        %v732 = vadd.f32 %v533, %v731
        %v733 = vpop.f32.mrf.mxu0
        %734 = vdwg.mxu0
        %735 = vmatpush.bf16.msra.mxu0 %v663
        %736 = vmatpush.bf16.msra.mxu0 %v661
        %737 = vmatpush.bf16.msra.mxu0 %v659
        %738 = vmatpush.bf16.msra.mxu0 %v657
        %739 = vmatpush.bf16.msra.mxu0 %v655
        %740 = vmatpush.bf16.msra.mxu0 %v653
        %741 = vmatpush.bf16.msra.mxu0 %v651
        %742 = vmatpush.bf16.msra.mxu0 %v649
        %743 = vmatmul.bf16.gmra.mxu0 %v448
        %v744 = vpop.f32.mrf.mxu0
        %v745 = vadd.f32 %v732, %v744
        %v746 = vpop.f32.mrf.mxu0
        %747 = vdwg.mxu0
        %v748 = vpack.c.bf16 %v745, %v719
        %749 = vst [vmem:[#allocation3] sm:$0xff] %v748
      $region60: #{forward.13} parent=55 // pred_fallthru
        _
      %v750 = vld [vmem:[%s380] sm:$0xff]
      %v751 = vld [vmem:[%s2] sm:$0xf]
      %v752 = vld [vmem:[%s2 + $0x4] sm:$0xf]
      %v753 = vld [vmem:[%s2 + $0x8] sm:$0xf]
      %v754 = vld [vmem:[%s2 + $0xc] sm:$0xf]
      %v755 = vld [vmem:[%s2 + $0x10] sm:$0xf]
      %v756 = vld [vmem:[%s2 + $0x14] sm:$0xf]
      %v757 = vld [vmem:[%s2 + $0x18] sm:$0xf]
      %v758 = vld [vmem:[%s2 + $0x1c] sm:$0xf]
      %v759 = vld [vmem:[%s2 + $0x20] sm:$0xf]
      %v760 = vld [vmem:[%s2 + $0x24] sm:$0xf]
      %v761 = vld [vmem:[%s2 + $0x28] sm:$0xf]
      %v762 = vld [vmem:[%s2 + $0x2c] sm:$0xf]
      %v763 = vld [vmem:[%s2 + $0x30] sm:$0xf]
      %v764 = vld [vmem:[%s2 + $0x34] sm:$0xf]
      %v765 = vld [vmem:[%s2 + $0x38] sm:$0xf]
      %v766 = vld [vmem:[%s2 + $0x3c] sm:$0xf]
      %v767 = vld [vmem:[%s2 + $0x40] sm:$0xf]
      %v768 = vld [vmem:[%s2 + $0x44] sm:$0xf]
      %v769 = vld [vmem:[%s2 + $0x48] sm:$0xf]
      %v770 = vld [vmem:[%s2 + $0x4c] sm:$0xf]
      %v771 = vld [vmem:[%s2 + $0x50] sm:$0xf]
      %v772 = vld [vmem:[%s2 + $0x54] sm:$0xf]
      %v773 = vld [vmem:[%s2 + $0x58] sm:$0xf]
      %v774 = vld [vmem:[%s2 + $0x5c] sm:$0xf]
      %v775 = vld [vmem:[%s2 + $0x60] sm:$0xf]
      %v776 = vld [vmem:[%s2 + $0x64] sm:$0xf]
      %v777 = vld [vmem:[%s2 + $0x68] sm:$0xf]
      %v778 = vld [vmem:[%s2 + $0x6c] sm:$0xf]
      %v779 = vld [vmem:[%s2 + $0x70] sm:$0xf]
      %v780 = vld [vmem:[%s2 + $0x74] sm:$0xf]
      %v781 = vld [vmem:[%s2 + $0x78] sm:$0xf]
      %v782 = vld [vmem:[%s2 + $0x7c] sm:$0xf]
      %v783 = vld [vmem:[%s3] sm:$0x1]
      %v785 = vperm.slane %v783, 0
      %v788 = vunpack.c.l.b16 %v750
      %v789 = vunpack.c.h.b16 %v750
      %v790 = vpack.c.b16 %v788, %v788
      %v791 = vpack.c.b16 %v789, %v789
      %v826 = vunpack.c.l.b16 %v751
      %v827 = vunpack.c.l.b16 %v752
      %v828 = vunpack.c.l.b16 %v753
      %v829 = vunpack.c.l.b16 %v754
      %v830 = vunpack.c.l.b16 %v755
      %v831 = vunpack.c.l.b16 %v756
      %v832 = vunpack.c.l.b16 %v757
      %v833 = vunpack.c.l.b16 %v758
      %v834 = vunpack.c.l.b16 %v759
      %v835 = vunpack.c.l.b16 %v760
      %v836 = vunpack.c.l.b16 %v761
      %v837 = vunpack.c.l.b16 %v762
      %v838 = vunpack.c.l.b16 %v763
      %v839 = vunpack.c.l.b16 %v764
      %v840 = vunpack.c.l.b16 %v765
      %v841 = vunpack.c.l.b16 %v766
      %v842 = vunpack.c.l.b16 %v767
      %v843 = vunpack.c.l.b16 %v768
      %v844 = vunpack.c.l.b16 %v769
      %v845 = vunpack.c.l.b16 %v770
      %v846 = vunpack.c.l.b16 %v771
      %v847 = vunpack.c.l.b16 %v772
      %v848 = vunpack.c.l.b16 %v773
      %v849 = vunpack.c.l.b16 %v774
      %v850 = vunpack.c.l.b16 %v775
      %v851 = vunpack.c.l.b16 %v776
      %v852 = vunpack.c.l.b16 %v777
      %v853 = vunpack.c.l.b16 %v778
      %v854 = vunpack.c.l.b16 %v779
      %v855 = vunpack.c.l.b16 %v780
      %v856 = vunpack.c.l.b16 %v781
      %v857 = vunpack.c.l.b16 %v782
      %v858 = vpack.c.b16 %v827, %v826
      %v859 = vpack.c.b16 %v829, %v828
      %v860 = vpack.c.b16 %v831, %v830
      %v861 = vpack.c.b16 %v833, %v832
      %v862 = vpack.c.b16 %v835, %v834
      %v863 = vpack.c.b16 %v837, %v836
      %v864 = vpack.c.b16 %v839, %v838
      %v865 = vpack.c.b16 %v841, %v840
      %v866 = vpack.c.b16 %v843, %v842
      %v867 = vpack.c.b16 %v845, %v844
      %v868 = vpack.c.b16 %v847, %v846
      %v869 = vpack.c.b16 %v849, %v848
      %v870 = vpack.c.b16 %v851, %v850
      %v871 = vpack.c.b16 %v853, %v852
      %v872 = vpack.c.b16 %v855, %v854
      %v873 = vpack.c.b16 %v857, %v856
      %890 = vmatpush.bf16.msra.mxu0 %v865
      %891 = vmatpush.bf16.msra.mxu0 %v864
      %892 = vmatpush.bf16.msra.mxu0 %v863
      %893 = vmatpush.bf16.msra.mxu0 %v862
      %894 = vmatpush.bf16.msra.mxu0 %v861
      %895 = vmatpush.bf16.msra.mxu0 %v860
      %896 = vmatpush.bf16.msra.mxu0 %v859
      %897 = vmatpush.bf16.msra.mxu0 %v858
      %898 = vmatmul.bf16.gmra.mxu0 %v790
      %v899 = vpop.f32.mrf.mxu0
      %v900 = vadd.f32 %v785, %v899
      %v901 = vpop.f32.mrf.mxu0
      %902 = vdwg.mxu0
      %903 = vmatpush.bf16.msra.mxu0 %v873
      %904 = vmatpush.bf16.msra.mxu0 %v872
      %905 = vmatpush.bf16.msra.mxu0 %v871
      %906 = vmatpush.bf16.msra.mxu0 %v870
      %907 = vmatpush.bf16.msra.mxu0 %v869
      %908 = vmatpush.bf16.msra.mxu0 %v868
      %909 = vmatpush.bf16.msra.mxu0 %v867
      %910 = vmatpush.bf16.msra.mxu0 %v866
      %911 = vmatmul.bf16.gmra.mxu0 %v791
      %v912 = vpop.f32.mrf.mxu0
      %v913 = vadd.f32 %v900, %v912
      %v914 = vpop.f32.mrf.mxu0
      %915 = vdwg.mxu0
      %v916 = vpack.c.bf16 %v913, %v913
      %v917 = vld [vmem:[#allocation2] sm:$0xf]
      %v918 = vld [vmem:[#allocation2 + $0x4] sm:$0xf]
      %v919 = vld [vmem:[#allocation2 + $0x8] sm:$0xf]
      %v920 = vld [vmem:[#allocation2 + $0xc] sm:$0xf]
      %v925 = vunpack.c.l.b16 %v917
      %v926 = vunpack.c.l.b16 %v918
      %v927 = vunpack.c.l.b16 %v919
      %v928 = vunpack.c.l.b16 %v920
      %v929 = vpack.c.b16 %v926, %v925
      %v930 = vpack.c.b16 %v928, %v927
      %vm933 = vcmask 261120
      %v935 = vsel %vm933, %v916, 0
      %937 = vmatpush.bf16.msra.mxu0 0
      %938 = vmatpush.bf16.msra.mxu0 0
      %939 = vmatpush.bf16.msra.mxu0 0
      %940 = vmatpush.bf16.msra.mxu0 0
      %941 = vmatpush.bf16.msra.mxu0 0
      %942 = vmatpush.bf16.msra.mxu0 0
      %943 = vmatpush.bf16.msra.mxu0 %v930
      %944 = vmatpush.bf16.msra.mxu0 %v929
      %945 = vmatmul.bf16.gmra.mxu0 %v935
      %v946 = vpop.f32.mrf.mxu0
      %v947 = vadd.f32 0.0, %v946
      %v948 = vpop.f32.mrf.mxu0
      %949 = vdwg.mxu0
      %v950 = vlaneseq
      %v951 = vand.u32 %v950, 127
      %vm952 = vcmp.lt.s32.totalorder %v951, 1
      %v953 = vsel %vm952, %v947, -1e+30
      %vm954 = vcmask 64512
      %v955 = vsel %vm954, %v953, -inf
      %956 = vmax.xlane.f32.xlu0 %v955
      %v957 = vpop.xlane.xlu0 %956
      %v958 = vsub.f32 %v953, %v957
      %v959 = vmul.f32 %v958, 1.442695
      %v960 = vpow.pop %v959
      %v961 = vsel %vm954, %v960, 0.0
      %962 = vadd.xlane.f32.xlu0 %v961
      %v963 = vpop.xlane.xlu0 %962
      %v964 = vrcp.pop %v963
      %v965 = vmul.f32 %v960, %v964
      %v966 = vpack.c.bf16 %v965, %v965
      %v967 = vld [vmem:[#allocation3] sm:$0xff]
      %v969 = vunpack.c.l.b16 %v967
      %v970 = vunpack.c.h.b16 %v967
      %v971 = vpack.c.b16 %v969, %v969
      %v972 = vpack.c.b16 %v970, %v970
      %v974 = vsel %vm954, %v966, 0
      %vm976 = vcmask 1043456
      %v978 = vsel %vm976, %v971, 0
      %v981 = vsel %vm976, %v972, 0
      %983 = vmatpush.bf16.msra.mxu0 0
      %984 = vmatpush.bf16.msra.mxu0 0
      %985 = vmatpush.bf16.msra.mxu0 0
      %986 = vmatpush.bf16.msra.mxu0 0
      %987 = vmatpush.bf16.msra.mxu0 0
      %988 = vmatpush.bf16.msra.mxu0 0
      %989 = vmatpush.bf16.msra.mxu0 0
      %990 = vmatpush.bf16.msra.mxu0 %v978
      %991 = vmatmul.bf16.gmra.mxu0 %v974
      %v992 = vpop.f32.mrf.mxu0
      %v993 = vadd.f32 0.0, %v992
      %v994 = vpop.f32.mrf.mxu0
      %995 = vdwg.mxu0
      %996 = vmatpush.bf16.msra.mxu0 0
      %997 = vmatpush.bf16.msra.mxu0 0
      %998 = vmatpush.bf16.msra.mxu0 0
      %999 = vmatpush.bf16.msra.mxu0 0
      %1000 = vmatpush.bf16.msra.mxu0 0
      %1001 = vmatpush.bf16.msra.mxu0 0
      %1002 = vmatpush.bf16.msra.mxu0 0
      %1003 = vmatpush.bf16.msra.mxu0 %v981
      %1004 = vmatmul.bf16.gmra.mxu0 %v974
      %v1005 = vpop.f32.mrf.mxu0
      %v1006 = vadd.f32 0.0, %v1005
      %v1007 = vpop.f32.mrf.mxu0
      %1008 = vdwg.mxu0
      %s1009 = sld [smem:[#allocation4]]
      %v1010 = vstv %s1009
      %v1011 = vmul.f32 %v1010, %v993
      %v1012 = vmul.f32 %v1010, %v1006
      %v1013 = vunpack.c.l.bf16 %v750
      %v1014 = vunpack.c.h.bf16 %v750
      %v1015 = vadd.f32 %v1011, %v1013
      %v1016 = vadd.f32 %v1012, %v1014
      %1017 = vst [vmem:[%s389] sm:$0xff] %v1015
      %1018 = vst [vmem:[%s389 + $0x8] sm:$0xff] %v1016
      %p1019 = scmp.lt.s32.totalorder %s25, 1
      %s1020 = scalar_select %p1019, %s25, 1
      %p1021 = scmp.lt.s32.totalorder %s26, 0
      %s1022 = scalar_select %p1021, %s26, 0
      %s1023 = smul.addr %s1022, 2
      %s1024 = smul.addr %s1020, 2
      %s1025 = sadd.s32 %s1023, %s1024
      %s1026 = smul.addr %s1025, 8
      %s1027 = scalar_lea.vmem %s9, %s1026
      // Predicated region
      $region61: #{forward.13} parent=55 // pred_check
        %p1028 = pneg %p254
      $region62: #{forward.13} parent=55 // pred_check_branch
        %1030 = sbr.rel (%p1028) target = $region64
      $region63: #{forward.13} parent=55 // pred_region
        _
      $region64: #{forward.13} parent=55 // pred_fallthru
        _
    $region56: #{forward.13} parent=5 // pred_fallthru
      _
    %p1031 = scmp.le.s32.totalorder 2, %s16
    // Predicated region
    $region65: #{forward.13} parent=5 // pred_check
      %p1032 = pneg %p1031
    $region66: #{forward.13} parent=5 // pred_check_branch
      %1034 = sbr.rel (%p1032) target = $region68
    $region67: #{forward.13} parent=5 // pred_region
      %s1035 = ssub.s32 %s16, 2
      // Predicated region
      $region69: #{forward.13} parent=67 // pred_check
        %p1036 = pneg %p260
      $region70: #{forward.13} parent=67 // pred_check_branch
        %1038 = sbr.rel (%p1036) target = $region72
      $region71: #{forward.13} parent=67 // pred_region
        %p1039 = scmp.lt.s32.totalorder %s27, 1
        %s1040 = scalar_select %p1039, %s27, 1
        %p1041 = scmp.lt.s32.totalorder %s28, 0
        %s1042 = scalar_select %p1041, %s28, 0
        %s1043 = smul.addr %s1042, 2
        %s1044 = smul.addr %s1040, 2
        %s1045 = sadd.s32 %s1043, %s1044
        %s1046 = smul.addr %s1045, 8
        %s1047 = scalar_lea.vmem %s9, %s1046
      $region72: #{forward.13} parent=67 // pred_fallthru
        _
    $region68: #{forward.13} parent=5 // pred_fallthru
      _
  $region6: #{forward.13} parent=0 // loop_footer
    %s20 = sadd.s32 1, %s16
  $region7: #{forward.13} parent=0 // loop_footer_branch
    %15 = sbr.rel target = $region3
  $region8: #{forward.13} parent=0 // loop_exit
    _

// kernel: forward.15
$region0: #{forward.15}
  #allocation0 [shape = 'u32[]', space=smem, size = 0x4, offset = 0x4, fixed_abs, tag = 'smem constant byte address 0x4 - core index']
  #allocation1 [shape = 'u32[72,128]{1,0:T(1,128)}', space=vmem, size = 0x9000, scoped, tag = 'internal scratch']
  #allocation2 [shape = 'f32[2,1]{1,0:T(2,128)}', space=vmem, size = 0x400, scoped, tag = 'scratch operand']
  #allocation3 [shape = 'f32[1,1]{1,0:T(1,128)S(1)}', space=vmem, size = 0x200, scoped, tag = 'scoped memory for forward.15']
  %s0 = inlined_call_operand.vmem [shape: f32[2,256], index: 0, kind: input, shape index: {}]
  %s1 = inlined_call_operand.vmem [shape: f32[2,256], index: 1, kind: input, shape index: {}]
  %s2 = inlined_call_operand.vmem [shape: f32[1,256], index: 2, kind: input, shape index: {}]
  %s3 = inlined_call_operand.<no memory space> [shape: f32[1,1], index: 3, kind: input, shape index: {}]
  %s4 = inlined_call_operand.vmem [shape: f32[2,1], index: 4, kind: output, shape index: {}]
  %s5 = sld [smem:[#allocation0]]
  $region34: #{forward.15} parent=0
    _
  %s7 = ssub.s32 1, %s5
  %s8 = scalar_select 0, %s7, %s5
  %v9 = vstv %s3
  %10 = vst [vmem:[#allocation3] sm:$0x1] %v9
  // Predicated region
  $region2: #{forward.15} parent=0 // pred_check
    _
  $region3: #{forward.15} parent=0 // pred_check_branch
    %12 = sbr.rel (0) target = $region5
  $region4: #{forward.15} parent=0 // pred_region
    _
  $region5: #{forward.15} parent=0 // pred_fallthru
    _
  // Predicated region
  $region6: #{forward.15} parent=0 // pred_check
    _
  $region7: #{forward.15} parent=0 // pred_check_branch
    %14 = sbr.rel (0) target = $region9
  $region8: #{forward.15} parent=0 // pred_region
    _
  $region9: #{forward.15} parent=0 // pred_fallthru
    _
  // Predicated region
  $region10: #{forward.15} parent=0 // pred_check
    _
  $region11: #{forward.15} parent=0 // pred_check_branch
    %16 = sbr.rel (0) target = $region13
  $region12: #{forward.15} parent=0 // pred_region
    _
  $region13: #{forward.15} parent=0 // pred_fallthru
    _
  // Predicated region
  $region14: #{forward.15} parent=0 // pred_check
    _
  $region15: #{forward.15} parent=0 // pred_check_branch
    %18 = sbr.rel (0) target = $region17
  $region16: #{forward.15} parent=0 // pred_region
    _
  $region17: #{forward.15} parent=0 // pred_fallthru
    _
  %p19 = scmp.eq.s32.totalorder 0, 0
  // Predicated region
  $region18: #{forward.15} parent=0 // pred_check
    %p20 = pneg %p19
  $region19: #{forward.15} parent=0 // pred_check_branch
    %22 = sbr.rel (%p20) target = $region21
  $region20: #{forward.15} parent=0 // pred_region
    %vm23 = vcmask 1024
    %24 = vst.msk [vmem:[#allocation2] sm:$0x3] %vm23, 0.0
  $region21: #{forward.15} parent=0 // pred_fallthru
    _
  %v25 = vld [vmem:[%s0] sm:$0xf]
  %v26 = vld [vmem:[%s1] sm:$0xf]
  %v27 = vld [vmem:[%s2] sm:$0x3]
  %v29 = vperm.slane %v27, 0
  %v30 = vperm.slane %v27, 1
  %v31 = vrot.slane %v30, 6
  %vm32 = vcmask 1041408
  %v33 = vsel %vm32, %v29, %v31
  %v35 = vadd.f32 %v26, %v33
  %v36 = vmul.f32 %v25, %v35
  %v37 = vld [vmem:[#allocation2] sm:$0x3]
  %39 = vst [vmem:[#allocation1] ss:$4 sm:$0xff] %v36
  %v40 = vld.sshfl [vmem:[#allocation1] sm:$0xff pattern:$0x73625140]
  %v41 = vld.sshfl [vmem:[#allocation1 + $0x8] sm:$0xff pattern:$0x73625140]
  %v44 = vsel %vm32, %v40, 0.0
  %v45 = vsel %vm32, %v41, 0.0
  %v46 = vadd.f32 %v44, %v45
  %47 = vadd.xlane.f32.xlu0 %v46
  %v48 = vpop.xlane.xlu0 %47
  %v49 = vadd.f32 %v37, %v48
  %vm50 = vcmask 1024
  %51 = vst.msk [vmem:[#allocation2] sm:$0x3] %vm50, %v49
  // Predicated region
  $region22: #{forward.15} parent=0 // pred_check
    %p52 = pneg %p19
  $region23: #{forward.15} parent=0 // pred_check_branch
    %54 = sbr.rel (%p52) target = $region25
  $region24: #{forward.15} parent=0 // pred_region
    %v55 = vld [vmem:[#allocation2] sm:$0x3]
    %v56 = vld [vmem:[#allocation3] sm:$0x1]
    %v58 = vperm.slane %v56, 0
    %v60 = vadd.f32 %v55, %v58
    %61 = vst.msk [vmem:[%s4] sm:$0x3] %vm50, %v60
  $region25: #{forward.15} parent=0 // pred_fallthru
    _
  // Predicated region
  $region26: #{forward.15} parent=0 // pred_check
    _
  $region27: #{forward.15} parent=0 // pred_check_branch
    %63 = sbr.rel (0) target = $region29
  $region28: #{forward.15} parent=0 // pred_region
    _
  $region29: #{forward.15} parent=0 // pred_fallthru
    _
  // Predicated region
  $region30: #{forward.15} parent=0 // pred_check
    _
  $region31: #{forward.15} parent=0 // pred_check_branch
    %65 = sbr.rel (0) target = $region33
  $region32: #{forward.15} parent=0 // pred_region
    _
  $region33: #{forward.15} parent=0 // pred_fallthru
    _

</llo_original>
